<compile_context>
chip_gen: v7x
topology: tpu7x:2x2x1
jax: 0.10.0
libtpu: 0.0.40
codegen_flags: <defaults>
</compile_context>

<pallas_src>
import functools

import numpy as np

import jax
import jax.numpy as jnp
from jax import lax
from jax.experimental import pallas as pl
from jax.experimental.pallas import tpu as pltpu


def _round_up(x, m):
    return ((x + m - 1) // m) * m


def _vmem_capacity_bytes():
    try:
        return int(pltpu.get_tpu_info().vmem_capacity_bytes)
    except Exception:
        return 64 * 1024 * 1024            # conservative default (v7x per-TensorCore)


def _choose_tk(K):
    """Reduction tile: multiple of 128, <= 1152 (= 9*128), dividing the 128-padded K."""
    Kp = _round_up(K, 128)
    units = Kp // 128
    best = 1
    for m in range(1, min(units, 9) + 1):
        if units % m == 0:
            best = m
    return 128 * best, Kp


# ----------------------------------------------------------------------------
# Fused conv-as-matmul kernel:  o = mask * relu?( x @ w + bias (+ residual) )
# ----------------------------------------------------------------------------
def _fused_matmul_kernel(x_ref, w_ref, b_ref, m_ref, *rest,
                         relu_mode, has_residual, resident, gk):
    rest = list(rest)
    rc_ref = rest.pop(0) if relu_mode == "cols" else None
    r_ref = rest.pop(0) if has_residual else None
    o_ref, acc_ref = rest
    j = pl.program_id(1)
    k = pl.program_id(2)

    @pl.when(k == 0)
    def _():
        acc_ref[...] = jnp.zeros_like(acc_ref)

    # Resident weight (gi > 1): whole (gj*gk, tk, tn) slab lives in VMEM, pick with a cheap
    # leading-axis dynamic index.  Streamed weight (gi == 1): normal (tk, tn) double-buffered tile.
    w_tile = w_ref[j * gk + k] if resident else w_ref[...]
    acc_ref[...] += jnp.dot(x_ref[...], w_tile, preferred_element_type=jnp.float32)

    @pl.when(k == gk - 1)
    def _():
        out = acc_ref[...] + b_ref[...]                       # folded BN shift (f32 epilogue)
        if has_residual:
            out = out + r_ref[...].astype(jnp.float32)
        if relu_mode == "all":
            out = jnp.maximum(out, 0.0)
        elif relu_mode == "cols":
            out = jnp.where(rc_ref[...] > 0.5, jnp.maximum(out, 0.0), out)
        out = out * m_ref[...]                                # active-row mask LAST
        o_ref[...] = out.astype(o_ref.dtype)


def fused_matmul(x, w, bias, mask, residual=None, relu="none", out_dtype=jnp.bfloat16):
    """x: (N, K) bf16 active-site rows; w: (K, Cout) bf16 BN-folded weight; bias: (1, Cout) f32;
    mask: (N, 1) f32 valid-row indicator; residual: (N, Cout) or None;
    relu: "none" | "all" | (1, Cout) per-column ReLU mask."""
    N, K = x.shape
    Kw, Cout = w.shape
    assert K == Kw
    relu_mode = relu if isinstance(relu, str) else "cols"
    has_residual = residual is not None

    tk, Kp = _choose_tk(K)
    gk = Kp // tk
    Cp = _round_up(Cout, 128)
    if Cp <= 512:
        tn = Cp                                   # gj == 1: one wide lane-dense output tile
    else:
        tn = 512 if Cp % 512 == 0 else (256 if Cp % 256 == 0 else 128)
    gj = Cp // tn

    # Row tile: multiple of 16 (bf16 sublane packing); 512 only on 128-MiB parts, 256 otherwise.
    max_tm = 512 if _vmem_capacity_bytes() >= 100 * 1024 * 1024 else 256
    tm = max_tm if N >= max_tm else _round_up(max(N, 16), 16)
    Np = _round_up(N, tm)
    gi = Np // tm
    # TODO(synk): on 2-TensorCore parts (v7x) force gi >= 2 for large bags so both cores get
    #             "parallel" work; at MIL demo sizes a single row tile is optimal.

    xp = jnp.pad(x.astype(jnp.bfloat16), ((0, Np - N), (0, Kp - K)))
    wp = jnp.pad(w.astype(jnp.bfloat16), ((0, Kp - K), (0, Cp - Cout)))
    bp = jnp.pad(bias.astype(jnp.float32), ((0, 0), (0, Cp - Cout)))
    mp = jnp.pad(mask.astype(jnp.float32), ((0, Np - N), (0, 0)))

    resident = gi > 1                # keep the weight VMEM-resident only when row tiles revisit it
    if resident:
        # (Kp, Cp) -> (gj*gk, tk, tn): leading index = j*gk + k, matching the kernel's slicing.
        w_arg = wp.reshape(gk, tk, gj, tn).transpose(2, 0, 1, 3).reshape(gj * gk, tk, tn)
        w_spec = pl.BlockSpec((gj * gk, tk, tn), lambda i, j, k: (0, 0, 0))
        w_bytes = 2 * gj * gk * tk * tn * 2
    else:
        # Stream (tk, tn) slabs, double-buffered against the MXU -> weight DMA is hidden.
        w_arg = wp
        w_spec = pl.BlockSpec((tk, tn), lambda i, j, k: (k, j))
        w_bytes = 2 * tk * tn * 2

    in_specs = [
        pl.BlockSpec((tm, tk), lambda i, j, k: (i, k)),      # bf16 activation rows
        w_spec,                                              # bf16 BN-folded weight
        pl.BlockSpec((1, tn), lambda i, j, k: (0, j)),       # f32 folded BN shift
        pl.BlockSpec((tm, 1), lambda i, j, k: (i, 0)),       # f32 valid-row mask
    ]
    args = [xp, w_arg, bp, mp]
    if relu_mode == "cols":
        rc = jnp.pad(relu.astype(jnp.float32), ((0, 0), (0, Cp - Cout)))
        in_specs.append(pl.BlockSpec((1, tn), lambda i, j, k: (0, j)))
        args.append(rc)
    if has_residual:
        rp = jnp.pad(residual.astype(jnp.bfloat16), ((0, Np - N), (0, Cp - Cout)))
        in_specs.append(pl.BlockSpec((tm, tn), lambda i, j, k: (i, j)))
        args.append(rp)

    # VMEM limit from the actual footprint (double-buffered streams + f32 acc) with 2x headroom.
    foot = (2 * tm * tk * 2 + w_bytes + 2 * tm * tn * jnp.dtype(out_dtype).itemsize
            + (2 * tm * tn * 2 if has_residual else 0) + tm * tn * 4 + (256 << 10))
    vmem_limit = int(min(max(2 * foot, 16 << 20), 40 << 20))

    out = pl.pallas_call(
        functools.partial(_fused_matmul_kernel, relu_mode=relu_mode,
                          has_residual=has_residual, resident=resident, gk=gk),
        out_shape=jax.ShapeDtypeStruct((Np, Cp), out_dtype),
        grid_spec=pltpu.PrefetchScalarGridSpec(
            num_scalar_prefetch=0,
            grid=(gi, gj, gk),
            in_specs=in_specs,
            out_specs=pl.BlockSpec((tm, tn), lambda i, j, k: (i, j)),
            scratch_shapes=[pltpu.VMEM((tm, tn), jnp.float32)],
        ),
        compiler_params=pltpu.CompilerParams(
            dimension_semantics=("parallel", "parallel", "arbitrary"),
            vmem_limit_bytes=vmem_limit,
        ),
    )(*args)
    return out[:N, :Cout]


def _fused_matmul_ref(x, w, bias, mask, residual=None, relu="none"):
    """Pure-jnp f32 reference for the fused kernel (used for a tolerance check)."""
    out = jnp.dot(x.astype(jnp.float32), w.astype(jnp.float32)) + bias.astype(jnp.float32)
    if residual is not None:
        out = out + residual.astype(jnp.float32)
    if isinstance(relu, str):
        if relu == "all":
            out = jnp.maximum(out, 0.0)
    else:
        out = jnp.where(relu.astype(jnp.float32) > 0.5, jnp.maximum(out, 0.0), out)
    return out * mask.astype(jnp.float32)


# ----------------------------------------------------------------------------
# SparseAdaptiveAvgPool(1): tiled per-batch masked mean over active rows
# ----------------------------------------------------------------------------
def _segment_mean_kernel(oh_ref, rows_ref, cnt_ref, o_ref, acc_ref):
    s = pl.program_id(0)

    @pl.when(s == 0)
    def _():
        acc_ref[...] = jnp.zeros_like(acc_ref)

    acc_ref[...] += jnp.dot(oh_ref[...], rows_ref[...], preferred_element_type=jnp.float32)

    @pl.when(s == pl.num_programs(0) - 1)
    def _():
        o_ref[...] = acc_ref[...] / jnp.maximum(cnt_ref[...], 1.0)


def segment_masked_mean(rows, onehot, counts):
    """rows: (M, C) bf16 active-site features; onehot: (B, M) valid & batch==b indicator;
    counts: (B, 1) active-sites-per-batch.  Returns (B, C) f32 per-batch masked mean."""
    M, C = rows.shape
    B = onehot.shape[0]
    assert C % 128 == 0
    Bp = _round_up(B, 8)                       # 8-sublane LHS (avoids a 2-row MXU layout)
    ts = 256 if M >= 256 else _round_up(M, 8)
    Mp = _round_up(M, ts)
    rows_p = jnp.pad(rows.astype(jnp.bfloat16), ((0, Mp - M), (0, 0)))
    oh_p = jnp.pad(onehot.astype(jnp.bfloat16), ((0, Bp - B), (0, Mp - M)))
    cnt_p = jnp.pad(counts.astype(jnp.float32), ((0, Bp - B), (0, 0)))
    out = pl.pallas_call(
        _segment_mean_kernel,
        out_shape=jax.ShapeDtypeStruct((Bp, C), jnp.float32),
        grid_spec=pltpu.PrefetchScalarGridSpec(
            num_scalar_prefetch=0,
            grid=(Mp // ts,),
            in_specs=[
                pl.BlockSpec((Bp, ts), lambda s: (0, s)),
                pl.BlockSpec((ts, C), lambda s: (s, 0)),
                pl.BlockSpec((Bp, 1), lambda s: (0, 0)),
            ],
            out_specs=pl.BlockSpec((Bp, C), lambda s: (0, 0)),
            scratch_shapes=[pltpu.VMEM((Bp, C), jnp.float32)],
        ),
        compiler_params=pltpu.CompilerParams(dimension_semantics=("arbitrary",)),
    )(oh_p, rows_p, cnt_p)
    return out[:B]


# ----------------------------------------------------------------------------
# Glue: location preprocessing, active-set geometry, neighbour gathers
# ----------------------------------------------------------------------------
def _correct_size_for_convs(size):
    if size < 5:
        size = 5
    if size % 2 == 0:
        size += 1
    if (size // 2) % 2 == 0:
        size += 2
    return size


def preprocess_locations_host(tiles_locations, downmap):
    """Host-side replica of SparseConvMIL's location preprocessing.  Doing the data-dependent
    spatial size on the host removes the mid-graph int() sync so the whole forward jits as ONE
    program per (Sx, Sy)."""
    locs = np.asarray(tiles_locations, np.float32) / float(downmap)
    locs = locs - locs.min(axis=1, keepdims=True)            # per-batch min-shift
    Sx = _correct_size_for_convs(int(locs[..., 0].max()) + 1)
    Sy = _correct_size_for_convs(int(locs[..., 1].max()) + 1)
    xi = locs[..., 0].astype(np.int32)                       # non-negative -> trunc == floor
    yi = locs[..., 1].astype(np.int32)
    # TODO(synk): distinct (Sx, Sy) still recompile downstream shapes; bucketing is NOT
    #             semantics-preserving (it changes boundary clipping of the strided conv).
    return jnp.asarray(xi), jnp.asarray(yi), Sx, Sy


def build_sparse_input(tile_embeddings, xi, yi, Sx, Sy):
    """sparseconvnet InputLayer(mode=4): duplicate integer coordinates are averaged."""
    B, n_tiles, C = tile_embeddings.shape
    T = B * n_tiles
    xi = xi.reshape(-1).astype(jnp.int32)
    yi = yi.reshape(-1).astype(jnp.int32)
    b_idx = jnp.repeat(jnp.arange(B, dtype=jnp.int32), n_tiles)
    feats = tile_embeddings.reshape(-1, C).astype(jnp.float32)

    # Sort-based dedupe (O(T log T)): representative row = first occurrence of each (b, x, y).
    key = (b_idx * Sx + xi) * Sy + yi
    order = jnp.argsort(key, stable=True)
    k_sorted = key[order]
    is_start = jnp.concatenate([jnp.ones((1,), jnp.bool_), k_sorted[1:] != k_sorted[:-1]])
    run_start = lax.cummax(jnp.where(is_start, jnp.arange(T, dtype=jnp.int32), 0), axis=0)
    rep_sorted = order[run_start].astype(jnp.int32)
    rep = jnp.zeros((T,), jnp.int32).at[order].set(rep_sorted)

    acc = jnp.zeros((T, C), jnp.float32).at[rep].add(feats)
    cnt = jnp.zeros((T, 1), jnp.float32).at[rep].add(1.0)
    feats0 = (acc / jnp.maximum(cnt, 1.0)).astype(jnp.bfloat16)   # bf16 active-site rows

    # Geometry-only dense maps (int32 / bool per site): row-index map + active-site mask.
    idx_map0 = jnp.full((B, Sx, Sy), -1, jnp.int32).at[b_idx, xi, yi].set(rep)
    mask0 = jnp.zeros((B, Sx, Sy), jnp.bool_).at[b_idx, xi, yi].set(True)
    return feats0, idx_map0, mask0


def downsample_active_set(mask0, m0cap):
    """Active output sites of a VALID 3x3 stride-2 sparse Convolution / AveragePooling."""
    B, Sx, Sy = mask0.shape
    X2 = (Sx - 3) // 2 + 1
    Y2 = (Sy - 3) // 2 + 1
    m = jnp.zeros((B, X2, Y2), jnp.bool_)
    for dh in range(3):
        for dw in range(3):
            m = m | mask0[:, dh:dh + 2 * X2 - 1:2, dw:dw + 2 * Y2 - 1:2]
    n_act = jnp.sum(m.astype(jnp.int32))
    m1cap = min(B * X2 * Y2, 4 * m0cap)        # each active input activates <= 4 output sites
    (flat_idx,) = jnp.nonzero(m.reshape(-1), size=m1cap, fill_value=0)
    flat_idx = flat_idx.astype(jnp.int32)
    valid = jnp.arange(m1cap, dtype=jnp.int32) < n_act
    b1 = flat_idx // (X2 * Y2)
    rem = flat_idx % (X2 * Y2)
    ox = rem // Y2
    oy = rem % Y2
    row_ids = jnp.where(valid, jnp.arange(m1cap, dtype=jnp.int32), -1)
    idx_map1 = jnp.full((B, X2, Y2), -1, jnp.int32).at[b1, ox, oy].max(row_ids)
    return b1, ox, oy, valid.astype(jnp.float32)[:, None], idx_map1, (X2, Y2)


def strided_neighbor_idx(idx_map0, b1, ox, oy):
    """Tap t=3*dh+dw of a VALID stride-2 3x3 conv reads input site (2*ox+dh, 2*oy+dw)."""
    d = jnp.arange(3, dtype=jnp.int32)
    hh = (2 * ox)[:, None, None] + d[None, :, None]
    ww = (2 * oy)[:, None, None] + d[None, None, :]
    idx = idx_map0[b1[:, None, None], hh, ww]       # in-bounds by construction of X2/Y2
    return idx.reshape(idx.shape[0], 9)


def submanifold_neighbor_idx(idx_map1, b1, ox, oy, X2, Y2):
    """Tap t=3*dh+dw of a SAME submanifold 3x3 conv reads site (ox+dh-1, oy+dw-1)."""
    d = jnp.arange(-1, 2, dtype=jnp.int32)
    hh = ox[:, None, None] + d[None, :, None]
    ww = oy[:, None, None] + d[None, None, :]
    inb = (hh >= 0) & (hh < X2) & (ww >= 0) & (ww < Y2)
    idx = idx_map1[b1[:, None, None], jnp.clip(hh, 0, X2 - 1), jnp.clip(ww, 0, Y2 - 1)]
    idx = jnp.where(inb, idx, -1)
    return idx.reshape(idx.shape[0], 9)


def gather_patches(rows, nbr_idx):
    """Gather 3x3 neighbourhood rows (missing / inactive neighbours are zero): (M, 9*C)."""
    # TODO(synk): for very large bags, fuse this 9-tap gather into the matmul kernel via
    #             scalar-prefetched nbr_idx + in-kernel DMA so the (M, 9*C) patch tensor never
    #             hits HBM; at MIL sizes the weight DMA dominates so this stays in XLA.
    M, C = rows.shape
    rows_ext = jnp.concatenate([rows, jnp.zeros((1, C), rows.dtype)], axis=0)
    safe = jnp.where(nbr_idx >= 0, nbr_idx, M)
    return rows_ext[safe].reshape(nbr_idx.shape[0], 9 * C)


# ----------------------------------------------------------------------------
# resnet18 layer4 as two SparseBasicBlocks evaluated on the active-site rows
# ----------------------------------------------------------------------------
def sparse_resnet_layer4(feats0, nbr_strided, nbr_sub, valid1, params, mm):
    p0, p1 = params['block0'], params['block1']

    # --- block 0: SparseBasicBlock(256, 512, stride=2) ---
    patches = gather_patches(feats0, nbr_strided)                             # (M1, 9*256) bf16
    # conv1+bn1+relu1 and the identity branch (AveragePooling(3,s2)/9 -> 1x1 convd -> bnd) fused
    # into ONE matmul over the same patches: pooled9 @ wd == patches @ tile(wd,(9,1))/9.
    y = mm(patches, p0['w1d'], p0['b1d'], valid1, relu=p0['relu1d'])          # (M1, 1024)
    a, idt = y[:, :512], y[:, 512:]
    # conv2 (submanifold 3x3) + bn2 + identity + relu2
    x1 = mm(gather_patches(a, nbr_sub), p0['w2'], p0['b2'], valid1, residual=idt, relu="all")

    # --- block 1: SparseBasicBlock(512, 512, stride=1) ---
    a2 = mm(gather_patches(x1, nbr_sub), p1['w1'], p1['b1'], valid1, relu="all")
    x2 = mm(gather_patches(a2, nbr_sub), p1['w2'], p1['b2'], valid1, residual=x1, relu="all")
    return x2


@functools.partial(jax.jit, static_argnums=(4, 5, 6))
def _forward_core(params, tile_embeddings, xi, yi, Sx, Sy, use_pallas):
    B, n_tiles, _ = tile_embeddings.shape
    mm = fused_matmul if use_pallas else _fused_matmul_ref

    feats0, idx_map0, mask0 = build_sparse_input(tile_embeddings, xi, yi, Sx, Sy)
    b1, ox, oy, valid1, idx_map1, (X2, Y2) = downsample_active_set(mask0, B * n_tiles)
    nbr_strided = strided_neighbor_idx(idx_map0, b1, ox, oy)
    nbr_sub = submanifold_neighbor_idx(idx_map1, b1, ox, oy, X2, Y2)

    x2 = sparse_resnet_layer4(feats0, nbr_strided, nbr_sub, valid1, params, mm)   # (M1, 512)

    # SparseAdaptiveAvgPool(1): per-batch mean over ACTIVE sites
    onehot = (jnp.arange(B, dtype=jnp.int32)[:, None] == b1[None, :]).astype(jnp.float32)
    onehot = onehot * valid1[:, 0][None, :]
    counts = jnp.sum(onehot, axis=1, keepdims=True)                               # (B, 1)
    if use_pallas:
        pooled = segment_masked_mean(x2, onehot, counts)                          # (B, 512) f32
    else:
        pooled = jnp.dot(onehot, x2.astype(jnp.float32)) / jnp.maximum(counts, 1.0)

    # Linear(512, n_classes, bias=False): too small to be worth a pallas_call -> plain XLA matmul
    return jnp.dot(pooled, params['w_cls'])


def full_sparse_conv_mil_forward(params, tile_embeddings, tiles_locations, downmap,
                                 use_pallas=True):
    xi, yi, Sx, Sy = preprocess_locations_host(tiles_locations, downmap)
    return _forward_core(params, tile_embeddings, xi, yi, Sx, Sy, use_pallas)


# ----------------------------------------------------------------------------
# Deterministic parameter init (shapes fixed by resnet18 layer4: 256 -> 512), BN pre-folded
# ----------------------------------------------------------------------------
def init_params(key, n_classes):
    keys = jax.random.split(key, 6)

    def conv_bn(k, kin, cout):
        kw, k1, k2, k3, k4 = jax.random.split(k, 5)
        w = jax.random.normal(kw, (kin, cout), jnp.float32) / jnp.sqrt(float(kin))
        gamma = 1.0 + 0.1 * jax.random.normal(k1, (cout,), jnp.float32)
        beta = 0.1 * jax.random.normal(k2, (cout,), jnp.float32)
        mean = 0.1 * jax.random.normal(k3, (cout,), jnp.float32)
        var = jax.random.uniform(k4, (cout,), jnp.float32, minval=0.5, maxval=1.5)
        scale = gamma / jnp.sqrt(var + 1e-5)
        shift = beta - mean * scale
        return w * scale[None, :], shift[None, :]      # folded f32 weight + f32 shift row

    # TODO(synk): pretrained ImageNet weights replaced by deterministic random init; if real
    #             sparseconvnet weights are ever loaded, validate the tap-major (9*C, Cout)
    #             flattening order against gather_patches.
    w1, b1 = conv_bn(keys[0], 9 * 256, 512)   # Convolution(2, 256, 512, 3, stride 2) + bn1
    w2, b2 = conv_bn(keys[1], 9 * 512, 512)   # SubmanifoldConvolution(2, 512, 512, 3) + bn2
    wd, bd = conv_bn(keys[2], 256, 512)       # SubmanifoldConvolution(2, 256, 512, 1) + bnd
    # Fuse conv1 and the AveragePooling(/9) + 1x1 downsample branch into a single (2304, 1024)
    # bf16 weight; first 512 output columns get ReLU, last 512 (identity branch) do not.
    w1d = jnp.concatenate([w1, jnp.tile(wd / 9.0, (9, 1))], axis=1).astype(jnp.bfloat16)
    b1d = jnp.concatenate([b1, bd], axis=1).astype(jnp.float32)
    relu1d = jnp.concatenate([jnp.ones((1, 512), jnp.float32),
                              jnp.zeros((1, 512), jnp.float32)], axis=1)
    block0 = {'w1d': w1d, 'b1d': b1d, 'relu1d': relu1d,
              'w2': w2.astype(jnp.bfloat16), 'b2': b2.astype(jnp.float32)}

    w1b, b1b = conv_bn(keys[3], 9 * 512, 512)
    w2b, b2b = conv_bn(keys[4], 9 * 512, 512)
    block1 = {'w1': w1b.astype(jnp.bfloat16), 'b1': b1b.astype(jnp.float32),
              'w2': w2b.astype(jnp.bfloat16), 'b2': b2b.astype(jnp.float32)}
    w_cls = jax.random.normal(keys[5], (512, n_classes), jnp.float32) / jnp.sqrt(512.0)
    return {'block0': block0, 'block1': block1, 'w_cls': w_cls}


if __name__ == "__main__":
    key = jax.random.PRNGKey(0)
    k_params, k_emb, k_loc = jax.random.split(key, 3)

    B, n_tiles, C_in, n_classes, downmap = 2, 8, 256, 4, 8
    params = init_params(k_params, n_classes)
    tile_embeddings = jax.random.normal(k_emb, (B, n_tiles, C_in), jnp.float32)
    tiles_locations = jax.random.uniform(k_loc, (B, n_tiles, 2), jnp.float32,
                                         minval=0.0, maxval=40.0)

    logits = full_sparse_conv_mil_forward(params, tile_embeddings, tiles_locations, downmap)
    logits = jax.block_until_ready(logits)
    assert logits.shape == (B, n_classes) and logits.dtype == jnp.float32

    # Tolerance check vs a pure-jnp f32 reference (same geometry, no Pallas): catches tiling /
    # padding / epilogue bugs; tolerance covers bf16 activation rounding.
    ref = full_sparse_conv_mil_forward(params, tile_embeddings, tiles_locations, downmap,
                                       use_pallas=False)
    ref = jax.block_until_ready(ref)
    np.testing.assert_allclose(np.asarray(logits), np.asarray(ref), rtol=5e-2, atol=1e-1)

    print("KERNEL_OK")
</pallas_src>

<mosaic_0001>
module attributes {stable_mosaic.version = 11 : i64} {
  func.func private @main(%arg0: i32) attributes {dimension_semantics = [#tpu.dimension_semantics<core_parallel>], iteration_bounds = array<i64: 2>, tpu.core_type = #tpu.core_type<sc_scalar_subcore>, window_params = []} {
    return
  }
}

module attributes {stable_mosaic.version = 11 : i64} {
  func.func private @main(%arg0: i32) attributes {dimension_semantics = [#tpu.dimension_semantics<core_parallel>], iteration_bounds = array<i64: 2>, tpu.core_type = #tpu.core_type<sc_scalar_subcore>, window_params = []} {
    return
  }
}

module attributes {stable_mosaic.version = 11 : i64} {
  func.func @_fused_matmul_kernel(%arg0: i32, %arg1: i32, %arg2: i32, %arg3: memref<32x1152xbf16, #tpu.memory_space<vmem>>, %arg4: memref<1152x512xbf16, #tpu.memory_space<vmem>>, %arg5: memref<1x512xf32, #tpu.memory_space<vmem>>, %arg6: memref<32x1xf32, #tpu.memory_space<vmem>>, %arg7: memref<1x512xf32, #tpu.memory_space<vmem>>, %arg8: memref<32x512xbf16, #tpu.memory_space<vmem>>, %arg9: memref<32x512xf32, #tpu.memory_space<vmem>>) attributes {dimension_semantics = [#tpu.dimension_semantics<parallel>, #tpu.dimension_semantics<parallel>, #tpu.dimension_semantics<arbitrary>], iteration_bounds = array<i64: 1, 2, 2>, scalar_prefetch = 0 : i64, scratch_operands = 1 : i64, tpu.core_type = #tpu.core_type<tc>, window_params = [{transform_indices = @transform_0, window_bounds = array<i64: 32, 1152>}, {transform_indices = @transform_1, window_bounds = array<i64: 1152, 512>}, {transform_indices = @transform_2, window_bounds = array<i64: 1, 512>}, {transform_indices = @transform_3, window_bounds = array<i64: 32, 1>}, {transform_indices = @transform_4, window_bounds = array<i64: 1, 512>}, {transform_indices = @transform_5, window_bounds = array<i64: 32, 512>}]} {
    %c0_i32 = arith.constant 0 : i32
    %0 = arith.cmpi eq, %arg2, %c0_i32 : i32
    %1 = arith.extui %0 : i1 to i32
    %c0_i32_0 = arith.constant 0 : i32
    %2 = arith.cmpi ne, %1, %c0_i32_0 : i32
    scf.if %2 {
      %cst_9 = arith.constant 0.000000e+00 : f32
      %12 = vector.broadcast %cst_9 : f32 to vector<32x512xf32>
      %c0_10 = arith.constant 0 : index
      %c0_11 = arith.constant 0 : index
      %13 = vector.load %arg9[%c0_10, %c0_11] : memref<32x512xf32, #tpu.memory_space<vmem>>, vector<32x512xf32>
      tpu.vector_store %arg9[%c0_10, %c0_11], %12 {strides = array<i32>} : memref<32x512xf32, #tpu.memory_space<vmem>>, vector<32x512xf32>,
    } else {
    }
    %c0 = arith.constant 0 : index
    %c0_1 = arith.constant 0 : index
    %3 = vector.load %arg4[%c0, %c0_1] : memref<1152x512xbf16, #tpu.memory_space<vmem>>, vector<1152x512xbf16>
    %c0_2 = arith.constant 0 : index
    %c0_3 = arith.constant 0 : index
    %4 = vector.load %arg9[%c0_2, %c0_3] : memref<32x512xf32, #tpu.memory_space<vmem>>, vector<32x512xf32>
    %c0_4 = arith.constant 0 : index
    %c0_5 = arith.constant 0 : index
    %5 = vector.load %arg3[%c0_4, %c0_5] : memref<32x1152xbf16, #tpu.memory_space<vmem>>, vector<32x1152xbf16>
    %cst = arith.constant dense<0.000000e+00> : vector<32x512xf32>
    %6 = tpu.matmul %5, %3, %cst {dimension_numbers = #tpu.dot_dimension_numbers<[1], [0], [0], [1], [0, 0, 1, 1], [], []>} : vector<32x1152xbf16>, vector<1152x512xbf16>, vector<32x512xf32> -> vector<32x512xf32>
    %7 = arith.addf %4, %6 : vector<32x512xf32>
    %c0_6 = arith.constant 0 : index
    %c0_7 = arith.constant 0 : index
    %8 = vector.load %arg9[%c0_6, %c0_7] : memref<32x512xf32, #tpu.memory_space<vmem>>, vector<32x512xf32>
    tpu.vector_store %arg9[%c0_6, %c0_7], %7 {strides = array<i32>} : memref<32x512xf32, #tpu.memory_space<vmem>>, vector<32x512xf32>,
    %c1_i32 = arith.constant 1 : i32
    %9 = arith.cmpi eq, %arg2, %c1_i32 : i32
    %10 = arith.extui %9 : i1 to i32
    %c0_i32_8 = arith.constant 0 : i32
    %11 = arith.cmpi ne, %10, %c0_i32_8 : i32
    scf.if %11 {
      %c0_9 = arith.constant 0 : index
      %c0_10 = arith.constant 0 : index
      %12 = vector.load %arg9[%c0_9, %c0_10] : memref<32x512xf32, #tpu.memory_space<vmem>>, vector<32x512xf32>
      %c0_11 = arith.constant 0 : index
      %c0_12 = arith.constant 0 : index
      %13 = vector.load %arg5[%c0_11, %c0_12] : memref<1x512xf32, #tpu.memory_space<vmem>>, vector<1x512xf32>
      %14 = vector.broadcast %13 : vector<1x512xf32> to vector<32x512xf32>
      %15 = arith.addf %12, %14 : vector<32x512xf32>
      %c0_13 = arith.constant 0 : index
      %c0_14 = arith.constant 0 : index
      %16 = vector.load %arg7[%c0_13, %c0_14] : memref<1x512xf32, #tpu.memory_space<vmem>>, vector<1x512xf32>
      %cst_15 = arith.constant 5.000000e-01 : f32
      %17 = vector.broadcast %cst_15 : f32 to vector<1x512xf32>
      %18 = arith.cmpf ogt, %16, %17 : vector<1x512xf32>
      %cst_16 = arith.constant 0.000000e+00 : f32
      %19 = vector.broadcast %cst_16 : f32 to vector<32x512xf32>
      %20 = arith.maximumf %15, %19 : vector<32x512xf32>
      %21 = vector.shape_cast %18 : vector<1x512xi1> to vector<1x512xi1>
      %22 = vector.broadcast %21 : vector<1x512xi1> to vector<32x512xi1>
      %23 = arith.select %22, %20, %15 : vector<32x512xi1>, vector<32x512xf32>
      %c0_17 = arith.constant 0 : index
      %c0_18 = arith.constant 0 : index
      %24 = vector.load %arg6[%c0_17, %c0_18] : memref<32x1xf32, #tpu.memory_space<vmem>>, vector<32x1xf32>
      %25 = vector.broadcast %24 : vector<32x1xf32> to vector<32x512xf32>
      %26 = arith.mulf %23, %25 : vector<32x512xf32>
      %27 = arith.truncf %26 : vector<32x512xf32> to vector<32x512xbf16>
      %c0_19 = arith.constant 0 : index
      %c0_20 = arith.constant 0 : index
      %28 = vector.load %arg8[%c0_19, %c0_20] : memref<32x512xbf16, #tpu.memory_space<vmem>>, vector<32x512xbf16>
      tpu.vector_store %arg8[%c0_19, %c0_20], %27 {strides = array<i32>} : memref<32x512xbf16, #tpu.memory_space<vmem>>, vector<32x512xbf16>,
    } else {
    }
    return
  }
  func.func @transform_0(%arg0: i32, %arg1: i32, %arg2: i32) -> (i32, i32) {
    %c0_i32 = arith.constant 0 : i32
    return %arg0, %arg2 : i32, i32
  }
  func.func @transform_1(%arg0: i32, %arg1: i32, %arg2: i32) -> (i32, i32) {
    %c0_i32 = arith.constant 0 : i32
    return %arg2, %arg1 : i32, i32
  }
  func.func @transform_2(%arg0: i32, %arg1: i32, %arg2: i32) -> (i32, i32) {
    %c0_i32 = arith.constant 0 : i32
    %c0_i32_0 = arith.constant 0 : i32
    return %c0_i32, %arg1 : i32, i32
  }
  func.func @transform_3(%arg0: i32, %arg1: i32, %arg2: i32) -> (i32, i32) {
    %c0_i32 = arith.constant 0 : i32
    %c0_i32_0 = arith.constant 0 : i32
    return %arg0, %c0_i32 : i32, i32
  }
  func.func @transform_4(%arg0: i32, %arg1: i32, %arg2: i32) -> (i32, i32) {
    %c0_i32 = arith.constant 0 : i32
    %c0_i32_0 = arith.constant 0 : i32
    return %c0_i32, %arg1 : i32, i32
  }
  func.func @transform_5(%arg0: i32, %arg1: i32, %arg2: i32) -> (i32, i32) {
    %c0_i32 = arith.constant 0 : i32
    return %arg0, %arg1 : i32, i32
  }
}

module attributes {stable_mosaic.version = 11 : i64} {
  func.func @_fused_matmul_kernel(%arg0: i32, %arg1: i32, %arg2: i32, %arg3: memref<32x1152xbf16, #tpu.memory_space<vmem>>, %arg4: memref<1152x512xbf16, #tpu.memory_space<vmem>>, %arg5: memref<1x512xf32, #tpu.memory_space<vmem>>, %arg6: memref<32x1xf32, #tpu.memory_space<vmem>>, %arg7: memref<32x512xbf16, #tpu.memory_space<vmem>>, %arg8: memref<32x512xbf16, #tpu.memory_space<vmem>>, %arg9: memref<32x512xf32, #tpu.memory_space<vmem>>) attributes {dimension_semantics = [#tpu.dimension_semantics<parallel>, #tpu.dimension_semantics<parallel>, #tpu.dimension_semantics<arbitrary>], iteration_bounds = array<i64: 1, 1, 4>, scalar_prefetch = 0 : i64, scratch_operands = 1 : i64, tpu.core_type = #tpu.core_type<tc>, window_params = [{transform_indices = @transform_0, window_bounds = array<i64: 32, 1152>}, {transform_indices = @transform_1, window_bounds = array<i64: 1152, 512>}, {transform_indices = @transform_2, window_bounds = array<i64: 1, 512>}, {transform_indices = @transform_3, window_bounds = array<i64: 32, 1>}, {transform_indices = @transform_4, window_bounds = array<i64: 32, 512>}, {transform_indices = @transform_5, window_bounds = array<i64: 32, 512>}]} {
    %c0_i32 = arith.constant 0 : i32
    %0 = arith.cmpi eq, %arg2, %c0_i32 : i32
    %1 = arith.extui %0 : i1 to i32
    %c0_i32_0 = arith.constant 0 : i32
    %2 = arith.cmpi ne, %1, %c0_i32_0 : i32
    scf.if %2 {
      %cst_9 = arith.constant 0.000000e+00 : f32
      %12 = vector.broadcast %cst_9 : f32 to vector<32x512xf32>
      %c0_10 = arith.constant 0 : index
      %c0_11 = arith.constant 0 : index
      %13 = vector.load %arg9[%c0_10, %c0_11] : memref<32x512xf32, #tpu.memory_space<vmem>>, vector<32x512xf32>
      tpu.vector_store %arg9[%c0_10, %c0_11], %12 {strides = array<i32>} : memref<32x512xf32, #tpu.memory_space<vmem>>, vector<32x512xf32>,
    } else {
    }
    %c0 = arith.constant 0 : index
    %c0_1 = arith.constant 0 : index
    %3 = vector.load %arg4[%c0, %c0_1] : memref<1152x512xbf16, #tpu.memory_space<vmem>>, vector<1152x512xbf16>
    %c0_2 = arith.constant 0 : index
    %c0_3 = arith.constant 0 : index
    %4 = vector.load %arg9[%c0_2, %c0_3] : memref<32x512xf32, #tpu.memory_space<vmem>>, vector<32x512xf32>
    %c0_4 = arith.constant 0 : index
    %c0_5 = arith.constant 0 : index
    %5 = vector.load %arg3[%c0_4, %c0_5] : memref<32x1152xbf16, #tpu.memory_space<vmem>>, vector<32x1152xbf16>
    %cst = arith.constant dense<0.000000e+00> : vector<32x512xf32>
    %6 = tpu.matmul %5, %3, %cst {dimension_numbers = #tpu.dot_dimension_numbers<[1], [0], [0], [1], [0, 0, 1, 1], [], []>} : vector<32x1152xbf16>, vector<1152x512xbf16>, vector<32x512xf32> -> vector<32x512xf32>
    %7 = arith.addf %4, %6 : vector<32x512xf32>
    %c0_6 = arith.constant 0 : index
    %c0_7 = arith.constant 0 : index
    %8 = vector.load %arg9[%c0_6, %c0_7] : memref<32x512xf32, #tpu.memory_space<vmem>>, vector<32x512xf32>
    tpu.vector_store %arg9[%c0_6, %c0_7], %7 {strides = array<i32>} : memref<32x512xf32, #tpu.memory_space<vmem>>, vector<32x512xf32>,
    %c3_i32 = arith.constant 3 : i32
    %9 = arith.cmpi eq, %arg2, %c3_i32 : i32
    %10 = arith.extui %9 : i1 to i32
    %c0_i32_8 = arith.constant 0 : i32
    %11 = arith.cmpi ne, %10, %c0_i32_8 : i32
    scf.if %11 {
      %c0_9 = arith.constant 0 : index
      %c0_10 = arith.constant 0 : index
      %12 = vector.load %arg9[%c0_9, %c0_10] : memref<32x512xf32, #tpu.memory_space<vmem>>, vector<32x512xf32>
      %c0_11 = arith.constant 0 : index
      %c0_12 = arith.constant 0 : index
      %13 = vector.load %arg5[%c0_11, %c0_12] : memref<1x512xf32, #tpu.memory_space<vmem>>, vector<1x512xf32>
      %14 = vector.broadcast %13 : vector<1x512xf32> to vector<32x512xf32>
      %15 = arith.addf %12, %14 : vector<32x512xf32>
      %c0_13 = arith.constant 0 : index
      %c0_14 = arith.constant 0 : index
      %16 = vector.load %arg7[%c0_13, %c0_14] : memref<32x512xbf16, #tpu.memory_space<vmem>>, vector<32x512xbf16>
      %17 = arith.extf %16 : vector<32x512xbf16> to vector<32x512xf32>
      %18 = arith.addf %15, %17 : vector<32x512xf32>
      %cst_15 = arith.constant 0.000000e+00 : f32
      %19 = vector.broadcast %cst_15 : f32 to vector<32x512xf32>
      %20 = arith.maximumf %18, %19 : vector<32x512xf32>
      %c0_16 = arith.constant 0 : index
      %c0_17 = arith.constant 0 : index
      %21 = vector.load %arg6[%c0_16, %c0_17] : memref<32x1xf32, #tpu.memory_space<vmem>>, vector<32x1xf32>
      %22 = vector.broadcast %21 : vector<32x1xf32> to vector<32x512xf32>
      %23 = arith.mulf %20, %22 : vector<32x512xf32>
      %24 = arith.truncf %23 : vector<32x512xf32> to vector<32x512xbf16>
      %c0_18 = arith.constant 0 : index
      %c0_19 = arith.constant 0 : index
      %25 = vector.load %arg8[%c0_18, %c0_19] : memref<32x512xbf16, #tpu.memory_space<vmem>>, vector<32x512xbf16>
      tpu.vector_store %arg8[%c0_18, %c0_19], %24 {strides = array<i32>} : memref<32x512xbf16, #tpu.memory_space<vmem>>, vector<32x512xbf16>,
    } else {
    }
    return
  }
  func.func @transform_0(%arg0: i32, %arg1: i32, %arg2: i32) -> (i32, i32) {
    %c0_i32 = arith.constant 0 : i32
    return %arg0, %arg2 : i32, i32
  }
  func.func @transform_1(%arg0: i32, %arg1: i32, %arg2: i32) -> (i32, i32) {
    %c0_i32 = arith.constant 0 : i32
    return %arg2, %arg1 : i32, i32
  }
  func.func @transform_2(%arg0: i32, %arg1: i32, %arg2: i32) -> (i32, i32) {
    %c0_i32 = arith.constant 0 : i32
    %c0_i32_0 = arith.constant 0 : i32
    return %c0_i32, %arg1 : i32, i32
  }
  func.func @transform_3(%arg0: i32, %arg1: i32, %arg2: i32) -> (i32, i32) {
    %c0_i32 = arith.constant 0 : i32
    %c0_i32_0 = arith.constant 0 : i32
    return %arg0, %c0_i32 : i32, i32
  }
  func.func @transform_4(%arg0: i32, %arg1: i32, %arg2: i32) -> (i32, i32) {
    %c0_i32 = arith.constant 0 : i32
    return %arg0, %arg1 : i32, i32
  }
  func.func @transform_5(%arg0: i32, %arg1: i32, %arg2: i32) -> (i32, i32) {
    %c0_i32 = arith.constant 0 : i32
    return %arg0, %arg1 : i32, i32
  }
}

module attributes {stable_mosaic.version = 11 : i64} {
  func.func @_fused_matmul_kernel(%arg0: i32, %arg1: i32, %arg2: i32, %arg3: memref<32x1152xbf16, #tpu.memory_space<vmem>>, %arg4: memref<1152x512xbf16, #tpu.memory_space<vmem>>, %arg5: memref<1x512xf32, #tpu.memory_space<vmem>>, %arg6: memref<32x1xf32, #tpu.memory_space<vmem>>, %arg7: memref<32x512xbf16, #tpu.memory_space<vmem>>, %arg8: memref<32x512xf32, #tpu.memory_space<vmem>>) attributes {dimension_semantics = [#tpu.dimension_semantics<parallel>, #tpu.dimension_semantics<parallel>, #tpu.dimension_semantics<arbitrary>], iteration_bounds = array<i64: 1, 1, 4>, scalar_prefetch = 0 : i64, scratch_operands = 1 : i64, tpu.core_type = #tpu.core_type<tc>, window_params = [{transform_indices = @transform_0, window_bounds = array<i64: 32, 1152>}, {transform_indices = @transform_1, window_bounds = array<i64: 1152, 512>}, {transform_indices = @transform_2, window_bounds = array<i64: 1, 512>}, {transform_indices = @transform_3, window_bounds = array<i64: 32, 1>}, {transform_indices = @transform_4, window_bounds = array<i64: 32, 512>}]} {
    %c0_i32 = arith.constant 0 : i32
    %0 = arith.cmpi eq, %arg2, %c0_i32 : i32
    %1 = arith.extui %0 : i1 to i32
    %c0_i32_0 = arith.constant 0 : i32
    %2 = arith.cmpi ne, %1, %c0_i32_0 : i32
    scf.if %2 {
      %cst_9 = arith.constant 0.000000e+00 : f32
      %12 = vector.broadcast %cst_9 : f32 to vector<32x512xf32>
      %c0_10 = arith.constant 0 : index
      %c0_11 = arith.constant 0 : index
      %13 = vector.load %arg8[%c0_10, %c0_11] : memref<32x512xf32, #tpu.memory_space<vmem>>, vector<32x512xf32>
      tpu.vector_store %arg8[%c0_10, %c0_11], %12 {strides = array<i32>} : memref<32x512xf32, #tpu.memory_space<vmem>>, vector<32x512xf32>,
    } else {
    }
    %c0 = arith.constant 0 : index
    %c0_1 = arith.constant 0 : index
    %3 = vector.load %arg4[%c0, %c0_1] : memref<1152x512xbf16, #tpu.memory_space<vmem>>, vector<1152x512xbf16>
    %c0_2 = arith.constant 0 : index
    %c0_3 = arith.constant 0 : index
    %4 = vector.load %arg8[%c0_2, %c0_3] : memref<32x512xf32, #tpu.memory_space<vmem>>, vector<32x512xf32>
    %c0_4 = arith.constant 0 : index
    %c0_5 = arith.constant 0 : index
    %5 = vector.load %arg3[%c0_4, %c0_5] : memref<32x1152xbf16, #tpu.memory_space<vmem>>, vector<32x1152xbf16>
    %cst = arith.constant dense<0.000000e+00> : vector<32x512xf32>
    %6 = tpu.matmul %5, %3, %cst {dimension_numbers = #tpu.dot_dimension_numbers<[1], [0], [0], [1], [0, 0, 1, 1], [], []>} : vector<32x1152xbf16>, vector<1152x512xbf16>, vector<32x512xf32> -> vector<32x512xf32>
    %7 = arith.addf %4, %6 : vector<32x512xf32>
    %c0_6 = arith.constant 0 : index
    %c0_7 = arith.constant 0 : index
    %8 = vector.load %arg8[%c0_6, %c0_7] : memref<32x512xf32, #tpu.memory_space<vmem>>, vector<32x512xf32>
    tpu.vector_store %arg8[%c0_6, %c0_7], %7 {strides = array<i32>} : memref<32x512xf32, #tpu.memory_space<vmem>>, vector<32x512xf32>,
    %c3_i32 = arith.constant 3 : i32
    %9 = arith.cmpi eq, %arg2, %c3_i32 : i32
    %10 = arith.extui %9 : i1 to i32
    %c0_i32_8 = arith.constant 0 : i32
    %11 = arith.cmpi ne, %10, %c0_i32_8 : i32
    scf.if %11 {
      %c0_9 = arith.constant 0 : index
      %c0_10 = arith.constant 0 : index
      %12 = vector.load %arg8[%c0_9, %c0_10] : memref<32x512xf32, #tpu.memory_space<vmem>>, vector<32x512xf32>
      %c0_11 = arith.constant 0 : index
      %c0_12 = arith.constant 0 : index
      %13 = vector.load %arg5[%c0_11, %c0_12] : memref<1x512xf32, #tpu.memory_space<vmem>>, vector<1x512xf32>
      %14 = vector.broadcast %13 : vector<1x512xf32> to vector<32x512xf32>
      %15 = arith.addf %12, %14 : vector<32x512xf32>
      %cst_13 = arith.constant 0.000000e+00 : f32
      %16 = vector.broadcast %cst_13 : f32 to vector<32x512xf32>
      %17 = arith.maximumf %15, %16 : vector<32x512xf32>
      %c0_14 = arith.constant 0 : index
      %c0_15 = arith.constant 0 : index
      %18 = vector.load %arg6[%c0_14, %c0_15] : memref<32x1xf32, #tpu.memory_space<vmem>>, vector<32x1xf32>
      %19 = vector.broadcast %18 : vector<32x1xf32> to vector<32x512xf32>
      %20 = arith.mulf %17, %19 : vector<32x512xf32>
      %21 = arith.truncf %20 : vector<32x512xf32> to vector<32x512xbf16>
      %c0_16 = arith.constant 0 : index
      %c0_17 = arith.constant 0 : index
      %22 = vector.load %arg7[%c0_16, %c0_17] : memref<32x512xbf16, #tpu.memory_space<vmem>>, vector<32x512xbf16>
      tpu.vector_store %arg7[%c0_16, %c0_17], %21 {strides = array<i32>} : memref<32x512xbf16, #tpu.memory_space<vmem>>, vector<32x512xbf16>,
    } else {
    }
    return
  }
  func.func @transform_0(%arg0: i32, %arg1: i32, %arg2: i32) -> (i32, i32) {
    %c0_i32 = arith.constant 0 : i32
    return %arg0, %arg2 : i32, i32
  }
  func.func @transform_1(%arg0: i32, %arg1: i32, %arg2: i32) -> (i32, i32) {
    %c0_i32 = arith.constant 0 : i32
    return %arg2, %arg1 : i32, i32
  }
  func.func @transform_2(%arg0: i32, %arg1: i32, %arg2: i32) -> (i32, i32) {
    %c0_i32 = arith.constant 0 : i32
    %c0_i32_0 = arith.constant 0 : i32
    return %c0_i32, %arg1 : i32, i32
  }
  func.func @transform_3(%arg0: i32, %arg1: i32, %arg2: i32) -> (i32, i32) {
    %c0_i32 = arith.constant 0 : i32
    %c0_i32_0 = arith.constant 0 : i32
    return %arg0, %c0_i32 : i32, i32
  }
  func.func @transform_4(%arg0: i32, %arg1: i32, %arg2: i32) -> (i32, i32) {
    %c0_i32 = arith.constant 0 : i32
    return %arg0, %arg1 : i32, i32
  }
}

module attributes {stable_mosaic.version = 11 : i64} {
  func.func @_segment_mean_kernel(%arg0: i32, %arg1: memref<8x24xbf16, #tpu.memory_space<vmem>>, %arg2: memref<24x512xbf16, #tpu.memory_space<vmem>>, %arg3: memref<8x1xf32, #tpu.memory_space<vmem>>, %arg4: memref<8x512xf32, #tpu.memory_space<vmem>>, %arg5: memref<8x512xf32, #tpu.memory_space<vmem>>) attributes {dimension_semantics = [#tpu.dimension_semantics<arbitrary>], iteration_bounds = array<i64: 1>, scalar_prefetch = 0 : i64, scratch_operands = 1 : i64, tpu.core_type = #tpu.core_type<tc>, window_params = [{transform_indices = @transform_0, window_bounds = array<i64: 8, 24>}, {transform_indices = @transform_1, window_bounds = array<i64: 24, 512>}, {pipeline_mode = #tpu.pipeline_mode<synchronous>, transform_indices = @transform_2, window_bounds = array<i64: 8, 1>}, {pipeline_mode = #tpu.pipeline_mode<synchronous>, transform_indices = @transform_3, window_bounds = array<i64: 8, 512>}]} {
    %c0_i32 = arith.constant 0 : i32
    %0 = arith.cmpi eq, %arg0, %c0_i32 : i32
    %1 = arith.extui %0 : i1 to i32
    %c0_i32_0 = arith.constant 0 : i32
    %2 = arith.cmpi ne, %1, %c0_i32_0 : i32
    scf.if %2 {
      %cst_10 = arith.constant 0.000000e+00 : f32
      %12 = vector.broadcast %cst_10 : f32 to vector<8x512xf32>
      %c0_11 = arith.constant 0 : index
      %c0_12 = arith.constant 0 : index
      %13 = vector.load %arg5[%c0_11, %c0_12] : memref<8x512xf32, #tpu.memory_space<vmem>>, vector<8x512xf32>
      tpu.vector_store %arg5[%c0_11, %c0_12], %12 {strides = array<i32>} : memref<8x512xf32, #tpu.memory_space<vmem>>, vector<8x512xf32>,
    } else {
    }
    %c0 = arith.constant 0 : index
    %c0_1 = arith.constant 0 : index
    %3 = vector.load %arg5[%c0, %c0_1] : memref<8x512xf32, #tpu.memory_space<vmem>>, vector<8x512xf32>
    %c0_2 = arith.constant 0 : index
    %c0_3 = arith.constant 0 : index
    %4 = vector.load %arg1[%c0_2, %c0_3] : memref<8x24xbf16, #tpu.memory_space<vmem>>, vector<8x24xbf16>
    %c0_4 = arith.constant 0 : index
    %c0_5 = arith.constant 0 : index
    %5 = vector.load %arg2[%c0_4, %c0_5] : memref<24x512xbf16, #tpu.memory_space<vmem>>, vector<24x512xbf16>
    %cst = arith.constant dense<0.000000e+00> : vector<8x512xf32>
    %6 = tpu.matmul %4, %5, %cst {dimension_numbers = #tpu.dot_dimension_numbers<[1], [0], [0], [1], [0, 0, 1, 1], [], []>} : vector<8x24xbf16>, vector<24x512xbf16>, vector<8x512xf32> -> vector<8x512xf32>
    %7 = arith.addf %3, %6 : vector<8x512xf32>
    %c0_6 = arith.constant 0 : index
    %c0_7 = arith.constant 0 : index
    %8 = vector.load %arg5[%c0_6, %c0_7] : memref<8x512xf32, #tpu.memory_space<vmem>>, vector<8x512xf32>
    tpu.vector_store %arg5[%c0_6, %c0_7], %7 {strides = array<i32>} : memref<8x512xf32, #tpu.memory_space<vmem>>, vector<8x512xf32>,
    %c0_i32_8 = arith.constant 0 : i32
    %9 = arith.cmpi eq, %arg0, %c0_i32_8 : i32
    %10 = arith.extui %9 : i1 to i32
    %c0_i32_9 = arith.constant 0 : i32
    %11 = arith.cmpi ne, %10, %c0_i32_9 : i32
    scf.if %11 {
      %c0_10 = arith.constant 0 : index
      %c0_11 = arith.constant 0 : index
      %12 = vector.load %arg5[%c0_10, %c0_11] : memref<8x512xf32, #tpu.memory_space<vmem>>, vector<8x512xf32>
      %c0_12 = arith.constant 0 : index
      %c0_13 = arith.constant 0 : index
      %13 = vector.load %arg3[%c0_12, %c0_13] : memref<8x1xf32, #tpu.memory_space<vmem>>, vector<8x1xf32>
      %cst_14 = arith.constant 1.000000e+00 : f32
      %14 = vector.broadcast %cst_14 : f32 to vector<8x1xf32>
      %15 = arith.maximumf %13, %14 : vector<8x1xf32>
      %16 = vector.broadcast %15 : vector<8x1xf32> to vector<8x512xf32>
      %17 = arith.divf %12, %16 : vector<8x512xf32>
      %c0_15 = arith.constant 0 : index
      %c0_16 = arith.constant 0 : index
      %18 = vector.load %arg4[%c0_15, %c0_16] : memref<8x512xf32, #tpu.memory_space<vmem>>, vector<8x512xf32>
      tpu.vector_store %arg4[%c0_15, %c0_16], %17 {strides = array<i32>} : memref<8x512xf32, #tpu.memory_space<vmem>>, vector<8x512xf32>,
    } else {
    }
    return
  }
  func.func @transform_0(%arg0: i32) -> (i32, i32) {
    %c0_i32 = arith.constant 0 : i32
    %c0_i32_0 = arith.constant 0 : i32
    return %c0_i32, %arg0 : i32, i32
  }
  func.func @transform_1(%arg0: i32) -> (i32, i32) {
    %c0_i32 = arith.constant 0 : i32
    %c0_i32_0 = arith.constant 0 : i32
    return %arg0, %c0_i32 : i32, i32
  }
  func.func @transform_2(%arg0: i32) -> (i32, i32) {
    %c0_i32 = arith.constant 0 : i32
    %c0_i32_0 = arith.constant 0 : i32
    %c0_i32_1 = arith.constant 0 : i32
    return %c0_i32, %c0_i32_0 : i32, i32
  }
  func.func @transform_3(%arg0: i32) -> (i32, i32) {
    %c0_i32 = arith.constant 0 : i32
    %c0_i32_0 = arith.constant 0 : i32
    %c0_i32_1 = arith.constant 0 : i32
    return %c0_i32, %c0_i32_0 : i32, i32
  }
}

</mosaic_0001>

<llo_original>
// kernel: _forward_core.5
$region0: #{_forward_core.5}
  #allocation0 [shape = 'u32[]', space=smem, size = 0x4, offset = 0x4, fixed_abs, tag = 'smem constant byte address 0x4 - core index']
  #allocation1 [shape = 'u32[144,128]{1,0:T(1,128)}', space=vmem, size = 0x12000, scoped, tag = 'internal scratch']
  #allocation2 [shape = 'f32[32,512]{1,0:T(8,128)}', space=vmem, size = 0x10000, scoped, tag = 'scratch operand']
  %s0 = inlined_call_operand.vmem [shape: bf16[32,2304], index: 0, kind: input, shape index: {}]
  %s1 = inlined_call_operand.vmem [shape: bf16[2304,1024], index: 1, kind: input, shape index: {}]
  %s2 = inlined_call_operand.vmem [shape: f32[1,1024], index: 2, kind: input, shape index: {}]
  %s3 = inlined_call_operand.vmem [shape: f32[32,1], index: 3, kind: input, shape index: {}]
  %s4 = inlined_call_operand.vmem [shape: f32[1,1024], index: 4, kind: input, shape index: {}]
  %s5 = inlined_call_operand.vmem [shape: bf16[32,1024], index: 5, kind: output, shape index: {}]
  %s6 = sld [smem:[#allocation0]]
  $region129: #{_forward_core.5} parent=0
    _
  %s8 = ssub.s32 1, %s6
  %s9 = scalar_select 0, %s8, %s6
  $region1: #{_forward_core.5} parent=0
    #allocation3 [shape = 'u8[147456]{0}', space=vmem, size = 0x24000, scoped, tag = 'input window, operand 0']
    #allocation4 [shape = 'u8[2359296]{0}', space=vmem, size = 0x240000, scoped, tag = 'input window, operand 1']
    #allocation5 [shape = 'u8[65536]{0}', space=vmem, size = 0x10000, scoped, tag = 'output window, operand 0']
    loop: start=0, step=1, limit=6
    $region2: #{_forward_core.5} parent=1 // loop_pre_header
      _
    $region3: #{_forward_core.5} parent=1 // loop_header
      %s11 = sphi 0, %s15
      %p12 = scmp.ge.s32.totalorder %s11, 6
      %s18 = sphi 0, %s37
      %s19 = sphi 0, %s33
      %s20 = sphi 0, %s29
      %s21 = sphi 0, %s18
      %s22 = sphi 0, %s19
      %s23 = sphi 0, %s20
      %s24 = sphi 0, %s21
      %s25 = sphi 0, %s22
      %s26 = sphi 0, %s23
      %s42 = sphi 0, %s44
      %s45 = sphi 0, %s42
      %s46 = sphi 0, %s45
      %s62 = sphi 0, %s46
      %s70 = sphi 0, %s72
      %s73 = sphi 0, %s70
      %s74 = sphi 0, %s73
      %s90 = sphi 0, %s74
      %s96 = sphi 0, %s98
      %s99 = sphi 0, %s96
      %s100 = sphi 0, %s99
      %s116 = sphi 0, %s100
      %s122 = sphi 0, %s124
      %s125 = sphi 0, %s122
      %s126 = sphi 0, %s125
      %s142 = sphi 0, %s126
      %s148 = sphi 0, %s150
      %s151 = sphi 0, %s148
      %s152 = sphi 0, %s151
      %s168 = sphi 0, %s152
      %s176 = sphi 0, %s178
      %s179 = sphi 0, %s176
      %s180 = sphi 0, %s179
      %s196 = sphi 0, %s180
    $region4: #{_forward_core.5} parent=1 // loop_header_branch
      %14 = sbr.rel (%p12) target = $region8
    $region5: #{_forward_core.5} parent=1 // loop_body
      %s16 = ssub.s32 %s11, 1
      %s17 = ssub.s32 %s11, 2
      %s27 = sadd.s32 1, %s20
      %p28 = scmp.ge.s32.totalorder %s27, 2
      %s29 = scalar_select %p28, 0, %s27
      %s30 = sadd.s32 1, %s19
      %s31 = scalar_select %p28, %s30, %s19
      %p32 = scmp.ge.s32.totalorder %s31, 2
      %s33 = scalar_select %p32, 0, %s31
      %s34 = sadd.s32 1, %s18
      %s35 = scalar_select %p32, %s34, %s18
      %p36 = scmp.ge.s32.totalorder %s35, 1
      %s37 = scalar_select %p36, 0, %s35
      %s38 = ssub.s32 %s18, %s37
      %s39 = ssub.s32 %s20, %s29
      %s40 = sor.u32 %s38, %s39
      %p41 = scmp.eq.s32.totalorder %s40, 0
      %s43 = sadd.s32 %s42, 1
      %s44 = scalar_select %p41, %s42, %s43
      %p47 = pneg %p41
      %p48 = scmp.eq.s32.totalorder %s11, 3
      %p49 = por %p47, %p48
      %p50 = scmp.ne.s32.totalorder %s42, %s45
      %p51 = scmp.eq.s32.totalorder %s11, 0
      %p52 = por %p50, %p51
      %p53 = scmp.ne.s32.totalorder %s42, %s45
      %p54 = scmp.eq.s32.totalorder %s16, 3
      %p55 = por %p53, %p54
      %p56 = scmp.ne.s32.totalorder %s45, %s46
      %p57 = scmp.eq.s32.totalorder %s16, 0
      %p58 = por %p56, %p57
      %p59 = scmp.ne.s32.totalorder %s45, %s46
      %p60 = scmp.eq.s32.totalorder %s17, 3
      %p61 = por %p59, %p60
      %p63 = scmp.ne.s32.totalorder %s46, %s62
      %p64 = scmp.eq.s32.totalorder %s17, 0
      %p65 = por %p63, %p64
      %s66 = ssub.s32 %s20, %s29
      %s67 = ssub.s32 %s19, %s33
      %s68 = sor.u32 %s66, %s67
      %p69 = scmp.eq.s32.totalorder %s68, 0
      %s71 = sadd.s32 %s70, 1
      %s72 = scalar_select %p69, %s70, %s71
      %p75 = pneg %p69
      %p76 = scmp.eq.s32.totalorder %s11, 3
      %p77 = por %p75, %p76
      %p78 = scmp.ne.s32.totalorder %s70, %s73
      %p79 = scmp.eq.s32.totalorder %s11, 0
      %p80 = por %p78, %p79
      %p81 = scmp.ne.s32.totalorder %s70, %s73
      %p82 = scmp.eq.s32.totalorder %s16, 3
      %p83 = por %p81, %p82
      %p84 = scmp.ne.s32.totalorder %s73, %s74
      %p85 = scmp.eq.s32.totalorder %s16, 0
      %p86 = por %p84, %p85
      %p87 = scmp.ne.s32.totalorder %s73, %s74
      %p88 = scmp.eq.s32.totalorder %s17, 3
      %p89 = por %p87, %p88
      %p91 = scmp.ne.s32.totalorder %s74, %s90
      %p92 = scmp.eq.s32.totalorder %s17, 0
      %p93 = por %p91, %p92
      %s94 = ssub.s32 %s19, %s33
      %p95 = scmp.eq.s32.totalorder %s94, 0
      %s97 = sadd.s32 %s96, 1
      %s98 = scalar_select %p95, %s96, %s97
      %p101 = pneg %p95
      %p102 = scmp.eq.s32.totalorder %s11, 3
      %p103 = por %p101, %p102
      %p104 = scmp.ne.s32.totalorder %s96, %s99
      %p105 = scmp.eq.s32.totalorder %s11, 0
      %p106 = por %p104, %p105
      %p107 = scmp.ne.s32.totalorder %s96, %s99
      %p108 = scmp.eq.s32.totalorder %s16, 3
      %p109 = por %p107, %p108
      %p110 = scmp.ne.s32.totalorder %s99, %s100
      %p111 = scmp.eq.s32.totalorder %s16, 0
      %p112 = por %p110, %p111
      %p113 = scmp.ne.s32.totalorder %s99, %s100
      %p114 = scmp.eq.s32.totalorder %s17, 3
      %p115 = por %p113, %p114
      %p117 = scmp.ne.s32.totalorder %s100, %s116
      %p118 = scmp.eq.s32.totalorder %s17, 0
      %p119 = por %p117, %p118
      %s120 = ssub.s32 %s18, %s37
      %p121 = scmp.eq.s32.totalorder %s120, 0
      %s123 = sadd.s32 %s122, 1
      %s124 = scalar_select %p121, %s122, %s123
      %p127 = pneg %p121
      %p128 = scmp.eq.s32.totalorder %s11, 3
      %p129 = por %p127, %p128
      %p130 = scmp.ne.s32.totalorder %s122, %s125
      %p131 = scmp.eq.s32.totalorder %s11, 0
      %p132 = por %p130, %p131
      %p133 = scmp.ne.s32.totalorder %s122, %s125
      %p134 = scmp.eq.s32.totalorder %s16, 3
      %p135 = por %p133, %p134
      %p136 = scmp.ne.s32.totalorder %s125, %s126
      %p137 = scmp.eq.s32.totalorder %s16, 0
      %p138 = por %p136, %p137
      %p139 = scmp.ne.s32.totalorder %s125, %s126
      %p140 = scmp.eq.s32.totalorder %s17, 3
      %p141 = por %p139, %p140
      %p143 = scmp.ne.s32.totalorder %s126, %s142
      %p144 = scmp.eq.s32.totalorder %s17, 0
      %p145 = por %p143, %p144
      %s146 = ssub.s32 %s19, %s33
      %p147 = scmp.eq.s32.totalorder %s146, 0
      %s149 = sadd.s32 %s148, 1
      %s150 = scalar_select %p147, %s148, %s149
      %p153 = pneg %p147
      %p154 = scmp.eq.s32.totalorder %s11, 3
      %p155 = por %p153, %p154
      %p156 = scmp.ne.s32.totalorder %s148, %s151
      %p157 = scmp.eq.s32.totalorder %s11, 0
      %p158 = por %p156, %p157
      %p159 = scmp.ne.s32.totalorder %s148, %s151
      %p160 = scmp.eq.s32.totalorder %s16, 3
      %p161 = por %p159, %p160
      %p162 = scmp.ne.s32.totalorder %s151, %s152
      %p163 = scmp.eq.s32.totalorder %s16, 0
      %p164 = por %p162, %p163
      %p165 = scmp.ne.s32.totalorder %s151, %s152
      %p166 = scmp.eq.s32.totalorder %s17, 3
      %p167 = por %p165, %p166
      %p169 = scmp.ne.s32.totalorder %s152, %s168
      %p170 = scmp.eq.s32.totalorder %s17, 0
      %p171 = por %p169, %p170
      %s172 = ssub.s32 %s18, %s37
      %s173 = ssub.s32 %s19, %s33
      %s174 = sor.u32 %s172, %s173
      %p175 = scmp.eq.s32.totalorder %s174, 0
      %s177 = sadd.s32 %s176, 1
      %s178 = scalar_select %p175, %s176, %s177
      %p181 = pneg %p175
      %p182 = scmp.eq.s32.totalorder %s11, 3
      %p183 = por %p181, %p182
      %p184 = scmp.ne.s32.totalorder %s176, %s179
      %p185 = scmp.eq.s32.totalorder %s11, 0
      %p186 = por %p184, %p185
      %p187 = scmp.ne.s32.totalorder %s176, %s179
      %p188 = scmp.eq.s32.totalorder %s16, 3
      %p189 = por %p187, %p188
      %p190 = scmp.ne.s32.totalorder %s179, %s180
      %p191 = scmp.eq.s32.totalorder %s16, 0
      %p192 = por %p190, %p191
      %p193 = scmp.ne.s32.totalorder %s179, %s180
      %p194 = scmp.eq.s32.totalorder %s17, 3
      %p195 = por %p193, %p194
      %p197 = scmp.ne.s32.totalorder %s180, %s196
      %p198 = scmp.eq.s32.totalorder %s17, 0
      %p199 = por %p197, %p198
      %p200 = scmp.le.s32.totalorder 1, %s11
      %p201 = scmp.lt.s32.totalorder %s11, 5
      %p202 = pnand %p200, %p201
      %p203 = pneg %p202
      // Predicated region
      $region9: #{_forward_core.5} parent=5 // pred_check
        _
      $region10: #{_forward_core.5} parent=5 // pred_check_branch
        %205 = sbr.rel (%p202) target = $region12
      $region11: #{_forward_core.5} parent=5 // pred_region
        %s206 = ssub.s32 %s11, 1
        // Predicated region
        $region13: #{_forward_core.5} parent=11 // pred_check
          %p207 = pneg %p138
        $region14: #{_forward_core.5} parent=11 // pred_check_branch
          %209 = sbr.rel (%p207) target = $region16
        $region15: #{_forward_core.5} parent=11 // pred_region
          %s210 = smul.u32 4, %s21
          %p211 = scmp.lt.s32.totalorder %s210, 3
          %s212 = scalar_select %p211, %s210, 3
          %s213 = smul.addr %s212, 8
          %s214 = scalar_lea.vmem %s3, %s213
          %s215 = smul.u32 4, %s21
        $region16: #{_forward_core.5} parent=11 // pred_fallthru
          _
      $region12: #{_forward_core.5} parent=5 // pred_fallthru
        _
      %p216 = scmp.lt.s32.totalorder %s11, 4
      // Predicated region
      $region17: #{_forward_core.5} parent=5 // pred_check
        %p217 = pneg %p216
      $region18: #{_forward_core.5} parent=5 // pred_check_branch
        %219 = sbr.rel (%p217) target = $region20
      $region19: #{_forward_core.5} parent=5 // pred_region
        // Predicated region
        $region21: #{_forward_core.5} parent=19 // pred_check
          %p220 = pneg %p52
        $region22: #{_forward_core.5} parent=19 // pred_check_branch
          %222 = sbr.rel (%p220) target = $region24
        $region23: #{_forward_core.5} parent=19 // pred_region
          %s223 = sand.u32 %s42, 1
          %s224 = sand.u32 %s42, 1
          %s225 = smul.addr %s224, 144
          %s226 = scalar_lea.vmem [#allocation3], %s225
          %s227 = smul.u32 4, %s18
          %s228 = smul.u32 9, %s20
          %s229 = smul.addr %s227, 18
          %s230 = sadd.s32 %s228, %s229
          %s231 = smul.addr %s230, 4
          %s232 = scalar_lea.vmem %s0, %s231
          // Predicated region
          $region25: #{_forward_core.5} parent=23 // pred_check
            _
          $region26: #{_forward_core.5} parent=23 // pred_check_branch
            %234 = sbr.rel (0) target = $region28
          $region27: #{_forward_core.5} parent=23 // pred_region
            // Predicated region
            $region29: #{_forward_core.5} parent=27 // pred_check
              _
            $region30: #{_forward_core.5} parent=27 // pred_check_branch
              %236 = sbr.rel (0) target = $region32
            $region31: #{_forward_core.5} parent=27 // pred_region
              %s237 = scalar_lea.vmem %s232, 32
              %s238 = scalar_lea.vmem %s226, 32 [#allocation3]
              loop: start=0, step=1, limit=1
              $region33: #{_forward_core.5} parent=31 // loop_pre_header
                _
              $region34: #{_forward_core.5} parent=31 // loop_header
                %s240 = sphi 0, %s244
                %p241 = scmp.ge.s32.totalorder %s240, 1
                %s245 = sphi %s232, %s232
                %s246 = sphi %s226, %s226
              $region35: #{_forward_core.5} parent=31 // loop_header_branch
                %243 = sbr.rel (%p241) target = $region39
              $region36: #{_forward_core.5} parent=31 // loop_body
                %v247 = vld [vmem:[%s245] sm:$0xff]
                %248 = vst [vmem:[%s246] sm:$0xff] %v247
                %v249 = vld [vmem:[%s245 + $0x8] sm:$0xff]
                %250 = vst [vmem:[%s246 + $0x8] sm:$0xff] %v249
                %v251 = vld [vmem:[%s245 + $0x10] sm:$0xff]
                %252 = vst [vmem:[%s246 + $0x10] sm:$0xff] %v251
                %v253 = vld [vmem:[%s245 + $0x18] sm:$0xff]
                %254 = vst [vmem:[%s246 + $0x18] sm:$0xff] %v253
                %v255 = vld [vmem:[%s245 + $0x48] sm:$0xff]
                %256 = vst [vmem:[%s246 + $0x24] sm:$0xff] %v255
                %v257 = vld [vmem:[%s245 + $0x50] sm:$0xff]
                %258 = vst [vmem:[%s246 + $0x2c] sm:$0xff] %v257
                %v259 = vld [vmem:[%s245 + $0x58] sm:$0xff]
                %260 = vst [vmem:[%s246 + $0x34] sm:$0xff] %v259
                %v261 = vld [vmem:[%s245 + $0x60] sm:$0xff]
                %262 = vst [vmem:[%s246 + $0x3c] sm:$0xff] %v261
                %v263 = vld [vmem:[%s245 + $0x90] sm:$0xff]
                %264 = vst [vmem:[%s246 + $0x48] sm:$0xff] %v263
                %v265 = vld [vmem:[%s245 + $0x98] sm:$0xff]
                %266 = vst [vmem:[%s246 + $0x50] sm:$0xff] %v265
                %v267 = vld [vmem:[%s245 + $0xa0] sm:$0xff]
                %268 = vst [vmem:[%s246 + $0x58] sm:$0xff] %v267
                %v269 = vld [vmem:[%s245 + $0xa8] sm:$0xff]
                %270 = vst [vmem:[%s246 + $0x60] sm:$0xff] %v269
                %v271 = vld [vmem:[%s245 + $0xd8] sm:$0xff]
                %272 = vst [vmem:[%s246 + $0x6c] sm:$0xff] %v271
                %v273 = vld [vmem:[%s245 + $0xe0] sm:$0xff]
                %274 = vst [vmem:[%s246 + $0x74] sm:$0xff] %v273
                %v275 = vld [vmem:[%s245 + $0xe8] sm:$0xff]
                %276 = vst [vmem:[%s246 + $0x7c] sm:$0xff] %v275
                %v277 = vld [vmem:[%s245 + $0xf0] sm:$0xff]
                %278 = vst [vmem:[%s246 + $0x84] sm:$0xff] %v277
              $region37: #{_forward_core.5} parent=31 // loop_footer
                %s244 = sadd.s32 1, %s240
              $region38: #{_forward_core.5} parent=31 // loop_footer_branch
                %239 = sbr.rel target = $region34
              $region39: #{_forward_core.5} parent=31 // loop_exit
                _
              loop: start=0, step=1, limit=1
              $region40: #{_forward_core.5} parent=31 // loop_pre_header
                _
              $region41: #{_forward_core.5} parent=31 // loop_header
                %s281 = sphi 0, %s285
                %p282 = scmp.ge.s32.totalorder %s281, 1
                %s286 = sphi %s237, %s237
                %s287 = sphi %s238, %s238
              $region42: #{_forward_core.5} parent=31 // loop_header_branch
                %284 = sbr.rel (%p282) target = $region46
              $region43: #{_forward_core.5} parent=31 // loop_body
                %v288 = vld [vmem:[%s286] sm:$0xf]
                %289 = vst [vmem:[%s287] sm:$0xf] %v288
                %v290 = vld [vmem:[%s286 + $0x48] sm:$0xf]
                %291 = vst [vmem:[%s287 + $0x24] sm:$0xf] %v290
                %v292 = vld [vmem:[%s286 + $0x90] sm:$0xf]
                %293 = vst [vmem:[%s287 + $0x48] sm:$0xf] %v292
                %v294 = vld [vmem:[%s286 + $0xd8] sm:$0xf]
                %295 = vst [vmem:[%s287 + $0x6c] sm:$0xf] %v294
              $region44: #{_forward_core.5} parent=31 // loop_footer
                %s285 = sadd.s32 1, %s281
              $region45: #{_forward_core.5} parent=31 // loop_footer_branch
                %280 = sbr.rel target = $region41
              $region46: #{_forward_core.5} parent=31 // loop_exit
                _
            $region32: #{_forward_core.5} parent=27 // pred_fallthru
              _
          $region28: #{_forward_core.5} parent=23 // pred_fallthru
            _
          %296 = vnop
        $region24: #{_forward_core.5} parent=19 // pred_fallthru
          _
        // Predicated region
        $region47: #{_forward_core.5} parent=19 // pred_check
          %p297 = pneg %p80
        $region48: #{_forward_core.5} parent=19 // pred_check_branch
          %299 = sbr.rel (%p297) target = $region50
        $region49: #{_forward_core.5} parent=19 // pred_region
          %s300 = sand.u32 %s70, 1
          %s301 = sand.u32 %s70, 1
          %s302 = smul.addr %s301, 2304
          %s303 = scalar_lea.vmem [#allocation4], %s302
          %s304 = smul.u32 144, %s20
          %s305 = smul.u32 4, %s19
          %s306 = smul.addr %s304, 8
          %s307 = sadd.s32 %s305, %s306
          %s308 = smul.addr %s307, 4
          %s309 = scalar_lea.vmem %s1, %s308
          // Predicated region
          $region51: #{_forward_core.5} parent=49 // pred_check
            _
          $region52: #{_forward_core.5} parent=49 // pred_check_branch
            %311 = sbr.rel (0) target = $region54
          $region53: #{_forward_core.5} parent=49 // pred_region
            // Predicated region
            $region55: #{_forward_core.5} parent=53 // pred_check
              _
            $region56: #{_forward_core.5} parent=53 // pred_check_branch
              %313 = sbr.rel (0) target = $region58
            $region57: #{_forward_core.5} parent=53 // pred_region
              loop: start=0, step=1, limit=1
              $region59: #{_forward_core.5} parent=57 // loop_pre_header
                _
              $region60: #{_forward_core.5} parent=57 // loop_header
                %s315 = sphi 0, %s319
                %p316 = scmp.ge.s32.totalorder %s315, 1
                %s320 = sphi %s309, %s309
                %s321 = sphi %s303, %s303
              $region61: #{_forward_core.5} parent=57 // loop_header_branch
                %318 = sbr.rel (%p316) target = $region65
              $region62: #{_forward_core.5} parent=57 // loop_body
                %v322 = vld [vmem:[%s320] sm:$0xff]
                %323 = vst [vmem:[%s321] sm:$0xff] %v322
                %v324 = vld [vmem:[%s320 + $0x8] sm:$0xff]
                %325 = vst [vmem:[%s321 + $0x8] sm:$0xff] %v324
                %v326 = vld [vmem:[%s320 + $0x20] sm:$0xff]
                %327 = vst [vmem:[%s321 + $0x10] sm:$0xff] %v326
                %v328 = vld [vmem:[%s320 + $0x28] sm:$0xff]
                %329 = vst [vmem:[%s321 + $0x18] sm:$0xff] %v328
                %v330 = vld [vmem:[%s320 + $0x40] sm:$0xff]
                %331 = vst [vmem:[%s321 + $0x20] sm:$0xff] %v330
                %v332 = vld [vmem:[%s320 + $0x48] sm:$0xff]
                %333 = vst [vmem:[%s321 + $0x28] sm:$0xff] %v332
                %v334 = vld [vmem:[%s320 + $0x60] sm:$0xff]
                %335 = vst [vmem:[%s321 + $0x30] sm:$0xff] %v334
                %v336 = vld [vmem:[%s320 + $0x68] sm:$0xff]
                %337 = vst [vmem:[%s321 + $0x38] sm:$0xff] %v336
                %v338 = vld [vmem:[%s320 + $0x80] sm:$0xff]
                %339 = vst [vmem:[%s321 + $0x40] sm:$0xff] %v338
                %v340 = vld [vmem:[%s320 + $0x88] sm:$0xff]
                %341 = vst [vmem:[%s321 + $0x48] sm:$0xff] %v340
                %v342 = vld [vmem:[%s320 + $0xa0] sm:$0xff]
                %343 = vst [vmem:[%s321 + $0x50] sm:$0xff] %v342
                %v344 = vld [vmem:[%s320 + $0xa8] sm:$0xff]
                %345 = vst [vmem:[%s321 + $0x58] sm:$0xff] %v344
                %v346 = vld [vmem:[%s320 + $0xc0] sm:$0xff]
                %347 = vst [vmem:[%s321 + $0x60] sm:$0xff] %v346
                %v348 = vld [vmem:[%s320 + $0xc8] sm:$0xff]
                %349 = vst [vmem:[%s321 + $0x68] sm:$0xff] %v348
                %v350 = vld [vmem:[%s320 + $0xe0] sm:$0xff]
                %351 = vst [vmem:[%s321 + $0x70] sm:$0xff] %v350
                %v352 = vld [vmem:[%s320 + $0xe8] sm:$0xff]
                %353 = vst [vmem:[%s321 + $0x78] sm:$0xff] %v352
                %v354 = vld [vmem:[%s320 + $0x100] sm:$0xff]
                %355 = vst [vmem:[%s321 + $0x80] sm:$0xff] %v354
                %v356 = vld [vmem:[%s320 + $0x108] sm:$0xff]
                %357 = vst [vmem:[%s321 + $0x88] sm:$0xff] %v356
                %v358 = vld [vmem:[%s320 + $0x120] sm:$0xff]
                %359 = vst [vmem:[%s321 + $0x90] sm:$0xff] %v358
                %v360 = vld [vmem:[%s320 + $0x128] sm:$0xff]
                %361 = vst [vmem:[%s321 + $0x98] sm:$0xff] %v360
                %v362 = vld [vmem:[%s320 + $0x140] sm:$0xff]
                %363 = vst [vmem:[%s321 + $0xa0] sm:$0xff] %v362
                %v364 = vld [vmem:[%s320 + $0x148] sm:$0xff]
                %365 = vst [vmem:[%s321 + $0xa8] sm:$0xff] %v364
                %v366 = vld [vmem:[%s320 + $0x160] sm:$0xff]
                %367 = vst [vmem:[%s321 + $0xb0] sm:$0xff] %v366
                %v368 = vld [vmem:[%s320 + $0x168] sm:$0xff]
                %369 = vst [vmem:[%s321 + $0xb8] sm:$0xff] %v368
                %v370 = vld [vmem:[%s320 + $0x180] sm:$0xff]
                %371 = vst [vmem:[%s321 + $0xc0] sm:$0xff] %v370
                %v372 = vld [vmem:[%s320 + $0x188] sm:$0xff]
                %373 = vst [vmem:[%s321 + $0xc8] sm:$0xff] %v372
                %v374 = vld [vmem:[%s320 + $0x1a0] sm:$0xff]
                %375 = vst [vmem:[%s321 + $0xd0] sm:$0xff] %v374
                %v376 = vld [vmem:[%s320 + $0x1a8] sm:$0xff]
                %377 = vst [vmem:[%s321 + $0xd8] sm:$0xff] %v376
                %v378 = vld [vmem:[%s320 + $0x1c0] sm:$0xff]
                %379 = vst [vmem:[%s321 + $0xe0] sm:$0xff] %v378
                %v380 = vld [vmem:[%s320 + $0x1c8] sm:$0xff]
                %381 = vst [vmem:[%s321 + $0xe8] sm:$0xff] %v380
                %v382 = vld [vmem:[%s320 + $0x1e0] sm:$0xff]
                %383 = vst [vmem:[%s321 + $0xf0] sm:$0xff] %v382
                %v384 = vld [vmem:[%s320 + $0x1e8] sm:$0xff]
                %385 = vst [vmem:[%s321 + $0xf8] sm:$0xff] %v384
                %v386 = vld [vmem:[%s320 + $0x200] sm:$0xff]
                %387 = vst [vmem:[%s321 + $0x100] sm:$0xff] %v386
                %v388 = vld [vmem:[%s320 + $0x208] sm:$0xff]
                %389 = vst [vmem:[%s321 + $0x108] sm:$0xff] %v388
                %v390 = vld [vmem:[%s320 + $0x220] sm:$0xff]
                %391 = vst [vmem:[%s321 + $0x110] sm:$0xff] %v390
                %v392 = vld [vmem:[%s320 + $0x228] sm:$0xff]
                %393 = vst [vmem:[%s321 + $0x118] sm:$0xff] %v392
                %v394 = vld [vmem:[%s320 + $0x240] sm:$0xff]
                %395 = vst [vmem:[%s321 + $0x120] sm:$0xff] %v394
                %v396 = vld [vmem:[%s320 + $0x248] sm:$0xff]
                %397 = vst [vmem:[%s321 + $0x128] sm:$0xff] %v396
                %v398 = vld [vmem:[%s320 + $0x260] sm:$0xff]
                %399 = vst [vmem:[%s321 + $0x130] sm:$0xff] %v398
                %v400 = vld [vmem:[%s320 + $0x268] sm:$0xff]
                %401 = vst [vmem:[%s321 + $0x138] sm:$0xff] %v400
                %v402 = vld [vmem:[%s320 + $0x280] sm:$0xff]
                %403 = vst [vmem:[%s321 + $0x140] sm:$0xff] %v402
                %v404 = vld [vmem:[%s320 + $0x288] sm:$0xff]
                %405 = vst [vmem:[%s321 + $0x148] sm:$0xff] %v404
                %v406 = vld [vmem:[%s320 + $0x2a0] sm:$0xff]
                %407 = vst [vmem:[%s321 + $0x150] sm:$0xff] %v406
                %v408 = vld [vmem:[%s320 + $0x2a8] sm:$0xff]
                %409 = vst [vmem:[%s321 + $0x158] sm:$0xff] %v408
                %v410 = vld [vmem:[%s320 + $0x2c0] sm:$0xff]
                %411 = vst [vmem:[%s321 + $0x160] sm:$0xff] %v410
                %v412 = vld [vmem:[%s320 + $0x2c8] sm:$0xff]
                %413 = vst [vmem:[%s321 + $0x168] sm:$0xff] %v412
                %v414 = vld [vmem:[%s320 + $0x2e0] sm:$0xff]
                %415 = vst [vmem:[%s321 + $0x170] sm:$0xff] %v414
                %v416 = vld [vmem:[%s320 + $0x2e8] sm:$0xff]
                %417 = vst [vmem:[%s321 + $0x178] sm:$0xff] %v416
                %v418 = vld [vmem:[%s320 + $0x300] sm:$0xff]
                %419 = vst [vmem:[%s321 + $0x180] sm:$0xff] %v418
                %v420 = vld [vmem:[%s320 + $0x308] sm:$0xff]
                %421 = vst [vmem:[%s321 + $0x188] sm:$0xff] %v420
                %v422 = vld [vmem:[%s320 + $0x320] sm:$0xff]
                %423 = vst [vmem:[%s321 + $0x190] sm:$0xff] %v422
                %v424 = vld [vmem:[%s320 + $0x328] sm:$0xff]
                %425 = vst [vmem:[%s321 + $0x198] sm:$0xff] %v424
                %v426 = vld [vmem:[%s320 + $0x340] sm:$0xff]
                %427 = vst [vmem:[%s321 + $0x1a0] sm:$0xff] %v426
                %v428 = vld [vmem:[%s320 + $0x348] sm:$0xff]
                %429 = vst [vmem:[%s321 + $0x1a8] sm:$0xff] %v428
                %v430 = vld [vmem:[%s320 + $0x360] sm:$0xff]
                %431 = vst [vmem:[%s321 + $0x1b0] sm:$0xff] %v430
                %v432 = vld [vmem:[%s320 + $0x368] sm:$0xff]
                %433 = vst [vmem:[%s321 + $0x1b8] sm:$0xff] %v432
                %v434 = vld [vmem:[%s320 + $0x380] sm:$0xff]
                %435 = vst [vmem:[%s321 + $0x1c0] sm:$0xff] %v434
                %v436 = vld [vmem:[%s320 + $0x388] sm:$0xff]
                %437 = vst [vmem:[%s321 + $0x1c8] sm:$0xff] %v436
                %v438 = vld [vmem:[%s320 + $0x3a0] sm:$0xff]
                %439 = vst [vmem:[%s321 + $0x1d0] sm:$0xff] %v438
                %v440 = vld [vmem:[%s320 + $0x3a8] sm:$0xff]
                %441 = vst [vmem:[%s321 + $0x1d8] sm:$0xff] %v440
                %v442 = vld [vmem:[%s320 + $0x3c0] sm:$0xff]
                %443 = vst [vmem:[%s321 + $0x1e0] sm:$0xff] %v442
                %v444 = vld [vmem:[%s320 + $0x3c8] sm:$0xff]
                %445 = vst [vmem:[%s321 + $0x1e8] sm:$0xff] %v444
                %v446 = vld [vmem:[%s320 + $0x3e0] sm:$0xff]
                %447 = vst [vmem:[%s321 + $0x1f0] sm:$0xff] %v446
                %v448 = vld [vmem:[%s320 + $0x3e8] sm:$0xff]
                %449 = vst [vmem:[%s321 + $0x1f8] sm:$0xff] %v448
                %v450 = vld [vmem:[%s320 + $0x400] sm:$0xff]
                %451 = vst [vmem:[%s321 + $0x200] sm:$0xff] %v450
                %v452 = vld [vmem:[%s320 + $0x408] sm:$0xff]
                %453 = vst [vmem:[%s321 + $0x208] sm:$0xff] %v452
                %v454 = vld [vmem:[%s320 + $0x420] sm:$0xff]
                %455 = vst [vmem:[%s321 + $0x210] sm:$0xff] %v454
                %v456 = vld [vmem:[%s320 + $0x428] sm:$0xff]
                %457 = vst [vmem:[%s321 + $0x218] sm:$0xff] %v456
                %v458 = vld [vmem:[%s320 + $0x440] sm:$0xff]
                %459 = vst [vmem:[%s321 + $0x220] sm:$0xff] %v458
                %v460 = vld [vmem:[%s320 + $0x448] sm:$0xff]
                %461 = vst [vmem:[%s321 + $0x228] sm:$0xff] %v460
                %v462 = vld [vmem:[%s320 + $0x460] sm:$0xff]
                %463 = vst [vmem:[%s321 + $0x230] sm:$0xff] %v462
                %v464 = vld [vmem:[%s320 + $0x468] sm:$0xff]
                %465 = vst [vmem:[%s321 + $0x238] sm:$0xff] %v464
                %v466 = vld [vmem:[%s320 + $0x480] sm:$0xff]
                %467 = vst [vmem:[%s321 + $0x240] sm:$0xff] %v466
                %v468 = vld [vmem:[%s320 + $0x488] sm:$0xff]
                %469 = vst [vmem:[%s321 + $0x248] sm:$0xff] %v468
                %v470 = vld [vmem:[%s320 + $0x4a0] sm:$0xff]
                %471 = vst [vmem:[%s321 + $0x250] sm:$0xff] %v470
                %v472 = vld [vmem:[%s320 + $0x4a8] sm:$0xff]
                %473 = vst [vmem:[%s321 + $0x258] sm:$0xff] %v472
                %v474 = vld [vmem:[%s320 + $0x4c0] sm:$0xff]
                %475 = vst [vmem:[%s321 + $0x260] sm:$0xff] %v474
                %v476 = vld [vmem:[%s320 + $0x4c8] sm:$0xff]
                %477 = vst [vmem:[%s321 + $0x268] sm:$0xff] %v476
                %v478 = vld [vmem:[%s320 + $0x4e0] sm:$0xff]
                %479 = vst [vmem:[%s321 + $0x270] sm:$0xff] %v478
                %v480 = vld [vmem:[%s320 + $0x4e8] sm:$0xff]
                %481 = vst [vmem:[%s321 + $0x278] sm:$0xff] %v480
                %v482 = vld [vmem:[%s320 + $0x500] sm:$0xff]
                %483 = vst [vmem:[%s321 + $0x280] sm:$0xff] %v482
                %v484 = vld [vmem:[%s320 + $0x508] sm:$0xff]
                %485 = vst [vmem:[%s321 + $0x288] sm:$0xff] %v484
                %v486 = vld [vmem:[%s320 + $0x520] sm:$0xff]
                %487 = vst [vmem:[%s321 + $0x290] sm:$0xff] %v486
                %v488 = vld [vmem:[%s320 + $0x528] sm:$0xff]
                %489 = vst [vmem:[%s321 + $0x298] sm:$0xff] %v488
                %v490 = vld [vmem:[%s320 + $0x540] sm:$0xff]
                %491 = vst [vmem:[%s321 + $0x2a0] sm:$0xff] %v490
                %v492 = vld [vmem:[%s320 + $0x548] sm:$0xff]
                %493 = vst [vmem:[%s321 + $0x2a8] sm:$0xff] %v492
                %v494 = vld [vmem:[%s320 + $0x560] sm:$0xff]
                %495 = vst [vmem:[%s321 + $0x2b0] sm:$0xff] %v494
                %v496 = vld [vmem:[%s320 + $0x568] sm:$0xff]
                %497 = vst [vmem:[%s321 + $0x2b8] sm:$0xff] %v496
                %v498 = vld [vmem:[%s320 + $0x580] sm:$0xff]
                %499 = vst [vmem:[%s321 + $0x2c0] sm:$0xff] %v498
                %v500 = vld [vmem:[%s320 + $0x588] sm:$0xff]
                %501 = vst [vmem:[%s321 + $0x2c8] sm:$0xff] %v500
                %v502 = vld [vmem:[%s320 + $0x5a0] sm:$0xff]
                %503 = vst [vmem:[%s321 + $0x2d0] sm:$0xff] %v502
                %v504 = vld [vmem:[%s320 + $0x5a8] sm:$0xff]
                %505 = vst [vmem:[%s321 + $0x2d8] sm:$0xff] %v504
                %v506 = vld [vmem:[%s320 + $0x5c0] sm:$0xff]
                %507 = vst [vmem:[%s321 + $0x2e0] sm:$0xff] %v506
                %v508 = vld [vmem:[%s320 + $0x5c8] sm:$0xff]
                %509 = vst [vmem:[%s321 + $0x2e8] sm:$0xff] %v508
                %v510 = vld [vmem:[%s320 + $0x5e0] sm:$0xff]
                %511 = vst [vmem:[%s321 + $0x2f0] sm:$0xff] %v510
                %v512 = vld [vmem:[%s320 + $0x5e8] sm:$0xff]
                %513 = vst [vmem:[%s321 + $0x2f8] sm:$0xff] %v512
                %v514 = vld [vmem:[%s320 + $0x600] sm:$0xff]
                %515 = vst [vmem:[%s321 + $0x300] sm:$0xff] %v514
                %v516 = vld [vmem:[%s320 + $0x608] sm:$0xff]
                %517 = vst [vmem:[%s321 + $0x308] sm:$0xff] %v516
                %v518 = vld [vmem:[%s320 + $0x620] sm:$0xff]
                %519 = vst [vmem:[%s321 + $0x310] sm:$0xff] %v518
                %v520 = vld [vmem:[%s320 + $0x628] sm:$0xff]
                %521 = vst [vmem:[%s321 + $0x318] sm:$0xff] %v520
                %v522 = vld [vmem:[%s320 + $0x640] sm:$0xff]
                %523 = vst [vmem:[%s321 + $0x320] sm:$0xff] %v522
                %v524 = vld [vmem:[%s320 + $0x648] sm:$0xff]
                %525 = vst [vmem:[%s321 + $0x328] sm:$0xff] %v524
                %v526 = vld [vmem:[%s320 + $0x660] sm:$0xff]
                %527 = vst [vmem:[%s321 + $0x330] sm:$0xff] %v526
                %v528 = vld [vmem:[%s320 + $0x668] sm:$0xff]
                %529 = vst [vmem:[%s321 + $0x338] sm:$0xff] %v528
                %v530 = vld [vmem:[%s320 + $0x680] sm:$0xff]
                %531 = vst [vmem:[%s321 + $0x340] sm:$0xff] %v530
                %v532 = vld [vmem:[%s320 + $0x688] sm:$0xff]
                %533 = vst [vmem:[%s321 + $0x348] sm:$0xff] %v532
                %v534 = vld [vmem:[%s320 + $0x6a0] sm:$0xff]
                %535 = vst [vmem:[%s321 + $0x350] sm:$0xff] %v534
                %v536 = vld [vmem:[%s320 + $0x6a8] sm:$0xff]
                %537 = vst [vmem:[%s321 + $0x358] sm:$0xff] %v536
                %v538 = vld [vmem:[%s320 + $0x6c0] sm:$0xff]
                %539 = vst [vmem:[%s321 + $0x360] sm:$0xff] %v538
                %v540 = vld [vmem:[%s320 + $0x6c8] sm:$0xff]
                %541 = vst [vmem:[%s321 + $0x368] sm:$0xff] %v540
                %v542 = vld [vmem:[%s320 + $0x6e0] sm:$0xff]
                %543 = vst [vmem:[%s321 + $0x370] sm:$0xff] %v542
                %v544 = vld [vmem:[%s320 + $0x6e8] sm:$0xff]
                %545 = vst [vmem:[%s321 + $0x378] sm:$0xff] %v544
                %v546 = vld [vmem:[%s320 + $0x700] sm:$0xff]
                %547 = vst [vmem:[%s321 + $0x380] sm:$0xff] %v546
                %v548 = vld [vmem:[%s320 + $0x708] sm:$0xff]
                %549 = vst [vmem:[%s321 + $0x388] sm:$0xff] %v548
                %v550 = vld [vmem:[%s320 + $0x720] sm:$0xff]
                %551 = vst [vmem:[%s321 + $0x390] sm:$0xff] %v550
                %v552 = vld [vmem:[%s320 + $0x728] sm:$0xff]
                %553 = vst [vmem:[%s321 + $0x398] sm:$0xff] %v552
                %v554 = vld [vmem:[%s320 + $0x740] sm:$0xff]
                %555 = vst [vmem:[%s321 + $0x3a0] sm:$0xff] %v554
                %v556 = vld [vmem:[%s320 + $0x748] sm:$0xff]
                %557 = vst [vmem:[%s321 + $0x3a8] sm:$0xff] %v556
                %v558 = vld [vmem:[%s320 + $0x760] sm:$0xff]
                %559 = vst [vmem:[%s321 + $0x3b0] sm:$0xff] %v558
                %v560 = vld [vmem:[%s320 + $0x768] sm:$0xff]
                %561 = vst [vmem:[%s321 + $0x3b8] sm:$0xff] %v560
                %v562 = vld [vmem:[%s320 + $0x780] sm:$0xff]
                %563 = vst [vmem:[%s321 + $0x3c0] sm:$0xff] %v562
                %v564 = vld [vmem:[%s320 + $0x788] sm:$0xff]
                %565 = vst [vmem:[%s321 + $0x3c8] sm:$0xff] %v564
                %v566 = vld [vmem:[%s320 + $0x7a0] sm:$0xff]
                %567 = vst [vmem:[%s321 + $0x3d0] sm:$0xff] %v566
                %v568 = vld [vmem:[%s320 + $0x7a8] sm:$0xff]
                %569 = vst [vmem:[%s321 + $0x3d8] sm:$0xff] %v568
                %v570 = vld [vmem:[%s320 + $0x7c0] sm:$0xff]
                %571 = vst [vmem:[%s321 + $0x3e0] sm:$0xff] %v570
                %v572 = vld [vmem:[%s320 + $0x7c8] sm:$0xff]
                %573 = vst [vmem:[%s321 + $0x3e8] sm:$0xff] %v572
                %v574 = vld [vmem:[%s320 + $0x7e0] sm:$0xff]
                %575 = vst [vmem:[%s321 + $0x3f0] sm:$0xff] %v574
                %v576 = vld [vmem:[%s320 + $0x7e8] sm:$0xff]
                %577 = vst [vmem:[%s321 + $0x3f8] sm:$0xff] %v576
                %v578 = vld [vmem:[%s320 + $0x800] sm:$0xff]
                %579 = vst [vmem:[%s321 + $0x400] sm:$0xff] %v578
                %v580 = vld [vmem:[%s320 + $0x808] sm:$0xff]
                %581 = vst [vmem:[%s321 + $0x408] sm:$0xff] %v580
                %v582 = vld [vmem:[%s320 + $0x820] sm:$0xff]
                %583 = vst [vmem:[%s321 + $0x410] sm:$0xff] %v582
                %v584 = vld [vmem:[%s320 + $0x828] sm:$0xff]
                %585 = vst [vmem:[%s321 + $0x418] sm:$0xff] %v584
                %v586 = vld [vmem:[%s320 + $0x840] sm:$0xff]
                %587 = vst [vmem:[%s321 + $0x420] sm:$0xff] %v586
                %v588 = vld [vmem:[%s320 + $0x848] sm:$0xff]
                %589 = vst [vmem:[%s321 + $0x428] sm:$0xff] %v588
                %v590 = vld [vmem:[%s320 + $0x860] sm:$0xff]
                %591 = vst [vmem:[%s321 + $0x430] sm:$0xff] %v590
                %v592 = vld [vmem:[%s320 + $0x868] sm:$0xff]
                %593 = vst [vmem:[%s321 + $0x438] sm:$0xff] %v592
                %v594 = vld [vmem:[%s320 + $0x880] sm:$0xff]
                %595 = vst [vmem:[%s321 + $0x440] sm:$0xff] %v594
                %v596 = vld [vmem:[%s320 + $0x888] sm:$0xff]
                %597 = vst [vmem:[%s321 + $0x448] sm:$0xff] %v596
                %v598 = vld [vmem:[%s320 + $0x8a0] sm:$0xff]
                %599 = vst [vmem:[%s321 + $0x450] sm:$0xff] %v598
                %v600 = vld [vmem:[%s320 + $0x8a8] sm:$0xff]
                %601 = vst [vmem:[%s321 + $0x458] sm:$0xff] %v600
                %v602 = vld [vmem:[%s320 + $0x8c0] sm:$0xff]
                %603 = vst [vmem:[%s321 + $0x460] sm:$0xff] %v602
                %v604 = vld [vmem:[%s320 + $0x8c8] sm:$0xff]
                %605 = vst [vmem:[%s321 + $0x468] sm:$0xff] %v604
                %v606 = vld [vmem:[%s320 + $0x8e0] sm:$0xff]
                %607 = vst [vmem:[%s321 + $0x470] sm:$0xff] %v606
                %v608 = vld [vmem:[%s320 + $0x8e8] sm:$0xff]
                %609 = vst [vmem:[%s321 + $0x478] sm:$0xff] %v608
                %v610 = vld [vmem:[%s320 + $0x900] sm:$0xff]
                %611 = vst [vmem:[%s321 + $0x480] sm:$0xff] %v610
                %v612 = vld [vmem:[%s320 + $0x908] sm:$0xff]
                %613 = vst [vmem:[%s321 + $0x488] sm:$0xff] %v612
                %v614 = vld [vmem:[%s320 + $0x920] sm:$0xff]
                %615 = vst [vmem:[%s321 + $0x490] sm:$0xff] %v614
                %v616 = vld [vmem:[%s320 + $0x928] sm:$0xff]
                %617 = vst [vmem:[%s321 + $0x498] sm:$0xff] %v616
                %v618 = vld [vmem:[%s320 + $0x940] sm:$0xff]
                %619 = vst [vmem:[%s321 + $0x4a0] sm:$0xff] %v618
                %v620 = vld [vmem:[%s320 + $0x948] sm:$0xff]
                %621 = vst [vmem:[%s321 + $0x4a8] sm:$0xff] %v620
                %v622 = vld [vmem:[%s320 + $0x960] sm:$0xff]
                %623 = vst [vmem:[%s321 + $0x4b0] sm:$0xff] %v622
                %v624 = vld [vmem:[%s320 + $0x968] sm:$0xff]
                %625 = vst [vmem:[%s321 + $0x4b8] sm:$0xff] %v624
                %v626 = vld [vmem:[%s320 + $0x980] sm:$0xff]
                %627 = vst [vmem:[%s321 + $0x4c0] sm:$0xff] %v626
                %v628 = vld [vmem:[%s320 + $0x988] sm:$0xff]
                %629 = vst [vmem:[%s321 + $0x4c8] sm:$0xff] %v628
                %v630 = vld [vmem:[%s320 + $0x9a0] sm:$0xff]
                %631 = vst [vmem:[%s321 + $0x4d0] sm:$0xff] %v630
                %v632 = vld [vmem:[%s320 + $0x9a8] sm:$0xff]
                %633 = vst [vmem:[%s321 + $0x4d8] sm:$0xff] %v632
                %v634 = vld [vmem:[%s320 + $0x9c0] sm:$0xff]
                %635 = vst [vmem:[%s321 + $0x4e0] sm:$0xff] %v634
                %v636 = vld [vmem:[%s320 + $0x9c8] sm:$0xff]
                %637 = vst [vmem:[%s321 + $0x4e8] sm:$0xff] %v636
                %v638 = vld [vmem:[%s320 + $0x9e0] sm:$0xff]
                %639 = vst [vmem:[%s321 + $0x4f0] sm:$0xff] %v638
                %v640 = vld [vmem:[%s320 + $0x9e8] sm:$0xff]
                %641 = vst [vmem:[%s321 + $0x4f8] sm:$0xff] %v640
                %v642 = vld [vmem:[%s320 + $0xa00] sm:$0xff]
                %643 = vst [vmem:[%s321 + $0x500] sm:$0xff] %v642
                %v644 = vld [vmem:[%s320 + $0xa08] sm:$0xff]
                %645 = vst [vmem:[%s321 + $0x508] sm:$0xff] %v644
                %v646 = vld [vmem:[%s320 + $0xa20] sm:$0xff]
                %647 = vst [vmem:[%s321 + $0x510] sm:$0xff] %v646
                %v648 = vld [vmem:[%s320 + $0xa28] sm:$0xff]
                %649 = vst [vmem:[%s321 + $0x518] sm:$0xff] %v648
                %v650 = vld [vmem:[%s320 + $0xa40] sm:$0xff]
                %651 = vst [vmem:[%s321 + $0x520] sm:$0xff] %v650
                %v652 = vld [vmem:[%s320 + $0xa48] sm:$0xff]
                %653 = vst [vmem:[%s321 + $0x528] sm:$0xff] %v652
                %v654 = vld [vmem:[%s320 + $0xa60] sm:$0xff]
                %655 = vst [vmem:[%s321 + $0x530] sm:$0xff] %v654
                %v656 = vld [vmem:[%s320 + $0xa68] sm:$0xff]
                %657 = vst [vmem:[%s321 + $0x538] sm:$0xff] %v656
                %v658 = vld [vmem:[%s320 + $0xa80] sm:$0xff]
                %659 = vst [vmem:[%s321 + $0x540] sm:$0xff] %v658
                %v660 = vld [vmem:[%s320 + $0xa88] sm:$0xff]
                %661 = vst [vmem:[%s321 + $0x548] sm:$0xff] %v660
                %v662 = vld [vmem:[%s320 + $0xaa0] sm:$0xff]
                %663 = vst [vmem:[%s321 + $0x550] sm:$0xff] %v662
                %v664 = vld [vmem:[%s320 + $0xaa8] sm:$0xff]
                %665 = vst [vmem:[%s321 + $0x558] sm:$0xff] %v664
                %v666 = vld [vmem:[%s320 + $0xac0] sm:$0xff]
                %667 = vst [vmem:[%s321 + $0x560] sm:$0xff] %v666
                %v668 = vld [vmem:[%s320 + $0xac8] sm:$0xff]
                %669 = vst [vmem:[%s321 + $0x568] sm:$0xff] %v668
                %v670 = vld [vmem:[%s320 + $0xae0] sm:$0xff]
                %671 = vst [vmem:[%s321 + $0x570] sm:$0xff] %v670
                %v672 = vld [vmem:[%s320 + $0xae8] sm:$0xff]
                %673 = vst [vmem:[%s321 + $0x578] sm:$0xff] %v672
                %v674 = vld [vmem:[%s320 + $0xb00] sm:$0xff]
                %675 = vst [vmem:[%s321 + $0x580] sm:$0xff] %v674
                %v676 = vld [vmem:[%s320 + $0xb08] sm:$0xff]
                %677 = vst [vmem:[%s321 + $0x588] sm:$0xff] %v676
                %v678 = vld [vmem:[%s320 + $0xb20] sm:$0xff]
                %679 = vst [vmem:[%s321 + $0x590] sm:$0xff] %v678
                %v680 = vld [vmem:[%s320 + $0xb28] sm:$0xff]
                %681 = vst [vmem:[%s321 + $0x598] sm:$0xff] %v680
                %v682 = vld [vmem:[%s320 + $0xb40] sm:$0xff]
                %683 = vst [vmem:[%s321 + $0x5a0] sm:$0xff] %v682
                %v684 = vld [vmem:[%s320 + $0xb48] sm:$0xff]
                %685 = vst [vmem:[%s321 + $0x5a8] sm:$0xff] %v684
                %v686 = vld [vmem:[%s320 + $0xb60] sm:$0xff]
                %687 = vst [vmem:[%s321 + $0x5b0] sm:$0xff] %v686
                %v688 = vld [vmem:[%s320 + $0xb68] sm:$0xff]
                %689 = vst [vmem:[%s321 + $0x5b8] sm:$0xff] %v688
                %v690 = vld [vmem:[%s320 + $0xb80] sm:$0xff]
                %691 = vst [vmem:[%s321 + $0x5c0] sm:$0xff] %v690
                %v692 = vld [vmem:[%s320 + $0xb88] sm:$0xff]
                %693 = vst [vmem:[%s321 + $0x5c8] sm:$0xff] %v692
                %v694 = vld [vmem:[%s320 + $0xba0] sm:$0xff]
                %695 = vst [vmem:[%s321 + $0x5d0] sm:$0xff] %v694
                %v696 = vld [vmem:[%s320 + $0xba8] sm:$0xff]
                %697 = vst [vmem:[%s321 + $0x5d8] sm:$0xff] %v696
                %v698 = vld [vmem:[%s320 + $0xbc0] sm:$0xff]
                %699 = vst [vmem:[%s321 + $0x5e0] sm:$0xff] %v698
                %v700 = vld [vmem:[%s320 + $0xbc8] sm:$0xff]
                %701 = vst [vmem:[%s321 + $0x5e8] sm:$0xff] %v700
                %v702 = vld [vmem:[%s320 + $0xbe0] sm:$0xff]
                %703 = vst [vmem:[%s321 + $0x5f0] sm:$0xff] %v702
                %v704 = vld [vmem:[%s320 + $0xbe8] sm:$0xff]
                %705 = vst [vmem:[%s321 + $0x5f8] sm:$0xff] %v704
                %v706 = vld [vmem:[%s320 + $0xc00] sm:$0xff]
                %707 = vst [vmem:[%s321 + $0x600] sm:$0xff] %v706
                %v708 = vld [vmem:[%s320 + $0xc08] sm:$0xff]
                %709 = vst [vmem:[%s321 + $0x608] sm:$0xff] %v708
                %v710 = vld [vmem:[%s320 + $0xc20] sm:$0xff]
                %711 = vst [vmem:[%s321 + $0x610] sm:$0xff] %v710
                %v712 = vld [vmem:[%s320 + $0xc28] sm:$0xff]
                %713 = vst [vmem:[%s321 + $0x618] sm:$0xff] %v712
                %v714 = vld [vmem:[%s320 + $0xc40] sm:$0xff]
                %715 = vst [vmem:[%s321 + $0x620] sm:$0xff] %v714
                %v716 = vld [vmem:[%s320 + $0xc48] sm:$0xff]
                %717 = vst [vmem:[%s321 + $0x628] sm:$0xff] %v716
                %v718 = vld [vmem:[%s320 + $0xc60] sm:$0xff]
                %719 = vst [vmem:[%s321 + $0x630] sm:$0xff] %v718
                %v720 = vld [vmem:[%s320 + $0xc68] sm:$0xff]
                %721 = vst [vmem:[%s321 + $0x638] sm:$0xff] %v720
                %v722 = vld [vmem:[%s320 + $0xc80] sm:$0xff]
                %723 = vst [vmem:[%s321 + $0x640] sm:$0xff] %v722
                %v724 = vld [vmem:[%s320 + $0xc88] sm:$0xff]
                %725 = vst [vmem:[%s321 + $0x648] sm:$0xff] %v724
                %v726 = vld [vmem:[%s320 + $0xca0] sm:$0xff]
                %727 = vst [vmem:[%s321 + $0x650] sm:$0xff] %v726
                %v728 = vld [vmem:[%s320 + $0xca8] sm:$0xff]
                %729 = vst [vmem:[%s321 + $0x658] sm:$0xff] %v728
                %v730 = vld [vmem:[%s320 + $0xcc0] sm:$0xff]
                %731 = vst [vmem:[%s321 + $0x660] sm:$0xff] %v730
                %v732 = vld [vmem:[%s320 + $0xcc8] sm:$0xff]
                %733 = vst [vmem:[%s321 + $0x668] sm:$0xff] %v732
                %v734 = vld [vmem:[%s320 + $0xce0] sm:$0xff]
                %735 = vst [vmem:[%s321 + $0x670] sm:$0xff] %v734
                %v736 = vld [vmem:[%s320 + $0xce8] sm:$0xff]
                %737 = vst [vmem:[%s321 + $0x678] sm:$0xff] %v736
                %v738 = vld [vmem:[%s320 + $0xd00] sm:$0xff]
                %739 = vst [vmem:[%s321 + $0x680] sm:$0xff] %v738
                %v740 = vld [vmem:[%s320 + $0xd08] sm:$0xff]
                %741 = vst [vmem:[%s321 + $0x688] sm:$0xff] %v740
                %v742 = vld [vmem:[%s320 + $0xd20] sm:$0xff]
                %743 = vst [vmem:[%s321 + $0x690] sm:$0xff] %v742
                %v744 = vld [vmem:[%s320 + $0xd28] sm:$0xff]
                %745 = vst [vmem:[%s321 + $0x698] sm:$0xff] %v744
                %v746 = vld [vmem:[%s320 + $0xd40] sm:$0xff]
                %747 = vst [vmem:[%s321 + $0x6a0] sm:$0xff] %v746
                %v748 = vld [vmem:[%s320 + $0xd48] sm:$0xff]
                %749 = vst [vmem:[%s321 + $0x6a8] sm:$0xff] %v748
                %v750 = vld [vmem:[%s320 + $0xd60] sm:$0xff]
                %751 = vst [vmem:[%s321 + $0x6b0] sm:$0xff] %v750
                %v752 = vld [vmem:[%s320 + $0xd68] sm:$0xff]
                %753 = vst [vmem:[%s321 + $0x6b8] sm:$0xff] %v752
                %v754 = vld [vmem:[%s320 + $0xd80] sm:$0xff]
                %755 = vst [vmem:[%s321 + $0x6c0] sm:$0xff] %v754
                %v756 = vld [vmem:[%s320 + $0xd88] sm:$0xff]
                %757 = vst [vmem:[%s321 + $0x6c8] sm:$0xff] %v756
                %v758 = vld [vmem:[%s320 + $0xda0] sm:$0xff]
                %759 = vst [vmem:[%s321 + $0x6d0] sm:$0xff] %v758
                %v760 = vld [vmem:[%s320 + $0xda8] sm:$0xff]
                %761 = vst [vmem:[%s321 + $0x6d8] sm:$0xff] %v760
                %v762 = vld [vmem:[%s320 + $0xdc0] sm:$0xff]
                %763 = vst [vmem:[%s321 + $0x6e0] sm:$0xff] %v762
                %v764 = vld [vmem:[%s320 + $0xdc8] sm:$0xff]
                %765 = vst [vmem:[%s321 + $0x6e8] sm:$0xff] %v764
                %v766 = vld [vmem:[%s320 + $0xde0] sm:$0xff]
                %767 = vst [vmem:[%s321 + $0x6f0] sm:$0xff] %v766
                %v768 = vld [vmem:[%s320 + $0xde8] sm:$0xff]
                %769 = vst [vmem:[%s321 + $0x6f8] sm:$0xff] %v768
                %v770 = vld [vmem:[%s320 + $0xe00] sm:$0xff]
                %771 = vst [vmem:[%s321 + $0x700] sm:$0xff] %v770
                %v772 = vld [vmem:[%s320 + $0xe08] sm:$0xff]
                %773 = vst [vmem:[%s321 + $0x708] sm:$0xff] %v772
                %v774 = vld [vmem:[%s320 + $0xe20] sm:$0xff]
                %775 = vst [vmem:[%s321 + $0x710] sm:$0xff] %v774
                %v776 = vld [vmem:[%s320 + $0xe28] sm:$0xff]
                %777 = vst [vmem:[%s321 + $0x718] sm:$0xff] %v776
                %v778 = vld [vmem:[%s320 + $0xe40] sm:$0xff]
                %779 = vst [vmem:[%s321 + $0x720] sm:$0xff] %v778
                %v780 = vld [vmem:[%s320 + $0xe48] sm:$0xff]
                %781 = vst [vmem:[%s321 + $0x728] sm:$0xff] %v780
                %v782 = vld [vmem:[%s320 + $0xe60] sm:$0xff]
                %783 = vst [vmem:[%s321 + $0x730] sm:$0xff] %v782
                %v784 = vld [vmem:[%s320 + $0xe68] sm:$0xff]
                %785 = vst [vmem:[%s321 + $0x738] sm:$0xff] %v784
                %v786 = vld [vmem:[%s320 + $0xe80] sm:$0xff]
                %787 = vst [vmem:[%s321 + $0x740] sm:$0xff] %v786
                %v788 = vld [vmem:[%s320 + $0xe88] sm:$0xff]
                %789 = vst [vmem:[%s321 + $0x748] sm:$0xff] %v788
                %v790 = vld [vmem:[%s320 + $0xea0] sm:$0xff]
                %791 = vst [vmem:[%s321 + $0x750] sm:$0xff] %v790
                %v792 = vld [vmem:[%s320 + $0xea8] sm:$0xff]
                %793 = vst [vmem:[%s321 + $0x758] sm:$0xff] %v792
                %v794 = vld [vmem:[%s320 + $0xec0] sm:$0xff]
                %795 = vst [vmem:[%s321 + $0x760] sm:$0xff] %v794
                %v796 = vld [vmem:[%s320 + $0xec8] sm:$0xff]
                %797 = vst [vmem:[%s321 + $0x768] sm:$0xff] %v796
                %v798 = vld [vmem:[%s320 + $0xee0] sm:$0xff]
                %799 = vst [vmem:[%s321 + $0x770] sm:$0xff] %v798
                %v800 = vld [vmem:[%s320 + $0xee8] sm:$0xff]
                %801 = vst [vmem:[%s321 + $0x778] sm:$0xff] %v800
                %v802 = vld [vmem:[%s320 + $0xf00] sm:$0xff]
                %803 = vst [vmem:[%s321 + $0x780] sm:$0xff] %v802
                %v804 = vld [vmem:[%s320 + $0xf08] sm:$0xff]
                %805 = vst [vmem:[%s321 + $0x788] sm:$0xff] %v804
                %v806 = vld [vmem:[%s320 + $0xf20] sm:$0xff]
                %807 = vst [vmem:[%s321 + $0x790] sm:$0xff] %v806
                %v808 = vld [vmem:[%s320 + $0xf28] sm:$0xff]
                %809 = vst [vmem:[%s321 + $0x798] sm:$0xff] %v808
                %v810 = vld [vmem:[%s320 + $0xf40] sm:$0xff]
                %811 = vst [vmem:[%s321 + $0x7a0] sm:$0xff] %v810
                %v812 = vld [vmem:[%s320 + $0xf48] sm:$0xff]
                %813 = vst [vmem:[%s321 + $0x7a8] sm:$0xff] %v812
                %v814 = vld [vmem:[%s320 + $0xf60] sm:$0xff]
                %815 = vst [vmem:[%s321 + $0x7b0] sm:$0xff] %v814
                %v816 = vld [vmem:[%s320 + $0xf68] sm:$0xff]
                %817 = vst [vmem:[%s321 + $0x7b8] sm:$0xff] %v816
                %v818 = vld [vmem:[%s320 + $0xf80] sm:$0xff]
                %819 = vst [vmem:[%s321 + $0x7c0] sm:$0xff] %v818
                %v820 = vld [vmem:[%s320 + $0xf88] sm:$0xff]
                %821 = vst [vmem:[%s321 + $0x7c8] sm:$0xff] %v820
                %v822 = vld [vmem:[%s320 + $0xfa0] sm:$0xff]
                %823 = vst [vmem:[%s321 + $0x7d0] sm:$0xff] %v822
                %v824 = vld [vmem:[%s320 + $0xfa8] sm:$0xff]
                %825 = vst [vmem:[%s321 + $0x7d8] sm:$0xff] %v824
                %v826 = vld [vmem:[%s320 + $0xfc0] sm:$0xff]
                %827 = vst [vmem:[%s321 + $0x7e0] sm:$0xff] %v826
                %v828 = vld [vmem:[%s320 + $0xfc8] sm:$0xff]
                %829 = vst [vmem:[%s321 + $0x7e8] sm:$0xff] %v828
                %v830 = vld [vmem:[%s320 + $0xfe0] sm:$0xff]
                %831 = vst [vmem:[%s321 + $0x7f0] sm:$0xff] %v830
                %v832 = vld [vmem:[%s320 + $0xfe8] sm:$0xff]
                %833 = vst [vmem:[%s321 + $0x7f8] sm:$0xff] %v832
                %v834 = vld [vmem:[%s320 + $0x1000] sm:$0xff]
                %835 = vst [vmem:[%s321 + $0x800] sm:$0xff] %v834
                %v836 = vld [vmem:[%s320 + $0x1008] sm:$0xff]
                %837 = vst [vmem:[%s321 + $0x808] sm:$0xff] %v836
                %v838 = vld [vmem:[%s320 + $0x1020] sm:$0xff]
                %839 = vst [vmem:[%s321 + $0x810] sm:$0xff] %v838
                %v840 = vld [vmem:[%s320 + $0x1028] sm:$0xff]
                %841 = vst [vmem:[%s321 + $0x818] sm:$0xff] %v840
                %v842 = vld [vmem:[%s320 + $0x1040] sm:$0xff]
                %843 = vst [vmem:[%s321 + $0x820] sm:$0xff] %v842
                %v844 = vld [vmem:[%s320 + $0x1048] sm:$0xff]
                %845 = vst [vmem:[%s321 + $0x828] sm:$0xff] %v844
                %v846 = vld [vmem:[%s320 + $0x1060] sm:$0xff]
                %847 = vst [vmem:[%s321 + $0x830] sm:$0xff] %v846
                %v848 = vld [vmem:[%s320 + $0x1068] sm:$0xff]
                %849 = vst [vmem:[%s321 + $0x838] sm:$0xff] %v848
                %v850 = vld [vmem:[%s320 + $0x1080] sm:$0xff]
                %851 = vst [vmem:[%s321 + $0x840] sm:$0xff] %v850
                %v852 = vld [vmem:[%s320 + $0x1088] sm:$0xff]
                %853 = vst [vmem:[%s321 + $0x848] sm:$0xff] %v852
                %v854 = vld [vmem:[%s320 + $0x10a0] sm:$0xff]
                %855 = vst [vmem:[%s321 + $0x850] sm:$0xff] %v854
                %v856 = vld [vmem:[%s320 + $0x10a8] sm:$0xff]
                %857 = vst [vmem:[%s321 + $0x858] sm:$0xff] %v856
                %v858 = vld [vmem:[%s320 + $0x10c0] sm:$0xff]
                %859 = vst [vmem:[%s321 + $0x860] sm:$0xff] %v858
                %v860 = vld [vmem:[%s320 + $0x10c8] sm:$0xff]
                %861 = vst [vmem:[%s321 + $0x868] sm:$0xff] %v860
                %v862 = vld [vmem:[%s320 + $0x10e0] sm:$0xff]
                %863 = vst [vmem:[%s321 + $0x870] sm:$0xff] %v862
                %v864 = vld [vmem:[%s320 + $0x10e8] sm:$0xff]
                %865 = vst [vmem:[%s321 + $0x878] sm:$0xff] %v864
                %v866 = vld [vmem:[%s320 + $0x1100] sm:$0xff]
                %867 = vst [vmem:[%s321 + $0x880] sm:$0xff] %v866
                %v868 = vld [vmem:[%s320 + $0x1108] sm:$0xff]
                %869 = vst [vmem:[%s321 + $0x888] sm:$0xff] %v868
                %v870 = vld [vmem:[%s320 + $0x1120] sm:$0xff]
                %871 = vst [vmem:[%s321 + $0x890] sm:$0xff] %v870
                %v872 = vld [vmem:[%s320 + $0x1128] sm:$0xff]
                %873 = vst [vmem:[%s321 + $0x898] sm:$0xff] %v872
                %v874 = vld [vmem:[%s320 + $0x1140] sm:$0xff]
                %875 = vst [vmem:[%s321 + $0x8a0] sm:$0xff] %v874
                %v876 = vld [vmem:[%s320 + $0x1148] sm:$0xff]
                %877 = vst [vmem:[%s321 + $0x8a8] sm:$0xff] %v876
                %v878 = vld [vmem:[%s320 + $0x1160] sm:$0xff]
                %879 = vst [vmem:[%s321 + $0x8b0] sm:$0xff] %v878
                %v880 = vld [vmem:[%s320 + $0x1168] sm:$0xff]
                %881 = vst [vmem:[%s321 + $0x8b8] sm:$0xff] %v880
                %v882 = vld [vmem:[%s320 + $0x1180] sm:$0xff]
                %883 = vst [vmem:[%s321 + $0x8c0] sm:$0xff] %v882
                %v884 = vld [vmem:[%s320 + $0x1188] sm:$0xff]
                %885 = vst [vmem:[%s321 + $0x8c8] sm:$0xff] %v884
                %v886 = vld [vmem:[%s320 + $0x11a0] sm:$0xff]
                %887 = vst [vmem:[%s321 + $0x8d0] sm:$0xff] %v886
                %v888 = vld [vmem:[%s320 + $0x11a8] sm:$0xff]
                %889 = vst [vmem:[%s321 + $0x8d8] sm:$0xff] %v888
                %v890 = vld [vmem:[%s320 + $0x11c0] sm:$0xff]
                %891 = vst [vmem:[%s321 + $0x8e0] sm:$0xff] %v890
                %v892 = vld [vmem:[%s320 + $0x11c8] sm:$0xff]
                %893 = vst [vmem:[%s321 + $0x8e8] sm:$0xff] %v892
                %v894 = vld [vmem:[%s320 + $0x11e0] sm:$0xff]
                %895 = vst [vmem:[%s321 + $0x8f0] sm:$0xff] %v894
                %v896 = vld [vmem:[%s320 + $0x11e8] sm:$0xff]
                %897 = vst [vmem:[%s321 + $0x8f8] sm:$0xff] %v896
              $region63: #{_forward_core.5} parent=57 // loop_footer
                %s319 = sadd.s32 1, %s315
              $region64: #{_forward_core.5} parent=57 // loop_footer_branch
                %314 = sbr.rel target = $region60
              $region65: #{_forward_core.5} parent=57 // loop_exit
                _
            $region58: #{_forward_core.5} parent=53 // pred_fallthru
              _
            // Predicated region
            $region66: #{_forward_core.5} parent=53 // pred_check
              _
            $region67: #{_forward_core.5} parent=53 // pred_check_branch
              %899 = sbr.rel target = $region69
            $region68: #{_forward_core.5} parent=53 // pred_region
              _
            $region69: #{_forward_core.5} parent=53 // pred_fallthru
              _
          $region54: #{_forward_core.5} parent=49 // pred_fallthru
            _
          %900 = vnop
        $region50: #{_forward_core.5} parent=19 // pred_fallthru
          _
        // Predicated region
        $region70: #{_forward_core.5} parent=19 // pred_check
          %p901 = pneg %p106
        $region71: #{_forward_core.5} parent=19 // pred_check_branch
          %903 = sbr.rel (%p901) target = $region73
        $region72: #{_forward_core.5} parent=19 // pred_region
          %s904 = smul.u32 4, %s19
          %p905 = scmp.lt.s32.totalorder %s904, 7
          %s906 = scalar_select %p905, %s904, 7
          %s907 = scalar_lea.vmem %s2, %s906
          %s908 = smul.u32 4, %s19
        $region73: #{_forward_core.5} parent=19 // pred_fallthru
          _
        // Predicated region
        $region74: #{_forward_core.5} parent=19 // pred_check
          %p909 = pneg %p158
        $region75: #{_forward_core.5} parent=19 // pred_check_branch
          %911 = sbr.rel (%p909) target = $region77
        $region76: #{_forward_core.5} parent=19 // pred_region
          %s912 = smul.u32 4, %s19
          %p913 = scmp.lt.s32.totalorder %s912, 7
          %s914 = scalar_select %p913, %s912, 7
          %s915 = scalar_lea.vmem %s4, %s914
          %s916 = smul.u32 4, %s19
        $region77: #{_forward_core.5} parent=19 // pred_fallthru
          _
      $region20: #{_forward_core.5} parent=5 // pred_fallthru
        _
      %p917 = scmp.le.s32.totalorder 1, %s11
      %p918 = scmp.lt.s32.totalorder %s11, 5
      %p919 = pnand %p917, %p918
      %p920 = pneg %p919
      // Predicated region
      $region78: #{_forward_core.5} parent=5 // pred_check
        _
      $region79: #{_forward_core.5} parent=5 // pred_check_branch
        %922 = sbr.rel (%p919) target = $region81
      $region80: #{_forward_core.5} parent=5 // pred_region
        %s923 = ssub.s32 %s11, 1
        %s924 = sand.u32 %s45, 1
        %s925 = sand.u32 %s45, 1
        %s926 = smul.addr %s925, 144
        %s927 = scalar_lea.vmem [#allocation3], %s926
        // Predicated region
        $region82: #{_forward_core.5} parent=80 // pred_check
          %p928 = pneg %p58
        $region83: #{_forward_core.5} parent=80 // pred_check_branch
          %930 = sbr.rel (%p928) target = $region85
        $region84: #{_forward_core.5} parent=80 // pred_region
          _
        $region85: #{_forward_core.5} parent=80 // pred_fallthru
          _
        %s931 = sand.u32 %s73, 1
        %s932 = sand.u32 %s73, 1
        %s933 = smul.addr %s932, 2304
        %s934 = scalar_lea.vmem [#allocation4], %s933
        // Predicated region
        $region86: #{_forward_core.5} parent=80 // pred_check
          %p935 = pneg %p86
        $region87: #{_forward_core.5} parent=80 // pred_check_branch
          %937 = sbr.rel (%p935) target = $region89
        $region88: #{_forward_core.5} parent=80 // pred_region
          _
        $region89: #{_forward_core.5} parent=80 // pred_fallthru
          _
        %s938 = sand.u32 %s45, 1
        %s939 = sand.u32 %s45, 1
        %s940 = smul.addr %s939, 144
        %s941 = scalar_lea.vmem [#allocation3], %s940
        %p942 = pneg %p58
        %p943 = pneg %p55
        %s944 = sand.u32 %s73, 1
        %s945 = sand.u32 %s73, 1
        %s946 = smul.addr %s945, 2304
        %s947 = scalar_lea.vmem [#allocation4], %s946
        %p948 = pneg %p86
        %p949 = pneg %p83
        %s950 = smul.u32 4, %s22
        %p951 = scmp.lt.s32.totalorder %s950, 7
        %s952 = scalar_select %p951, %s950, 7
        %s953 = scalar_lea.vmem %s2, %s952
        %p954 = pneg %p112
        %p955 = pneg %p109
        %s956 = smul.u32 4, %s21
        %p957 = scmp.lt.s32.totalorder %s956, 3
        %s958 = scalar_select %p957, %s956, 3
        %s959 = smul.addr %s958, 8
        %s960 = scalar_lea.vmem %s3, %s959
        %p961 = pneg %p138
        %p962 = pneg %p135
        %s963 = smul.u32 4, %s22
        %p964 = scmp.lt.s32.totalorder %s963, 7
        %s965 = scalar_select %p964, %s963, 7
        %s966 = scalar_lea.vmem %s4, %s965
        %p967 = pneg %p164
        %p968 = pneg %p161
        %p969 = pneg %p192
        %p970 = pneg %p189
        %s971 = sand.u32 %s179, 1
        %s972 = sand.u32 %s179, 1
        %s973 = smul.addr %s972, 64
        %s974 = scalar_lea.vmem [#allocation5], %s973
        %s975 = smul.u32 4, %s21
        %s976 = smul.u32 9, %s23
        %s977 = smul.u32 144, %s23
        %s978 = smul.u32 4, %s22
        %s979 = smul.u32 4, %s22
        %p980 = scmp.lt.s32.totalorder %s979, 7
        %s981 = scalar_select %p980, %s979, 7
        %s982 = scalar_lea.vmem %s2, %s981
        %s983 = smul.u32 4, %s22
        %s984 = smul.u32 4, %s21
        %p985 = scmp.lt.s32.totalorder %s984, 3
        %s986 = scalar_select %p985, %s984, 3
        %s987 = smul.addr %s986, 8
        %s988 = scalar_lea.vmem %s3, %s987
        %s989 = smul.u32 4, %s21
        %s990 = smul.u32 4, %s22
        %p991 = scmp.lt.s32.totalorder %s990, 7
        %s992 = scalar_select %p991, %s990, 7
        %s993 = scalar_lea.vmem %s4, %s992
        %s994 = smul.u32 4, %s22
        %s995 = smul.u32 4, %s21
        %s996 = smul.u32 4, %s22
        %p998 = scmp.eq.s32.totalorder %s23, 0
        // Predicated region
        $region90: #{_forward_core.5} parent=80 // pred_check
          %p999 = pneg %p998
        $region91: #{_forward_core.5} parent=80 // pred_check_branch
          %1001 = sbr.rel (%p999) target = $region93
        $region92: #{_forward_core.5} parent=80 // pred_region
          %1002 = vst [vmem:[#allocation2] sm:$0xff] 0.0
          %1003 = vst [vmem:[#allocation2 + $0x8] sm:$0xff] 0.0
          %1004 = vst [vmem:[#allocation2 + $0x10] sm:$0xff] 0.0
          %1005 = vst [vmem:[#allocation2 + $0x18] sm:$0xff] 0.0
          %1006 = vst [vmem:[#allocation2 + $0x20] sm:$0xff] 0.0
          %1007 = vst [vmem:[#allocation2 + $0x28] sm:$0xff] 0.0
          %1008 = vst [vmem:[#allocation2 + $0x30] sm:$0xff] 0.0
          %1009 = vst [vmem:[#allocation2 + $0x38] sm:$0xff] 0.0
          %1010 = vst [vmem:[#allocation2 + $0x40] sm:$0xff] 0.0
          %1011 = vst [vmem:[#allocation2 + $0x48] sm:$0xff] 0.0
          %1012 = vst [vmem:[#allocation2 + $0x50] sm:$0xff] 0.0
          %1013 = vst [vmem:[#allocation2 + $0x58] sm:$0xff] 0.0
          %1014 = vst [vmem:[#allocation2 + $0x60] sm:$0xff] 0.0
          %1015 = vst [vmem:[#allocation2 + $0x68] sm:$0xff] 0.0
          %1016 = vst [vmem:[#allocation2 + $0x70] sm:$0xff] 0.0
          %1017 = vst [vmem:[#allocation2 + $0x78] sm:$0xff] 0.0
        $region93: #{_forward_core.5} parent=80 // pred_fallthru
          _
        %v1018 = vld [vmem:[%s934] sm:$0xff]
        %v1019 = vld [vmem:[%s934 + $0x8] sm:$0xff]
        %v1020 = vld [vmem:[%s934 + $0x10] sm:$0xff]
        %v1021 = vld [vmem:[%s934 + $0x18] sm:$0xff]
        %v1022 = vld [vmem:[%s934 + $0x20] sm:$0xff]
        %v1023 = vld [vmem:[%s934 + $0x28] sm:$0xff]
        %v1024 = vld [vmem:[%s934 + $0x30] sm:$0xff]
        %v1025 = vld [vmem:[%s934 + $0x38] sm:$0xff]
        %v1026 = vld [vmem:[%s934 + $0x40] sm:$0xff]
        %v1027 = vld [vmem:[%s934 + $0x48] sm:$0xff]
        %v1028 = vld [vmem:[%s934 + $0x50] sm:$0xff]
        %v1029 = vld [vmem:[%s934 + $0x58] sm:$0xff]
        %v1030 = vld [vmem:[%s934 + $0x60] sm:$0xff]
        %v1031 = vld [vmem:[%s934 + $0x68] sm:$0xff]
        %v1032 = vld [vmem:[%s934 + $0x70] sm:$0xff]
        %v1033 = vld [vmem:[%s934 + $0x78] sm:$0xff]
        %v1034 = vld [vmem:[%s934 + $0x80] sm:$0xff]
        %v1035 = vld [vmem:[%s934 + $0x88] sm:$0xff]
        %v1036 = vld [vmem:[%s934 + $0x90] sm:$0xff]
        %v1037 = vld [vmem:[%s934 + $0x98] sm:$0xff]
        %v1038 = vld [vmem:[%s934 + $0xa0] sm:$0xff]
        %v1039 = vld [vmem:[%s934 + $0xa8] sm:$0xff]
        %v1040 = vld [vmem:[%s934 + $0xb0] sm:$0xff]
        %v1041 = vld [vmem:[%s934 + $0xb8] sm:$0xff]
        %v1042 = vld [vmem:[%s934 + $0xc0] sm:$0xff]
        %v1043 = vld [vmem:[%s934 + $0xc8] sm:$0xff]
        %v1044 = vld [vmem:[%s934 + $0xd0] sm:$0xff]
        %v1045 = vld [vmem:[%s934 + $0xd8] sm:$0xff]
        %v1046 = vld [vmem:[%s934 + $0xe0] sm:$0xff]
        %v1047 = vld [vmem:[%s934 + $0xe8] sm:$0xff]
        %v1048 = vld [vmem:[%s934 + $0xf0] sm:$0xff]
        %v1049 = vld [vmem:[%s934 + $0xf8] sm:$0xff]
        %v1050 = vld [vmem:[%s934 + $0x100] sm:$0xff]
        %v1051 = vld [vmem:[%s934 + $0x108] sm:$0xff]
        %v1052 = vld [vmem:[%s934 + $0x110] sm:$0xff]
        %v1053 = vld [vmem:[%s934 + $0x118] sm:$0xff]
        %v1054 = vld [vmem:[%s934 + $0x120] sm:$0xff]
        %v1055 = vld [vmem:[%s934 + $0x128] sm:$0xff]
        %v1056 = vld [vmem:[%s934 + $0x130] sm:$0xff]
        %v1057 = vld [vmem:[%s934 + $0x138] sm:$0xff]
        %v1058 = vld [vmem:[%s934 + $0x140] sm:$0xff]
        %v1059 = vld [vmem:[%s934 + $0x148] sm:$0xff]
        %v1060 = vld [vmem:[%s934 + $0x150] sm:$0xff]
        %v1061 = vld [vmem:[%s934 + $0x158] sm:$0xff]
        %v1062 = vld [vmem:[%s934 + $0x160] sm:$0xff]
        %v1063 = vld [vmem:[%s934 + $0x168] sm:$0xff]
        %v1064 = vld [vmem:[%s934 + $0x170] sm:$0xff]
        %v1065 = vld [vmem:[%s934 + $0x178] sm:$0xff]
        %v1066 = vld [vmem:[%s934 + $0x180] sm:$0xff]
        %v1067 = vld [vmem:[%s934 + $0x188] sm:$0xff]
        %v1068 = vld [vmem:[%s934 + $0x190] sm:$0xff]
        %v1069 = vld [vmem:[%s934 + $0x198] sm:$0xff]
        %v1070 = vld [vmem:[%s934 + $0x1a0] sm:$0xff]
        %v1071 = vld [vmem:[%s934 + $0x1a8] sm:$0xff]
        %v1072 = vld [vmem:[%s934 + $0x1b0] sm:$0xff]
        %v1073 = vld [vmem:[%s934 + $0x1b8] sm:$0xff]
        %v1074 = vld [vmem:[%s934 + $0x1c0] sm:$0xff]
        %v1075 = vld [vmem:[%s934 + $0x1c8] sm:$0xff]
        %v1076 = vld [vmem:[%s934 + $0x1d0] sm:$0xff]
        %v1077 = vld [vmem:[%s934 + $0x1d8] sm:$0xff]
        %v1078 = vld [vmem:[%s934 + $0x1e0] sm:$0xff]
        %v1079 = vld [vmem:[%s934 + $0x1e8] sm:$0xff]
        %v1080 = vld [vmem:[%s934 + $0x1f0] sm:$0xff]
        %v1081 = vld [vmem:[%s934 + $0x1f8] sm:$0xff]
        %v1082 = vld [vmem:[%s934 + $0x200] sm:$0xff]
        %v1083 = vld [vmem:[%s934 + $0x208] sm:$0xff]
        %v1084 = vld [vmem:[%s934 + $0x210] sm:$0xff]
        %v1085 = vld [vmem:[%s934 + $0x218] sm:$0xff]
        %v1086 = vld [vmem:[%s934 + $0x220] sm:$0xff]
        %v1087 = vld [vmem:[%s934 + $0x228] sm:$0xff]
        %v1088 = vld [vmem:[%s934 + $0x230] sm:$0xff]
        %v1089 = vld [vmem:[%s934 + $0x238] sm:$0xff]
        %v1090 = vld [vmem:[%s934 + $0x240] sm:$0xff]
        %v1091 = vld [vmem:[%s934 + $0x248] sm:$0xff]
        %v1092 = vld [vmem:[%s934 + $0x250] sm:$0xff]
        %v1093 = vld [vmem:[%s934 + $0x258] sm:$0xff]
        %v1094 = vld [vmem:[%s934 + $0x260] sm:$0xff]
        %v1095 = vld [vmem:[%s934 + $0x268] sm:$0xff]
        %v1096 = vld [vmem:[%s934 + $0x270] sm:$0xff]
        %v1097 = vld [vmem:[%s934 + $0x278] sm:$0xff]
        %v1098 = vld [vmem:[%s934 + $0x280] sm:$0xff]
        %v1099 = vld [vmem:[%s934 + $0x288] sm:$0xff]
        %v1100 = vld [vmem:[%s934 + $0x290] sm:$0xff]
        %v1101 = vld [vmem:[%s934 + $0x298] sm:$0xff]
        %v1102 = vld [vmem:[%s934 + $0x2a0] sm:$0xff]
        %v1103 = vld [vmem:[%s934 + $0x2a8] sm:$0xff]
        %v1104 = vld [vmem:[%s934 + $0x2b0] sm:$0xff]
        %v1105 = vld [vmem:[%s934 + $0x2b8] sm:$0xff]
        %v1106 = vld [vmem:[%s934 + $0x2c0] sm:$0xff]
        %v1107 = vld [vmem:[%s934 + $0x2c8] sm:$0xff]
        %v1108 = vld [vmem:[%s934 + $0x2d0] sm:$0xff]
        %v1109 = vld [vmem:[%s934 + $0x2d8] sm:$0xff]
        %v1110 = vld [vmem:[%s934 + $0x2e0] sm:$0xff]
        %v1111 = vld [vmem:[%s934 + $0x2e8] sm:$0xff]
        %v1112 = vld [vmem:[%s934 + $0x2f0] sm:$0xff]
        %v1113 = vld [vmem:[%s934 + $0x2f8] sm:$0xff]
        %v1114 = vld [vmem:[%s934 + $0x300] sm:$0xff]
        %v1115 = vld [vmem:[%s934 + $0x308] sm:$0xff]
        %v1116 = vld [vmem:[%s934 + $0x310] sm:$0xff]
        %v1117 = vld [vmem:[%s934 + $0x318] sm:$0xff]
        %v1118 = vld [vmem:[%s934 + $0x320] sm:$0xff]
        %v1119 = vld [vmem:[%s934 + $0x328] sm:$0xff]
        %v1120 = vld [vmem:[%s934 + $0x330] sm:$0xff]
        %v1121 = vld [vmem:[%s934 + $0x338] sm:$0xff]
        %v1122 = vld [vmem:[%s934 + $0x340] sm:$0xff]
        %v1123 = vld [vmem:[%s934 + $0x348] sm:$0xff]
        %v1124 = vld [vmem:[%s934 + $0x350] sm:$0xff]
        %v1125 = vld [vmem:[%s934 + $0x358] sm:$0xff]
        %v1126 = vld [vmem:[%s934 + $0x360] sm:$0xff]
        %v1127 = vld [vmem:[%s934 + $0x368] sm:$0xff]
        %v1128 = vld [vmem:[%s934 + $0x370] sm:$0xff]
        %v1129 = vld [vmem:[%s934 + $0x378] sm:$0xff]
        %v1130 = vld [vmem:[%s934 + $0x380] sm:$0xff]
        %v1131 = vld [vmem:[%s934 + $0x388] sm:$0xff]
        %v1132 = vld [vmem:[%s934 + $0x390] sm:$0xff]
        %v1133 = vld [vmem:[%s934 + $0x398] sm:$0xff]
        %v1134 = vld [vmem:[%s934 + $0x3a0] sm:$0xff]
        %v1135 = vld [vmem:[%s934 + $0x3a8] sm:$0xff]
        %v1136 = vld [vmem:[%s934 + $0x3b0] sm:$0xff]
        %v1137 = vld [vmem:[%s934 + $0x3b8] sm:$0xff]
        %v1138 = vld [vmem:[%s934 + $0x3c0] sm:$0xff]
        %v1139 = vld [vmem:[%s934 + $0x3c8] sm:$0xff]
        %v1140 = vld [vmem:[%s934 + $0x3d0] sm:$0xff]
        %v1141 = vld [vmem:[%s934 + $0x3d8] sm:$0xff]
        %v1142 = vld [vmem:[%s934 + $0x3e0] sm:$0xff]
        %v1143 = vld [vmem:[%s934 + $0x3e8] sm:$0xff]
        %v1144 = vld [vmem:[%s934 + $0x3f0] sm:$0xff]
        %v1145 = vld [vmem:[%s934 + $0x3f8] sm:$0xff]
        %v1146 = vld [vmem:[%s934 + $0x400] sm:$0xff]
        %v1147 = vld [vmem:[%s934 + $0x408] sm:$0xff]
        %v1148 = vld [vmem:[%s934 + $0x410] sm:$0xff]
        %v1149 = vld [vmem:[%s934 + $0x418] sm:$0xff]
        %v1150 = vld [vmem:[%s934 + $0x420] sm:$0xff]
        %v1151 = vld [vmem:[%s934 + $0x428] sm:$0xff]
        %v1152 = vld [vmem:[%s934 + $0x430] sm:$0xff]
        %v1153 = vld [vmem:[%s934 + $0x438] sm:$0xff]
        %v1154 = vld [vmem:[%s934 + $0x440] sm:$0xff]
        %v1155 = vld [vmem:[%s934 + $0x448] sm:$0xff]
        %v1156 = vld [vmem:[%s934 + $0x450] sm:$0xff]
        %v1157 = vld [vmem:[%s934 + $0x458] sm:$0xff]
        %v1158 = vld [vmem:[%s934 + $0x460] sm:$0xff]
        %v1159 = vld [vmem:[%s934 + $0x468] sm:$0xff]
        %v1160 = vld [vmem:[%s934 + $0x470] sm:$0xff]
        %v1161 = vld [vmem:[%s934 + $0x478] sm:$0xff]
        %v1162 = vld [vmem:[%s934 + $0x480] sm:$0xff]
        %v1163 = vld [vmem:[%s934 + $0x488] sm:$0xff]
        %v1164 = vld [vmem:[%s934 + $0x490] sm:$0xff]
        %v1165 = vld [vmem:[%s934 + $0x498] sm:$0xff]
        %v1166 = vld [vmem:[%s934 + $0x4a0] sm:$0xff]
        %v1167 = vld [vmem:[%s934 + $0x4a8] sm:$0xff]
        %v1168 = vld [vmem:[%s934 + $0x4b0] sm:$0xff]
        %v1169 = vld [vmem:[%s934 + $0x4b8] sm:$0xff]
        %v1170 = vld [vmem:[%s934 + $0x4c0] sm:$0xff]
        %v1171 = vld [vmem:[%s934 + $0x4c8] sm:$0xff]
        %v1172 = vld [vmem:[%s934 + $0x4d0] sm:$0xff]
        %v1173 = vld [vmem:[%s934 + $0x4d8] sm:$0xff]
        %v1174 = vld [vmem:[%s934 + $0x4e0] sm:$0xff]
        %v1175 = vld [vmem:[%s934 + $0x4e8] sm:$0xff]
        %v1176 = vld [vmem:[%s934 + $0x4f0] sm:$0xff]
        %v1177 = vld [vmem:[%s934 + $0x4f8] sm:$0xff]
        %v1178 = vld [vmem:[%s934 + $0x500] sm:$0xff]
        %v1179 = vld [vmem:[%s934 + $0x508] sm:$0xff]
        %v1180 = vld [vmem:[%s934 + $0x510] sm:$0xff]
        %v1181 = vld [vmem:[%s934 + $0x518] sm:$0xff]
        %v1182 = vld [vmem:[%s934 + $0x520] sm:$0xff]
        %v1183 = vld [vmem:[%s934 + $0x528] sm:$0xff]
        %v1184 = vld [vmem:[%s934 + $0x530] sm:$0xff]
        %v1185 = vld [vmem:[%s934 + $0x538] sm:$0xff]
        %v1186 = vld [vmem:[%s934 + $0x540] sm:$0xff]
        %v1187 = vld [vmem:[%s934 + $0x548] sm:$0xff]
        %v1188 = vld [vmem:[%s934 + $0x550] sm:$0xff]
        %v1189 = vld [vmem:[%s934 + $0x558] sm:$0xff]
        %v1190 = vld [vmem:[%s934 + $0x560] sm:$0xff]
        %v1191 = vld [vmem:[%s934 + $0x568] sm:$0xff]
        %v1192 = vld [vmem:[%s934 + $0x570] sm:$0xff]
        %v1193 = vld [vmem:[%s934 + $0x578] sm:$0xff]
        %v1194 = vld [vmem:[%s934 + $0x580] sm:$0xff]
        %v1195 = vld [vmem:[%s934 + $0x588] sm:$0xff]
        %v1196 = vld [vmem:[%s934 + $0x590] sm:$0xff]
        %v1197 = vld [vmem:[%s934 + $0x598] sm:$0xff]
        %v1198 = vld [vmem:[%s934 + $0x5a0] sm:$0xff]
        %v1199 = vld [vmem:[%s934 + $0x5a8] sm:$0xff]
        %v1200 = vld [vmem:[%s934 + $0x5b0] sm:$0xff]
        %v1201 = vld [vmem:[%s934 + $0x5b8] sm:$0xff]
        %v1202 = vld [vmem:[%s934 + $0x5c0] sm:$0xff]
        %v1203 = vld [vmem:[%s934 + $0x5c8] sm:$0xff]
        %v1204 = vld [vmem:[%s934 + $0x5d0] sm:$0xff]
        %v1205 = vld [vmem:[%s934 + $0x5d8] sm:$0xff]
        %v1206 = vld [vmem:[%s934 + $0x5e0] sm:$0xff]
        %v1207 = vld [vmem:[%s934 + $0x5e8] sm:$0xff]
        %v1208 = vld [vmem:[%s934 + $0x5f0] sm:$0xff]
        %v1209 = vld [vmem:[%s934 + $0x5f8] sm:$0xff]
        %v1210 = vld [vmem:[%s934 + $0x600] sm:$0xff]
        %v1211 = vld [vmem:[%s934 + $0x608] sm:$0xff]
        %v1212 = vld [vmem:[%s934 + $0x610] sm:$0xff]
        %v1213 = vld [vmem:[%s934 + $0x618] sm:$0xff]
        %v1214 = vld [vmem:[%s934 + $0x620] sm:$0xff]
        %v1215 = vld [vmem:[%s934 + $0x628] sm:$0xff]
        %v1216 = vld [vmem:[%s934 + $0x630] sm:$0xff]
        %v1217 = vld [vmem:[%s934 + $0x638] sm:$0xff]
        %v1218 = vld [vmem:[%s934 + $0x640] sm:$0xff]
        %v1219 = vld [vmem:[%s934 + $0x648] sm:$0xff]
        %v1220 = vld [vmem:[%s934 + $0x650] sm:$0xff]
        %v1221 = vld [vmem:[%s934 + $0x658] sm:$0xff]
        %v1222 = vld [vmem:[%s934 + $0x660] sm:$0xff]
        %v1223 = vld [vmem:[%s934 + $0x668] sm:$0xff]
        %v1224 = vld [vmem:[%s934 + $0x670] sm:$0xff]
        %v1225 = vld [vmem:[%s934 + $0x678] sm:$0xff]
        %v1226 = vld [vmem:[%s934 + $0x680] sm:$0xff]
        %v1227 = vld [vmem:[%s934 + $0x688] sm:$0xff]
        %v1228 = vld [vmem:[%s934 + $0x690] sm:$0xff]
        %v1229 = vld [vmem:[%s934 + $0x698] sm:$0xff]
        %v1230 = vld [vmem:[%s934 + $0x6a0] sm:$0xff]
        %v1231 = vld [vmem:[%s934 + $0x6a8] sm:$0xff]
        %v1232 = vld [vmem:[%s934 + $0x6b0] sm:$0xff]
        %v1233 = vld [vmem:[%s934 + $0x6b8] sm:$0xff]
        %v1234 = vld [vmem:[%s934 + $0x6c0] sm:$0xff]
        %v1235 = vld [vmem:[%s934 + $0x6c8] sm:$0xff]
        %v1236 = vld [vmem:[%s934 + $0x6d0] sm:$0xff]
        %v1237 = vld [vmem:[%s934 + $0x6d8] sm:$0xff]
        %v1238 = vld [vmem:[%s934 + $0x6e0] sm:$0xff]
        %v1239 = vld [vmem:[%s934 + $0x6e8] sm:$0xff]
        %v1240 = vld [vmem:[%s934 + $0x6f0] sm:$0xff]
        %v1241 = vld [vmem:[%s934 + $0x6f8] sm:$0xff]
        %v1242 = vld [vmem:[%s934 + $0x700] sm:$0xff]
        %v1243 = vld [vmem:[%s934 + $0x708] sm:$0xff]
        %v1244 = vld [vmem:[%s934 + $0x710] sm:$0xff]
        %v1245 = vld [vmem:[%s934 + $0x718] sm:$0xff]
        %v1246 = vld [vmem:[%s934 + $0x720] sm:$0xff]
        %v1247 = vld [vmem:[%s934 + $0x728] sm:$0xff]
        %v1248 = vld [vmem:[%s934 + $0x730] sm:$0xff]
        %v1249 = vld [vmem:[%s934 + $0x738] sm:$0xff]
        %v1250 = vld [vmem:[%s934 + $0x740] sm:$0xff]
        %v1251 = vld [vmem:[%s934 + $0x748] sm:$0xff]
        %v1252 = vld [vmem:[%s934 + $0x750] sm:$0xff]
        %v1253 = vld [vmem:[%s934 + $0x758] sm:$0xff]
        %v1254 = vld [vmem:[%s934 + $0x760] sm:$0xff]
        %v1255 = vld [vmem:[%s934 + $0x768] sm:$0xff]
        %v1256 = vld [vmem:[%s934 + $0x770] sm:$0xff]
        %v1257 = vld [vmem:[%s934 + $0x778] sm:$0xff]
        %v1258 = vld [vmem:[%s934 + $0x780] sm:$0xff]
        %v1259 = vld [vmem:[%s934 + $0x788] sm:$0xff]
        %v1260 = vld [vmem:[%s934 + $0x790] sm:$0xff]
        %v1261 = vld [vmem:[%s934 + $0x798] sm:$0xff]
        %v1262 = vld [vmem:[%s934 + $0x7a0] sm:$0xff]
        %v1263 = vld [vmem:[%s934 + $0x7a8] sm:$0xff]
        %v1264 = vld [vmem:[%s934 + $0x7b0] sm:$0xff]
        %v1265 = vld [vmem:[%s934 + $0x7b8] sm:$0xff]
        %v1266 = vld [vmem:[%s934 + $0x7c0] sm:$0xff]
        %v1267 = vld [vmem:[%s934 + $0x7c8] sm:$0xff]
        %v1268 = vld [vmem:[%s934 + $0x7d0] sm:$0xff]
        %v1269 = vld [vmem:[%s934 + $0x7d8] sm:$0xff]
        %v1270 = vld [vmem:[%s934 + $0x7e0] sm:$0xff]
        %v1271 = vld [vmem:[%s934 + $0x7e8] sm:$0xff]
        %v1272 = vld [vmem:[%s934 + $0x7f0] sm:$0xff]
        %v1273 = vld [vmem:[%s934 + $0x7f8] sm:$0xff]
        %v1274 = vld [vmem:[%s934 + $0x800] sm:$0xff]
        %v1275 = vld [vmem:[%s934 + $0x808] sm:$0xff]
        %v1276 = vld [vmem:[%s934 + $0x810] sm:$0xff]
        %v1277 = vld [vmem:[%s934 + $0x818] sm:$0xff]
        %v1278 = vld [vmem:[%s934 + $0x820] sm:$0xff]
        %v1279 = vld [vmem:[%s934 + $0x828] sm:$0xff]
        %v1280 = vld [vmem:[%s934 + $0x830] sm:$0xff]
        %v1281 = vld [vmem:[%s934 + $0x838] sm:$0xff]
        %v1282 = vld [vmem:[%s934 + $0x840] sm:$0xff]
        %v1283 = vld [vmem:[%s934 + $0x848] sm:$0xff]
        %v1284 = vld [vmem:[%s934 + $0x850] sm:$0xff]
        %v1285 = vld [vmem:[%s934 + $0x858] sm:$0xff]
        %v1286 = vld [vmem:[%s934 + $0x860] sm:$0xff]
        %v1287 = vld [vmem:[%s934 + $0x868] sm:$0xff]
        %v1288 = vld [vmem:[%s934 + $0x870] sm:$0xff]
        %v1289 = vld [vmem:[%s934 + $0x878] sm:$0xff]
        %v1290 = vld [vmem:[%s934 + $0x880] sm:$0xff]
        %v1291 = vld [vmem:[%s934 + $0x888] sm:$0xff]
        %v1292 = vld [vmem:[%s934 + $0x890] sm:$0xff]
        %v1293 = vld [vmem:[%s934 + $0x898] sm:$0xff]
        %v1294 = vld [vmem:[%s934 + $0x8a0] sm:$0xff]
        %v1295 = vld [vmem:[%s934 + $0x8a8] sm:$0xff]
        %v1296 = vld [vmem:[%s934 + $0x8b0] sm:$0xff]
        %v1297 = vld [vmem:[%s934 + $0x8b8] sm:$0xff]
        %v1298 = vld [vmem:[%s934 + $0x8c0] sm:$0xff]
        %v1299 = vld [vmem:[%s934 + $0x8c8] sm:$0xff]
        %v1300 = vld [vmem:[%s934 + $0x8d0] sm:$0xff]
        %v1301 = vld [vmem:[%s934 + $0x8d8] sm:$0xff]
        %v1302 = vld [vmem:[%s934 + $0x8e0] sm:$0xff]
        %v1303 = vld [vmem:[%s934 + $0x8e8] sm:$0xff]
        %v1304 = vld [vmem:[%s934 + $0x8f0] sm:$0xff]
        %v1305 = vld [vmem:[%s934 + $0x8f8] sm:$0xff]
        %v1306 = vld [vmem:[#allocation2] sm:$0xff]
        %v1307 = vld [vmem:[#allocation2 + $0x8] sm:$0xff]
        %v1308 = vld [vmem:[#allocation2 + $0x10] sm:$0xff]
        %v1309 = vld [vmem:[#allocation2 + $0x18] sm:$0xff]
        %v1310 = vld [vmem:[#allocation2 + $0x20] sm:$0xff]
        %v1311 = vld [vmem:[#allocation2 + $0x28] sm:$0xff]
        %v1312 = vld [vmem:[#allocation2 + $0x30] sm:$0xff]
        %v1313 = vld [vmem:[#allocation2 + $0x38] sm:$0xff]
        %v1314 = vld [vmem:[#allocation2 + $0x40] sm:$0xff]
        %v1315 = vld [vmem:[#allocation2 + $0x48] sm:$0xff]
        %v1316 = vld [vmem:[#allocation2 + $0x50] sm:$0xff]
        %v1317 = vld [vmem:[#allocation2 + $0x58] sm:$0xff]
        %v1318 = vld [vmem:[#allocation2 + $0x60] sm:$0xff]
        %v1319 = vld [vmem:[#allocation2 + $0x68] sm:$0xff]
        %v1320 = vld [vmem:[#allocation2 + $0x70] sm:$0xff]
        %v1321 = vld [vmem:[#allocation2 + $0x78] sm:$0xff]
        %v1322 = vld [vmem:[%s927] sm:$0xff]
        %v1323 = vld [vmem:[%s927 + $0x8] sm:$0xff]
        %v1324 = vld [vmem:[%s927 + $0x10] sm:$0xff]
        %v1325 = vld [vmem:[%s927 + $0x18] sm:$0xff]
        %v1326 = vld [vmem:[%s927 + $0x20] sm:$0xf]
        %v1327 = vld [vmem:[%s927 + $0x24] sm:$0xff]
        %v1328 = vld [vmem:[%s927 + $0x2c] sm:$0xff]
        %v1329 = vld [vmem:[%s927 + $0x34] sm:$0xff]
        %v1330 = vld [vmem:[%s927 + $0x3c] sm:$0xff]
        %v1331 = vld [vmem:[%s927 + $0x44] sm:$0xf]
        %v1332 = vld [vmem:[%s927 + $0x48] sm:$0xff]
        %v1333 = vld [vmem:[%s927 + $0x50] sm:$0xff]
        %v1334 = vld [vmem:[%s927 + $0x58] sm:$0xff]
        %v1335 = vld [vmem:[%s927 + $0x60] sm:$0xff]
        %v1336 = vld [vmem:[%s927 + $0x68] sm:$0xf]
        %v1337 = vld [vmem:[%s927 + $0x6c] sm:$0xff]
        %v1338 = vld [vmem:[%s927 + $0x74] sm:$0xff]
        %v1339 = vld [vmem:[%s927 + $0x7c] sm:$0xff]
        %v1340 = vld [vmem:[%s927 + $0x84] sm:$0xff]
        %v1341 = vld [vmem:[%s927 + $0x8c] sm:$0xf]
        %v1362 = vunpack.c.l.b16 %v1322
        %v1363 = vunpack.c.h.b16 %v1322
        %v1364 = vunpack.c.l.b16 %v1323
        %v1365 = vunpack.c.h.b16 %v1323
        %v1366 = vunpack.c.l.b16 %v1324
        %v1367 = vunpack.c.h.b16 %v1324
        %v1368 = vunpack.c.l.b16 %v1325
        %v1369 = vunpack.c.h.b16 %v1325
        %v1370 = vunpack.c.l.b16 %v1326
        %v1371 = vunpack.c.l.b16 %v1327
        %v1372 = vunpack.c.h.b16 %v1327
        %v1373 = vunpack.c.l.b16 %v1328
        %v1374 = vunpack.c.h.b16 %v1328
        %v1375 = vunpack.c.l.b16 %v1329
        %v1376 = vunpack.c.h.b16 %v1329
        %v1377 = vunpack.c.l.b16 %v1330
        %v1378 = vunpack.c.h.b16 %v1330
        %v1379 = vunpack.c.l.b16 %v1331
        %v1380 = vunpack.c.l.b16 %v1332
        %v1381 = vunpack.c.h.b16 %v1332
        %v1382 = vunpack.c.l.b16 %v1333
        %v1383 = vunpack.c.h.b16 %v1333
        %v1384 = vunpack.c.l.b16 %v1334
        %v1385 = vunpack.c.h.b16 %v1334
        %v1386 = vunpack.c.l.b16 %v1335
        %v1387 = vunpack.c.h.b16 %v1335
        %v1388 = vunpack.c.l.b16 %v1336
        %v1389 = vunpack.c.l.b16 %v1337
        %v1390 = vunpack.c.h.b16 %v1337
        %v1391 = vunpack.c.l.b16 %v1338
        %v1392 = vunpack.c.h.b16 %v1338
        %v1393 = vunpack.c.l.b16 %v1339
        %v1394 = vunpack.c.h.b16 %v1339
        %v1395 = vunpack.c.l.b16 %v1340
        %v1396 = vunpack.c.h.b16 %v1340
        %v1397 = vunpack.c.l.b16 %v1341
        %v1398 = vpack.c.b16 %v1371, %v1362
        %v1399 = vpack.c.b16 %v1372, %v1363
        %v1400 = vpack.c.b16 %v1373, %v1364
        %v1401 = vpack.c.b16 %v1374, %v1365
        %v1402 = vpack.c.b16 %v1375, %v1366
        %v1403 = vpack.c.b16 %v1376, %v1367
        %v1404 = vpack.c.b16 %v1377, %v1368
        %v1405 = vpack.c.b16 %v1378, %v1369
        %v1406 = vpack.c.b16 %v1379, %v1370
        %v1407 = vpack.c.b16 %v1389, %v1380
        %v1408 = vpack.c.b16 %v1390, %v1381
        %v1409 = vpack.c.b16 %v1391, %v1382
        %v1410 = vpack.c.b16 %v1392, %v1383
        %v1411 = vpack.c.b16 %v1393, %v1384
        %v1412 = vpack.c.b16 %v1394, %v1385
        %v1413 = vpack.c.b16 %v1395, %v1386
        %v1414 = vpack.c.b16 %v1396, %v1387
        %v1415 = vpack.c.b16 %v1397, %v1388
        %v1722 = vunpack.c.l.b16 %v1018
        %v1723 = vunpack.c.h.b16 %v1018
        %v1724 = vunpack.c.l.b16 %v1019
        %v1725 = vunpack.c.h.b16 %v1019
        %v1726 = vunpack.c.l.b16 %v1020
        %v1727 = vunpack.c.h.b16 %v1020
        %v1728 = vunpack.c.l.b16 %v1021
        %v1729 = vunpack.c.h.b16 %v1021
        %v1730 = vunpack.c.l.b16 %v1022
        %v1731 = vunpack.c.h.b16 %v1022
        %v1732 = vunpack.c.l.b16 %v1023
        %v1733 = vunpack.c.h.b16 %v1023
        %v1734 = vunpack.c.l.b16 %v1024
        %v1735 = vunpack.c.h.b16 %v1024
        %v1736 = vunpack.c.l.b16 %v1025
        %v1737 = vunpack.c.h.b16 %v1025
        %v1738 = vunpack.c.l.b16 %v1026
        %v1739 = vunpack.c.h.b16 %v1026
        %v1740 = vunpack.c.l.b16 %v1027
        %v1741 = vunpack.c.h.b16 %v1027
        %v1742 = vunpack.c.l.b16 %v1028
        %v1743 = vunpack.c.h.b16 %v1028
        %v1744 = vunpack.c.l.b16 %v1029
        %v1745 = vunpack.c.h.b16 %v1029
        %v1746 = vunpack.c.l.b16 %v1030
        %v1747 = vunpack.c.h.b16 %v1030
        %v1748 = vunpack.c.l.b16 %v1031
        %v1749 = vunpack.c.h.b16 %v1031
        %v1750 = vunpack.c.l.b16 %v1032
        %v1751 = vunpack.c.h.b16 %v1032
        %v1752 = vunpack.c.l.b16 %v1033
        %v1753 = vunpack.c.h.b16 %v1033
        %v1754 = vunpack.c.l.b16 %v1034
        %v1755 = vunpack.c.h.b16 %v1034
        %v1756 = vunpack.c.l.b16 %v1035
        %v1757 = vunpack.c.h.b16 %v1035
        %v1758 = vunpack.c.l.b16 %v1036
        %v1759 = vunpack.c.h.b16 %v1036
        %v1760 = vunpack.c.l.b16 %v1037
        %v1761 = vunpack.c.h.b16 %v1037
        %v1762 = vunpack.c.l.b16 %v1038
        %v1763 = vunpack.c.h.b16 %v1038
        %v1764 = vunpack.c.l.b16 %v1039
        %v1765 = vunpack.c.h.b16 %v1039
        %v1766 = vunpack.c.l.b16 %v1040
        %v1767 = vunpack.c.h.b16 %v1040
        %v1768 = vunpack.c.l.b16 %v1041
        %v1769 = vunpack.c.h.b16 %v1041
        %v1770 = vunpack.c.l.b16 %v1042
        %v1771 = vunpack.c.h.b16 %v1042
        %v1772 = vunpack.c.l.b16 %v1043
        %v1773 = vunpack.c.h.b16 %v1043
        %v1774 = vunpack.c.l.b16 %v1044
        %v1775 = vunpack.c.h.b16 %v1044
        %v1776 = vunpack.c.l.b16 %v1045
        %v1777 = vunpack.c.h.b16 %v1045
        %v1778 = vunpack.c.l.b16 %v1046
        %v1779 = vunpack.c.h.b16 %v1046
        %v1780 = vunpack.c.l.b16 %v1047
        %v1781 = vunpack.c.h.b16 %v1047
        %v1782 = vunpack.c.l.b16 %v1048
        %v1783 = vunpack.c.h.b16 %v1048
        %v1784 = vunpack.c.l.b16 %v1049
        %v1785 = vunpack.c.h.b16 %v1049
        %v1786 = vunpack.c.l.b16 %v1050
        %v1787 = vunpack.c.h.b16 %v1050
        %v1788 = vunpack.c.l.b16 %v1051
        %v1789 = vunpack.c.h.b16 %v1051
        %v1790 = vunpack.c.l.b16 %v1052
        %v1791 = vunpack.c.h.b16 %v1052
        %v1792 = vunpack.c.l.b16 %v1053
        %v1793 = vunpack.c.h.b16 %v1053
        %v1794 = vunpack.c.l.b16 %v1054
        %v1795 = vunpack.c.h.b16 %v1054
        %v1796 = vunpack.c.l.b16 %v1055
        %v1797 = vunpack.c.h.b16 %v1055
        %v1798 = vunpack.c.l.b16 %v1056
        %v1799 = vunpack.c.h.b16 %v1056
        %v1800 = vunpack.c.l.b16 %v1057
        %v1801 = vunpack.c.h.b16 %v1057
        %v1802 = vunpack.c.l.b16 %v1058
        %v1803 = vunpack.c.h.b16 %v1058
        %v1804 = vunpack.c.l.b16 %v1059
        %v1805 = vunpack.c.h.b16 %v1059
        %v1806 = vunpack.c.l.b16 %v1060
        %v1807 = vunpack.c.h.b16 %v1060
        %v1808 = vunpack.c.l.b16 %v1061
        %v1809 = vunpack.c.h.b16 %v1061
        %v1810 = vunpack.c.l.b16 %v1062
        %v1811 = vunpack.c.h.b16 %v1062
        %v1812 = vunpack.c.l.b16 %v1063
        %v1813 = vunpack.c.h.b16 %v1063
        %v1814 = vunpack.c.l.b16 %v1064
        %v1815 = vunpack.c.h.b16 %v1064
        %v1816 = vunpack.c.l.b16 %v1065
        %v1817 = vunpack.c.h.b16 %v1065
        %v1818 = vunpack.c.l.b16 %v1066
        %v1819 = vunpack.c.h.b16 %v1066
        %v1820 = vunpack.c.l.b16 %v1067
        %v1821 = vunpack.c.h.b16 %v1067
        %v1822 = vunpack.c.l.b16 %v1068
        %v1823 = vunpack.c.h.b16 %v1068
        %v1824 = vunpack.c.l.b16 %v1069
        %v1825 = vunpack.c.h.b16 %v1069
        %v1826 = vunpack.c.l.b16 %v1070
        %v1827 = vunpack.c.h.b16 %v1070
        %v1828 = vunpack.c.l.b16 %v1071
        %v1829 = vunpack.c.h.b16 %v1071
        %v1830 = vunpack.c.l.b16 %v1072
        %v1831 = vunpack.c.h.b16 %v1072
        %v1832 = vunpack.c.l.b16 %v1073
        %v1833 = vunpack.c.h.b16 %v1073
        %v1834 = vunpack.c.l.b16 %v1074
        %v1835 = vunpack.c.h.b16 %v1074
        %v1836 = vunpack.c.l.b16 %v1075
        %v1837 = vunpack.c.h.b16 %v1075
        %v1838 = vunpack.c.l.b16 %v1076
        %v1839 = vunpack.c.h.b16 %v1076
        %v1840 = vunpack.c.l.b16 %v1077
        %v1841 = vunpack.c.h.b16 %v1077
        %v1842 = vunpack.c.l.b16 %v1078
        %v1843 = vunpack.c.h.b16 %v1078
        %v1844 = vunpack.c.l.b16 %v1079
        %v1845 = vunpack.c.h.b16 %v1079
        %v1846 = vunpack.c.l.b16 %v1080
        %v1847 = vunpack.c.h.b16 %v1080
        %v1848 = vunpack.c.l.b16 %v1081
        %v1849 = vunpack.c.h.b16 %v1081
        %v1850 = vunpack.c.l.b16 %v1082
        %v1851 = vunpack.c.h.b16 %v1082
        %v1852 = vunpack.c.l.b16 %v1083
        %v1853 = vunpack.c.h.b16 %v1083
        %v1854 = vunpack.c.l.b16 %v1084
        %v1855 = vunpack.c.h.b16 %v1084
        %v1856 = vunpack.c.l.b16 %v1085
        %v1857 = vunpack.c.h.b16 %v1085
        %v1858 = vunpack.c.l.b16 %v1086
        %v1859 = vunpack.c.h.b16 %v1086
        %v1860 = vunpack.c.l.b16 %v1087
        %v1861 = vunpack.c.h.b16 %v1087
        %v1862 = vunpack.c.l.b16 %v1088
        %v1863 = vunpack.c.h.b16 %v1088
        %v1864 = vunpack.c.l.b16 %v1089
        %v1865 = vunpack.c.h.b16 %v1089
        %v1866 = vunpack.c.l.b16 %v1090
        %v1867 = vunpack.c.h.b16 %v1090
        %v1868 = vunpack.c.l.b16 %v1091
        %v1869 = vunpack.c.h.b16 %v1091
        %v1870 = vunpack.c.l.b16 %v1092
        %v1871 = vunpack.c.h.b16 %v1092
        %v1872 = vunpack.c.l.b16 %v1093
        %v1873 = vunpack.c.h.b16 %v1093
        %v1874 = vunpack.c.l.b16 %v1094
        %v1875 = vunpack.c.h.b16 %v1094
        %v1876 = vunpack.c.l.b16 %v1095
        %v1877 = vunpack.c.h.b16 %v1095
        %v1878 = vunpack.c.l.b16 %v1096
        %v1879 = vunpack.c.h.b16 %v1096
        %v1880 = vunpack.c.l.b16 %v1097
        %v1881 = vunpack.c.h.b16 %v1097
        %v1882 = vunpack.c.l.b16 %v1098
        %v1883 = vunpack.c.h.b16 %v1098
        %v1884 = vunpack.c.l.b16 %v1099
        %v1885 = vunpack.c.h.b16 %v1099
        %v1886 = vunpack.c.l.b16 %v1100
        %v1887 = vunpack.c.h.b16 %v1100
        %v1888 = vunpack.c.l.b16 %v1101
        %v1889 = vunpack.c.h.b16 %v1101
        %v1890 = vunpack.c.l.b16 %v1102
        %v1891 = vunpack.c.h.b16 %v1102
        %v1892 = vunpack.c.l.b16 %v1103
        %v1893 = vunpack.c.h.b16 %v1103
        %v1894 = vunpack.c.l.b16 %v1104
        %v1895 = vunpack.c.h.b16 %v1104
        %v1896 = vunpack.c.l.b16 %v1105
        %v1897 = vunpack.c.h.b16 %v1105
        %v1898 = vunpack.c.l.b16 %v1106
        %v1899 = vunpack.c.h.b16 %v1106
        %v1900 = vunpack.c.l.b16 %v1107
        %v1901 = vunpack.c.h.b16 %v1107
        %v1902 = vunpack.c.l.b16 %v1108
        %v1903 = vunpack.c.h.b16 %v1108
        %v1904 = vunpack.c.l.b16 %v1109
        %v1905 = vunpack.c.h.b16 %v1109
        %v1906 = vunpack.c.l.b16 %v1110
        %v1907 = vunpack.c.h.b16 %v1110
        %v1908 = vunpack.c.l.b16 %v1111
        %v1909 = vunpack.c.h.b16 %v1111
        %v1910 = vunpack.c.l.b16 %v1112
        %v1911 = vunpack.c.h.b16 %v1112
        %v1912 = vunpack.c.l.b16 %v1113
        %v1913 = vunpack.c.h.b16 %v1113
        %v1914 = vunpack.c.l.b16 %v1114
        %v1915 = vunpack.c.h.b16 %v1114
        %v1916 = vunpack.c.l.b16 %v1115
        %v1917 = vunpack.c.h.b16 %v1115
        %v1918 = vunpack.c.l.b16 %v1116
        %v1919 = vunpack.c.h.b16 %v1116
        %v1920 = vunpack.c.l.b16 %v1117
        %v1921 = vunpack.c.h.b16 %v1117
        %v1922 = vunpack.c.l.b16 %v1118
        %v1923 = vunpack.c.h.b16 %v1118
        %v1924 = vunpack.c.l.b16 %v1119
        %v1925 = vunpack.c.h.b16 %v1119
        %v1926 = vunpack.c.l.b16 %v1120
        %v1927 = vunpack.c.h.b16 %v1120
        %v1928 = vunpack.c.l.b16 %v1121
        %v1929 = vunpack.c.h.b16 %v1121
        %v1930 = vunpack.c.l.b16 %v1122
        %v1931 = vunpack.c.h.b16 %v1122
        %v1932 = vunpack.c.l.b16 %v1123
        %v1933 = vunpack.c.h.b16 %v1123
        %v1934 = vunpack.c.l.b16 %v1124
        %v1935 = vunpack.c.h.b16 %v1124
        %v1936 = vunpack.c.l.b16 %v1125
        %v1937 = vunpack.c.h.b16 %v1125
        %v1938 = vunpack.c.l.b16 %v1126
        %v1939 = vunpack.c.h.b16 %v1126
        %v1940 = vunpack.c.l.b16 %v1127
        %v1941 = vunpack.c.h.b16 %v1127
        %v1942 = vunpack.c.l.b16 %v1128
        %v1943 = vunpack.c.h.b16 %v1128
        %v1944 = vunpack.c.l.b16 %v1129
        %v1945 = vunpack.c.h.b16 %v1129
        %v1946 = vunpack.c.l.b16 %v1130
        %v1947 = vunpack.c.h.b16 %v1130
        %v1948 = vunpack.c.l.b16 %v1131
        %v1949 = vunpack.c.h.b16 %v1131
        %v1950 = vunpack.c.l.b16 %v1132
        %v1951 = vunpack.c.h.b16 %v1132
        %v1952 = vunpack.c.l.b16 %v1133
        %v1953 = vunpack.c.h.b16 %v1133
        %v1954 = vunpack.c.l.b16 %v1134
        %v1955 = vunpack.c.h.b16 %v1134
        %v1956 = vunpack.c.l.b16 %v1135
        %v1957 = vunpack.c.h.b16 %v1135
        %v1958 = vunpack.c.l.b16 %v1136
        %v1959 = vunpack.c.h.b16 %v1136
        %v1960 = vunpack.c.l.b16 %v1137
        %v1961 = vunpack.c.h.b16 %v1137
        %v1962 = vunpack.c.l.b16 %v1138
        %v1963 = vunpack.c.h.b16 %v1138
        %v1964 = vunpack.c.l.b16 %v1139
        %v1965 = vunpack.c.h.b16 %v1139
        %v1966 = vunpack.c.l.b16 %v1140
        %v1967 = vunpack.c.h.b16 %v1140
        %v1968 = vunpack.c.l.b16 %v1141
        %v1969 = vunpack.c.h.b16 %v1141
        %v1970 = vunpack.c.l.b16 %v1142
        %v1971 = vunpack.c.h.b16 %v1142
        %v1972 = vunpack.c.l.b16 %v1143
        %v1973 = vunpack.c.h.b16 %v1143
        %v1974 = vunpack.c.l.b16 %v1144
        %v1975 = vunpack.c.h.b16 %v1144
        %v1976 = vunpack.c.l.b16 %v1145
        %v1977 = vunpack.c.h.b16 %v1145
        %v1978 = vunpack.c.l.b16 %v1146
        %v1979 = vunpack.c.h.b16 %v1146
        %v1980 = vunpack.c.l.b16 %v1147
        %v1981 = vunpack.c.h.b16 %v1147
        %v1982 = vunpack.c.l.b16 %v1148
        %v1983 = vunpack.c.h.b16 %v1148
        %v1984 = vunpack.c.l.b16 %v1149
        %v1985 = vunpack.c.h.b16 %v1149
        %v1986 = vunpack.c.l.b16 %v1150
        %v1987 = vunpack.c.h.b16 %v1150
        %v1988 = vunpack.c.l.b16 %v1151
        %v1989 = vunpack.c.h.b16 %v1151
        %v1990 = vunpack.c.l.b16 %v1152
        %v1991 = vunpack.c.h.b16 %v1152
        %v1992 = vunpack.c.l.b16 %v1153
        %v1993 = vunpack.c.h.b16 %v1153
        %v1994 = vunpack.c.l.b16 %v1154
        %v1995 = vunpack.c.h.b16 %v1154
        %v1996 = vunpack.c.l.b16 %v1155
        %v1997 = vunpack.c.h.b16 %v1155
        %v1998 = vunpack.c.l.b16 %v1156
        %v1999 = vunpack.c.h.b16 %v1156
        %v2000 = vunpack.c.l.b16 %v1157
        %v2001 = vunpack.c.h.b16 %v1157
        %v2002 = vunpack.c.l.b16 %v1158
        %v2003 = vunpack.c.h.b16 %v1158
        %v2004 = vunpack.c.l.b16 %v1159
        %v2005 = vunpack.c.h.b16 %v1159
        %v2006 = vunpack.c.l.b16 %v1160
        %v2007 = vunpack.c.h.b16 %v1160
        %v2008 = vunpack.c.l.b16 %v1161
        %v2009 = vunpack.c.h.b16 %v1161
        %v2010 = vunpack.c.l.b16 %v1162
        %v2011 = vunpack.c.h.b16 %v1162
        %v2012 = vunpack.c.l.b16 %v1163
        %v2013 = vunpack.c.h.b16 %v1163
        %v2014 = vunpack.c.l.b16 %v1164
        %v2015 = vunpack.c.h.b16 %v1164
        %v2016 = vunpack.c.l.b16 %v1165
        %v2017 = vunpack.c.h.b16 %v1165
        %v2018 = vunpack.c.l.b16 %v1166
        %v2019 = vunpack.c.h.b16 %v1166
        %v2020 = vunpack.c.l.b16 %v1167
        %v2021 = vunpack.c.h.b16 %v1167
        %v2022 = vunpack.c.l.b16 %v1168
        %v2023 = vunpack.c.h.b16 %v1168
        %v2024 = vunpack.c.l.b16 %v1169
        %v2025 = vunpack.c.h.b16 %v1169
        %v2026 = vunpack.c.l.b16 %v1170
        %v2027 = vunpack.c.h.b16 %v1170
        %v2028 = vunpack.c.l.b16 %v1171
        %v2029 = vunpack.c.h.b16 %v1171
        %v2030 = vunpack.c.l.b16 %v1172
        %v2031 = vunpack.c.h.b16 %v1172
        %v2032 = vunpack.c.l.b16 %v1173
        %v2033 = vunpack.c.h.b16 %v1173
        %v2034 = vunpack.c.l.b16 %v1174
        %v2035 = vunpack.c.h.b16 %v1174
        %v2036 = vunpack.c.l.b16 %v1175
        %v2037 = vunpack.c.h.b16 %v1175
        %v2038 = vunpack.c.l.b16 %v1176
        %v2039 = vunpack.c.h.b16 %v1176
        %v2040 = vunpack.c.l.b16 %v1177
        %v2041 = vunpack.c.h.b16 %v1177
        %v2042 = vunpack.c.l.b16 %v1178
        %v2043 = vunpack.c.h.b16 %v1178
        %v2044 = vunpack.c.l.b16 %v1179
        %v2045 = vunpack.c.h.b16 %v1179
        %v2046 = vunpack.c.l.b16 %v1180
        %v2047 = vunpack.c.h.b16 %v1180
        %v2048 = vunpack.c.l.b16 %v1181
        %v2049 = vunpack.c.h.b16 %v1181
        %v2050 = vunpack.c.l.b16 %v1182
        %v2051 = vunpack.c.h.b16 %v1182
        %v2052 = vunpack.c.l.b16 %v1183
        %v2053 = vunpack.c.h.b16 %v1183
        %v2054 = vunpack.c.l.b16 %v1184
        %v2055 = vunpack.c.h.b16 %v1184
        %v2056 = vunpack.c.l.b16 %v1185
        %v2057 = vunpack.c.h.b16 %v1185
        %v2058 = vunpack.c.l.b16 %v1186
        %v2059 = vunpack.c.h.b16 %v1186
        %v2060 = vunpack.c.l.b16 %v1187
        %v2061 = vunpack.c.h.b16 %v1187
        %v2062 = vunpack.c.l.b16 %v1188
        %v2063 = vunpack.c.h.b16 %v1188
        %v2064 = vunpack.c.l.b16 %v1189
        %v2065 = vunpack.c.h.b16 %v1189
        %v2066 = vunpack.c.l.b16 %v1190
        %v2067 = vunpack.c.h.b16 %v1190
        %v2068 = vunpack.c.l.b16 %v1191
        %v2069 = vunpack.c.h.b16 %v1191
        %v2070 = vunpack.c.l.b16 %v1192
        %v2071 = vunpack.c.h.b16 %v1192
        %v2072 = vunpack.c.l.b16 %v1193
        %v2073 = vunpack.c.h.b16 %v1193
        %v2074 = vunpack.c.l.b16 %v1194
        %v2075 = vunpack.c.h.b16 %v1194
        %v2076 = vunpack.c.l.b16 %v1195
        %v2077 = vunpack.c.h.b16 %v1195
        %v2078 = vunpack.c.l.b16 %v1196
        %v2079 = vunpack.c.h.b16 %v1196
        %v2080 = vunpack.c.l.b16 %v1197
        %v2081 = vunpack.c.h.b16 %v1197
        %v2082 = vunpack.c.l.b16 %v1198
        %v2083 = vunpack.c.h.b16 %v1198
        %v2084 = vunpack.c.l.b16 %v1199
        %v2085 = vunpack.c.h.b16 %v1199
        %v2086 = vunpack.c.l.b16 %v1200
        %v2087 = vunpack.c.h.b16 %v1200
        %v2088 = vunpack.c.l.b16 %v1201
        %v2089 = vunpack.c.h.b16 %v1201
        %v2090 = vunpack.c.l.b16 %v1202
        %v2091 = vunpack.c.h.b16 %v1202
        %v2092 = vunpack.c.l.b16 %v1203
        %v2093 = vunpack.c.h.b16 %v1203
        %v2094 = vunpack.c.l.b16 %v1204
        %v2095 = vunpack.c.h.b16 %v1204
        %v2096 = vunpack.c.l.b16 %v1205
        %v2097 = vunpack.c.h.b16 %v1205
        %v2098 = vunpack.c.l.b16 %v1206
        %v2099 = vunpack.c.h.b16 %v1206
        %v2100 = vunpack.c.l.b16 %v1207
        %v2101 = vunpack.c.h.b16 %v1207
        %v2102 = vunpack.c.l.b16 %v1208
        %v2103 = vunpack.c.h.b16 %v1208
        %v2104 = vunpack.c.l.b16 %v1209
        %v2105 = vunpack.c.h.b16 %v1209
        %v2106 = vunpack.c.l.b16 %v1210
        %v2107 = vunpack.c.h.b16 %v1210
        %v2108 = vunpack.c.l.b16 %v1211
        %v2109 = vunpack.c.h.b16 %v1211
        %v2110 = vunpack.c.l.b16 %v1212
        %v2111 = vunpack.c.h.b16 %v1212
        %v2112 = vunpack.c.l.b16 %v1213
        %v2113 = vunpack.c.h.b16 %v1213
        %v2114 = vunpack.c.l.b16 %v1214
        %v2115 = vunpack.c.h.b16 %v1214
        %v2116 = vunpack.c.l.b16 %v1215
        %v2117 = vunpack.c.h.b16 %v1215
        %v2118 = vunpack.c.l.b16 %v1216
        %v2119 = vunpack.c.h.b16 %v1216
        %v2120 = vunpack.c.l.b16 %v1217
        %v2121 = vunpack.c.h.b16 %v1217
        %v2122 = vunpack.c.l.b16 %v1218
        %v2123 = vunpack.c.h.b16 %v1218
        %v2124 = vunpack.c.l.b16 %v1219
        %v2125 = vunpack.c.h.b16 %v1219
        %v2126 = vunpack.c.l.b16 %v1220
        %v2127 = vunpack.c.h.b16 %v1220
        %v2128 = vunpack.c.l.b16 %v1221
        %v2129 = vunpack.c.h.b16 %v1221
        %v2130 = vunpack.c.l.b16 %v1222
        %v2131 = vunpack.c.h.b16 %v1222
        %v2132 = vunpack.c.l.b16 %v1223
        %v2133 = vunpack.c.h.b16 %v1223
        %v2134 = vunpack.c.l.b16 %v1224
        %v2135 = vunpack.c.h.b16 %v1224
        %v2136 = vunpack.c.l.b16 %v1225
        %v2137 = vunpack.c.h.b16 %v1225
        %v2138 = vunpack.c.l.b16 %v1226
        %v2139 = vunpack.c.h.b16 %v1226
        %v2140 = vunpack.c.l.b16 %v1227
        %v2141 = vunpack.c.h.b16 %v1227
        %v2142 = vunpack.c.l.b16 %v1228
        %v2143 = vunpack.c.h.b16 %v1228
        %v2144 = vunpack.c.l.b16 %v1229
        %v2145 = vunpack.c.h.b16 %v1229
        %v2146 = vunpack.c.l.b16 %v1230
        %v2147 = vunpack.c.h.b16 %v1230
        %v2148 = vunpack.c.l.b16 %v1231
        %v2149 = vunpack.c.h.b16 %v1231
        %v2150 = vunpack.c.l.b16 %v1232
        %v2151 = vunpack.c.h.b16 %v1232
        %v2152 = vunpack.c.l.b16 %v1233
        %v2153 = vunpack.c.h.b16 %v1233
        %v2154 = vunpack.c.l.b16 %v1234
        %v2155 = vunpack.c.h.b16 %v1234
        %v2156 = vunpack.c.l.b16 %v1235
        %v2157 = vunpack.c.h.b16 %v1235
        %v2158 = vunpack.c.l.b16 %v1236
        %v2159 = vunpack.c.h.b16 %v1236
        %v2160 = vunpack.c.l.b16 %v1237
        %v2161 = vunpack.c.h.b16 %v1237
        %v2162 = vunpack.c.l.b16 %v1238
        %v2163 = vunpack.c.h.b16 %v1238
        %v2164 = vunpack.c.l.b16 %v1239
        %v2165 = vunpack.c.h.b16 %v1239
        %v2166 = vunpack.c.l.b16 %v1240
        %v2167 = vunpack.c.h.b16 %v1240
        %v2168 = vunpack.c.l.b16 %v1241
        %v2169 = vunpack.c.h.b16 %v1241
        %v2170 = vunpack.c.l.b16 %v1242
        %v2171 = vunpack.c.h.b16 %v1242
        %v2172 = vunpack.c.l.b16 %v1243
        %v2173 = vunpack.c.h.b16 %v1243
        %v2174 = vunpack.c.l.b16 %v1244
        %v2175 = vunpack.c.h.b16 %v1244
        %v2176 = vunpack.c.l.b16 %v1245
        %v2177 = vunpack.c.h.b16 %v1245
        %v2178 = vunpack.c.l.b16 %v1246
        %v2179 = vunpack.c.h.b16 %v1246
        %v2180 = vunpack.c.l.b16 %v1247
        %v2181 = vunpack.c.h.b16 %v1247
        %v2182 = vunpack.c.l.b16 %v1248
        %v2183 = vunpack.c.h.b16 %v1248
        %v2184 = vunpack.c.l.b16 %v1249
        %v2185 = vunpack.c.h.b16 %v1249
        %v2186 = vunpack.c.l.b16 %v1250
        %v2187 = vunpack.c.h.b16 %v1250
        %v2188 = vunpack.c.l.b16 %v1251
        %v2189 = vunpack.c.h.b16 %v1251
        %v2190 = vunpack.c.l.b16 %v1252
        %v2191 = vunpack.c.h.b16 %v1252
        %v2192 = vunpack.c.l.b16 %v1253
        %v2193 = vunpack.c.h.b16 %v1253
        %v2194 = vunpack.c.l.b16 %v1254
        %v2195 = vunpack.c.h.b16 %v1254
        %v2196 = vunpack.c.l.b16 %v1255
        %v2197 = vunpack.c.h.b16 %v1255
        %v2198 = vunpack.c.l.b16 %v1256
        %v2199 = vunpack.c.h.b16 %v1256
        %v2200 = vunpack.c.l.b16 %v1257
        %v2201 = vunpack.c.h.b16 %v1257
        %v2202 = vunpack.c.l.b16 %v1258
        %v2203 = vunpack.c.h.b16 %v1258
        %v2204 = vunpack.c.l.b16 %v1259
        %v2205 = vunpack.c.h.b16 %v1259
        %v2206 = vunpack.c.l.b16 %v1260
        %v2207 = vunpack.c.h.b16 %v1260
        %v2208 = vunpack.c.l.b16 %v1261
        %v2209 = vunpack.c.h.b16 %v1261
        %v2210 = vunpack.c.l.b16 %v1262
        %v2211 = vunpack.c.h.b16 %v1262
        %v2212 = vunpack.c.l.b16 %v1263
        %v2213 = vunpack.c.h.b16 %v1263
        %v2214 = vunpack.c.l.b16 %v1264
        %v2215 = vunpack.c.h.b16 %v1264
        %v2216 = vunpack.c.l.b16 %v1265
        %v2217 = vunpack.c.h.b16 %v1265
        %v2218 = vunpack.c.l.b16 %v1266
        %v2219 = vunpack.c.h.b16 %v1266
        %v2220 = vunpack.c.l.b16 %v1267
        %v2221 = vunpack.c.h.b16 %v1267
        %v2222 = vunpack.c.l.b16 %v1268
        %v2223 = vunpack.c.h.b16 %v1268
        %v2224 = vunpack.c.l.b16 %v1269
        %v2225 = vunpack.c.h.b16 %v1269
        %v2226 = vunpack.c.l.b16 %v1270
        %v2227 = vunpack.c.h.b16 %v1270
        %v2228 = vunpack.c.l.b16 %v1271
        %v2229 = vunpack.c.h.b16 %v1271
        %v2230 = vunpack.c.l.b16 %v1272
        %v2231 = vunpack.c.h.b16 %v1272
        %v2232 = vunpack.c.l.b16 %v1273
        %v2233 = vunpack.c.h.b16 %v1273
        %v2234 = vunpack.c.l.b16 %v1274
        %v2235 = vunpack.c.h.b16 %v1274
        %v2236 = vunpack.c.l.b16 %v1275
        %v2237 = vunpack.c.h.b16 %v1275
        %v2238 = vunpack.c.l.b16 %v1276
        %v2239 = vunpack.c.h.b16 %v1276
        %v2240 = vunpack.c.l.b16 %v1277
        %v2241 = vunpack.c.h.b16 %v1277
        %v2242 = vunpack.c.l.b16 %v1278
        %v2243 = vunpack.c.h.b16 %v1278
        %v2244 = vunpack.c.l.b16 %v1279
        %v2245 = vunpack.c.h.b16 %v1279
        %v2246 = vunpack.c.l.b16 %v1280
        %v2247 = vunpack.c.h.b16 %v1280
        %v2248 = vunpack.c.l.b16 %v1281
        %v2249 = vunpack.c.h.b16 %v1281
        %v2250 = vunpack.c.l.b16 %v1282
        %v2251 = vunpack.c.h.b16 %v1282
        %v2252 = vunpack.c.l.b16 %v1283
        %v2253 = vunpack.c.h.b16 %v1283
        %v2254 = vunpack.c.l.b16 %v1284
        %v2255 = vunpack.c.h.b16 %v1284
        %v2256 = vunpack.c.l.b16 %v1285
        %v2257 = vunpack.c.h.b16 %v1285
        %v2258 = vunpack.c.l.b16 %v1286
        %v2259 = vunpack.c.h.b16 %v1286
        %v2260 = vunpack.c.l.b16 %v1287
        %v2261 = vunpack.c.h.b16 %v1287
        %v2262 = vunpack.c.l.b16 %v1288
        %v2263 = vunpack.c.h.b16 %v1288
        %v2264 = vunpack.c.l.b16 %v1289
        %v2265 = vunpack.c.h.b16 %v1289
        %v2266 = vunpack.c.l.b16 %v1290
        %v2267 = vunpack.c.h.b16 %v1290
        %v2268 = vunpack.c.l.b16 %v1291
        %v2269 = vunpack.c.h.b16 %v1291
        %v2270 = vunpack.c.l.b16 %v1292
        %v2271 = vunpack.c.h.b16 %v1292
        %v2272 = vunpack.c.l.b16 %v1293
        %v2273 = vunpack.c.h.b16 %v1293
        %v2274 = vunpack.c.l.b16 %v1294
        %v2275 = vunpack.c.h.b16 %v1294
        %v2276 = vunpack.c.l.b16 %v1295
        %v2277 = vunpack.c.h.b16 %v1295
        %v2278 = vunpack.c.l.b16 %v1296
        %v2279 = vunpack.c.h.b16 %v1296
        %v2280 = vunpack.c.l.b16 %v1297
        %v2281 = vunpack.c.h.b16 %v1297
        %v2282 = vunpack.c.l.b16 %v1298
        %v2283 = vunpack.c.h.b16 %v1298
        %v2284 = vunpack.c.l.b16 %v1299
        %v2285 = vunpack.c.h.b16 %v1299
        %v2286 = vunpack.c.l.b16 %v1300
        %v2287 = vunpack.c.h.b16 %v1300
        %v2288 = vunpack.c.l.b16 %v1301
        %v2289 = vunpack.c.h.b16 %v1301
        %v2290 = vunpack.c.l.b16 %v1302
        %v2291 = vunpack.c.h.b16 %v1302
        %v2292 = vunpack.c.l.b16 %v1303
        %v2293 = vunpack.c.h.b16 %v1303
        %v2294 = vunpack.c.l.b16 %v1304
        %v2295 = vunpack.c.h.b16 %v1304
        %v2296 = vunpack.c.l.b16 %v1305
        %v2297 = vunpack.c.h.b16 %v1305
        %v2298 = vpack.c.b16 %v1726, %v1722
        %v2299 = vpack.c.b16 %v1727, %v1723
        %v2300 = vpack.c.b16 %v1728, %v1724
        %v2301 = vpack.c.b16 %v1729, %v1725
        %v2302 = vpack.c.b16 %v1734, %v1730
        %v2303 = vpack.c.b16 %v1735, %v1731
        %v2304 = vpack.c.b16 %v1736, %v1732
        %v2305 = vpack.c.b16 %v1737, %v1733
        %v2306 = vpack.c.b16 %v1742, %v1738
        %v2307 = vpack.c.b16 %v1743, %v1739
        %v2308 = vpack.c.b16 %v1744, %v1740
        %v2309 = vpack.c.b16 %v1745, %v1741
        %v2310 = vpack.c.b16 %v1750, %v1746
        %v2311 = vpack.c.b16 %v1751, %v1747
        %v2312 = vpack.c.b16 %v1752, %v1748
        %v2313 = vpack.c.b16 %v1753, %v1749
        %v2314 = vpack.c.b16 %v1758, %v1754
        %v2315 = vpack.c.b16 %v1759, %v1755
        %v2316 = vpack.c.b16 %v1760, %v1756
        %v2317 = vpack.c.b16 %v1761, %v1757
        %v2318 = vpack.c.b16 %v1766, %v1762
        %v2319 = vpack.c.b16 %v1767, %v1763
        %v2320 = vpack.c.b16 %v1768, %v1764
        %v2321 = vpack.c.b16 %v1769, %v1765
        %v2322 = vpack.c.b16 %v1774, %v1770
        %v2323 = vpack.c.b16 %v1775, %v1771
        %v2324 = vpack.c.b16 %v1776, %v1772
        %v2325 = vpack.c.b16 %v1777, %v1773
        %v2326 = vpack.c.b16 %v1782, %v1778
        %v2327 = vpack.c.b16 %v1783, %v1779
        %v2328 = vpack.c.b16 %v1784, %v1780
        %v2329 = vpack.c.b16 %v1785, %v1781
        %v2330 = vpack.c.b16 %v1790, %v1786
        %v2331 = vpack.c.b16 %v1791, %v1787
        %v2332 = vpack.c.b16 %v1792, %v1788
        %v2333 = vpack.c.b16 %v1793, %v1789
        %v2334 = vpack.c.b16 %v1798, %v1794
        %v2335 = vpack.c.b16 %v1799, %v1795
        %v2336 = vpack.c.b16 %v1800, %v1796
        %v2337 = vpack.c.b16 %v1801, %v1797
        %v2338 = vpack.c.b16 %v1806, %v1802
        %v2339 = vpack.c.b16 %v1807, %v1803
        %v2340 = vpack.c.b16 %v1808, %v1804
        %v2341 = vpack.c.b16 %v1809, %v1805
        %v2342 = vpack.c.b16 %v1814, %v1810
        %v2343 = vpack.c.b16 %v1815, %v1811
        %v2344 = vpack.c.b16 %v1816, %v1812
        %v2345 = vpack.c.b16 %v1817, %v1813
        %v2346 = vpack.c.b16 %v1822, %v1818
        %v2347 = vpack.c.b16 %v1823, %v1819
        %v2348 = vpack.c.b16 %v1824, %v1820
        %v2349 = vpack.c.b16 %v1825, %v1821
        %v2350 = vpack.c.b16 %v1830, %v1826
        %v2351 = vpack.c.b16 %v1831, %v1827
        %v2352 = vpack.c.b16 %v1832, %v1828
        %v2353 = vpack.c.b16 %v1833, %v1829
        %v2354 = vpack.c.b16 %v1838, %v1834
        %v2355 = vpack.c.b16 %v1839, %v1835
        %v2356 = vpack.c.b16 %v1840, %v1836
        %v2357 = vpack.c.b16 %v1841, %v1837
        %v2358 = vpack.c.b16 %v1846, %v1842
        %v2359 = vpack.c.b16 %v1847, %v1843
        %v2360 = vpack.c.b16 %v1848, %v1844
        %v2361 = vpack.c.b16 %v1849, %v1845
        %v2362 = vpack.c.b16 %v1854, %v1850
        %v2363 = vpack.c.b16 %v1855, %v1851
        %v2364 = vpack.c.b16 %v1856, %v1852
        %v2365 = vpack.c.b16 %v1857, %v1853
        %v2366 = vpack.c.b16 %v1862, %v1858
        %v2367 = vpack.c.b16 %v1863, %v1859
        %v2368 = vpack.c.b16 %v1864, %v1860
        %v2369 = vpack.c.b16 %v1865, %v1861
        %v2370 = vpack.c.b16 %v1870, %v1866
        %v2371 = vpack.c.b16 %v1871, %v1867
        %v2372 = vpack.c.b16 %v1872, %v1868
        %v2373 = vpack.c.b16 %v1873, %v1869
        %v2374 = vpack.c.b16 %v1878, %v1874
        %v2375 = vpack.c.b16 %v1879, %v1875
        %v2376 = vpack.c.b16 %v1880, %v1876
        %v2377 = vpack.c.b16 %v1881, %v1877
        %v2378 = vpack.c.b16 %v1886, %v1882
        %v2379 = vpack.c.b16 %v1887, %v1883
        %v2380 = vpack.c.b16 %v1888, %v1884
        %v2381 = vpack.c.b16 %v1889, %v1885
        %v2382 = vpack.c.b16 %v1894, %v1890
        %v2383 = vpack.c.b16 %v1895, %v1891
        %v2384 = vpack.c.b16 %v1896, %v1892
        %v2385 = vpack.c.b16 %v1897, %v1893
        %v2386 = vpack.c.b16 %v1902, %v1898
        %v2387 = vpack.c.b16 %v1903, %v1899
        %v2388 = vpack.c.b16 %v1904, %v1900
        %v2389 = vpack.c.b16 %v1905, %v1901
        %v2390 = vpack.c.b16 %v1910, %v1906
        %v2391 = vpack.c.b16 %v1911, %v1907
        %v2392 = vpack.c.b16 %v1912, %v1908
        %v2393 = vpack.c.b16 %v1913, %v1909
        %v2394 = vpack.c.b16 %v1918, %v1914
        %v2395 = vpack.c.b16 %v1919, %v1915
        %v2396 = vpack.c.b16 %v1920, %v1916
        %v2397 = vpack.c.b16 %v1921, %v1917
        %v2398 = vpack.c.b16 %v1926, %v1922
        %v2399 = vpack.c.b16 %v1927, %v1923
        %v2400 = vpack.c.b16 %v1928, %v1924
        %v2401 = vpack.c.b16 %v1929, %v1925
        %v2402 = vpack.c.b16 %v1934, %v1930
        %v2403 = vpack.c.b16 %v1935, %v1931
        %v2404 = vpack.c.b16 %v1936, %v1932
        %v2405 = vpack.c.b16 %v1937, %v1933
        %v2406 = vpack.c.b16 %v1942, %v1938
        %v2407 = vpack.c.b16 %v1943, %v1939
        %v2408 = vpack.c.b16 %v1944, %v1940
        %v2409 = vpack.c.b16 %v1945, %v1941
        %v2410 = vpack.c.b16 %v1950, %v1946
        %v2411 = vpack.c.b16 %v1951, %v1947
        %v2412 = vpack.c.b16 %v1952, %v1948
        %v2413 = vpack.c.b16 %v1953, %v1949
        %v2414 = vpack.c.b16 %v1958, %v1954
        %v2415 = vpack.c.b16 %v1959, %v1955
        %v2416 = vpack.c.b16 %v1960, %v1956
        %v2417 = vpack.c.b16 %v1961, %v1957
        %v2418 = vpack.c.b16 %v1966, %v1962
        %v2419 = vpack.c.b16 %v1967, %v1963
        %v2420 = vpack.c.b16 %v1968, %v1964
        %v2421 = vpack.c.b16 %v1969, %v1965
        %v2422 = vpack.c.b16 %v1974, %v1970
        %v2423 = vpack.c.b16 %v1975, %v1971
        %v2424 = vpack.c.b16 %v1976, %v1972
        %v2425 = vpack.c.b16 %v1977, %v1973
        %v2426 = vpack.c.b16 %v1982, %v1978
        %v2427 = vpack.c.b16 %v1983, %v1979
        %v2428 = vpack.c.b16 %v1984, %v1980
        %v2429 = vpack.c.b16 %v1985, %v1981
        %v2430 = vpack.c.b16 %v1990, %v1986
        %v2431 = vpack.c.b16 %v1991, %v1987
        %v2432 = vpack.c.b16 %v1992, %v1988
        %v2433 = vpack.c.b16 %v1993, %v1989
        %v2434 = vpack.c.b16 %v1998, %v1994
        %v2435 = vpack.c.b16 %v1999, %v1995
        %v2436 = vpack.c.b16 %v2000, %v1996
        %v2437 = vpack.c.b16 %v2001, %v1997
        %v2438 = vpack.c.b16 %v2006, %v2002
        %v2439 = vpack.c.b16 %v2007, %v2003
        %v2440 = vpack.c.b16 %v2008, %v2004
        %v2441 = vpack.c.b16 %v2009, %v2005
        %v2442 = vpack.c.b16 %v2014, %v2010
        %v2443 = vpack.c.b16 %v2015, %v2011
        %v2444 = vpack.c.b16 %v2016, %v2012
        %v2445 = vpack.c.b16 %v2017, %v2013
        %v2446 = vpack.c.b16 %v2022, %v2018
        %v2447 = vpack.c.b16 %v2023, %v2019
        %v2448 = vpack.c.b16 %v2024, %v2020
        %v2449 = vpack.c.b16 %v2025, %v2021
        %v2450 = vpack.c.b16 %v2030, %v2026
        %v2451 = vpack.c.b16 %v2031, %v2027
        %v2452 = vpack.c.b16 %v2032, %v2028
        %v2453 = vpack.c.b16 %v2033, %v2029
        %v2454 = vpack.c.b16 %v2038, %v2034
        %v2455 = vpack.c.b16 %v2039, %v2035
        %v2456 = vpack.c.b16 %v2040, %v2036
        %v2457 = vpack.c.b16 %v2041, %v2037
        %v2458 = vpack.c.b16 %v2046, %v2042
        %v2459 = vpack.c.b16 %v2047, %v2043
        %v2460 = vpack.c.b16 %v2048, %v2044
        %v2461 = vpack.c.b16 %v2049, %v2045
        %v2462 = vpack.c.b16 %v2054, %v2050
        %v2463 = vpack.c.b16 %v2055, %v2051
        %v2464 = vpack.c.b16 %v2056, %v2052
        %v2465 = vpack.c.b16 %v2057, %v2053
        %v2466 = vpack.c.b16 %v2062, %v2058
        %v2467 = vpack.c.b16 %v2063, %v2059
        %v2468 = vpack.c.b16 %v2064, %v2060
        %v2469 = vpack.c.b16 %v2065, %v2061
        %v2470 = vpack.c.b16 %v2070, %v2066
        %v2471 = vpack.c.b16 %v2071, %v2067
        %v2472 = vpack.c.b16 %v2072, %v2068
        %v2473 = vpack.c.b16 %v2073, %v2069
        %v2474 = vpack.c.b16 %v2078, %v2074
        %v2475 = vpack.c.b16 %v2079, %v2075
        %v2476 = vpack.c.b16 %v2080, %v2076
        %v2477 = vpack.c.b16 %v2081, %v2077
        %v2478 = vpack.c.b16 %v2086, %v2082
        %v2479 = vpack.c.b16 %v2087, %v2083
        %v2480 = vpack.c.b16 %v2088, %v2084
        %v2481 = vpack.c.b16 %v2089, %v2085
        %v2482 = vpack.c.b16 %v2094, %v2090
        %v2483 = vpack.c.b16 %v2095, %v2091
        %v2484 = vpack.c.b16 %v2096, %v2092
        %v2485 = vpack.c.b16 %v2097, %v2093
        %v2486 = vpack.c.b16 %v2102, %v2098
        %v2487 = vpack.c.b16 %v2103, %v2099
        %v2488 = vpack.c.b16 %v2104, %v2100
        %v2489 = vpack.c.b16 %v2105, %v2101
        %v2490 = vpack.c.b16 %v2110, %v2106
        %v2491 = vpack.c.b16 %v2111, %v2107
        %v2492 = vpack.c.b16 %v2112, %v2108
        %v2493 = vpack.c.b16 %v2113, %v2109
        %v2494 = vpack.c.b16 %v2118, %v2114
        %v2495 = vpack.c.b16 %v2119, %v2115
        %v2496 = vpack.c.b16 %v2120, %v2116
        %v2497 = vpack.c.b16 %v2121, %v2117
        %v2498 = vpack.c.b16 %v2126, %v2122
        %v2499 = vpack.c.b16 %v2127, %v2123
        %v2500 = vpack.c.b16 %v2128, %v2124
        %v2501 = vpack.c.b16 %v2129, %v2125
        %v2502 = vpack.c.b16 %v2134, %v2130
        %v2503 = vpack.c.b16 %v2135, %v2131
        %v2504 = vpack.c.b16 %v2136, %v2132
        %v2505 = vpack.c.b16 %v2137, %v2133
        %v2506 = vpack.c.b16 %v2142, %v2138
        %v2507 = vpack.c.b16 %v2143, %v2139
        %v2508 = vpack.c.b16 %v2144, %v2140
        %v2509 = vpack.c.b16 %v2145, %v2141
        %v2510 = vpack.c.b16 %v2150, %v2146
        %v2511 = vpack.c.b16 %v2151, %v2147
        %v2512 = vpack.c.b16 %v2152, %v2148
        %v2513 = vpack.c.b16 %v2153, %v2149
        %v2514 = vpack.c.b16 %v2158, %v2154
        %v2515 = vpack.c.b16 %v2159, %v2155
        %v2516 = vpack.c.b16 %v2160, %v2156
        %v2517 = vpack.c.b16 %v2161, %v2157
        %v2518 = vpack.c.b16 %v2166, %v2162
        %v2519 = vpack.c.b16 %v2167, %v2163
        %v2520 = vpack.c.b16 %v2168, %v2164
        %v2521 = vpack.c.b16 %v2169, %v2165
        %v2522 = vpack.c.b16 %v2174, %v2170
        %v2523 = vpack.c.b16 %v2175, %v2171
        %v2524 = vpack.c.b16 %v2176, %v2172
        %v2525 = vpack.c.b16 %v2177, %v2173
        %v2526 = vpack.c.b16 %v2182, %v2178
        %v2527 = vpack.c.b16 %v2183, %v2179
        %v2528 = vpack.c.b16 %v2184, %v2180
        %v2529 = vpack.c.b16 %v2185, %v2181
        %v2530 = vpack.c.b16 %v2190, %v2186
        %v2531 = vpack.c.b16 %v2191, %v2187
        %v2532 = vpack.c.b16 %v2192, %v2188
        %v2533 = vpack.c.b16 %v2193, %v2189
        %v2534 = vpack.c.b16 %v2198, %v2194
        %v2535 = vpack.c.b16 %v2199, %v2195
        %v2536 = vpack.c.b16 %v2200, %v2196
        %v2537 = vpack.c.b16 %v2201, %v2197
        %v2538 = vpack.c.b16 %v2206, %v2202
        %v2539 = vpack.c.b16 %v2207, %v2203
        %v2540 = vpack.c.b16 %v2208, %v2204
        %v2541 = vpack.c.b16 %v2209, %v2205
        %v2542 = vpack.c.b16 %v2214, %v2210
        %v2543 = vpack.c.b16 %v2215, %v2211
        %v2544 = vpack.c.b16 %v2216, %v2212
        %v2545 = vpack.c.b16 %v2217, %v2213
        %v2546 = vpack.c.b16 %v2222, %v2218
        %v2547 = vpack.c.b16 %v2223, %v2219
        %v2548 = vpack.c.b16 %v2224, %v2220
        %v2549 = vpack.c.b16 %v2225, %v2221
        %v2550 = vpack.c.b16 %v2230, %v2226
        %v2551 = vpack.c.b16 %v2231, %v2227
        %v2552 = vpack.c.b16 %v2232, %v2228
        %v2553 = vpack.c.b16 %v2233, %v2229
        %v2554 = vpack.c.b16 %v2238, %v2234
        %v2555 = vpack.c.b16 %v2239, %v2235
        %v2556 = vpack.c.b16 %v2240, %v2236
        %v2557 = vpack.c.b16 %v2241, %v2237
        %v2558 = vpack.c.b16 %v2246, %v2242
        %v2559 = vpack.c.b16 %v2247, %v2243
        %v2560 = vpack.c.b16 %v2248, %v2244
        %v2561 = vpack.c.b16 %v2249, %v2245
        %v2562 = vpack.c.b16 %v2254, %v2250
        %v2563 = vpack.c.b16 %v2255, %v2251
        %v2564 = vpack.c.b16 %v2256, %v2252
        %v2565 = vpack.c.b16 %v2257, %v2253
        %v2566 = vpack.c.b16 %v2262, %v2258
        %v2567 = vpack.c.b16 %v2263, %v2259
        %v2568 = vpack.c.b16 %v2264, %v2260
        %v2569 = vpack.c.b16 %v2265, %v2261
        %v2570 = vpack.c.b16 %v2270, %v2266
        %v2571 = vpack.c.b16 %v2271, %v2267
        %v2572 = vpack.c.b16 %v2272, %v2268
        %v2573 = vpack.c.b16 %v2273, %v2269
        %v2574 = vpack.c.b16 %v2278, %v2274
        %v2575 = vpack.c.b16 %v2279, %v2275
        %v2576 = vpack.c.b16 %v2280, %v2276
        %v2577 = vpack.c.b16 %v2281, %v2277
        %v2578 = vpack.c.b16 %v2286, %v2282
        %v2579 = vpack.c.b16 %v2287, %v2283
        %v2580 = vpack.c.b16 %v2288, %v2284
        %v2581 = vpack.c.b16 %v2289, %v2285
        %v2582 = vpack.c.b16 %v2294, %v2290
        %v2583 = vpack.c.b16 %v2295, %v2291
        %v2584 = vpack.c.b16 %v2296, %v2292
        %v2585 = vpack.c.b16 %v2297, %v2293
        %2874 = vmatprep.subr.bf16.mxu0 %v2299
        %2875 = vmatpush1.bf16.msra.mxu0 %v2298
        %2876 = vmatprep.subr.bf16.mxu0 %v2303
        %2877 = vmatpush1.bf16.msra.mxu0 %v2302
        %2878 = vmatprep.subr.bf16.mxu0 %v2307
        %2879 = vmatpush1.bf16.msra.mxu0 %v2306
        %2880 = vmatprep.subr.bf16.mxu0 %v2311
        %2881 = vmatpush1.bf16.msra.mxu0 %v2310
        %2882 = vmatprep.subr.bf16.mxu0 %v2315
        %2883 = vmatpush1.bf16.msra.mxu0 %v2314
        %2884 = vmatprep.subr.bf16.mxu0 %v2319
        %2885 = vmatpush1.bf16.msra.mxu0 %v2318
        %2886 = vmatprep.subr.bf16.mxu0 %v2323
        %2887 = vmatpush1.bf16.msra.mxu0 %v2322
        %2888 = vmatprep.subr.bf16.mxu0 %v2327
        %2889 = vmatpush1.bf16.msra.mxu0 %v2326
        %2890 = vmatprep.subr.bf16.mxu0 %v2331
        %2891 = vmatpush1.bf16.msra.mxu0 %v2330
        %2892 = vmatprep.subr.bf16.mxu0 %v2335
        %2893 = vmatpush1.bf16.msra.mxu0 %v2334
        %2894 = vmatprep.subr.bf16.mxu0 %v2339
        %2895 = vmatpush1.bf16.msra.mxu0 %v2338
        %2896 = vmatprep.subr.bf16.mxu0 %v2343
        %2897 = vmatpush1.bf16.msra.mxu0 %v2342
        %2898 = vmatprep.subr.bf16.mxu0 %v2347
        %2899 = vmatpush1.bf16.msra.mxu0 %v2346
        %2900 = vmatprep.subr.bf16.mxu0 %v2351
        %2901 = vmatpush1.bf16.msra.mxu0 %v2350
        %2902 = vmatprep.subr.bf16.mxu0 %v2355
        %2903 = vmatpush1.bf16.msra.mxu0 %v2354
        %2904 = vmatprep.subr.bf16.mxu0 %v2359
        %2905 = vmatpush1.bf16.msra.mxu0 %v2358
        %2906 = vmatprep.mubr.bf16.mxu0 %v1399
        %2907 = vmatmul.mubr.bf16.gmra.mrb[0].mxu0 %v1398
        %v2908 = vpop.f32.mrb[0].mxu0
        %v2909 = vadd.f32 0.0, %v2908
        %v2910 = vpop.f32.mrb[0].mxu0
        %v2911 = vadd.f32 0.0, %v2910
        %v2912 = vpop.f32.mrb[0].mxu0
        %v2913 = vadd.f32 0.0, %v2912
        %v2914 = vpop.f32.mrb[0].mxu0
        %v2915 = vadd.f32 0.0, %v2914
        %2916 = vmatprep.mubr.bf16.mxu0 %v1408
        %2917 = vmatmul.mubr.bf16.gmra.mrb[0].mxu0 %v1407
        %v2918 = vpop.f32.mrb[0].mxu0
        %v2919 = vadd.f32 0.0, %v2918
        %v2920 = vpop.f32.mrb[0].mxu0
        %v2921 = vadd.f32 0.0, %v2920
        %v2922 = vpop.f32.mrb[0].mxu0
        %v2923 = vadd.f32 0.0, %v2922
        %v2924 = vpop.f32.mrb[0].mxu0
        %v2925 = vadd.f32 0.0, %v2924
        %2926 = vdwg.mxu0
        %2927 = vmatprep.subr.bf16.mxu0 %v2363
        %2928 = vmatpush1.bf16.msra.mxu0 %v2362
        %2929 = vmatprep.subr.bf16.mxu0 %v2367
        %2930 = vmatpush1.bf16.msra.mxu0 %v2366
        %2931 = vmatprep.subr.bf16.mxu0 %v2371
        %2932 = vmatpush1.bf16.msra.mxu0 %v2370
        %2933 = vmatprep.subr.bf16.mxu0 %v2375
        %2934 = vmatpush1.bf16.msra.mxu0 %v2374
        %2935 = vmatprep.subr.bf16.mxu0 %v2379
        %2936 = vmatpush1.bf16.msra.mxu0 %v2378
        %2937 = vmatprep.subr.bf16.mxu0 %v2383
        %2938 = vmatpush1.bf16.msra.mxu0 %v2382
        %2939 = vmatprep.subr.bf16.mxu0 %v2387
        %2940 = vmatpush1.bf16.msra.mxu0 %v2386
        %2941 = vmatprep.subr.bf16.mxu0 %v2391
        %2942 = vmatpush1.bf16.msra.mxu0 %v2390
        %2943 = vmatprep.subr.bf16.mxu0 %v2395
        %2944 = vmatpush1.bf16.msra.mxu0 %v2394
        %2945 = vmatprep.subr.bf16.mxu0 %v2399
        %2946 = vmatpush1.bf16.msra.mxu0 %v2398
        %2947 = vmatprep.subr.bf16.mxu0 %v2403
        %2948 = vmatpush1.bf16.msra.mxu0 %v2402
        %2949 = vmatprep.subr.bf16.mxu0 %v2407
        %2950 = vmatpush1.bf16.msra.mxu0 %v2406
        %2951 = vmatprep.subr.bf16.mxu0 %v2411
        %2952 = vmatpush1.bf16.msra.mxu0 %v2410
        %2953 = vmatprep.subr.bf16.mxu0 %v2415
        %2954 = vmatpush1.bf16.msra.mxu0 %v2414
        %2955 = vmatprep.subr.bf16.mxu0 %v2419
        %2956 = vmatpush1.bf16.msra.mxu0 %v2418
        %2957 = vmatprep.subr.bf16.mxu0 %v2423
        %2958 = vmatpush1.bf16.msra.mxu0 %v2422
        %2959 = vmatprep.mubr.bf16.mxu0 %v1401
        %2960 = vmatmul.mubr.bf16.gmra.mrb[0].mxu0 %v1400
        %v2961 = vpop.f32.mrb[0].mxu0
        %v2962 = vadd.f32 %v2909, %v2961
        %v2963 = vpop.f32.mrb[0].mxu0
        %v2964 = vadd.f32 %v2911, %v2963
        %v2965 = vpop.f32.mrb[0].mxu0
        %v2966 = vadd.f32 %v2913, %v2965
        %v2967 = vpop.f32.mrb[0].mxu0
        %v2968 = vadd.f32 %v2915, %v2967
        %2969 = vmatprep.mubr.bf16.mxu0 %v1410
        %2970 = vmatmul.mubr.bf16.gmra.mrb[0].mxu0 %v1409
        %v2971 = vpop.f32.mrb[0].mxu0
        %v2972 = vadd.f32 %v2919, %v2971
        %v2973 = vpop.f32.mrb[0].mxu0
        %v2974 = vadd.f32 %v2921, %v2973
        %v2975 = vpop.f32.mrb[0].mxu0
        %v2976 = vadd.f32 %v2923, %v2975
        %v2977 = vpop.f32.mrb[0].mxu0
        %v2978 = vadd.f32 %v2925, %v2977
        %2979 = vdwg.mxu0
        %2980 = vmatprep.subr.bf16.mxu0 %v2427
        %2981 = vmatpush1.bf16.msra.mxu0 %v2426
        %2982 = vmatprep.subr.bf16.mxu0 %v2431
        %2983 = vmatpush1.bf16.msra.mxu0 %v2430
        %2984 = vmatprep.subr.bf16.mxu0 %v2435
        %2985 = vmatpush1.bf16.msra.mxu0 %v2434
        %2986 = vmatprep.subr.bf16.mxu0 %v2439
        %2987 = vmatpush1.bf16.msra.mxu0 %v2438
        %2988 = vmatprep.subr.bf16.mxu0 %v2443
        %2989 = vmatpush1.bf16.msra.mxu0 %v2442
        %2990 = vmatprep.subr.bf16.mxu0 %v2447
        %2991 = vmatpush1.bf16.msra.mxu0 %v2446
        %2992 = vmatprep.subr.bf16.mxu0 %v2451
        %2993 = vmatpush1.bf16.msra.mxu0 %v2450
        %2994 = vmatprep.subr.bf16.mxu0 %v2455
        %2995 = vmatpush1.bf16.msra.mxu0 %v2454
        %2996 = vmatprep.subr.bf16.mxu0 %v2459
        %2997 = vmatpush1.bf16.msra.mxu0 %v2458
        %2998 = vmatprep.subr.bf16.mxu0 %v2463
        %2999 = vmatpush1.bf16.msra.mxu0 %v2462
        %3000 = vmatprep.subr.bf16.mxu0 %v2467
        %3001 = vmatpush1.bf16.msra.mxu0 %v2466
        %3002 = vmatprep.subr.bf16.mxu0 %v2471
        %3003 = vmatpush1.bf16.msra.mxu0 %v2470
        %3004 = vmatprep.subr.bf16.mxu0 %v2475
        %3005 = vmatpush1.bf16.msra.mxu0 %v2474
        %3006 = vmatprep.subr.bf16.mxu0 %v2479
        %3007 = vmatpush1.bf16.msra.mxu0 %v2478
        %3008 = vmatprep.subr.bf16.mxu0 %v2483
        %3009 = vmatpush1.bf16.msra.mxu0 %v2482
        %3010 = vmatprep.subr.bf16.mxu0 %v2487
        %3011 = vmatpush1.bf16.msra.mxu0 %v2486
        %3012 = vmatprep.mubr.bf16.mxu0 %v1403
        %3013 = vmatmul.mubr.bf16.gmra.mrb[0].mxu0 %v1402
        %v3014 = vpop.f32.mrb[0].mxu0
        %v3015 = vadd.f32 %v2962, %v3014
        %v3016 = vpop.f32.mrb[0].mxu0
        %v3017 = vadd.f32 %v2964, %v3016
        %v3018 = vpop.f32.mrb[0].mxu0
        %v3019 = vadd.f32 %v2966, %v3018
        %v3020 = vpop.f32.mrb[0].mxu0
        %v3021 = vadd.f32 %v2968, %v3020
        %3022 = vmatprep.mubr.bf16.mxu0 %v1412
        %3023 = vmatmul.mubr.bf16.gmra.mrb[0].mxu0 %v1411
        %v3024 = vpop.f32.mrb[0].mxu0
        %v3025 = vadd.f32 %v2972, %v3024
        %v3026 = vpop.f32.mrb[0].mxu0
        %v3027 = vadd.f32 %v2974, %v3026
        %v3028 = vpop.f32.mrb[0].mxu0
        %v3029 = vadd.f32 %v2976, %v3028
        %v3030 = vpop.f32.mrb[0].mxu0
        %v3031 = vadd.f32 %v2978, %v3030
        %3032 = vdwg.mxu0
        %3033 = vmatprep.subr.bf16.mxu0 %v2491
        %3034 = vmatpush1.bf16.msra.mxu0 %v2490
        %3035 = vmatprep.subr.bf16.mxu0 %v2495
        %3036 = vmatpush1.bf16.msra.mxu0 %v2494
        %3037 = vmatprep.subr.bf16.mxu0 %v2499
        %3038 = vmatpush1.bf16.msra.mxu0 %v2498
        %3039 = vmatprep.subr.bf16.mxu0 %v2503
        %3040 = vmatpush1.bf16.msra.mxu0 %v2502
        %3041 = vmatprep.subr.bf16.mxu0 %v2507
        %3042 = vmatpush1.bf16.msra.mxu0 %v2506
        %3043 = vmatprep.subr.bf16.mxu0 %v2511
        %3044 = vmatpush1.bf16.msra.mxu0 %v2510
        %3045 = vmatprep.subr.bf16.mxu0 %v2515
        %3046 = vmatpush1.bf16.msra.mxu0 %v2514
        %3047 = vmatprep.subr.bf16.mxu0 %v2519
        %3048 = vmatpush1.bf16.msra.mxu0 %v2518
        %3049 = vmatprep.subr.bf16.mxu0 %v2523
        %3050 = vmatpush1.bf16.msra.mxu0 %v2522
        %3051 = vmatprep.subr.bf16.mxu0 %v2527
        %3052 = vmatpush1.bf16.msra.mxu0 %v2526
        %3053 = vmatprep.subr.bf16.mxu0 %v2531
        %3054 = vmatpush1.bf16.msra.mxu0 %v2530
        %3055 = vmatprep.subr.bf16.mxu0 %v2535
        %3056 = vmatpush1.bf16.msra.mxu0 %v2534
        %3057 = vmatprep.subr.bf16.mxu0 %v2539
        %3058 = vmatpush1.bf16.msra.mxu0 %v2538
        %3059 = vmatprep.subr.bf16.mxu0 %v2543
        %3060 = vmatpush1.bf16.msra.mxu0 %v2542
        %3061 = vmatprep.subr.bf16.mxu0 %v2547
        %3062 = vmatpush1.bf16.msra.mxu0 %v2546
        %3063 = vmatprep.subr.bf16.mxu0 %v2551
        %3064 = vmatpush1.bf16.msra.mxu0 %v2550
        %3065 = vmatprep.mubr.bf16.mxu0 %v1405
        %3066 = vmatmul.mubr.bf16.gmra.mrb[0].mxu0 %v1404
        %v3067 = vpop.f32.mrb[0].mxu0
        %v3068 = vadd.f32 %v3015, %v3067
        %v3069 = vpop.f32.mrb[0].mxu0
        %v3070 = vadd.f32 %v3017, %v3069
        %v3071 = vpop.f32.mrb[0].mxu0
        %v3072 = vadd.f32 %v3019, %v3071
        %v3073 = vpop.f32.mrb[0].mxu0
        %v3074 = vadd.f32 %v3021, %v3073
        %3075 = vmatprep.mubr.bf16.mxu0 %v1414
        %3076 = vmatmul.mubr.bf16.gmra.mrb[0].mxu0 %v1413
        %v3077 = vpop.f32.mrb[0].mxu0
        %v3078 = vadd.f32 %v3025, %v3077
        %v3079 = vpop.f32.mrb[0].mxu0
        %v3080 = vadd.f32 %v3027, %v3079
        %v3081 = vpop.f32.mrb[0].mxu0
        %v3082 = vadd.f32 %v3029, %v3081
        %v3083 = vpop.f32.mrb[0].mxu0
        %v3084 = vadd.f32 %v3031, %v3083
        %3085 = vdwg.mxu0
        %3086 = vmatprep.subr.bf16.mxu0 %v2555
        %3087 = vmatpush1.bf16.msra.mxu0 %v2554
        %3088 = vmatprep.subr.bf16.mxu0 %v2559
        %3089 = vmatpush1.bf16.msra.mxu0 %v2558
        %3090 = vmatprep.subr.bf16.mxu0 %v2563
        %3091 = vmatpush1.bf16.msra.mxu0 %v2562
        %3092 = vmatprep.subr.bf16.mxu0 %v2567
        %3093 = vmatpush1.bf16.msra.mxu0 %v2566
        %3094 = vmatprep.subr.bf16.mxu0 %v2571
        %3095 = vmatpush1.bf16.msra.mxu0 %v2570
        %3096 = vmatprep.subr.bf16.mxu0 %v2575
        %3097 = vmatpush1.bf16.msra.mxu0 %v2574
        %3098 = vmatprep.subr.bf16.mxu0 %v2579
        %3099 = vmatpush1.bf16.msra.mxu0 %v2578
        %3100 = vmatprep.subr.bf16.mxu0 %v2583
        %3101 = vmatpush1.bf16.msra.mxu0 %v2582
        %3102 = vmatprep.subr.bf16.mxu0 0
        %3103 = vmatpush1.bf16.msra.mxu0 0
        %3104 = vmatprep.subr.bf16.mxu0 0
        %3105 = vmatpush1.bf16.msra.mxu0 0
        %3106 = vmatprep.subr.bf16.mxu0 0
        %3107 = vmatpush1.bf16.msra.mxu0 0
        %3108 = vmatprep.subr.bf16.mxu0 0
        %3109 = vmatpush1.bf16.msra.mxu0 0
        %3110 = vmatprep.subr.bf16.mxu0 0
        %3111 = vmatpush1.bf16.msra.mxu0 0
        %3112 = vmatprep.subr.bf16.mxu0 0
        %3113 = vmatpush1.bf16.msra.mxu0 0
        %3114 = vmatprep.subr.bf16.mxu0 0
        %3115 = vmatpush1.bf16.msra.mxu0 0
        %3116 = vmatprep.subr.bf16.mxu0 0
        %3117 = vmatpush1.bf16.msra.mxu0 0
        %3118 = vmatprep.mubr.bf16.mxu0 0
        %3119 = vmatmul.mubr.bf16.gmra.mrb[0].mxu0 %v1406
        %v3120 = vpop.f32.mrb[0].mxu0
        %v3121 = vadd.f32 %v3068, %v3120
        %v3122 = vpop.f32.mrb[0].mxu0
        %v3123 = vadd.f32 %v3070, %v3122
        %v3124 = vpop.f32.mrb[0].mxu0
        %v3125 = vadd.f32 %v3072, %v3124
        %v3126 = vpop.f32.mrb[0].mxu0
        %v3127 = vadd.f32 %v3074, %v3126
        %3128 = vmatprep.mubr.bf16.mxu0 0
        %3129 = vmatmul.mubr.bf16.gmra.mrb[0].mxu0 %v1415
        %v3130 = vpop.f32.mrb[0].mxu0
        %v3131 = vadd.f32 %v3078, %v3130
        %v3132 = vpop.f32.mrb[0].mxu0
        %v3133 = vadd.f32 %v3080, %v3132
        %v3134 = vpop.f32.mrb[0].mxu0
        %v3135 = vadd.f32 %v3082, %v3134
        %v3136 = vpop.f32.mrb[0].mxu0
        %v3137 = vadd.f32 %v3084, %v3136
        %3138 = vdwg.mxu0
        %3139 = vmatprep.subr.bf16.mxu0 %v2301
        %3140 = vmatpush1.bf16.msra.mxu0 %v2300
        %3141 = vmatprep.subr.bf16.mxu0 %v2305
        %3142 = vmatpush1.bf16.msra.mxu0 %v2304
        %3143 = vmatprep.subr.bf16.mxu0 %v2309
        %3144 = vmatpush1.bf16.msra.mxu0 %v2308
        %3145 = vmatprep.subr.bf16.mxu0 %v2313
        %3146 = vmatpush1.bf16.msra.mxu0 %v2312
        %3147 = vmatprep.subr.bf16.mxu0 %v2317
        %3148 = vmatpush1.bf16.msra.mxu0 %v2316
        %3149 = vmatprep.subr.bf16.mxu0 %v2321
        %3150 = vmatpush1.bf16.msra.mxu0 %v2320
        %3151 = vmatprep.subr.bf16.mxu0 %v2325
        %3152 = vmatpush1.bf16.msra.mxu0 %v2324
        %3153 = vmatprep.subr.bf16.mxu0 %v2329
        %3154 = vmatpush1.bf16.msra.mxu0 %v2328
        %3155 = vmatprep.subr.bf16.mxu0 %v2333
        %3156 = vmatpush1.bf16.msra.mxu0 %v2332
        %3157 = vmatprep.subr.bf16.mxu0 %v2337
        %3158 = vmatpush1.bf16.msra.mxu0 %v2336
        %3159 = vmatprep.subr.bf16.mxu0 %v2341
        %3160 = vmatpush1.bf16.msra.mxu0 %v2340
        %3161 = vmatprep.subr.bf16.mxu0 %v2345
        %3162 = vmatpush1.bf16.msra.mxu0 %v2344
        %3163 = vmatprep.subr.bf16.mxu0 %v2349
        %3164 = vmatpush1.bf16.msra.mxu0 %v2348
        %3165 = vmatprep.subr.bf16.mxu0 %v2353
        %3166 = vmatpush1.bf16.msra.mxu0 %v2352
        %3167 = vmatprep.subr.bf16.mxu0 %v2357
        %3168 = vmatpush1.bf16.msra.mxu0 %v2356
        %3169 = vmatprep.subr.bf16.mxu0 %v2361
        %3170 = vmatpush1.bf16.msra.mxu0 %v2360
        %3171 = vmatprep.mubr.bf16.mxu0 %v1399
        %3172 = vmatmul.mubr.bf16.gmra.mrb[0].mxu0 %v1398
        %v3173 = vpop.f32.mrb[0].mxu0
        %v3174 = vadd.f32 0.0, %v3173
        %v3175 = vpop.f32.mrb[0].mxu0
        %v3176 = vadd.f32 0.0, %v3175
        %v3177 = vpop.f32.mrb[0].mxu0
        %v3178 = vadd.f32 0.0, %v3177
        %v3179 = vpop.f32.mrb[0].mxu0
        %v3180 = vadd.f32 0.0, %v3179
        %3181 = vmatprep.mubr.bf16.mxu0 %v1408
        %3182 = vmatmul.mubr.bf16.gmra.mrb[0].mxu0 %v1407
        %v3183 = vpop.f32.mrb[0].mxu0
        %v3184 = vadd.f32 0.0, %v3183
        %v3185 = vpop.f32.mrb[0].mxu0
        %v3186 = vadd.f32 0.0, %v3185
        %v3187 = vpop.f32.mrb[0].mxu0
        %v3188 = vadd.f32 0.0, %v3187
        %v3189 = vpop.f32.mrb[0].mxu0
        %v3190 = vadd.f32 0.0, %v3189
        %3191 = vdwg.mxu0
        %3192 = vmatprep.subr.bf16.mxu0 %v2365
        %3193 = vmatpush1.bf16.msra.mxu0 %v2364
        %3194 = vmatprep.subr.bf16.mxu0 %v2369
        %3195 = vmatpush1.bf16.msra.mxu0 %v2368
        %3196 = vmatprep.subr.bf16.mxu0 %v2373
        %3197 = vmatpush1.bf16.msra.mxu0 %v2372
        %3198 = vmatprep.subr.bf16.mxu0 %v2377
        %3199 = vmatpush1.bf16.msra.mxu0 %v2376
        %3200 = vmatprep.subr.bf16.mxu0 %v2381
        %3201 = vmatpush1.bf16.msra.mxu0 %v2380
        %3202 = vmatprep.subr.bf16.mxu0 %v2385
        %3203 = vmatpush1.bf16.msra.mxu0 %v2384
        %3204 = vmatprep.subr.bf16.mxu0 %v2389
        %3205 = vmatpush1.bf16.msra.mxu0 %v2388
        %3206 = vmatprep.subr.bf16.mxu0 %v2393
        %3207 = vmatpush1.bf16.msra.mxu0 %v2392
        %3208 = vmatprep.subr.bf16.mxu0 %v2397
        %3209 = vmatpush1.bf16.msra.mxu0 %v2396
        %3210 = vmatprep.subr.bf16.mxu0 %v2401
        %3211 = vmatpush1.bf16.msra.mxu0 %v2400
        %3212 = vmatprep.subr.bf16.mxu0 %v2405
        %3213 = vmatpush1.bf16.msra.mxu0 %v2404
        %3214 = vmatprep.subr.bf16.mxu0 %v2409
        %3215 = vmatpush1.bf16.msra.mxu0 %v2408
        %3216 = vmatprep.subr.bf16.mxu0 %v2413
        %3217 = vmatpush1.bf16.msra.mxu0 %v2412
        %3218 = vmatprep.subr.bf16.mxu0 %v2417
        %3219 = vmatpush1.bf16.msra.mxu0 %v2416
        %3220 = vmatprep.subr.bf16.mxu0 %v2421
        %3221 = vmatpush1.bf16.msra.mxu0 %v2420
        %3222 = vmatprep.subr.bf16.mxu0 %v2425
        %3223 = vmatpush1.bf16.msra.mxu0 %v2424
        %3224 = vmatprep.mubr.bf16.mxu0 %v1401
        %3225 = vmatmul.mubr.bf16.gmra.mrb[0].mxu0 %v1400
        %v3226 = vpop.f32.mrb[0].mxu0
        %v3227 = vadd.f32 %v3174, %v3226
        %v3228 = vpop.f32.mrb[0].mxu0
        %v3229 = vadd.f32 %v3176, %v3228
        %v3230 = vpop.f32.mrb[0].mxu0
        %v3231 = vadd.f32 %v3178, %v3230
        %v3232 = vpop.f32.mrb[0].mxu0
        %v3233 = vadd.f32 %v3180, %v3232
        %3234 = vmatprep.mubr.bf16.mxu0 %v1410
        %3235 = vmatmul.mubr.bf16.gmra.mrb[0].mxu0 %v1409
        %v3236 = vpop.f32.mrb[0].mxu0
        %v3237 = vadd.f32 %v3184, %v3236
        %v3238 = vpop.f32.mrb[0].mxu0
        %v3239 = vadd.f32 %v3186, %v3238
        %v3240 = vpop.f32.mrb[0].mxu0
        %v3241 = vadd.f32 %v3188, %v3240
        %v3242 = vpop.f32.mrb[0].mxu0
        %v3243 = vadd.f32 %v3190, %v3242
        %3244 = vdwg.mxu0
        %3245 = vmatprep.subr.bf16.mxu0 %v2429
        %3246 = vmatpush1.bf16.msra.mxu0 %v2428
        %3247 = vmatprep.subr.bf16.mxu0 %v2433
        %3248 = vmatpush1.bf16.msra.mxu0 %v2432
        %3249 = vmatprep.subr.bf16.mxu0 %v2437
        %3250 = vmatpush1.bf16.msra.mxu0 %v2436
        %3251 = vmatprep.subr.bf16.mxu0 %v2441
        %3252 = vmatpush1.bf16.msra.mxu0 %v2440
        %3253 = vmatprep.subr.bf16.mxu0 %v2445
        %3254 = vmatpush1.bf16.msra.mxu0 %v2444
        %3255 = vmatprep.subr.bf16.mxu0 %v2449
        %3256 = vmatpush1.bf16.msra.mxu0 %v2448
        %3257 = vmatprep.subr.bf16.mxu0 %v2453
        %3258 = vmatpush1.bf16.msra.mxu0 %v2452
        %3259 = vmatprep.subr.bf16.mxu0 %v2457
        %3260 = vmatpush1.bf16.msra.mxu0 %v2456
        %3261 = vmatprep.subr.bf16.mxu0 %v2461
        %3262 = vmatpush1.bf16.msra.mxu0 %v2460
        %3263 = vmatprep.subr.bf16.mxu0 %v2465
        %3264 = vmatpush1.bf16.msra.mxu0 %v2464
        %3265 = vmatprep.subr.bf16.mxu0 %v2469
        %3266 = vmatpush1.bf16.msra.mxu0 %v2468
        %3267 = vmatprep.subr.bf16.mxu0 %v2473
        %3268 = vmatpush1.bf16.msra.mxu0 %v2472
        %3269 = vmatprep.subr.bf16.mxu0 %v2477
        %3270 = vmatpush1.bf16.msra.mxu0 %v2476
        %3271 = vmatprep.subr.bf16.mxu0 %v2481
        %3272 = vmatpush1.bf16.msra.mxu0 %v2480
        %3273 = vmatprep.subr.bf16.mxu0 %v2485
        %3274 = vmatpush1.bf16.msra.mxu0 %v2484
        %3275 = vmatprep.subr.bf16.mxu0 %v2489
        %3276 = vmatpush1.bf16.msra.mxu0 %v2488
        %3277 = vmatprep.mubr.bf16.mxu0 %v1403
        %3278 = vmatmul.mubr.bf16.gmra.mrb[0].mxu0 %v1402
        %v3279 = vpop.f32.mrb[0].mxu0
        %v3280 = vadd.f32 %v3227, %v3279
        %v3281 = vpop.f32.mrb[0].mxu0
        %v3282 = vadd.f32 %v3229, %v3281
        %v3283 = vpop.f32.mrb[0].mxu0
        %v3284 = vadd.f32 %v3231, %v3283
        %v3285 = vpop.f32.mrb[0].mxu0
        %v3286 = vadd.f32 %v3233, %v3285
        %3287 = vmatprep.mubr.bf16.mxu0 %v1412
        %3288 = vmatmul.mubr.bf16.gmra.mrb[0].mxu0 %v1411
        %v3289 = vpop.f32.mrb[0].mxu0
        %v3290 = vadd.f32 %v3237, %v3289
        %v3291 = vpop.f32.mrb[0].mxu0
        %v3292 = vadd.f32 %v3239, %v3291
        %v3293 = vpop.f32.mrb[0].mxu0
        %v3294 = vadd.f32 %v3241, %v3293
        %v3295 = vpop.f32.mrb[0].mxu0
        %v3296 = vadd.f32 %v3243, %v3295
        %3297 = vdwg.mxu0
        %3298 = vmatprep.subr.bf16.mxu0 %v2493
        %3299 = vmatpush1.bf16.msra.mxu0 %v2492
        %3300 = vmatprep.subr.bf16.mxu0 %v2497
        %3301 = vmatpush1.bf16.msra.mxu0 %v2496
        %3302 = vmatprep.subr.bf16.mxu0 %v2501
        %3303 = vmatpush1.bf16.msra.mxu0 %v2500
        %3304 = vmatprep.subr.bf16.mxu0 %v2505
        %3305 = vmatpush1.bf16.msra.mxu0 %v2504
        %3306 = vmatprep.subr.bf16.mxu0 %v2509
        %3307 = vmatpush1.bf16.msra.mxu0 %v2508
        %3308 = vmatprep.subr.bf16.mxu0 %v2513
        %3309 = vmatpush1.bf16.msra.mxu0 %v2512
        %3310 = vmatprep.subr.bf16.mxu0 %v2517
        %3311 = vmatpush1.bf16.msra.mxu0 %v2516
        %3312 = vmatprep.subr.bf16.mxu0 %v2521
        %3313 = vmatpush1.bf16.msra.mxu0 %v2520
        %3314 = vmatprep.subr.bf16.mxu0 %v2525
        %3315 = vmatpush1.bf16.msra.mxu0 %v2524
        %3316 = vmatprep.subr.bf16.mxu0 %v2529
        %3317 = vmatpush1.bf16.msra.mxu0 %v2528
        %3318 = vmatprep.subr.bf16.mxu0 %v2533
        %3319 = vmatpush1.bf16.msra.mxu0 %v2532
        %3320 = vmatprep.subr.bf16.mxu0 %v2537
        %3321 = vmatpush1.bf16.msra.mxu0 %v2536
        %3322 = vmatprep.subr.bf16.mxu0 %v2541
        %3323 = vmatpush1.bf16.msra.mxu0 %v2540
        %3324 = vmatprep.subr.bf16.mxu0 %v2545
        %3325 = vmatpush1.bf16.msra.mxu0 %v2544
        %3326 = vmatprep.subr.bf16.mxu0 %v2549
        %3327 = vmatpush1.bf16.msra.mxu0 %v2548
        %3328 = vmatprep.subr.bf16.mxu0 %v2553
        %3329 = vmatpush1.bf16.msra.mxu0 %v2552
        %3330 = vmatprep.mubr.bf16.mxu0 %v1405
        %3331 = vmatmul.mubr.bf16.gmra.mrb[0].mxu0 %v1404
        %v3332 = vpop.f32.mrb[0].mxu0
        %v3333 = vadd.f32 %v3280, %v3332
        %v3334 = vpop.f32.mrb[0].mxu0
        %v3335 = vadd.f32 %v3282, %v3334
        %v3336 = vpop.f32.mrb[0].mxu0
        %v3337 = vadd.f32 %v3284, %v3336
        %v3338 = vpop.f32.mrb[0].mxu0
        %v3339 = vadd.f32 %v3286, %v3338
        %3340 = vmatprep.mubr.bf16.mxu0 %v1414
        %3341 = vmatmul.mubr.bf16.gmra.mrb[0].mxu0 %v1413
        %v3342 = vpop.f32.mrb[0].mxu0
        %v3343 = vadd.f32 %v3290, %v3342
        %v3344 = vpop.f32.mrb[0].mxu0
        %v3345 = vadd.f32 %v3292, %v3344
        %v3346 = vpop.f32.mrb[0].mxu0
        %v3347 = vadd.f32 %v3294, %v3346
        %v3348 = vpop.f32.mrb[0].mxu0
        %v3349 = vadd.f32 %v3296, %v3348
        %3350 = vdwg.mxu0
        %3351 = vmatprep.subr.bf16.mxu0 %v2557
        %3352 = vmatpush1.bf16.msra.mxu0 %v2556
        %3353 = vmatprep.subr.bf16.mxu0 %v2561
        %3354 = vmatpush1.bf16.msra.mxu0 %v2560
        %3355 = vmatprep.subr.bf16.mxu0 %v2565
        %3356 = vmatpush1.bf16.msra.mxu0 %v2564
        %3357 = vmatprep.subr.bf16.mxu0 %v2569
        %3358 = vmatpush1.bf16.msra.mxu0 %v2568
        %3359 = vmatprep.subr.bf16.mxu0 %v2573
        %3360 = vmatpush1.bf16.msra.mxu0 %v2572
        %3361 = vmatprep.subr.bf16.mxu0 %v2577
        %3362 = vmatpush1.bf16.msra.mxu0 %v2576
        %3363 = vmatprep.subr.bf16.mxu0 %v2581
        %3364 = vmatpush1.bf16.msra.mxu0 %v2580
        %3365 = vmatprep.subr.bf16.mxu0 %v2585
        %3366 = vmatpush1.bf16.msra.mxu0 %v2584
        %3367 = vmatprep.subr.bf16.mxu0 0
        %3368 = vmatpush1.bf16.msra.mxu0 0
        %3369 = vmatprep.subr.bf16.mxu0 0
        %3370 = vmatpush1.bf16.msra.mxu0 0
        %3371 = vmatprep.subr.bf16.mxu0 0
        %3372 = vmatpush1.bf16.msra.mxu0 0
        %3373 = vmatprep.subr.bf16.mxu0 0
        %3374 = vmatpush1.bf16.msra.mxu0 0
        %3375 = vmatprep.subr.bf16.mxu0 0
        %3376 = vmatpush1.bf16.msra.mxu0 0
        %3377 = vmatprep.subr.bf16.mxu0 0
        %3378 = vmatpush1.bf16.msra.mxu0 0
        %3379 = vmatprep.subr.bf16.mxu0 0
        %3380 = vmatpush1.bf16.msra.mxu0 0
        %3381 = vmatprep.subr.bf16.mxu0 0
        %3382 = vmatpush1.bf16.msra.mxu0 0
        %3383 = vmatprep.mubr.bf16.mxu0 0
        %3384 = vmatmul.mubr.bf16.gmra.mrb[0].mxu0 %v1406
        %v3385 = vpop.f32.mrb[0].mxu0
        %v3386 = vadd.f32 %v3333, %v3385
        %v3387 = vpop.f32.mrb[0].mxu0
        %v3388 = vadd.f32 %v3335, %v3387
        %v3389 = vpop.f32.mrb[0].mxu0
        %v3390 = vadd.f32 %v3337, %v3389
        %v3391 = vpop.f32.mrb[0].mxu0
        %v3392 = vadd.f32 %v3339, %v3391
        %3393 = vmatprep.mubr.bf16.mxu0 0
        %3394 = vmatmul.mubr.bf16.gmra.mrb[0].mxu0 %v1415
        %v3395 = vpop.f32.mrb[0].mxu0
        %v3396 = vadd.f32 %v3343, %v3395
        %v3397 = vpop.f32.mrb[0].mxu0
        %v3398 = vadd.f32 %v3345, %v3397
        %v3399 = vpop.f32.mrb[0].mxu0
        %v3400 = vadd.f32 %v3347, %v3399
        %v3401 = vpop.f32.mrb[0].mxu0
        %v3402 = vadd.f32 %v3349, %v3401
        %3403 = vdwg.mxu0
        %v3404 = vadd.f32 %v1306, %v3121
        %v3405 = vadd.f32 %v1307, %v3123
        %v3406 = vadd.f32 %v1308, %v3386
        %v3407 = vadd.f32 %v1309, %v3388
        %v3408 = vadd.f32 %v1310, %v3125
        %v3409 = vadd.f32 %v1311, %v3127
        %v3410 = vadd.f32 %v1312, %v3390
        %v3411 = vadd.f32 %v1313, %v3392
        %v3412 = vadd.f32 %v1314, %v3131
        %v3413 = vadd.f32 %v1315, %v3133
        %v3414 = vadd.f32 %v1316, %v3396
        %v3415 = vadd.f32 %v1317, %v3398
        %v3416 = vadd.f32 %v1318, %v3135
        %v3417 = vadd.f32 %v1319, %v3137
        %v3418 = vadd.f32 %v1320, %v3400
        %v3419 = vadd.f32 %v1321, %v3402
        %3420 = vst [vmem:[#allocation2] sm:$0xff] %v3404
        %3421 = vst [vmem:[#allocation2 + $0x8] sm:$0xff] %v3405
        %3422 = vst [vmem:[#allocation2 + $0x10] sm:$0xff] %v3406
        %3423 = vst [vmem:[#allocation2 + $0x18] sm:$0xff] %v3407
        %3424 = vst [vmem:[#allocation2 + $0x20] sm:$0xff] %v3408
        %3425 = vst [vmem:[#allocation2 + $0x28] sm:$0xff] %v3409
        %3426 = vst [vmem:[#allocation2 + $0x30] sm:$0xff] %v3410
        %3427 = vst [vmem:[#allocation2 + $0x38] sm:$0xff] %v3411
        %3428 = vst [vmem:[#allocation2 + $0x40] sm:$0xff] %v3412
        %3429 = vst [vmem:[#allocation2 + $0x48] sm:$0xff] %v3413
        %3430 = vst [vmem:[#allocation2 + $0x50] sm:$0xff] %v3414
        %3431 = vst [vmem:[#allocation2 + $0x58] sm:$0xff] %v3415
        %3432 = vst [vmem:[#allocation2 + $0x60] sm:$0xff] %v3416
        %3433 = vst [vmem:[#allocation2 + $0x68] sm:$0xff] %v3417
        %3434 = vst [vmem:[#allocation2 + $0x70] sm:$0xff] %v3418
        %3435 = vst [vmem:[#allocation2 + $0x78] sm:$0xff] %v3419
        %p3436 = scmp.eq.s32.totalorder %s23, 1
        // Predicated region
        $region94: #{_forward_core.5} parent=80 // pred_check
          %p3437 = pneg %p3436
        $region95: #{_forward_core.5} parent=80 // pred_check_branch
          %3439 = sbr.rel (%p3437) target = $region97
        $region96: #{_forward_core.5} parent=80 // pred_region
          %v3440 = vld [vmem:[#allocation2] sm:$0xff]
          %v3441 = vld [vmem:[#allocation2 + $0x8] sm:$0xff]
          %v3442 = vld [vmem:[#allocation2 + $0x10] sm:$0xff]
          %v3443 = vld [vmem:[#allocation2 + $0x18] sm:$0xff]
          %v3444 = vld [vmem:[#allocation2 + $0x20] sm:$0xff]
          %v3445 = vld [vmem:[#allocation2 + $0x28] sm:$0xff]
          %v3446 = vld [vmem:[#allocation2 + $0x30] sm:$0xff]
          %v3447 = vld [vmem:[#allocation2 + $0x38] sm:$0xff]
          %v3448 = vld [vmem:[#allocation2 + $0x40] sm:$0xff]
          %v3449 = vld [vmem:[#allocation2 + $0x48] sm:$0xff]
          %v3450 = vld [vmem:[#allocation2 + $0x50] sm:$0xff]
          %v3451 = vld [vmem:[#allocation2 + $0x58] sm:$0xff]
          %v3452 = vld [vmem:[#allocation2 + $0x60] sm:$0xff]
          %v3453 = vld [vmem:[#allocation2 + $0x68] sm:$0xff]
          %v3454 = vld [vmem:[#allocation2 + $0x70] sm:$0xff]
          %v3455 = vld [vmem:[#allocation2 + $0x78] sm:$0xff]
          %v3456 = vld [vmem:[%s982] sm:$0xf]
          %v3458 = vlaneseq
          %v3459 = vshrl.u32 %v3458, 7
          %v3460 = vsub.s32 0, %v3459
          %v3461 = vrot.slane %v3456, %v3460
          %v3462 = vlaneseq
          %v3463 = vshrl.u32 %v3462, 7
          %v3464 = vsub.s32 1, %v3463
          %v3465 = vrot.slane %v3456, %v3464
          %v3466 = vlaneseq
          %v3467 = vshrl.u32 %v3466, 7
          %v3468 = vsub.s32 2, %v3467
          %v3469 = vrot.slane %v3456, %v3468
          %v3470 = vlaneseq
          %v3471 = vshrl.u32 %v3470, 7
          %v3472 = vsub.s32 3, %v3471
          %v3473 = vrot.slane %v3456, %v3472
          %v3478 = vadd.f32 %v3440, %v3461
          %v3479 = vadd.f32 %v3441, %v3465
          %v3480 = vadd.f32 %v3442, %v3469
          %v3481 = vadd.f32 %v3443, %v3473
          %v3482 = vadd.f32 %v3444, %v3461
          %v3483 = vadd.f32 %v3445, %v3465
          %v3484 = vadd.f32 %v3446, %v3469
          %v3485 = vadd.f32 %v3447, %v3473
          %v3486 = vadd.f32 %v3448, %v3461
          %v3487 = vadd.f32 %v3449, %v3465
          %v3488 = vadd.f32 %v3450, %v3469
          %v3489 = vadd.f32 %v3451, %v3473
          %v3490 = vadd.f32 %v3452, %v3461
          %v3491 = vadd.f32 %v3453, %v3465
          %v3492 = vadd.f32 %v3454, %v3469
          %v3493 = vadd.f32 %v3455, %v3473
          %v3494 = vld [vmem:[%s993] sm:$0xf]
          %vm3495 = vcmp.gt.f32.partialorder %v3494, 0.5
          %v3496 = vmax.f32 %v3478, 0.0
          %v3497 = vmax.f32 %v3479, 0.0
          %v3498 = vmax.f32 %v3480, 0.0
          %v3499 = vmax.f32 %v3481, 0.0
          %v3500 = vmax.f32 %v3482, 0.0
          %v3501 = vmax.f32 %v3483, 0.0
          %v3502 = vmax.f32 %v3484, 0.0
          %v3503 = vmax.f32 %v3485, 0.0
          %v3504 = vmax.f32 %v3486, 0.0
          %v3505 = vmax.f32 %v3487, 0.0
          %v3506 = vmax.f32 %v3488, 0.0
          %v3507 = vmax.f32 %v3489, 0.0
          %v3508 = vmax.f32 %v3490, 0.0
          %v3509 = vmax.f32 %v3491, 0.0
          %v3510 = vmax.f32 %v3492, 0.0
          %v3511 = vmax.f32 %v3493, 0.0
          %v3512 = vsel %vm3495, 1, 0
          %v3513 = vlaneseq
          %v3514 = vshrl.u32 %v3513, 7
          %v3515 = vsub.s32 0, %v3514
          %v3516 = vrot.slane %v3512, %v3515
          %v3517 = vlaneseq
          %v3518 = vshrl.u32 %v3517, 7
          %v3519 = vsub.s32 1, %v3518
          %v3520 = vrot.slane %v3512, %v3519
          %v3521 = vlaneseq
          %v3522 = vshrl.u32 %v3521, 7
          %v3523 = vsub.s32 2, %v3522
          %v3524 = vrot.slane %v3512, %v3523
          %v3525 = vlaneseq
          %v3526 = vshrl.u32 %v3525, 7
          %v3527 = vsub.s32 3, %v3526
          %v3528 = vrot.slane %v3512, %v3527
          %vm3529 = vcmp.eq.s32.totalorder %v3516, 1
          %vm3530 = vcmp.eq.s32.totalorder %v3520, 1
          %vm3531 = vcmp.eq.s32.totalorder %v3524, 1
          %vm3532 = vcmp.eq.s32.totalorder %v3528, 1
          %v3533 = vsel %vm3529, %v3496, %v3478
          %v3534 = vsel %vm3530, %v3497, %v3479
          %v3535 = vsel %vm3531, %v3498, %v3480
          %v3536 = vsel %vm3532, %v3499, %v3481
          %v3537 = vsel %vm3529, %v3500, %v3482
          %v3538 = vsel %vm3530, %v3501, %v3483
          %v3539 = vsel %vm3531, %v3502, %v3484
          %v3540 = vsel %vm3532, %v3503, %v3485
          %v3541 = vsel %vm3529, %v3504, %v3486
          %v3542 = vsel %vm3530, %v3505, %v3487
          %v3543 = vsel %vm3531, %v3506, %v3488
          %v3544 = vsel %vm3532, %v3507, %v3489
          %v3545 = vsel %vm3529, %v3508, %v3490
          %v3546 = vsel %vm3530, %v3509, %v3491
          %v3547 = vsel %vm3531, %v3510, %v3492
          %v3548 = vsel %vm3532, %v3511, %v3493
          %v3549 = vld [vmem:[%s988] sm:$0xff]
          %v3550 = vld [vmem:[%s988 + $0x8] sm:$0xff]
          %v3551 = vld [vmem:[%s988 + $0x10] sm:$0xff]
          %v3552 = vld [vmem:[%s988 + $0x18] sm:$0xff]
          %3554 = vset.pattern.permute.xlu0 0
          %3555 = vperm.xlu0 %3554, %v3549
          %v3556 = vpop.permute.xlu0 %3555
          %3559 = vset.pattern.permute.xlu0 0
          %3560 = vperm.xlu0 %3559, %v3550
          %v3561 = vpop.permute.xlu0 %3560
          %3564 = vset.pattern.permute.xlu0 0
          %3565 = vperm.xlu0 %3564, %v3551
          %v3566 = vpop.permute.xlu0 %3565
          %3569 = vset.pattern.permute.xlu0 0
          %3570 = vperm.xlu0 %3569, %v3552
          %v3571 = vpop.permute.xlu0 %3570
          %v3573 = vmul.f32 %v3533, %v3556
          %v3574 = vmul.f32 %v3534, %v3556
          %v3575 = vmul.f32 %v3535, %v3556
          %v3576 = vmul.f32 %v3536, %v3556
          %v3577 = vmul.f32 %v3537, %v3561
          %v3578 = vmul.f32 %v3538, %v3561
          %v3579 = vmul.f32 %v3539, %v3561
          %v3580 = vmul.f32 %v3540, %v3561
          %v3581 = vmul.f32 %v3541, %v3566
          %v3582 = vmul.f32 %v3542, %v3566
          %v3583 = vmul.f32 %v3543, %v3566
          %v3584 = vmul.f32 %v3544, %v3566
          %v3585 = vmul.f32 %v3545, %v3571
          %v3586 = vmul.f32 %v3546, %v3571
          %v3587 = vmul.f32 %v3547, %v3571
          %v3588 = vmul.f32 %v3548, %v3571
          %v3589 = vpack.c.bf16 %v3577, %v3573
          %v3590 = vpack.c.bf16 %v3578, %v3574
          %v3591 = vpack.c.bf16 %v3579, %v3575
          %v3592 = vpack.c.bf16 %v3580, %v3576
          %v3593 = vpack.c.bf16 %v3585, %v3581
          %v3594 = vpack.c.bf16 %v3586, %v3582
          %v3595 = vpack.c.bf16 %v3587, %v3583
          %v3596 = vpack.c.bf16 %v3588, %v3584
          %v3605 = vunpack.c.l.b16 %v3589
          %v3606 = vunpack.c.l.b16 %v3590
          %v3607 = vunpack.c.l.b16 %v3591
          %v3608 = vunpack.c.l.b16 %v3592
          %v3609 = vunpack.c.h.b16 %v3589
          %v3610 = vunpack.c.h.b16 %v3590
          %v3611 = vunpack.c.h.b16 %v3591
          %v3612 = vunpack.c.h.b16 %v3592
          %v3613 = vunpack.c.l.b16 %v3593
          %v3614 = vunpack.c.l.b16 %v3594
          %v3615 = vunpack.c.l.b16 %v3595
          %v3616 = vunpack.c.l.b16 %v3596
          %v3617 = vunpack.c.h.b16 %v3593
          %v3618 = vunpack.c.h.b16 %v3594
          %v3619 = vunpack.c.h.b16 %v3595
          %v3620 = vunpack.c.h.b16 %v3596
          %v3621 = vpack.c.b16 %v3606, %v3605
          %v3622 = vpack.c.b16 %v3608, %v3607
          %v3623 = vpack.c.b16 %v3610, %v3609
          %v3624 = vpack.c.b16 %v3612, %v3611
          %v3625 = vpack.c.b16 %v3614, %v3613
          %v3626 = vpack.c.b16 %v3616, %v3615
          %v3627 = vpack.c.b16 %v3618, %v3617
          %v3628 = vpack.c.b16 %v3620, %v3619
          %3637 = vst [vmem:[%s974] sm:$0xff] %v3621
          %3638 = vst [vmem:[%s974 + $0x8] sm:$0xff] %v3622
          %3639 = vst [vmem:[%s974 + $0x10] sm:$0xff] %v3623
          %3640 = vst [vmem:[%s974 + $0x18] sm:$0xff] %v3624
          %3641 = vst [vmem:[%s974 + $0x20] sm:$0xff] %v3625
          %3642 = vst [vmem:[%s974 + $0x28] sm:$0xff] %v3626
          %3643 = vst [vmem:[%s974 + $0x30] sm:$0xff] %v3627
          %3644 = vst [vmem:[%s974 + $0x38] sm:$0xff] %v3628
        $region97: #{_forward_core.5} parent=80 // pred_fallthru
          _
        %s3645 = sand.u32 %s179, 1
        %s3646 = sand.u32 %s179, 1
        %s3647 = smul.addr %s3646, 64
        %s3648 = scalar_lea.vmem [#allocation5], %s3647
        // Predicated region
        $region98: #{_forward_core.5} parent=80 // pred_check
          %p3649 = pneg %p189
        $region99: #{_forward_core.5} parent=80 // pred_check_branch
          %3651 = sbr.rel (%p3649) target = $region101
        $region100: #{_forward_core.5} parent=80 // pred_region
          %s3652 = smul.u32 4, %s21
          %s3653 = smul.u32 4, %s22
          %s3654 = smul.addr %s3652, 8
          %s3655 = sadd.s32 %s3653, %s3654
          %s3656 = smul.addr %s3655, 4
          %s3657 = scalar_lea.vmem %s5, %s3656
          // Predicated region
          $region102: #{_forward_core.5} parent=100 // pred_check
            _
          $region103: #{_forward_core.5} parent=100 // pred_check_branch
            %3659 = sbr.rel (0) target = $region105
          $region104: #{_forward_core.5} parent=100 // pred_region
            // Predicated region
            $region106: #{_forward_core.5} parent=104 // pred_check
              _
            $region107: #{_forward_core.5} parent=104 // pred_check_branch
              %3661 = sbr.rel (0) target = $region109
            $region108: #{_forward_core.5} parent=104 // pred_region
              loop: start=0, step=1, limit=1
              $region110: #{_forward_core.5} parent=108 // loop_pre_header
                _
              $region111: #{_forward_core.5} parent=108 // loop_header
                %s3663 = sphi 0, %s3667
                %p3664 = scmp.ge.s32.totalorder %s3663, 1
                %s3668 = sphi %s3648, %s3648
                %s3669 = sphi %s3657, %s3657
              $region112: #{_forward_core.5} parent=108 // loop_header_branch
                %3666 = sbr.rel (%p3664) target = $region116
              $region113: #{_forward_core.5} parent=108 // loop_body
                %v3670 = vld [vmem:[%s3668] sm:$0xff]
                %3671 = vst [vmem:[%s3669] sm:$0xff] %v3670
                %v3672 = vld [vmem:[%s3668 + $0x8] sm:$0xff]
                %3673 = vst [vmem:[%s3669 + $0x8] sm:$0xff] %v3672
                %v3674 = vld [vmem:[%s3668 + $0x10] sm:$0xff]
                %3675 = vst [vmem:[%s3669 + $0x20] sm:$0xff] %v3674
                %v3676 = vld [vmem:[%s3668 + $0x18] sm:$0xff]
                %3677 = vst [vmem:[%s3669 + $0x28] sm:$0xff] %v3676
                %v3678 = vld [vmem:[%s3668 + $0x20] sm:$0xff]
                %3679 = vst [vmem:[%s3669 + $0x40] sm:$0xff] %v3678
                %v3680 = vld [vmem:[%s3668 + $0x28] sm:$0xff]
                %3681 = vst [vmem:[%s3669 + $0x48] sm:$0xff] %v3680
                %v3682 = vld [vmem:[%s3668 + $0x30] sm:$0xff]
                %3683 = vst [vmem:[%s3669 + $0x60] sm:$0xff] %v3682
                %v3684 = vld [vmem:[%s3668 + $0x38] sm:$0xff]
                %3685 = vst [vmem:[%s3669 + $0x68] sm:$0xff] %v3684
              $region114: #{_forward_core.5} parent=108 // loop_footer
                %s3667 = sadd.s32 1, %s3663
              $region115: #{_forward_core.5} parent=108 // loop_footer_branch
                %3662 = sbr.rel target = $region111
              $region116: #{_forward_core.5} parent=108 // loop_exit
                _
            $region109: #{_forward_core.5} parent=104 // pred_fallthru
              _
            // Predicated region
            $region117: #{_forward_core.5} parent=104 // pred_check
              _
            $region118: #{_forward_core.5} parent=104 // pred_check_branch
              %3687 = sbr.rel target = $region120
            $region119: #{_forward_core.5} parent=104 // pred_region
              _
            $region120: #{_forward_core.5} parent=104 // pred_fallthru
              _
          $region105: #{_forward_core.5} parent=100 // pred_fallthru
            _
          %3688 = vnop
        $region101: #{_forward_core.5} parent=80 // pred_fallthru
          _
      $region81: #{_forward_core.5} parent=5 // pred_fallthru
        _
      %p3689 = scmp.le.s32.totalorder 2, %s11
      // Predicated region
      $region121: #{_forward_core.5} parent=5 // pred_check
        %p3690 = pneg %p3689
      $region122: #{_forward_core.5} parent=5 // pred_check_branch
        %3692 = sbr.rel (%p3690) target = $region124
      $region123: #{_forward_core.5} parent=5 // pred_region
        %s3693 = ssub.s32 %s11, 2
        // Predicated region
        $region125: #{_forward_core.5} parent=123 // pred_check
          %p3694 = pneg %p195
        $region126: #{_forward_core.5} parent=123 // pred_check_branch
          %3696 = sbr.rel (%p3694) target = $region128
        $region127: #{_forward_core.5} parent=123 // pred_region
          %s3697 = sand.u32 %s180, 1
          %s3698 = sand.u32 %s180, 1
          %s3699 = smul.addr %s3698, 64
          %s3700 = scalar_lea.vmem [#allocation5], %s3699
        $region128: #{_forward_core.5} parent=123 // pred_fallthru
          _
      $region124: #{_forward_core.5} parent=5 // pred_fallthru
        _
    $region6: #{_forward_core.5} parent=1 // loop_footer
      %s15 = sadd.s32 1, %s11
    $region7: #{_forward_core.5} parent=1 // loop_footer_branch
      %10 = sbr.rel target = $region3
    $region8: #{_forward_core.5} parent=1 // loop_exit
      _

// kernel: _forward_core.7
$region0: #{_forward_core.7}
  #allocation0 [shape = 'u32[]', space=smem, size = 0x4, offset = 0x4, fixed_abs, tag = 'smem constant byte address 0x4 - core index']
  #allocation1 [shape = 'u32[144,128]{1,0:T(1,128)}', space=vmem, size = 0x12000, scoped, tag = 'internal scratch']
  #allocation2 [shape = 'f32[32,512]{1,0:T(8,128)}', space=vmem, size = 0x10000, scoped, tag = 'scratch operand']
  %s0 = inlined_call_operand.vmem [shape: bf16[32,4608], index: 0, kind: input, shape index: {}]
  %s1 = inlined_call_operand.vmem [shape: bf16[4608,512], index: 1, kind: input, shape index: {}]
  %s2 = inlined_call_operand.vmem [shape: f32[1,512], index: 2, kind: input, shape index: {}]
  %s3 = inlined_call_operand.vmem [shape: f32[32,1], index: 3, kind: input, shape index: {}]
  %s4 = inlined_call_operand.vmem [shape: bf16[32,512], index: 4, kind: output, shape index: {}]
  %s5 = sld [smem:[#allocation0]]
  $region83: #{_forward_core.7} parent=0
    _
  %s7 = ssub.s32 1, %s5
  %s8 = scalar_select 0, %s7, %s5
  $region1: #{_forward_core.7} parent=0
    #allocation3 [shape = 'u8[147456]{0}', space=vmem, size = 0x24000, scoped, tag = 'input window, operand 0']
    loop: start=0, step=1, limit=6
    $region2: #{_forward_core.7} parent=1 // loop_pre_header
      _
    $region3: #{_forward_core.7} parent=1 // loop_header
      %s10 = sphi 0, %s14
      %p11 = scmp.ge.s32.totalorder %s10, 6
      %s17 = sphi 0, %s36
      %s18 = sphi 0, %s32
      %s19 = sphi 0, %s28
      %s20 = sphi 0, %s17
      %s21 = sphi 0, %s18
      %s22 = sphi 0, %s19
      %s23 = sphi 0, %s20
      %s24 = sphi 0, %s21
      %s25 = sphi 0, %s22
      %s41 = sphi 0, %s43
      %s44 = sphi 0, %s41
      %s45 = sphi 0, %s44
      %s61 = sphi 0, %s45
      %s69 = sphi 0, %s71
      %s72 = sphi 0, %s69
      %s73 = sphi 0, %s72
      %s89 = sphi 0, %s73
      %s95 = sphi 0, %s97
      %s98 = sphi 0, %s95
      %s99 = sphi 0, %s98
      %s115 = sphi 0, %s99
      %s121 = sphi 0, %s123
      %s124 = sphi 0, %s121
      %s125 = sphi 0, %s124
      %s141 = sphi 0, %s125
      %s149 = sphi 0, %s151
      %s152 = sphi 0, %s149
      %s153 = sphi 0, %s152
      %s169 = sphi 0, %s153
    $region4: #{_forward_core.7} parent=1 // loop_header_branch
      %13 = sbr.rel (%p11) target = $region8
    $region5: #{_forward_core.7} parent=1 // loop_body
      %s15 = ssub.s32 %s10, 1
      %s16 = ssub.s32 %s10, 2
      %s26 = sadd.s32 1, %s19
      %p27 = scmp.ge.s32.totalorder %s26, 4
      %s28 = scalar_select %p27, 0, %s26
      %s29 = sadd.s32 1, %s18
      %s30 = scalar_select %p27, %s29, %s18
      %p31 = scmp.ge.s32.totalorder %s30, 1
      %s32 = scalar_select %p31, 0, %s30
      %s33 = sadd.s32 1, %s17
      %s34 = scalar_select %p31, %s33, %s17
      %p35 = scmp.ge.s32.totalorder %s34, 1
      %s36 = scalar_select %p35, 0, %s34
      %s37 = ssub.s32 %s17, %s36
      %s38 = ssub.s32 %s19, %s28
      %s39 = sor.u32 %s37, %s38
      %p40 = scmp.eq.s32.totalorder %s39, 0
      %s42 = sadd.s32 %s41, 1
      %s43 = scalar_select %p40, %s41, %s42
      %p46 = pneg %p40
      %p47 = scmp.eq.s32.totalorder %s10, 3
      %p48 = por %p46, %p47
      %p49 = scmp.ne.s32.totalorder %s41, %s44
      %p50 = scmp.eq.s32.totalorder %s10, 0
      %p51 = por %p49, %p50
      %p52 = scmp.ne.s32.totalorder %s41, %s44
      %p53 = scmp.eq.s32.totalorder %s15, 3
      %p54 = por %p52, %p53
      %p55 = scmp.ne.s32.totalorder %s44, %s45
      %p56 = scmp.eq.s32.totalorder %s15, 0
      %p57 = por %p55, %p56
      %p58 = scmp.ne.s32.totalorder %s44, %s45
      %p59 = scmp.eq.s32.totalorder %s16, 3
      %p60 = por %p58, %p59
      %p62 = scmp.ne.s32.totalorder %s45, %s61
      %p63 = scmp.eq.s32.totalorder %s16, 0
      %p64 = por %p62, %p63
      %s65 = ssub.s32 %s19, %s28
      %s66 = ssub.s32 %s18, %s32
      %s67 = sor.u32 %s65, %s66
      %p68 = scmp.eq.s32.totalorder %s67, 0
      %s70 = sadd.s32 %s69, 1
      %s71 = scalar_select %p68, %s69, %s70
      %p74 = pneg %p68
      %p75 = scmp.eq.s32.totalorder %s10, 3
      %p76 = por %p74, %p75
      %p77 = scmp.ne.s32.totalorder %s69, %s72
      %p78 = scmp.eq.s32.totalorder %s10, 0
      %p79 = por %p77, %p78
      %p80 = scmp.ne.s32.totalorder %s69, %s72
      %p81 = scmp.eq.s32.totalorder %s15, 3
      %p82 = por %p80, %p81
      %p83 = scmp.ne.s32.totalorder %s72, %s73
      %p84 = scmp.eq.s32.totalorder %s15, 0
      %p85 = por %p83, %p84
      %p86 = scmp.ne.s32.totalorder %s72, %s73
      %p87 = scmp.eq.s32.totalorder %s16, 3
      %p88 = por %p86, %p87
      %p90 = scmp.ne.s32.totalorder %s73, %s89
      %p91 = scmp.eq.s32.totalorder %s16, 0
      %p92 = por %p90, %p91
      %s93 = ssub.s32 %s18, %s32
      %p94 = scmp.eq.s32.totalorder %s93, 0
      %s96 = sadd.s32 %s95, 1
      %s97 = scalar_select %p94, %s95, %s96
      %p100 = pneg %p94
      %p101 = scmp.eq.s32.totalorder %s10, 3
      %p102 = por %p100, %p101
      %p103 = scmp.ne.s32.totalorder %s95, %s98
      %p104 = scmp.eq.s32.totalorder %s10, 0
      %p105 = por %p103, %p104
      %p106 = scmp.ne.s32.totalorder %s95, %s98
      %p107 = scmp.eq.s32.totalorder %s15, 3
      %p108 = por %p106, %p107
      %p109 = scmp.ne.s32.totalorder %s98, %s99
      %p110 = scmp.eq.s32.totalorder %s15, 0
      %p111 = por %p109, %p110
      %p112 = scmp.ne.s32.totalorder %s98, %s99
      %p113 = scmp.eq.s32.totalorder %s16, 3
      %p114 = por %p112, %p113
      %p116 = scmp.ne.s32.totalorder %s99, %s115
      %p117 = scmp.eq.s32.totalorder %s16, 0
      %p118 = por %p116, %p117
      %s119 = ssub.s32 %s17, %s36
      %p120 = scmp.eq.s32.totalorder %s119, 0
      %s122 = sadd.s32 %s121, 1
      %s123 = scalar_select %p120, %s121, %s122
      %p126 = pneg %p120
      %p127 = scmp.eq.s32.totalorder %s10, 3
      %p128 = por %p126, %p127
      %p129 = scmp.ne.s32.totalorder %s121, %s124
      %p130 = scmp.eq.s32.totalorder %s10, 0
      %p131 = por %p129, %p130
      %p132 = scmp.ne.s32.totalorder %s121, %s124
      %p133 = scmp.eq.s32.totalorder %s15, 3
      %p134 = por %p132, %p133
      %p135 = scmp.ne.s32.totalorder %s124, %s125
      %p136 = scmp.eq.s32.totalorder %s15, 0
      %p137 = por %p135, %p136
      %p138 = scmp.ne.s32.totalorder %s124, %s125
      %p139 = scmp.eq.s32.totalorder %s16, 3
      %p140 = por %p138, %p139
      %p142 = scmp.ne.s32.totalorder %s125, %s141
      %p143 = scmp.eq.s32.totalorder %s16, 0
      %p144 = por %p142, %p143
      %s145 = ssub.s32 %s17, %s36
      %s146 = ssub.s32 %s18, %s32
      %s147 = sor.u32 %s145, %s146
      %p148 = scmp.eq.s32.totalorder %s147, 0
      %s150 = sadd.s32 %s149, 1
      %s151 = scalar_select %p148, %s149, %s150
      %p154 = pneg %p148
      %p155 = scmp.eq.s32.totalorder %s10, 3
      %p156 = por %p154, %p155
      %p157 = scmp.ne.s32.totalorder %s149, %s152
      %p158 = scmp.eq.s32.totalorder %s10, 0
      %p159 = por %p157, %p158
      %p160 = scmp.ne.s32.totalorder %s149, %s152
      %p161 = scmp.eq.s32.totalorder %s15, 3
      %p162 = por %p160, %p161
      %p163 = scmp.ne.s32.totalorder %s152, %s153
      %p164 = scmp.eq.s32.totalorder %s15, 0
      %p165 = por %p163, %p164
      %p166 = scmp.ne.s32.totalorder %s152, %s153
      %p167 = scmp.eq.s32.totalorder %s16, 3
      %p168 = por %p166, %p167
      %p170 = scmp.ne.s32.totalorder %s153, %s169
      %p171 = scmp.eq.s32.totalorder %s16, 0
      %p172 = por %p170, %p171
      %p173 = scmp.le.s32.totalorder 1, %s10
      %p174 = scmp.lt.s32.totalorder %s10, 5
      %p175 = pnand %p173, %p174
      %p176 = pneg %p175
      // Predicated region
      $region9: #{_forward_core.7} parent=5 // pred_check
        _
      $region10: #{_forward_core.7} parent=5 // pred_check_branch
        %178 = sbr.rel (%p175) target = $region12
      $region11: #{_forward_core.7} parent=5 // pred_region
        %s179 = ssub.s32 %s10, 1
        // Predicated region
        $region13: #{_forward_core.7} parent=11 // pred_check
          %p180 = pneg %p111
        $region14: #{_forward_core.7} parent=11 // pred_check_branch
          %182 = sbr.rel (%p180) target = $region16
        $region15: #{_forward_core.7} parent=11 // pred_region
          %s183 = smul.u32 4, %s21
          %p184 = scmp.lt.s32.totalorder %s183, 3
          %s185 = scalar_select %p184, %s183, 3
          %s186 = scalar_lea.vmem %s2, %s185
          %s187 = smul.u32 4, %s21
        $region16: #{_forward_core.7} parent=11 // pred_fallthru
          _
        // Predicated region
        $region17: #{_forward_core.7} parent=11 // pred_check
          %p188 = pneg %p137
        $region18: #{_forward_core.7} parent=11 // pred_check_branch
          %190 = sbr.rel (%p188) target = $region20
        $region19: #{_forward_core.7} parent=11 // pred_region
          %s191 = smul.u32 4, %s20
          %p192 = scmp.lt.s32.totalorder %s191, 3
          %s193 = scalar_select %p192, %s191, 3
          %s194 = smul.addr %s193, 8
          %s195 = scalar_lea.vmem %s3, %s194
          %s196 = smul.u32 4, %s20
        $region20: #{_forward_core.7} parent=11 // pred_fallthru
          _
      $region12: #{_forward_core.7} parent=5 // pred_fallthru
        _
      %p197 = scmp.lt.s32.totalorder %s10, 4
      // Predicated region
      $region21: #{_forward_core.7} parent=5 // pred_check
        %p198 = pneg %p197
      $region22: #{_forward_core.7} parent=5 // pred_check_branch
        %200 = sbr.rel (%p198) target = $region24
      $region23: #{_forward_core.7} parent=5 // pred_region
        // Predicated region
        $region25: #{_forward_core.7} parent=23 // pred_check
          %p201 = pneg %p51
        $region26: #{_forward_core.7} parent=23 // pred_check_branch
          %203 = sbr.rel (%p201) target = $region28
        $region27: #{_forward_core.7} parent=23 // pred_region
          %s204 = sand.u32 %s41, 1
          %s205 = sand.u32 %s41, 1
          %s206 = smul.addr %s205, 144
          %s207 = scalar_lea.vmem [#allocation3], %s206
          %s208 = smul.u32 4, %s17
          %s209 = smul.u32 9, %s19
          %s210 = smul.addr %s208, 36
          %s211 = sadd.s32 %s209, %s210
          %s212 = smul.addr %s211, 4
          %s213 = scalar_lea.vmem %s0, %s212
          // Predicated region
          $region29: #{_forward_core.7} parent=27 // pred_check
            _
          $region30: #{_forward_core.7} parent=27 // pred_check_branch
            %215 = sbr.rel (0) target = $region32
          $region31: #{_forward_core.7} parent=27 // pred_region
            // Predicated region
            $region33: #{_forward_core.7} parent=31 // pred_check
              _
            $region34: #{_forward_core.7} parent=31 // pred_check_branch
              %217 = sbr.rel (0) target = $region36
            $region35: #{_forward_core.7} parent=31 // pred_region
              %s218 = scalar_lea.vmem %s213, 32
              %s219 = scalar_lea.vmem %s207, 32 [#allocation3]
              loop: start=0, step=1, limit=1
              $region37: #{_forward_core.7} parent=35 // loop_pre_header
                _
              $region38: #{_forward_core.7} parent=35 // loop_header
                %s221 = sphi 0, %s225
                %p222 = scmp.ge.s32.totalorder %s221, 1
                %s226 = sphi %s213, %s213
                %s227 = sphi %s207, %s207
              $region39: #{_forward_core.7} parent=35 // loop_header_branch
                %224 = sbr.rel (%p222) target = $region43
              $region40: #{_forward_core.7} parent=35 // loop_body
                %v228 = vld [vmem:[%s226] sm:$0xff]
                %229 = vst [vmem:[%s227] sm:$0xff] %v228
                %v230 = vld [vmem:[%s226 + $0x8] sm:$0xff]
                %231 = vst [vmem:[%s227 + $0x8] sm:$0xff] %v230
                %v232 = vld [vmem:[%s226 + $0x10] sm:$0xff]
                %233 = vst [vmem:[%s227 + $0x10] sm:$0xff] %v232
                %v234 = vld [vmem:[%s226 + $0x18] sm:$0xff]
                %235 = vst [vmem:[%s227 + $0x18] sm:$0xff] %v234
                %v236 = vld [vmem:[%s226 + $0x90] sm:$0xff]
                %237 = vst [vmem:[%s227 + $0x24] sm:$0xff] %v236
                %v238 = vld [vmem:[%s226 + $0x98] sm:$0xff]
                %239 = vst [vmem:[%s227 + $0x2c] sm:$0xff] %v238
                %v240 = vld [vmem:[%s226 + $0xa0] sm:$0xff]
                %241 = vst [vmem:[%s227 + $0x34] sm:$0xff] %v240
                %v242 = vld [vmem:[%s226 + $0xa8] sm:$0xff]
                %243 = vst [vmem:[%s227 + $0x3c] sm:$0xff] %v242
                %v244 = vld [vmem:[%s226 + $0x120] sm:$0xff]
                %245 = vst [vmem:[%s227 + $0x48] sm:$0xff] %v244
                %v246 = vld [vmem:[%s226 + $0x128] sm:$0xff]
                %247 = vst [vmem:[%s227 + $0x50] sm:$0xff] %v246
                %v248 = vld [vmem:[%s226 + $0x130] sm:$0xff]
                %249 = vst [vmem:[%s227 + $0x58] sm:$0xff] %v248
                %v250 = vld [vmem:[%s226 + $0x138] sm:$0xff]
                %251 = vst [vmem:[%s227 + $0x60] sm:$0xff] %v250
                %v252 = vld [vmem:[%s226 + $0x1b0] sm:$0xff]
                %253 = vst [vmem:[%s227 + $0x6c] sm:$0xff] %v252
                %v254 = vld [vmem:[%s226 + $0x1b8] sm:$0xff]
                %255 = vst [vmem:[%s227 + $0x74] sm:$0xff] %v254
                %v256 = vld [vmem:[%s226 + $0x1c0] sm:$0xff]
                %257 = vst [vmem:[%s227 + $0x7c] sm:$0xff] %v256
                %v258 = vld [vmem:[%s226 + $0x1c8] sm:$0xff]
                %259 = vst [vmem:[%s227 + $0x84] sm:$0xff] %v258
              $region41: #{_forward_core.7} parent=35 // loop_footer
                %s225 = sadd.s32 1, %s221
              $region42: #{_forward_core.7} parent=35 // loop_footer_branch
                %220 = sbr.rel target = $region38
              $region43: #{_forward_core.7} parent=35 // loop_exit
                _
              loop: start=0, step=1, limit=1
              $region44: #{_forward_core.7} parent=35 // loop_pre_header
                _
              $region45: #{_forward_core.7} parent=35 // loop_header
                %s262 = sphi 0, %s266
                %p263 = scmp.ge.s32.totalorder %s262, 1
                %s267 = sphi %s218, %s218
                %s268 = sphi %s219, %s219
              $region46: #{_forward_core.7} parent=35 // loop_header_branch
                %265 = sbr.rel (%p263) target = $region50
              $region47: #{_forward_core.7} parent=35 // loop_body
                %v269 = vld [vmem:[%s267] sm:$0xf]
                %270 = vst [vmem:[%s268] sm:$0xf] %v269
                %v271 = vld [vmem:[%s267 + $0x90] sm:$0xf]
                %272 = vst [vmem:[%s268 + $0x24] sm:$0xf] %v271
                %v273 = vld [vmem:[%s267 + $0x120] sm:$0xf]
                %274 = vst [vmem:[%s268 + $0x48] sm:$0xf] %v273
                %v275 = vld [vmem:[%s267 + $0x1b0] sm:$0xf]
                %276 = vst [vmem:[%s268 + $0x6c] sm:$0xf] %v275
              $region48: #{_forward_core.7} parent=35 // loop_footer
                %s266 = sadd.s32 1, %s262
              $region49: #{_forward_core.7} parent=35 // loop_footer_branch
                %261 = sbr.rel target = $region45
              $region50: #{_forward_core.7} parent=35 // loop_exit
                _
            $region36: #{_forward_core.7} parent=31 // pred_fallthru
              _
          $region32: #{_forward_core.7} parent=27 // pred_fallthru
            _
          %277 = vnop
        $region28: #{_forward_core.7} parent=23 // pred_fallthru
          _
        // Predicated region
        $region51: #{_forward_core.7} parent=23 // pred_check
          %p278 = pneg %p79
        $region52: #{_forward_core.7} parent=23 // pred_check_branch
          %280 = sbr.rel (%p278) target = $region54
        $region53: #{_forward_core.7} parent=23 // pred_region
          %s281 = smul.u32 144, %s19
          %s282 = smul.u32 4, %s18
          %p283 = scmp.lt.s32.totalorder %s281, 575
          %s284 = scalar_select %p283, %s281, 575
          %p285 = scmp.lt.s32.totalorder %s282, 3
          %s286 = scalar_select %p285, %s282, 3
          %s287 = smul.addr %s284, 4
          %s288 = sadd.s32 %s286, %s287
          %s289 = smul.addr %s288, 4
          %s290 = scalar_lea.vmem %s1, %s289
          %s291 = smul.u32 144, %s19
          %s292 = smul.u32 4, %s18
        $region54: #{_forward_core.7} parent=23 // pred_fallthru
          _
      $region24: #{_forward_core.7} parent=5 // pred_fallthru
        _
      %p293 = scmp.le.s32.totalorder 1, %s10
      %p294 = scmp.lt.s32.totalorder %s10, 5
      %p295 = pnand %p293, %p294
      %p296 = pneg %p295
      // Predicated region
      $region55: #{_forward_core.7} parent=5 // pred_check
        _
      $region56: #{_forward_core.7} parent=5 // pred_check_branch
        %298 = sbr.rel (%p295) target = $region58
      $region57: #{_forward_core.7} parent=5 // pred_region
        %s299 = ssub.s32 %s10, 1
        %s300 = sand.u32 %s44, 1
        %s301 = sand.u32 %s44, 1
        %s302 = smul.addr %s301, 144
        %s303 = scalar_lea.vmem [#allocation3], %s302
        // Predicated region
        $region59: #{_forward_core.7} parent=57 // pred_check
          %p304 = pneg %p57
        $region60: #{_forward_core.7} parent=57 // pred_check_branch
          %306 = sbr.rel (%p304) target = $region62
        $region61: #{_forward_core.7} parent=57 // pred_region
          _
        $region62: #{_forward_core.7} parent=57 // pred_fallthru
          _
        %s307 = sand.u32 %s44, 1
        %s308 = sand.u32 %s44, 1
        %s309 = smul.addr %s308, 144
        %s310 = scalar_lea.vmem [#allocation3], %s309
        %p311 = pneg %p57
        %p312 = pneg %p54
        %s313 = smul.u32 144, %s22
        %s314 = smul.u32 4, %s21
        %p315 = scmp.lt.s32.totalorder %s313, 575
        %s316 = scalar_select %p315, %s313, 575
        %p317 = scmp.lt.s32.totalorder %s314, 3
        %s318 = scalar_select %p317, %s314, 3
        %s319 = smul.addr %s316, 4
        %s320 = sadd.s32 %s318, %s319
        %s321 = smul.addr %s320, 4
        %s322 = scalar_lea.vmem %s1, %s321
        %p323 = pneg %p85
        %p324 = pneg %p82
        %s325 = smul.u32 4, %s21
        %p326 = scmp.lt.s32.totalorder %s325, 3
        %s327 = scalar_select %p326, %s325, 3
        %s328 = scalar_lea.vmem %s2, %s327
        %p329 = pneg %p111
        %p330 = pneg %p108
        %s331 = smul.u32 4, %s20
        %p332 = scmp.lt.s32.totalorder %s331, 3
        %s333 = scalar_select %p332, %s331, 3
        %s334 = smul.addr %s333, 8
        %s335 = scalar_lea.vmem %s3, %s334
        %p336 = pneg %p137
        %p337 = pneg %p134
        %p338 = pneg %p165
        %p339 = pneg %p162
        %s340 = smul.u32 4, %s20
        %s341 = smul.u32 4, %s21
        %p342 = scmp.lt.s32.totalorder %s340, 3
        %s343 = scalar_select %p342, %s340, 3
        %p344 = scmp.lt.s32.totalorder %s341, 3
        %s345 = scalar_select %p344, %s341, 3
        %s346 = smul.addr %s343, 4
        %s347 = sadd.s32 %s345, %s346
        %s348 = smul.addr %s347, 4
        %s349 = scalar_lea.vmem %s4, %s348
        %s350 = smul.u32 4, %s20
        %s351 = smul.u32 9, %s22
        %s352 = smul.u32 144, %s22
        %s353 = smul.u32 4, %s21
        %p354 = scmp.lt.s32.totalorder %s352, 575
        %s355 = scalar_select %p354, %s352, 575
        %p356 = scmp.lt.s32.totalorder %s353, 3
        %s357 = scalar_select %p356, %s353, 3
        %s358 = smul.addr %s355, 4
        %s359 = sadd.s32 %s357, %s358
        %s360 = smul.addr %s359, 4
        %s361 = scalar_lea.vmem %s1, %s360
        %s362 = smul.u32 144, %s22
        %s363 = smul.u32 4, %s21
        %s364 = smul.u32 4, %s21
        %p365 = scmp.lt.s32.totalorder %s364, 3
        %s366 = scalar_select %p365, %s364, 3
        %s367 = scalar_lea.vmem %s2, %s366
        %s368 = smul.u32 4, %s21
        %s369 = smul.u32 4, %s20
        %p370 = scmp.lt.s32.totalorder %s369, 3
        %s371 = scalar_select %p370, %s369, 3
        %s372 = smul.addr %s371, 8
        %s373 = scalar_lea.vmem %s3, %s372
        %s374 = smul.u32 4, %s20
        %s375 = smul.u32 4, %s20
        %s376 = smul.u32 4, %s21
        %p377 = scmp.lt.s32.totalorder %s375, 3
        %s378 = scalar_select %p377, %s375, 3
        %p379 = scmp.lt.s32.totalorder %s376, 3
        %s380 = scalar_select %p379, %s376, 3
        %s381 = smul.addr %s378, 4
        %s382 = sadd.s32 %s380, %s381
        %s383 = smul.addr %s382, 4
        %s384 = scalar_lea.vmem %s4, %s383
        %s385 = smul.u32 4, %s20
        %s386 = smul.u32 4, %s21
        %p388 = scmp.eq.s32.totalorder %s22, 0
        // Predicated region
        $region63: #{_forward_core.7} parent=57 // pred_check
          %p389 = pneg %p388
        $region64: #{_forward_core.7} parent=57 // pred_check_branch
          %391 = sbr.rel (%p389) target = $region66
        $region65: #{_forward_core.7} parent=57 // pred_region
          %392 = vst [vmem:[#allocation2] sm:$0xff] 0.0
          %393 = vst [vmem:[#allocation2 + $0x8] sm:$0xff] 0.0
          %394 = vst [vmem:[#allocation2 + $0x10] sm:$0xff] 0.0
          %395 = vst [vmem:[#allocation2 + $0x18] sm:$0xff] 0.0
          %396 = vst [vmem:[#allocation2 + $0x20] sm:$0xff] 0.0
          %397 = vst [vmem:[#allocation2 + $0x28] sm:$0xff] 0.0
          %398 = vst [vmem:[#allocation2 + $0x30] sm:$0xff] 0.0
          %399 = vst [vmem:[#allocation2 + $0x38] sm:$0xff] 0.0
          %400 = vst [vmem:[#allocation2 + $0x40] sm:$0xff] 0.0
          %401 = vst [vmem:[#allocation2 + $0x48] sm:$0xff] 0.0
          %402 = vst [vmem:[#allocation2 + $0x50] sm:$0xff] 0.0
          %403 = vst [vmem:[#allocation2 + $0x58] sm:$0xff] 0.0
          %404 = vst [vmem:[#allocation2 + $0x60] sm:$0xff] 0.0
          %405 = vst [vmem:[#allocation2 + $0x68] sm:$0xff] 0.0
          %406 = vst [vmem:[#allocation2 + $0x70] sm:$0xff] 0.0
          %407 = vst [vmem:[#allocation2 + $0x78] sm:$0xff] 0.0
        $region66: #{_forward_core.7} parent=57 // pred_fallthru
          _
        %v408 = vld [vmem:[%s361] sm:$0xff]
        %v409 = vld [vmem:[%s361 + $0x8] sm:$0xff]
        %v410 = vld [vmem:[%s361 + $0x10] sm:$0xff]
        %v411 = vld [vmem:[%s361 + $0x18] sm:$0xff]
        %v412 = vld [vmem:[%s361 + $0x20] sm:$0xff]
        %v413 = vld [vmem:[%s361 + $0x28] sm:$0xff]
        %v414 = vld [vmem:[%s361 + $0x30] sm:$0xff]
        %v415 = vld [vmem:[%s361 + $0x38] sm:$0xff]
        %v416 = vld [vmem:[%s361 + $0x40] sm:$0xff]
        %v417 = vld [vmem:[%s361 + $0x48] sm:$0xff]
        %v418 = vld [vmem:[%s361 + $0x50] sm:$0xff]
        %v419 = vld [vmem:[%s361 + $0x58] sm:$0xff]
        %v420 = vld [vmem:[%s361 + $0x60] sm:$0xff]
        %v421 = vld [vmem:[%s361 + $0x68] sm:$0xff]
        %v422 = vld [vmem:[%s361 + $0x70] sm:$0xff]
        %v423 = vld [vmem:[%s361 + $0x78] sm:$0xff]
        %v424 = vld [vmem:[%s361 + $0x80] sm:$0xff]
        %v425 = vld [vmem:[%s361 + $0x88] sm:$0xff]
        %v426 = vld [vmem:[%s361 + $0x90] sm:$0xff]
        %v427 = vld [vmem:[%s361 + $0x98] sm:$0xff]
        %v428 = vld [vmem:[%s361 + $0xa0] sm:$0xff]
        %v429 = vld [vmem:[%s361 + $0xa8] sm:$0xff]
        %v430 = vld [vmem:[%s361 + $0xb0] sm:$0xff]
        %v431 = vld [vmem:[%s361 + $0xb8] sm:$0xff]
        %v432 = vld [vmem:[%s361 + $0xc0] sm:$0xff]
        %v433 = vld [vmem:[%s361 + $0xc8] sm:$0xff]
        %v434 = vld [vmem:[%s361 + $0xd0] sm:$0xff]
        %v435 = vld [vmem:[%s361 + $0xd8] sm:$0xff]
        %v436 = vld [vmem:[%s361 + $0xe0] sm:$0xff]
        %v437 = vld [vmem:[%s361 + $0xe8] sm:$0xff]
        %v438 = vld [vmem:[%s361 + $0xf0] sm:$0xff]
        %v439 = vld [vmem:[%s361 + $0xf8] sm:$0xff]
        %v440 = vld [vmem:[%s361 + $0x100] sm:$0xff]
        %v441 = vld [vmem:[%s361 + $0x108] sm:$0xff]
        %v442 = vld [vmem:[%s361 + $0x110] sm:$0xff]
        %v443 = vld [vmem:[%s361 + $0x118] sm:$0xff]
        %v444 = vld [vmem:[%s361 + $0x120] sm:$0xff]
        %v445 = vld [vmem:[%s361 + $0x128] sm:$0xff]
        %v446 = vld [vmem:[%s361 + $0x130] sm:$0xff]
        %v447 = vld [vmem:[%s361 + $0x138] sm:$0xff]
        %v448 = vld [vmem:[%s361 + $0x140] sm:$0xff]
        %v449 = vld [vmem:[%s361 + $0x148] sm:$0xff]
        %v450 = vld [vmem:[%s361 + $0x150] sm:$0xff]
        %v451 = vld [vmem:[%s361 + $0x158] sm:$0xff]
        %v452 = vld [vmem:[%s361 + $0x160] sm:$0xff]
        %v453 = vld [vmem:[%s361 + $0x168] sm:$0xff]
        %v454 = vld [vmem:[%s361 + $0x170] sm:$0xff]
        %v455 = vld [vmem:[%s361 + $0x178] sm:$0xff]
        %v456 = vld [vmem:[%s361 + $0x180] sm:$0xff]
        %v457 = vld [vmem:[%s361 + $0x188] sm:$0xff]
        %v458 = vld [vmem:[%s361 + $0x190] sm:$0xff]
        %v459 = vld [vmem:[%s361 + $0x198] sm:$0xff]
        %v460 = vld [vmem:[%s361 + $0x1a0] sm:$0xff]
        %v461 = vld [vmem:[%s361 + $0x1a8] sm:$0xff]
        %v462 = vld [vmem:[%s361 + $0x1b0] sm:$0xff]
        %v463 = vld [vmem:[%s361 + $0x1b8] sm:$0xff]
        %v464 = vld [vmem:[%s361 + $0x1c0] sm:$0xff]
        %v465 = vld [vmem:[%s361 + $0x1c8] sm:$0xff]
        %v466 = vld [vmem:[%s361 + $0x1d0] sm:$0xff]
        %v467 = vld [vmem:[%s361 + $0x1d8] sm:$0xff]
        %v468 = vld [vmem:[%s361 + $0x1e0] sm:$0xff]
        %v469 = vld [vmem:[%s361 + $0x1e8] sm:$0xff]
        %v470 = vld [vmem:[%s361 + $0x1f0] sm:$0xff]
        %v471 = vld [vmem:[%s361 + $0x1f8] sm:$0xff]
        %v472 = vld [vmem:[%s361 + $0x200] sm:$0xff]
        %v473 = vld [vmem:[%s361 + $0x208] sm:$0xff]
        %v474 = vld [vmem:[%s361 + $0x210] sm:$0xff]
        %v475 = vld [vmem:[%s361 + $0x218] sm:$0xff]
        %v476 = vld [vmem:[%s361 + $0x220] sm:$0xff]
        %v477 = vld [vmem:[%s361 + $0x228] sm:$0xff]
        %v478 = vld [vmem:[%s361 + $0x230] sm:$0xff]
        %v479 = vld [vmem:[%s361 + $0x238] sm:$0xff]
        %v480 = vld [vmem:[%s361 + $0x240] sm:$0xff]
        %v481 = vld [vmem:[%s361 + $0x248] sm:$0xff]
        %v482 = vld [vmem:[%s361 + $0x250] sm:$0xff]
        %v483 = vld [vmem:[%s361 + $0x258] sm:$0xff]
        %v484 = vld [vmem:[%s361 + $0x260] sm:$0xff]
        %v485 = vld [vmem:[%s361 + $0x268] sm:$0xff]
        %v486 = vld [vmem:[%s361 + $0x270] sm:$0xff]
        %v487 = vld [vmem:[%s361 + $0x278] sm:$0xff]
        %v488 = vld [vmem:[%s361 + $0x280] sm:$0xff]
        %v489 = vld [vmem:[%s361 + $0x288] sm:$0xff]
        %v490 = vld [vmem:[%s361 + $0x290] sm:$0xff]
        %v491 = vld [vmem:[%s361 + $0x298] sm:$0xff]
        %v492 = vld [vmem:[%s361 + $0x2a0] sm:$0xff]
        %v493 = vld [vmem:[%s361 + $0x2a8] sm:$0xff]
        %v494 = vld [vmem:[%s361 + $0x2b0] sm:$0xff]
        %v495 = vld [vmem:[%s361 + $0x2b8] sm:$0xff]
        %v496 = vld [vmem:[%s361 + $0x2c0] sm:$0xff]
        %v497 = vld [vmem:[%s361 + $0x2c8] sm:$0xff]
        %v498 = vld [vmem:[%s361 + $0x2d0] sm:$0xff]
        %v499 = vld [vmem:[%s361 + $0x2d8] sm:$0xff]
        %v500 = vld [vmem:[%s361 + $0x2e0] sm:$0xff]
        %v501 = vld [vmem:[%s361 + $0x2e8] sm:$0xff]
        %v502 = vld [vmem:[%s361 + $0x2f0] sm:$0xff]
        %v503 = vld [vmem:[%s361 + $0x2f8] sm:$0xff]
        %v504 = vld [vmem:[%s361 + $0x300] sm:$0xff]
        %v505 = vld [vmem:[%s361 + $0x308] sm:$0xff]
        %v506 = vld [vmem:[%s361 + $0x310] sm:$0xff]
        %v507 = vld [vmem:[%s361 + $0x318] sm:$0xff]
        %v508 = vld [vmem:[%s361 + $0x320] sm:$0xff]
        %v509 = vld [vmem:[%s361 + $0x328] sm:$0xff]
        %v510 = vld [vmem:[%s361 + $0x330] sm:$0xff]
        %v511 = vld [vmem:[%s361 + $0x338] sm:$0xff]
        %v512 = vld [vmem:[%s361 + $0x340] sm:$0xff]
        %v513 = vld [vmem:[%s361 + $0x348] sm:$0xff]
        %v514 = vld [vmem:[%s361 + $0x350] sm:$0xff]
        %v515 = vld [vmem:[%s361 + $0x358] sm:$0xff]
        %v516 = vld [vmem:[%s361 + $0x360] sm:$0xff]
        %v517 = vld [vmem:[%s361 + $0x368] sm:$0xff]
        %v518 = vld [vmem:[%s361 + $0x370] sm:$0xff]
        %v519 = vld [vmem:[%s361 + $0x378] sm:$0xff]
        %v520 = vld [vmem:[%s361 + $0x380] sm:$0xff]
        %v521 = vld [vmem:[%s361 + $0x388] sm:$0xff]
        %v522 = vld [vmem:[%s361 + $0x390] sm:$0xff]
        %v523 = vld [vmem:[%s361 + $0x398] sm:$0xff]
        %v524 = vld [vmem:[%s361 + $0x3a0] sm:$0xff]
        %v525 = vld [vmem:[%s361 + $0x3a8] sm:$0xff]
        %v526 = vld [vmem:[%s361 + $0x3b0] sm:$0xff]
        %v527 = vld [vmem:[%s361 + $0x3b8] sm:$0xff]
        %v528 = vld [vmem:[%s361 + $0x3c0] sm:$0xff]
        %v529 = vld [vmem:[%s361 + $0x3c8] sm:$0xff]
        %v530 = vld [vmem:[%s361 + $0x3d0] sm:$0xff]
        %v531 = vld [vmem:[%s361 + $0x3d8] sm:$0xff]
        %v532 = vld [vmem:[%s361 + $0x3e0] sm:$0xff]
        %v533 = vld [vmem:[%s361 + $0x3e8] sm:$0xff]
        %v534 = vld [vmem:[%s361 + $0x3f0] sm:$0xff]
        %v535 = vld [vmem:[%s361 + $0x3f8] sm:$0xff]
        %v536 = vld [vmem:[%s361 + $0x400] sm:$0xff]
        %v537 = vld [vmem:[%s361 + $0x408] sm:$0xff]
        %v538 = vld [vmem:[%s361 + $0x410] sm:$0xff]
        %v539 = vld [vmem:[%s361 + $0x418] sm:$0xff]
        %v540 = vld [vmem:[%s361 + $0x420] sm:$0xff]
        %v541 = vld [vmem:[%s361 + $0x428] sm:$0xff]
        %v542 = vld [vmem:[%s361 + $0x430] sm:$0xff]
        %v543 = vld [vmem:[%s361 + $0x438] sm:$0xff]
        %v544 = vld [vmem:[%s361 + $0x440] sm:$0xff]
        %v545 = vld [vmem:[%s361 + $0x448] sm:$0xff]
        %v546 = vld [vmem:[%s361 + $0x450] sm:$0xff]
        %v547 = vld [vmem:[%s361 + $0x458] sm:$0xff]
        %v548 = vld [vmem:[%s361 + $0x460] sm:$0xff]
        %v549 = vld [vmem:[%s361 + $0x468] sm:$0xff]
        %v550 = vld [vmem:[%s361 + $0x470] sm:$0xff]
        %v551 = vld [vmem:[%s361 + $0x478] sm:$0xff]
        %v552 = vld [vmem:[%s361 + $0x480] sm:$0xff]
        %v553 = vld [vmem:[%s361 + $0x488] sm:$0xff]
        %v554 = vld [vmem:[%s361 + $0x490] sm:$0xff]
        %v555 = vld [vmem:[%s361 + $0x498] sm:$0xff]
        %v556 = vld [vmem:[%s361 + $0x4a0] sm:$0xff]
        %v557 = vld [vmem:[%s361 + $0x4a8] sm:$0xff]
        %v558 = vld [vmem:[%s361 + $0x4b0] sm:$0xff]
        %v559 = vld [vmem:[%s361 + $0x4b8] sm:$0xff]
        %v560 = vld [vmem:[%s361 + $0x4c0] sm:$0xff]
        %v561 = vld [vmem:[%s361 + $0x4c8] sm:$0xff]
        %v562 = vld [vmem:[%s361 + $0x4d0] sm:$0xff]
        %v563 = vld [vmem:[%s361 + $0x4d8] sm:$0xff]
        %v564 = vld [vmem:[%s361 + $0x4e0] sm:$0xff]
        %v565 = vld [vmem:[%s361 + $0x4e8] sm:$0xff]
        %v566 = vld [vmem:[%s361 + $0x4f0] sm:$0xff]
        %v567 = vld [vmem:[%s361 + $0x4f8] sm:$0xff]
        %v568 = vld [vmem:[%s361 + $0x500] sm:$0xff]
        %v569 = vld [vmem:[%s361 + $0x508] sm:$0xff]
        %v570 = vld [vmem:[%s361 + $0x510] sm:$0xff]
        %v571 = vld [vmem:[%s361 + $0x518] sm:$0xff]
        %v572 = vld [vmem:[%s361 + $0x520] sm:$0xff]
        %v573 = vld [vmem:[%s361 + $0x528] sm:$0xff]
        %v574 = vld [vmem:[%s361 + $0x530] sm:$0xff]
        %v575 = vld [vmem:[%s361 + $0x538] sm:$0xff]
        %v576 = vld [vmem:[%s361 + $0x540] sm:$0xff]
        %v577 = vld [vmem:[%s361 + $0x548] sm:$0xff]
        %v578 = vld [vmem:[%s361 + $0x550] sm:$0xff]
        %v579 = vld [vmem:[%s361 + $0x558] sm:$0xff]
        %v580 = vld [vmem:[%s361 + $0x560] sm:$0xff]
        %v581 = vld [vmem:[%s361 + $0x568] sm:$0xff]
        %v582 = vld [vmem:[%s361 + $0x570] sm:$0xff]
        %v583 = vld [vmem:[%s361 + $0x578] sm:$0xff]
        %v584 = vld [vmem:[%s361 + $0x580] sm:$0xff]
        %v585 = vld [vmem:[%s361 + $0x588] sm:$0xff]
        %v586 = vld [vmem:[%s361 + $0x590] sm:$0xff]
        %v587 = vld [vmem:[%s361 + $0x598] sm:$0xff]
        %v588 = vld [vmem:[%s361 + $0x5a0] sm:$0xff]
        %v589 = vld [vmem:[%s361 + $0x5a8] sm:$0xff]
        %v590 = vld [vmem:[%s361 + $0x5b0] sm:$0xff]
        %v591 = vld [vmem:[%s361 + $0x5b8] sm:$0xff]
        %v592 = vld [vmem:[%s361 + $0x5c0] sm:$0xff]
        %v593 = vld [vmem:[%s361 + $0x5c8] sm:$0xff]
        %v594 = vld [vmem:[%s361 + $0x5d0] sm:$0xff]
        %v595 = vld [vmem:[%s361 + $0x5d8] sm:$0xff]
        %v596 = vld [vmem:[%s361 + $0x5e0] sm:$0xff]
        %v597 = vld [vmem:[%s361 + $0x5e8] sm:$0xff]
        %v598 = vld [vmem:[%s361 + $0x5f0] sm:$0xff]
        %v599 = vld [vmem:[%s361 + $0x5f8] sm:$0xff]
        %v600 = vld [vmem:[%s361 + $0x600] sm:$0xff]
        %v601 = vld [vmem:[%s361 + $0x608] sm:$0xff]
        %v602 = vld [vmem:[%s361 + $0x610] sm:$0xff]
        %v603 = vld [vmem:[%s361 + $0x618] sm:$0xff]
        %v604 = vld [vmem:[%s361 + $0x620] sm:$0xff]
        %v605 = vld [vmem:[%s361 + $0x628] sm:$0xff]
        %v606 = vld [vmem:[%s361 + $0x630] sm:$0xff]
        %v607 = vld [vmem:[%s361 + $0x638] sm:$0xff]
        %v608 = vld [vmem:[%s361 + $0x640] sm:$0xff]
        %v609 = vld [vmem:[%s361 + $0x648] sm:$0xff]
        %v610 = vld [vmem:[%s361 + $0x650] sm:$0xff]
        %v611 = vld [vmem:[%s361 + $0x658] sm:$0xff]
        %v612 = vld [vmem:[%s361 + $0x660] sm:$0xff]
        %v613 = vld [vmem:[%s361 + $0x668] sm:$0xff]
        %v614 = vld [vmem:[%s361 + $0x670] sm:$0xff]
        %v615 = vld [vmem:[%s361 + $0x678] sm:$0xff]
        %v616 = vld [vmem:[%s361 + $0x680] sm:$0xff]
        %v617 = vld [vmem:[%s361 + $0x688] sm:$0xff]
        %v618 = vld [vmem:[%s361 + $0x690] sm:$0xff]
        %v619 = vld [vmem:[%s361 + $0x698] sm:$0xff]
        %v620 = vld [vmem:[%s361 + $0x6a0] sm:$0xff]
        %v621 = vld [vmem:[%s361 + $0x6a8] sm:$0xff]
        %v622 = vld [vmem:[%s361 + $0x6b0] sm:$0xff]
        %v623 = vld [vmem:[%s361 + $0x6b8] sm:$0xff]
        %v624 = vld [vmem:[%s361 + $0x6c0] sm:$0xff]
        %v625 = vld [vmem:[%s361 + $0x6c8] sm:$0xff]
        %v626 = vld [vmem:[%s361 + $0x6d0] sm:$0xff]
        %v627 = vld [vmem:[%s361 + $0x6d8] sm:$0xff]
        %v628 = vld [vmem:[%s361 + $0x6e0] sm:$0xff]
        %v629 = vld [vmem:[%s361 + $0x6e8] sm:$0xff]
        %v630 = vld [vmem:[%s361 + $0x6f0] sm:$0xff]
        %v631 = vld [vmem:[%s361 + $0x6f8] sm:$0xff]
        %v632 = vld [vmem:[%s361 + $0x700] sm:$0xff]
        %v633 = vld [vmem:[%s361 + $0x708] sm:$0xff]
        %v634 = vld [vmem:[%s361 + $0x710] sm:$0xff]
        %v635 = vld [vmem:[%s361 + $0x718] sm:$0xff]
        %v636 = vld [vmem:[%s361 + $0x720] sm:$0xff]
        %v637 = vld [vmem:[%s361 + $0x728] sm:$0xff]
        %v638 = vld [vmem:[%s361 + $0x730] sm:$0xff]
        %v639 = vld [vmem:[%s361 + $0x738] sm:$0xff]
        %v640 = vld [vmem:[%s361 + $0x740] sm:$0xff]
        %v641 = vld [vmem:[%s361 + $0x748] sm:$0xff]
        %v642 = vld [vmem:[%s361 + $0x750] sm:$0xff]
        %v643 = vld [vmem:[%s361 + $0x758] sm:$0xff]
        %v644 = vld [vmem:[%s361 + $0x760] sm:$0xff]
        %v645 = vld [vmem:[%s361 + $0x768] sm:$0xff]
        %v646 = vld [vmem:[%s361 + $0x770] sm:$0xff]
        %v647 = vld [vmem:[%s361 + $0x778] sm:$0xff]
        %v648 = vld [vmem:[%s361 + $0x780] sm:$0xff]
        %v649 = vld [vmem:[%s361 + $0x788] sm:$0xff]
        %v650 = vld [vmem:[%s361 + $0x790] sm:$0xff]
        %v651 = vld [vmem:[%s361 + $0x798] sm:$0xff]
        %v652 = vld [vmem:[%s361 + $0x7a0] sm:$0xff]
        %v653 = vld [vmem:[%s361 + $0x7a8] sm:$0xff]
        %v654 = vld [vmem:[%s361 + $0x7b0] sm:$0xff]
        %v655 = vld [vmem:[%s361 + $0x7b8] sm:$0xff]
        %v656 = vld [vmem:[%s361 + $0x7c0] sm:$0xff]
        %v657 = vld [vmem:[%s361 + $0x7c8] sm:$0xff]
        %v658 = vld [vmem:[%s361 + $0x7d0] sm:$0xff]
        %v659 = vld [vmem:[%s361 + $0x7d8] sm:$0xff]
        %v660 = vld [vmem:[%s361 + $0x7e0] sm:$0xff]
        %v661 = vld [vmem:[%s361 + $0x7e8] sm:$0xff]
        %v662 = vld [vmem:[%s361 + $0x7f0] sm:$0xff]
        %v663 = vld [vmem:[%s361 + $0x7f8] sm:$0xff]
        %v664 = vld [vmem:[%s361 + $0x800] sm:$0xff]
        %v665 = vld [vmem:[%s361 + $0x808] sm:$0xff]
        %v666 = vld [vmem:[%s361 + $0x810] sm:$0xff]
        %v667 = vld [vmem:[%s361 + $0x818] sm:$0xff]
        %v668 = vld [vmem:[%s361 + $0x820] sm:$0xff]
        %v669 = vld [vmem:[%s361 + $0x828] sm:$0xff]
        %v670 = vld [vmem:[%s361 + $0x830] sm:$0xff]
        %v671 = vld [vmem:[%s361 + $0x838] sm:$0xff]
        %v672 = vld [vmem:[%s361 + $0x840] sm:$0xff]
        %v673 = vld [vmem:[%s361 + $0x848] sm:$0xff]
        %v674 = vld [vmem:[%s361 + $0x850] sm:$0xff]
        %v675 = vld [vmem:[%s361 + $0x858] sm:$0xff]
        %v676 = vld [vmem:[%s361 + $0x860] sm:$0xff]
        %v677 = vld [vmem:[%s361 + $0x868] sm:$0xff]
        %v678 = vld [vmem:[%s361 + $0x870] sm:$0xff]
        %v679 = vld [vmem:[%s361 + $0x878] sm:$0xff]
        %v680 = vld [vmem:[%s361 + $0x880] sm:$0xff]
        %v681 = vld [vmem:[%s361 + $0x888] sm:$0xff]
        %v682 = vld [vmem:[%s361 + $0x890] sm:$0xff]
        %v683 = vld [vmem:[%s361 + $0x898] sm:$0xff]
        %v684 = vld [vmem:[%s361 + $0x8a0] sm:$0xff]
        %v685 = vld [vmem:[%s361 + $0x8a8] sm:$0xff]
        %v686 = vld [vmem:[%s361 + $0x8b0] sm:$0xff]
        %v687 = vld [vmem:[%s361 + $0x8b8] sm:$0xff]
        %v688 = vld [vmem:[%s361 + $0x8c0] sm:$0xff]
        %v689 = vld [vmem:[%s361 + $0x8c8] sm:$0xff]
        %v690 = vld [vmem:[%s361 + $0x8d0] sm:$0xff]
        %v691 = vld [vmem:[%s361 + $0x8d8] sm:$0xff]
        %v692 = vld [vmem:[%s361 + $0x8e0] sm:$0xff]
        %v693 = vld [vmem:[%s361 + $0x8e8] sm:$0xff]
        %v694 = vld [vmem:[%s361 + $0x8f0] sm:$0xff]
        %v695 = vld [vmem:[%s361 + $0x8f8] sm:$0xff]
        %v696 = vld [vmem:[#allocation2] sm:$0xff]
        %v697 = vld [vmem:[#allocation2 + $0x8] sm:$0xff]
        %v698 = vld [vmem:[#allocation2 + $0x10] sm:$0xff]
        %v699 = vld [vmem:[#allocation2 + $0x18] sm:$0xff]
        %v700 = vld [vmem:[#allocation2 + $0x20] sm:$0xff]
        %v701 = vld [vmem:[#allocation2 + $0x28] sm:$0xff]
        %v702 = vld [vmem:[#allocation2 + $0x30] sm:$0xff]
        %v703 = vld [vmem:[#allocation2 + $0x38] sm:$0xff]
        %v704 = vld [vmem:[#allocation2 + $0x40] sm:$0xff]
        %v705 = vld [vmem:[#allocation2 + $0x48] sm:$0xff]
        %v706 = vld [vmem:[#allocation2 + $0x50] sm:$0xff]
        %v707 = vld [vmem:[#allocation2 + $0x58] sm:$0xff]
        %v708 = vld [vmem:[#allocation2 + $0x60] sm:$0xff]
        %v709 = vld [vmem:[#allocation2 + $0x68] sm:$0xff]
        %v710 = vld [vmem:[#allocation2 + $0x70] sm:$0xff]
        %v711 = vld [vmem:[#allocation2 + $0x78] sm:$0xff]
        %v712 = vld [vmem:[%s303] sm:$0xff]
        %v713 = vld [vmem:[%s303 + $0x8] sm:$0xff]
        %v714 = vld [vmem:[%s303 + $0x10] sm:$0xff]
        %v715 = vld [vmem:[%s303 + $0x18] sm:$0xff]
        %v716 = vld [vmem:[%s303 + $0x20] sm:$0xf]
        %v717 = vld [vmem:[%s303 + $0x24] sm:$0xff]
        %v718 = vld [vmem:[%s303 + $0x2c] sm:$0xff]
        %v719 = vld [vmem:[%s303 + $0x34] sm:$0xff]
        %v720 = vld [vmem:[%s303 + $0x3c] sm:$0xff]
        %v721 = vld [vmem:[%s303 + $0x44] sm:$0xf]
        %v722 = vld [vmem:[%s303 + $0x48] sm:$0xff]
        %v723 = vld [vmem:[%s303 + $0x50] sm:$0xff]
        %v724 = vld [vmem:[%s303 + $0x58] sm:$0xff]
        %v725 = vld [vmem:[%s303 + $0x60] sm:$0xff]
        %v726 = vld [vmem:[%s303 + $0x68] sm:$0xf]
        %v727 = vld [vmem:[%s303 + $0x6c] sm:$0xff]
        %v728 = vld [vmem:[%s303 + $0x74] sm:$0xff]
        %v729 = vld [vmem:[%s303 + $0x7c] sm:$0xff]
        %v730 = vld [vmem:[%s303 + $0x84] sm:$0xff]
        %v731 = vld [vmem:[%s303 + $0x8c] sm:$0xf]
        %v752 = vunpack.c.l.b16 %v712
        %v753 = vunpack.c.h.b16 %v712
        %v754 = vunpack.c.l.b16 %v713
        %v755 = vunpack.c.h.b16 %v713
        %v756 = vunpack.c.l.b16 %v714
        %v757 = vunpack.c.h.b16 %v714
        %v758 = vunpack.c.l.b16 %v715
        %v759 = vunpack.c.h.b16 %v715
        %v760 = vunpack.c.l.b16 %v716
        %v761 = vunpack.c.l.b16 %v717
        %v762 = vunpack.c.h.b16 %v717
        %v763 = vunpack.c.l.b16 %v718
        %v764 = vunpack.c.h.b16 %v718
        %v765 = vunpack.c.l.b16 %v719
        %v766 = vunpack.c.h.b16 %v719
        %v767 = vunpack.c.l.b16 %v720
        %v768 = vunpack.c.h.b16 %v720
        %v769 = vunpack.c.l.b16 %v721
        %v770 = vunpack.c.l.b16 %v722
        %v771 = vunpack.c.h.b16 %v722
        %v772 = vunpack.c.l.b16 %v723
        %v773 = vunpack.c.h.b16 %v723
        %v774 = vunpack.c.l.b16 %v724
        %v775 = vunpack.c.h.b16 %v724
        %v776 = vunpack.c.l.b16 %v725
        %v777 = vunpack.c.h.b16 %v725
        %v778 = vunpack.c.l.b16 %v726
        %v779 = vunpack.c.l.b16 %v727
        %v780 = vunpack.c.h.b16 %v727
        %v781 = vunpack.c.l.b16 %v728
        %v782 = vunpack.c.h.b16 %v728
        %v783 = vunpack.c.l.b16 %v729
        %v784 = vunpack.c.h.b16 %v729
        %v785 = vunpack.c.l.b16 %v730
        %v786 = vunpack.c.h.b16 %v730
        %v787 = vunpack.c.l.b16 %v731
        %v788 = vpack.c.b16 %v761, %v752
        %v789 = vpack.c.b16 %v762, %v753
        %v790 = vpack.c.b16 %v763, %v754
        %v791 = vpack.c.b16 %v764, %v755
        %v792 = vpack.c.b16 %v765, %v756
        %v793 = vpack.c.b16 %v766, %v757
        %v794 = vpack.c.b16 %v767, %v758
        %v795 = vpack.c.b16 %v768, %v759
        %v796 = vpack.c.b16 %v769, %v760
        %v797 = vpack.c.b16 %v779, %v770
        %v798 = vpack.c.b16 %v780, %v771
        %v799 = vpack.c.b16 %v781, %v772
        %v800 = vpack.c.b16 %v782, %v773
        %v801 = vpack.c.b16 %v783, %v774
        %v802 = vpack.c.b16 %v784, %v775
        %v803 = vpack.c.b16 %v785, %v776
        %v804 = vpack.c.b16 %v786, %v777
        %v805 = vpack.c.b16 %v787, %v778
        %v1112 = vunpack.c.l.b16 %v408
        %v1113 = vunpack.c.h.b16 %v408
        %v1114 = vunpack.c.l.b16 %v409
        %v1115 = vunpack.c.h.b16 %v409
        %v1116 = vunpack.c.l.b16 %v410
        %v1117 = vunpack.c.h.b16 %v410
        %v1118 = vunpack.c.l.b16 %v411
        %v1119 = vunpack.c.h.b16 %v411
        %v1120 = vunpack.c.l.b16 %v412
        %v1121 = vunpack.c.h.b16 %v412
        %v1122 = vunpack.c.l.b16 %v413
        %v1123 = vunpack.c.h.b16 %v413
        %v1124 = vunpack.c.l.b16 %v414
        %v1125 = vunpack.c.h.b16 %v414
        %v1126 = vunpack.c.l.b16 %v415
        %v1127 = vunpack.c.h.b16 %v415
        %v1128 = vunpack.c.l.b16 %v416
        %v1129 = vunpack.c.h.b16 %v416
        %v1130 = vunpack.c.l.b16 %v417
        %v1131 = vunpack.c.h.b16 %v417
        %v1132 = vunpack.c.l.b16 %v418
        %v1133 = vunpack.c.h.b16 %v418
        %v1134 = vunpack.c.l.b16 %v419
        %v1135 = vunpack.c.h.b16 %v419
        %v1136 = vunpack.c.l.b16 %v420
        %v1137 = vunpack.c.h.b16 %v420
        %v1138 = vunpack.c.l.b16 %v421
        %v1139 = vunpack.c.h.b16 %v421
        %v1140 = vunpack.c.l.b16 %v422
        %v1141 = vunpack.c.h.b16 %v422
        %v1142 = vunpack.c.l.b16 %v423
        %v1143 = vunpack.c.h.b16 %v423
        %v1144 = vunpack.c.l.b16 %v424
        %v1145 = vunpack.c.h.b16 %v424
        %v1146 = vunpack.c.l.b16 %v425
        %v1147 = vunpack.c.h.b16 %v425
        %v1148 = vunpack.c.l.b16 %v426
        %v1149 = vunpack.c.h.b16 %v426
        %v1150 = vunpack.c.l.b16 %v427
        %v1151 = vunpack.c.h.b16 %v427
        %v1152 = vunpack.c.l.b16 %v428
        %v1153 = vunpack.c.h.b16 %v428
        %v1154 = vunpack.c.l.b16 %v429
        %v1155 = vunpack.c.h.b16 %v429
        %v1156 = vunpack.c.l.b16 %v430
        %v1157 = vunpack.c.h.b16 %v430
        %v1158 = vunpack.c.l.b16 %v431
        %v1159 = vunpack.c.h.b16 %v431
        %v1160 = vunpack.c.l.b16 %v432
        %v1161 = vunpack.c.h.b16 %v432
        %v1162 = vunpack.c.l.b16 %v433
        %v1163 = vunpack.c.h.b16 %v433
        %v1164 = vunpack.c.l.b16 %v434
        %v1165 = vunpack.c.h.b16 %v434
        %v1166 = vunpack.c.l.b16 %v435
        %v1167 = vunpack.c.h.b16 %v435
        %v1168 = vunpack.c.l.b16 %v436
        %v1169 = vunpack.c.h.b16 %v436
        %v1170 = vunpack.c.l.b16 %v437
        %v1171 = vunpack.c.h.b16 %v437
        %v1172 = vunpack.c.l.b16 %v438
        %v1173 = vunpack.c.h.b16 %v438
        %v1174 = vunpack.c.l.b16 %v439
        %v1175 = vunpack.c.h.b16 %v439
        %v1176 = vunpack.c.l.b16 %v440
        %v1177 = vunpack.c.h.b16 %v440
        %v1178 = vunpack.c.l.b16 %v441
        %v1179 = vunpack.c.h.b16 %v441
        %v1180 = vunpack.c.l.b16 %v442
        %v1181 = vunpack.c.h.b16 %v442
        %v1182 = vunpack.c.l.b16 %v443
        %v1183 = vunpack.c.h.b16 %v443
        %v1184 = vunpack.c.l.b16 %v444
        %v1185 = vunpack.c.h.b16 %v444
        %v1186 = vunpack.c.l.b16 %v445
        %v1187 = vunpack.c.h.b16 %v445
        %v1188 = vunpack.c.l.b16 %v446
        %v1189 = vunpack.c.h.b16 %v446
        %v1190 = vunpack.c.l.b16 %v447
        %v1191 = vunpack.c.h.b16 %v447
        %v1192 = vunpack.c.l.b16 %v448
        %v1193 = vunpack.c.h.b16 %v448
        %v1194 = vunpack.c.l.b16 %v449
        %v1195 = vunpack.c.h.b16 %v449
        %v1196 = vunpack.c.l.b16 %v450
        %v1197 = vunpack.c.h.b16 %v450
        %v1198 = vunpack.c.l.b16 %v451
        %v1199 = vunpack.c.h.b16 %v451
        %v1200 = vunpack.c.l.b16 %v452
        %v1201 = vunpack.c.h.b16 %v452
        %v1202 = vunpack.c.l.b16 %v453
        %v1203 = vunpack.c.h.b16 %v453
        %v1204 = vunpack.c.l.b16 %v454
        %v1205 = vunpack.c.h.b16 %v454
        %v1206 = vunpack.c.l.b16 %v455
        %v1207 = vunpack.c.h.b16 %v455
        %v1208 = vunpack.c.l.b16 %v456
        %v1209 = vunpack.c.h.b16 %v456
        %v1210 = vunpack.c.l.b16 %v457
        %v1211 = vunpack.c.h.b16 %v457
        %v1212 = vunpack.c.l.b16 %v458
        %v1213 = vunpack.c.h.b16 %v458
        %v1214 = vunpack.c.l.b16 %v459
        %v1215 = vunpack.c.h.b16 %v459
        %v1216 = vunpack.c.l.b16 %v460
        %v1217 = vunpack.c.h.b16 %v460
        %v1218 = vunpack.c.l.b16 %v461
        %v1219 = vunpack.c.h.b16 %v461
        %v1220 = vunpack.c.l.b16 %v462
        %v1221 = vunpack.c.h.b16 %v462
        %v1222 = vunpack.c.l.b16 %v463
        %v1223 = vunpack.c.h.b16 %v463
        %v1224 = vunpack.c.l.b16 %v464
        %v1225 = vunpack.c.h.b16 %v464
        %v1226 = vunpack.c.l.b16 %v465
        %v1227 = vunpack.c.h.b16 %v465
        %v1228 = vunpack.c.l.b16 %v466
        %v1229 = vunpack.c.h.b16 %v466
        %v1230 = vunpack.c.l.b16 %v467
        %v1231 = vunpack.c.h.b16 %v467
        %v1232 = vunpack.c.l.b16 %v468
        %v1233 = vunpack.c.h.b16 %v468
        %v1234 = vunpack.c.l.b16 %v469
        %v1235 = vunpack.c.h.b16 %v469
        %v1236 = vunpack.c.l.b16 %v470
        %v1237 = vunpack.c.h.b16 %v470
        %v1238 = vunpack.c.l.b16 %v471
        %v1239 = vunpack.c.h.b16 %v471
        %v1240 = vunpack.c.l.b16 %v472
        %v1241 = vunpack.c.h.b16 %v472
        %v1242 = vunpack.c.l.b16 %v473
        %v1243 = vunpack.c.h.b16 %v473
        %v1244 = vunpack.c.l.b16 %v474
        %v1245 = vunpack.c.h.b16 %v474
        %v1246 = vunpack.c.l.b16 %v475
        %v1247 = vunpack.c.h.b16 %v475
        %v1248 = vunpack.c.l.b16 %v476
        %v1249 = vunpack.c.h.b16 %v476
        %v1250 = vunpack.c.l.b16 %v477
        %v1251 = vunpack.c.h.b16 %v477
        %v1252 = vunpack.c.l.b16 %v478
        %v1253 = vunpack.c.h.b16 %v478
        %v1254 = vunpack.c.l.b16 %v479
        %v1255 = vunpack.c.h.b16 %v479
        %v1256 = vunpack.c.l.b16 %v480
        %v1257 = vunpack.c.h.b16 %v480
        %v1258 = vunpack.c.l.b16 %v481
        %v1259 = vunpack.c.h.b16 %v481
        %v1260 = vunpack.c.l.b16 %v482
        %v1261 = vunpack.c.h.b16 %v482
        %v1262 = vunpack.c.l.b16 %v483
        %v1263 = vunpack.c.h.b16 %v483
        %v1264 = vunpack.c.l.b16 %v484
        %v1265 = vunpack.c.h.b16 %v484
        %v1266 = vunpack.c.l.b16 %v485
        %v1267 = vunpack.c.h.b16 %v485
        %v1268 = vunpack.c.l.b16 %v486
        %v1269 = vunpack.c.h.b16 %v486
        %v1270 = vunpack.c.l.b16 %v487
        %v1271 = vunpack.c.h.b16 %v487
        %v1272 = vunpack.c.l.b16 %v488
        %v1273 = vunpack.c.h.b16 %v488
        %v1274 = vunpack.c.l.b16 %v489
        %v1275 = vunpack.c.h.b16 %v489
        %v1276 = vunpack.c.l.b16 %v490
        %v1277 = vunpack.c.h.b16 %v490
        %v1278 = vunpack.c.l.b16 %v491
        %v1279 = vunpack.c.h.b16 %v491
        %v1280 = vunpack.c.l.b16 %v492
        %v1281 = vunpack.c.h.b16 %v492
        %v1282 = vunpack.c.l.b16 %v493
        %v1283 = vunpack.c.h.b16 %v493
        %v1284 = vunpack.c.l.b16 %v494
        %v1285 = vunpack.c.h.b16 %v494
        %v1286 = vunpack.c.l.b16 %v495
        %v1287 = vunpack.c.h.b16 %v495
        %v1288 = vunpack.c.l.b16 %v496
        %v1289 = vunpack.c.h.b16 %v496
        %v1290 = vunpack.c.l.b16 %v497
        %v1291 = vunpack.c.h.b16 %v497
        %v1292 = vunpack.c.l.b16 %v498
        %v1293 = vunpack.c.h.b16 %v498
        %v1294 = vunpack.c.l.b16 %v499
        %v1295 = vunpack.c.h.b16 %v499
        %v1296 = vunpack.c.l.b16 %v500
        %v1297 = vunpack.c.h.b16 %v500
        %v1298 = vunpack.c.l.b16 %v501
        %v1299 = vunpack.c.h.b16 %v501
        %v1300 = vunpack.c.l.b16 %v502
        %v1301 = vunpack.c.h.b16 %v502
        %v1302 = vunpack.c.l.b16 %v503
        %v1303 = vunpack.c.h.b16 %v503
        %v1304 = vunpack.c.l.b16 %v504
        %v1305 = vunpack.c.h.b16 %v504
        %v1306 = vunpack.c.l.b16 %v505
        %v1307 = vunpack.c.h.b16 %v505
        %v1308 = vunpack.c.l.b16 %v506
        %v1309 = vunpack.c.h.b16 %v506
        %v1310 = vunpack.c.l.b16 %v507
        %v1311 = vunpack.c.h.b16 %v507
        %v1312 = vunpack.c.l.b16 %v508
        %v1313 = vunpack.c.h.b16 %v508
        %v1314 = vunpack.c.l.b16 %v509
        %v1315 = vunpack.c.h.b16 %v509
        %v1316 = vunpack.c.l.b16 %v510
        %v1317 = vunpack.c.h.b16 %v510
        %v1318 = vunpack.c.l.b16 %v511
        %v1319 = vunpack.c.h.b16 %v511
        %v1320 = vunpack.c.l.b16 %v512
        %v1321 = vunpack.c.h.b16 %v512
        %v1322 = vunpack.c.l.b16 %v513
        %v1323 = vunpack.c.h.b16 %v513
        %v1324 = vunpack.c.l.b16 %v514
        %v1325 = vunpack.c.h.b16 %v514
        %v1326 = vunpack.c.l.b16 %v515
        %v1327 = vunpack.c.h.b16 %v515
        %v1328 = vunpack.c.l.b16 %v516
        %v1329 = vunpack.c.h.b16 %v516
        %v1330 = vunpack.c.l.b16 %v517
        %v1331 = vunpack.c.h.b16 %v517
        %v1332 = vunpack.c.l.b16 %v518
        %v1333 = vunpack.c.h.b16 %v518
        %v1334 = vunpack.c.l.b16 %v519
        %v1335 = vunpack.c.h.b16 %v519
        %v1336 = vunpack.c.l.b16 %v520
        %v1337 = vunpack.c.h.b16 %v520
        %v1338 = vunpack.c.l.b16 %v521
        %v1339 = vunpack.c.h.b16 %v521
        %v1340 = vunpack.c.l.b16 %v522
        %v1341 = vunpack.c.h.b16 %v522
        %v1342 = vunpack.c.l.b16 %v523
        %v1343 = vunpack.c.h.b16 %v523
        %v1344 = vunpack.c.l.b16 %v524
        %v1345 = vunpack.c.h.b16 %v524
        %v1346 = vunpack.c.l.b16 %v525
        %v1347 = vunpack.c.h.b16 %v525
        %v1348 = vunpack.c.l.b16 %v526
        %v1349 = vunpack.c.h.b16 %v526
        %v1350 = vunpack.c.l.b16 %v527
        %v1351 = vunpack.c.h.b16 %v527
        %v1352 = vunpack.c.l.b16 %v528
        %v1353 = vunpack.c.h.b16 %v528
        %v1354 = vunpack.c.l.b16 %v529
        %v1355 = vunpack.c.h.b16 %v529
        %v1356 = vunpack.c.l.b16 %v530
        %v1357 = vunpack.c.h.b16 %v530
        %v1358 = vunpack.c.l.b16 %v531
        %v1359 = vunpack.c.h.b16 %v531
        %v1360 = vunpack.c.l.b16 %v532
        %v1361 = vunpack.c.h.b16 %v532
        %v1362 = vunpack.c.l.b16 %v533
        %v1363 = vunpack.c.h.b16 %v533
        %v1364 = vunpack.c.l.b16 %v534
        %v1365 = vunpack.c.h.b16 %v534
        %v1366 = vunpack.c.l.b16 %v535
        %v1367 = vunpack.c.h.b16 %v535
        %v1368 = vunpack.c.l.b16 %v536
        %v1369 = vunpack.c.h.b16 %v536
        %v1370 = vunpack.c.l.b16 %v537
        %v1371 = vunpack.c.h.b16 %v537
        %v1372 = vunpack.c.l.b16 %v538
        %v1373 = vunpack.c.h.b16 %v538
        %v1374 = vunpack.c.l.b16 %v539
        %v1375 = vunpack.c.h.b16 %v539
        %v1376 = vunpack.c.l.b16 %v540
        %v1377 = vunpack.c.h.b16 %v540
        %v1378 = vunpack.c.l.b16 %v541
        %v1379 = vunpack.c.h.b16 %v541
        %v1380 = vunpack.c.l.b16 %v542
        %v1381 = vunpack.c.h.b16 %v542
        %v1382 = vunpack.c.l.b16 %v543
        %v1383 = vunpack.c.h.b16 %v543
        %v1384 = vunpack.c.l.b16 %v544
        %v1385 = vunpack.c.h.b16 %v544
        %v1386 = vunpack.c.l.b16 %v545
        %v1387 = vunpack.c.h.b16 %v545
        %v1388 = vunpack.c.l.b16 %v546
        %v1389 = vunpack.c.h.b16 %v546
        %v1390 = vunpack.c.l.b16 %v547
        %v1391 = vunpack.c.h.b16 %v547
        %v1392 = vunpack.c.l.b16 %v548
        %v1393 = vunpack.c.h.b16 %v548
        %v1394 = vunpack.c.l.b16 %v549
        %v1395 = vunpack.c.h.b16 %v549
        %v1396 = vunpack.c.l.b16 %v550
        %v1397 = vunpack.c.h.b16 %v550
        %v1398 = vunpack.c.l.b16 %v551
        %v1399 = vunpack.c.h.b16 %v551
        %v1400 = vunpack.c.l.b16 %v552
        %v1401 = vunpack.c.h.b16 %v552
        %v1402 = vunpack.c.l.b16 %v553
        %v1403 = vunpack.c.h.b16 %v553
        %v1404 = vunpack.c.l.b16 %v554
        %v1405 = vunpack.c.h.b16 %v554
        %v1406 = vunpack.c.l.b16 %v555
        %v1407 = vunpack.c.h.b16 %v555
        %v1408 = vunpack.c.l.b16 %v556
        %v1409 = vunpack.c.h.b16 %v556
        %v1410 = vunpack.c.l.b16 %v557
        %v1411 = vunpack.c.h.b16 %v557
        %v1412 = vunpack.c.l.b16 %v558
        %v1413 = vunpack.c.h.b16 %v558
        %v1414 = vunpack.c.l.b16 %v559
        %v1415 = vunpack.c.h.b16 %v559
        %v1416 = vunpack.c.l.b16 %v560
        %v1417 = vunpack.c.h.b16 %v560
        %v1418 = vunpack.c.l.b16 %v561
        %v1419 = vunpack.c.h.b16 %v561
        %v1420 = vunpack.c.l.b16 %v562
        %v1421 = vunpack.c.h.b16 %v562
        %v1422 = vunpack.c.l.b16 %v563
        %v1423 = vunpack.c.h.b16 %v563
        %v1424 = vunpack.c.l.b16 %v564
        %v1425 = vunpack.c.h.b16 %v564
        %v1426 = vunpack.c.l.b16 %v565
        %v1427 = vunpack.c.h.b16 %v565
        %v1428 = vunpack.c.l.b16 %v566
        %v1429 = vunpack.c.h.b16 %v566
        %v1430 = vunpack.c.l.b16 %v567
        %v1431 = vunpack.c.h.b16 %v567
        %v1432 = vunpack.c.l.b16 %v568
        %v1433 = vunpack.c.h.b16 %v568
        %v1434 = vunpack.c.l.b16 %v569
        %v1435 = vunpack.c.h.b16 %v569
        %v1436 = vunpack.c.l.b16 %v570
        %v1437 = vunpack.c.h.b16 %v570
        %v1438 = vunpack.c.l.b16 %v571
        %v1439 = vunpack.c.h.b16 %v571
        %v1440 = vunpack.c.l.b16 %v572
        %v1441 = vunpack.c.h.b16 %v572
        %v1442 = vunpack.c.l.b16 %v573
        %v1443 = vunpack.c.h.b16 %v573
        %v1444 = vunpack.c.l.b16 %v574
        %v1445 = vunpack.c.h.b16 %v574
        %v1446 = vunpack.c.l.b16 %v575
        %v1447 = vunpack.c.h.b16 %v575
        %v1448 = vunpack.c.l.b16 %v576
        %v1449 = vunpack.c.h.b16 %v576
        %v1450 = vunpack.c.l.b16 %v577
        %v1451 = vunpack.c.h.b16 %v577
        %v1452 = vunpack.c.l.b16 %v578
        %v1453 = vunpack.c.h.b16 %v578
        %v1454 = vunpack.c.l.b16 %v579
        %v1455 = vunpack.c.h.b16 %v579
        %v1456 = vunpack.c.l.b16 %v580
        %v1457 = vunpack.c.h.b16 %v580
        %v1458 = vunpack.c.l.b16 %v581
        %v1459 = vunpack.c.h.b16 %v581
        %v1460 = vunpack.c.l.b16 %v582
        %v1461 = vunpack.c.h.b16 %v582
        %v1462 = vunpack.c.l.b16 %v583
        %v1463 = vunpack.c.h.b16 %v583
        %v1464 = vunpack.c.l.b16 %v584
        %v1465 = vunpack.c.h.b16 %v584
        %v1466 = vunpack.c.l.b16 %v585
        %v1467 = vunpack.c.h.b16 %v585
        %v1468 = vunpack.c.l.b16 %v586
        %v1469 = vunpack.c.h.b16 %v586
        %v1470 = vunpack.c.l.b16 %v587
        %v1471 = vunpack.c.h.b16 %v587
        %v1472 = vunpack.c.l.b16 %v588
        %v1473 = vunpack.c.h.b16 %v588
        %v1474 = vunpack.c.l.b16 %v589
        %v1475 = vunpack.c.h.b16 %v589
        %v1476 = vunpack.c.l.b16 %v590
        %v1477 = vunpack.c.h.b16 %v590
        %v1478 = vunpack.c.l.b16 %v591
        %v1479 = vunpack.c.h.b16 %v591
        %v1480 = vunpack.c.l.b16 %v592
        %v1481 = vunpack.c.h.b16 %v592
        %v1482 = vunpack.c.l.b16 %v593
        %v1483 = vunpack.c.h.b16 %v593
        %v1484 = vunpack.c.l.b16 %v594
        %v1485 = vunpack.c.h.b16 %v594
        %v1486 = vunpack.c.l.b16 %v595
        %v1487 = vunpack.c.h.b16 %v595
        %v1488 = vunpack.c.l.b16 %v596
        %v1489 = vunpack.c.h.b16 %v596
        %v1490 = vunpack.c.l.b16 %v597
        %v1491 = vunpack.c.h.b16 %v597
        %v1492 = vunpack.c.l.b16 %v598
        %v1493 = vunpack.c.h.b16 %v598
        %v1494 = vunpack.c.l.b16 %v599
        %v1495 = vunpack.c.h.b16 %v599
        %v1496 = vunpack.c.l.b16 %v600
        %v1497 = vunpack.c.h.b16 %v600
        %v1498 = vunpack.c.l.b16 %v601
        %v1499 = vunpack.c.h.b16 %v601
        %v1500 = vunpack.c.l.b16 %v602
        %v1501 = vunpack.c.h.b16 %v602
        %v1502 = vunpack.c.l.b16 %v603
        %v1503 = vunpack.c.h.b16 %v603
        %v1504 = vunpack.c.l.b16 %v604
        %v1505 = vunpack.c.h.b16 %v604
        %v1506 = vunpack.c.l.b16 %v605
        %v1507 = vunpack.c.h.b16 %v605
        %v1508 = vunpack.c.l.b16 %v606
        %v1509 = vunpack.c.h.b16 %v606
        %v1510 = vunpack.c.l.b16 %v607
        %v1511 = vunpack.c.h.b16 %v607
        %v1512 = vunpack.c.l.b16 %v608
        %v1513 = vunpack.c.h.b16 %v608
        %v1514 = vunpack.c.l.b16 %v609
        %v1515 = vunpack.c.h.b16 %v609
        %v1516 = vunpack.c.l.b16 %v610
        %v1517 = vunpack.c.h.b16 %v610
        %v1518 = vunpack.c.l.b16 %v611
        %v1519 = vunpack.c.h.b16 %v611
        %v1520 = vunpack.c.l.b16 %v612
        %v1521 = vunpack.c.h.b16 %v612
        %v1522 = vunpack.c.l.b16 %v613
        %v1523 = vunpack.c.h.b16 %v613
        %v1524 = vunpack.c.l.b16 %v614
        %v1525 = vunpack.c.h.b16 %v614
        %v1526 = vunpack.c.l.b16 %v615
        %v1527 = vunpack.c.h.b16 %v615
        %v1528 = vunpack.c.l.b16 %v616
        %v1529 = vunpack.c.h.b16 %v616
        %v1530 = vunpack.c.l.b16 %v617
        %v1531 = vunpack.c.h.b16 %v617
        %v1532 = vunpack.c.l.b16 %v618
        %v1533 = vunpack.c.h.b16 %v618
        %v1534 = vunpack.c.l.b16 %v619
        %v1535 = vunpack.c.h.b16 %v619
        %v1536 = vunpack.c.l.b16 %v620
        %v1537 = vunpack.c.h.b16 %v620
        %v1538 = vunpack.c.l.b16 %v621
        %v1539 = vunpack.c.h.b16 %v621
        %v1540 = vunpack.c.l.b16 %v622
        %v1541 = vunpack.c.h.b16 %v622
        %v1542 = vunpack.c.l.b16 %v623
        %v1543 = vunpack.c.h.b16 %v623
        %v1544 = vunpack.c.l.b16 %v624
        %v1545 = vunpack.c.h.b16 %v624
        %v1546 = vunpack.c.l.b16 %v625
        %v1547 = vunpack.c.h.b16 %v625
        %v1548 = vunpack.c.l.b16 %v626
        %v1549 = vunpack.c.h.b16 %v626
        %v1550 = vunpack.c.l.b16 %v627
        %v1551 = vunpack.c.h.b16 %v627
        %v1552 = vunpack.c.l.b16 %v628
        %v1553 = vunpack.c.h.b16 %v628
        %v1554 = vunpack.c.l.b16 %v629
        %v1555 = vunpack.c.h.b16 %v629
        %v1556 = vunpack.c.l.b16 %v630
        %v1557 = vunpack.c.h.b16 %v630
        %v1558 = vunpack.c.l.b16 %v631
        %v1559 = vunpack.c.h.b16 %v631
        %v1560 = vunpack.c.l.b16 %v632
        %v1561 = vunpack.c.h.b16 %v632
        %v1562 = vunpack.c.l.b16 %v633
        %v1563 = vunpack.c.h.b16 %v633
        %v1564 = vunpack.c.l.b16 %v634
        %v1565 = vunpack.c.h.b16 %v634
        %v1566 = vunpack.c.l.b16 %v635
        %v1567 = vunpack.c.h.b16 %v635
        %v1568 = vunpack.c.l.b16 %v636
        %v1569 = vunpack.c.h.b16 %v636
        %v1570 = vunpack.c.l.b16 %v637
        %v1571 = vunpack.c.h.b16 %v637
        %v1572 = vunpack.c.l.b16 %v638
        %v1573 = vunpack.c.h.b16 %v638
        %v1574 = vunpack.c.l.b16 %v639
        %v1575 = vunpack.c.h.b16 %v639
        %v1576 = vunpack.c.l.b16 %v640
        %v1577 = vunpack.c.h.b16 %v640
        %v1578 = vunpack.c.l.b16 %v641
        %v1579 = vunpack.c.h.b16 %v641
        %v1580 = vunpack.c.l.b16 %v642
        %v1581 = vunpack.c.h.b16 %v642
        %v1582 = vunpack.c.l.b16 %v643
        %v1583 = vunpack.c.h.b16 %v643
        %v1584 = vunpack.c.l.b16 %v644
        %v1585 = vunpack.c.h.b16 %v644
        %v1586 = vunpack.c.l.b16 %v645
        %v1587 = vunpack.c.h.b16 %v645
        %v1588 = vunpack.c.l.b16 %v646
        %v1589 = vunpack.c.h.b16 %v646
        %v1590 = vunpack.c.l.b16 %v647
        %v1591 = vunpack.c.h.b16 %v647
        %v1592 = vunpack.c.l.b16 %v648
        %v1593 = vunpack.c.h.b16 %v648
        %v1594 = vunpack.c.l.b16 %v649
        %v1595 = vunpack.c.h.b16 %v649
        %v1596 = vunpack.c.l.b16 %v650
        %v1597 = vunpack.c.h.b16 %v650
        %v1598 = vunpack.c.l.b16 %v651
        %v1599 = vunpack.c.h.b16 %v651
        %v1600 = vunpack.c.l.b16 %v652
        %v1601 = vunpack.c.h.b16 %v652
        %v1602 = vunpack.c.l.b16 %v653
        %v1603 = vunpack.c.h.b16 %v653
        %v1604 = vunpack.c.l.b16 %v654
        %v1605 = vunpack.c.h.b16 %v654
        %v1606 = vunpack.c.l.b16 %v655
        %v1607 = vunpack.c.h.b16 %v655
        %v1608 = vunpack.c.l.b16 %v656
        %v1609 = vunpack.c.h.b16 %v656
        %v1610 = vunpack.c.l.b16 %v657
        %v1611 = vunpack.c.h.b16 %v657
        %v1612 = vunpack.c.l.b16 %v658
        %v1613 = vunpack.c.h.b16 %v658
        %v1614 = vunpack.c.l.b16 %v659
        %v1615 = vunpack.c.h.b16 %v659
        %v1616 = vunpack.c.l.b16 %v660
        %v1617 = vunpack.c.h.b16 %v660
        %v1618 = vunpack.c.l.b16 %v661
        %v1619 = vunpack.c.h.b16 %v661
        %v1620 = vunpack.c.l.b16 %v662
        %v1621 = vunpack.c.h.b16 %v662
        %v1622 = vunpack.c.l.b16 %v663
        %v1623 = vunpack.c.h.b16 %v663
        %v1624 = vunpack.c.l.b16 %v664
        %v1625 = vunpack.c.h.b16 %v664
        %v1626 = vunpack.c.l.b16 %v665
        %v1627 = vunpack.c.h.b16 %v665
        %v1628 = vunpack.c.l.b16 %v666
        %v1629 = vunpack.c.h.b16 %v666
        %v1630 = vunpack.c.l.b16 %v667
        %v1631 = vunpack.c.h.b16 %v667
        %v1632 = vunpack.c.l.b16 %v668
        %v1633 = vunpack.c.h.b16 %v668
        %v1634 = vunpack.c.l.b16 %v669
        %v1635 = vunpack.c.h.b16 %v669
        %v1636 = vunpack.c.l.b16 %v670
        %v1637 = vunpack.c.h.b16 %v670
        %v1638 = vunpack.c.l.b16 %v671
        %v1639 = vunpack.c.h.b16 %v671
        %v1640 = vunpack.c.l.b16 %v672
        %v1641 = vunpack.c.h.b16 %v672
        %v1642 = vunpack.c.l.b16 %v673
        %v1643 = vunpack.c.h.b16 %v673
        %v1644 = vunpack.c.l.b16 %v674
        %v1645 = vunpack.c.h.b16 %v674
        %v1646 = vunpack.c.l.b16 %v675
        %v1647 = vunpack.c.h.b16 %v675
        %v1648 = vunpack.c.l.b16 %v676
        %v1649 = vunpack.c.h.b16 %v676
        %v1650 = vunpack.c.l.b16 %v677
        %v1651 = vunpack.c.h.b16 %v677
        %v1652 = vunpack.c.l.b16 %v678
        %v1653 = vunpack.c.h.b16 %v678
        %v1654 = vunpack.c.l.b16 %v679
        %v1655 = vunpack.c.h.b16 %v679
        %v1656 = vunpack.c.l.b16 %v680
        %v1657 = vunpack.c.h.b16 %v680
        %v1658 = vunpack.c.l.b16 %v681
        %v1659 = vunpack.c.h.b16 %v681
        %v1660 = vunpack.c.l.b16 %v682
        %v1661 = vunpack.c.h.b16 %v682
        %v1662 = vunpack.c.l.b16 %v683
        %v1663 = vunpack.c.h.b16 %v683
        %v1664 = vunpack.c.l.b16 %v684
        %v1665 = vunpack.c.h.b16 %v684
        %v1666 = vunpack.c.l.b16 %v685
        %v1667 = vunpack.c.h.b16 %v685
        %v1668 = vunpack.c.l.b16 %v686
        %v1669 = vunpack.c.h.b16 %v686
        %v1670 = vunpack.c.l.b16 %v687
        %v1671 = vunpack.c.h.b16 %v687
        %v1672 = vunpack.c.l.b16 %v688
        %v1673 = vunpack.c.h.b16 %v688
        %v1674 = vunpack.c.l.b16 %v689
        %v1675 = vunpack.c.h.b16 %v689
        %v1676 = vunpack.c.l.b16 %v690
        %v1677 = vunpack.c.h.b16 %v690
        %v1678 = vunpack.c.l.b16 %v691
        %v1679 = vunpack.c.h.b16 %v691
        %v1680 = vunpack.c.l.b16 %v692
        %v1681 = vunpack.c.h.b16 %v692
        %v1682 = vunpack.c.l.b16 %v693
        %v1683 = vunpack.c.h.b16 %v693
        %v1684 = vunpack.c.l.b16 %v694
        %v1685 = vunpack.c.h.b16 %v694
        %v1686 = vunpack.c.l.b16 %v695
        %v1687 = vunpack.c.h.b16 %v695
        %v1688 = vpack.c.b16 %v1116, %v1112
        %v1689 = vpack.c.b16 %v1117, %v1113
        %v1690 = vpack.c.b16 %v1118, %v1114
        %v1691 = vpack.c.b16 %v1119, %v1115
        %v1692 = vpack.c.b16 %v1124, %v1120
        %v1693 = vpack.c.b16 %v1125, %v1121
        %v1694 = vpack.c.b16 %v1126, %v1122
        %v1695 = vpack.c.b16 %v1127, %v1123
        %v1696 = vpack.c.b16 %v1132, %v1128
        %v1697 = vpack.c.b16 %v1133, %v1129
        %v1698 = vpack.c.b16 %v1134, %v1130
        %v1699 = vpack.c.b16 %v1135, %v1131
        %v1700 = vpack.c.b16 %v1140, %v1136
        %v1701 = vpack.c.b16 %v1141, %v1137
        %v1702 = vpack.c.b16 %v1142, %v1138
        %v1703 = vpack.c.b16 %v1143, %v1139
        %v1704 = vpack.c.b16 %v1148, %v1144
        %v1705 = vpack.c.b16 %v1149, %v1145
        %v1706 = vpack.c.b16 %v1150, %v1146
        %v1707 = vpack.c.b16 %v1151, %v1147
        %v1708 = vpack.c.b16 %v1156, %v1152
        %v1709 = vpack.c.b16 %v1157, %v1153
        %v1710 = vpack.c.b16 %v1158, %v1154
        %v1711 = vpack.c.b16 %v1159, %v1155
        %v1712 = vpack.c.b16 %v1164, %v1160
        %v1713 = vpack.c.b16 %v1165, %v1161
        %v1714 = vpack.c.b16 %v1166, %v1162
        %v1715 = vpack.c.b16 %v1167, %v1163
        %v1716 = vpack.c.b16 %v1172, %v1168
        %v1717 = vpack.c.b16 %v1173, %v1169
        %v1718 = vpack.c.b16 %v1174, %v1170
        %v1719 = vpack.c.b16 %v1175, %v1171
        %v1720 = vpack.c.b16 %v1180, %v1176
        %v1721 = vpack.c.b16 %v1181, %v1177
        %v1722 = vpack.c.b16 %v1182, %v1178
        %v1723 = vpack.c.b16 %v1183, %v1179
        %v1724 = vpack.c.b16 %v1188, %v1184
        %v1725 = vpack.c.b16 %v1189, %v1185
        %v1726 = vpack.c.b16 %v1190, %v1186
        %v1727 = vpack.c.b16 %v1191, %v1187
        %v1728 = vpack.c.b16 %v1196, %v1192
        %v1729 = vpack.c.b16 %v1197, %v1193
        %v1730 = vpack.c.b16 %v1198, %v1194
        %v1731 = vpack.c.b16 %v1199, %v1195
        %v1732 = vpack.c.b16 %v1204, %v1200
        %v1733 = vpack.c.b16 %v1205, %v1201
        %v1734 = vpack.c.b16 %v1206, %v1202
        %v1735 = vpack.c.b16 %v1207, %v1203
        %v1736 = vpack.c.b16 %v1212, %v1208
        %v1737 = vpack.c.b16 %v1213, %v1209
        %v1738 = vpack.c.b16 %v1214, %v1210
        %v1739 = vpack.c.b16 %v1215, %v1211
        %v1740 = vpack.c.b16 %v1220, %v1216
        %v1741 = vpack.c.b16 %v1221, %v1217
        %v1742 = vpack.c.b16 %v1222, %v1218
        %v1743 = vpack.c.b16 %v1223, %v1219
        %v1744 = vpack.c.b16 %v1228, %v1224
        %v1745 = vpack.c.b16 %v1229, %v1225
        %v1746 = vpack.c.b16 %v1230, %v1226
        %v1747 = vpack.c.b16 %v1231, %v1227
        %v1748 = vpack.c.b16 %v1236, %v1232
        %v1749 = vpack.c.b16 %v1237, %v1233
        %v1750 = vpack.c.b16 %v1238, %v1234
        %v1751 = vpack.c.b16 %v1239, %v1235
        %v1752 = vpack.c.b16 %v1244, %v1240
        %v1753 = vpack.c.b16 %v1245, %v1241
        %v1754 = vpack.c.b16 %v1246, %v1242
        %v1755 = vpack.c.b16 %v1247, %v1243
        %v1756 = vpack.c.b16 %v1252, %v1248
        %v1757 = vpack.c.b16 %v1253, %v1249
        %v1758 = vpack.c.b16 %v1254, %v1250
        %v1759 = vpack.c.b16 %v1255, %v1251
        %v1760 = vpack.c.b16 %v1260, %v1256
        %v1761 = vpack.c.b16 %v1261, %v1257
        %v1762 = vpack.c.b16 %v1262, %v1258
        %v1763 = vpack.c.b16 %v1263, %v1259
        %v1764 = vpack.c.b16 %v1268, %v1264
        %v1765 = vpack.c.b16 %v1269, %v1265
        %v1766 = vpack.c.b16 %v1270, %v1266
        %v1767 = vpack.c.b16 %v1271, %v1267
        %v1768 = vpack.c.b16 %v1276, %v1272
        %v1769 = vpack.c.b16 %v1277, %v1273
        %v1770 = vpack.c.b16 %v1278, %v1274
        %v1771 = vpack.c.b16 %v1279, %v1275
        %v1772 = vpack.c.b16 %v1284, %v1280
        %v1773 = vpack.c.b16 %v1285, %v1281
        %v1774 = vpack.c.b16 %v1286, %v1282
        %v1775 = vpack.c.b16 %v1287, %v1283
        %v1776 = vpack.c.b16 %v1292, %v1288
        %v1777 = vpack.c.b16 %v1293, %v1289
        %v1778 = vpack.c.b16 %v1294, %v1290
        %v1779 = vpack.c.b16 %v1295, %v1291
        %v1780 = vpack.c.b16 %v1300, %v1296
        %v1781 = vpack.c.b16 %v1301, %v1297
        %v1782 = vpack.c.b16 %v1302, %v1298
        %v1783 = vpack.c.b16 %v1303, %v1299
        %v1784 = vpack.c.b16 %v1308, %v1304
        %v1785 = vpack.c.b16 %v1309, %v1305
        %v1786 = vpack.c.b16 %v1310, %v1306
        %v1787 = vpack.c.b16 %v1311, %v1307
        %v1788 = vpack.c.b16 %v1316, %v1312
        %v1789 = vpack.c.b16 %v1317, %v1313
        %v1790 = vpack.c.b16 %v1318, %v1314
        %v1791 = vpack.c.b16 %v1319, %v1315
        %v1792 = vpack.c.b16 %v1324, %v1320
        %v1793 = vpack.c.b16 %v1325, %v1321
        %v1794 = vpack.c.b16 %v1326, %v1322
        %v1795 = vpack.c.b16 %v1327, %v1323
        %v1796 = vpack.c.b16 %v1332, %v1328
        %v1797 = vpack.c.b16 %v1333, %v1329
        %v1798 = vpack.c.b16 %v1334, %v1330
        %v1799 = vpack.c.b16 %v1335, %v1331
        %v1800 = vpack.c.b16 %v1340, %v1336
        %v1801 = vpack.c.b16 %v1341, %v1337
        %v1802 = vpack.c.b16 %v1342, %v1338
        %v1803 = vpack.c.b16 %v1343, %v1339
        %v1804 = vpack.c.b16 %v1348, %v1344
        %v1805 = vpack.c.b16 %v1349, %v1345
        %v1806 = vpack.c.b16 %v1350, %v1346
        %v1807 = vpack.c.b16 %v1351, %v1347
        %v1808 = vpack.c.b16 %v1356, %v1352
        %v1809 = vpack.c.b16 %v1357, %v1353
        %v1810 = vpack.c.b16 %v1358, %v1354
        %v1811 = vpack.c.b16 %v1359, %v1355
        %v1812 = vpack.c.b16 %v1364, %v1360
        %v1813 = vpack.c.b16 %v1365, %v1361
        %v1814 = vpack.c.b16 %v1366, %v1362
        %v1815 = vpack.c.b16 %v1367, %v1363
        %v1816 = vpack.c.b16 %v1372, %v1368
        %v1817 = vpack.c.b16 %v1373, %v1369
        %v1818 = vpack.c.b16 %v1374, %v1370
        %v1819 = vpack.c.b16 %v1375, %v1371
        %v1820 = vpack.c.b16 %v1380, %v1376
        %v1821 = vpack.c.b16 %v1381, %v1377
        %v1822 = vpack.c.b16 %v1382, %v1378
        %v1823 = vpack.c.b16 %v1383, %v1379
        %v1824 = vpack.c.b16 %v1388, %v1384
        %v1825 = vpack.c.b16 %v1389, %v1385
        %v1826 = vpack.c.b16 %v1390, %v1386
        %v1827 = vpack.c.b16 %v1391, %v1387
        %v1828 = vpack.c.b16 %v1396, %v1392
        %v1829 = vpack.c.b16 %v1397, %v1393
        %v1830 = vpack.c.b16 %v1398, %v1394
        %v1831 = vpack.c.b16 %v1399, %v1395
        %v1832 = vpack.c.b16 %v1404, %v1400
        %v1833 = vpack.c.b16 %v1405, %v1401
        %v1834 = vpack.c.b16 %v1406, %v1402
        %v1835 = vpack.c.b16 %v1407, %v1403
        %v1836 = vpack.c.b16 %v1412, %v1408
        %v1837 = vpack.c.b16 %v1413, %v1409
        %v1838 = vpack.c.b16 %v1414, %v1410
        %v1839 = vpack.c.b16 %v1415, %v1411
        %v1840 = vpack.c.b16 %v1420, %v1416
        %v1841 = vpack.c.b16 %v1421, %v1417
        %v1842 = vpack.c.b16 %v1422, %v1418
        %v1843 = vpack.c.b16 %v1423, %v1419
        %v1844 = vpack.c.b16 %v1428, %v1424
        %v1845 = vpack.c.b16 %v1429, %v1425
        %v1846 = vpack.c.b16 %v1430, %v1426
        %v1847 = vpack.c.b16 %v1431, %v1427
        %v1848 = vpack.c.b16 %v1436, %v1432
        %v1849 = vpack.c.b16 %v1437, %v1433
        %v1850 = vpack.c.b16 %v1438, %v1434
        %v1851 = vpack.c.b16 %v1439, %v1435
        %v1852 = vpack.c.b16 %v1444, %v1440
        %v1853 = vpack.c.b16 %v1445, %v1441
        %v1854 = vpack.c.b16 %v1446, %v1442
        %v1855 = vpack.c.b16 %v1447, %v1443
        %v1856 = vpack.c.b16 %v1452, %v1448
        %v1857 = vpack.c.b16 %v1453, %v1449
        %v1858 = vpack.c.b16 %v1454, %v1450
        %v1859 = vpack.c.b16 %v1455, %v1451
        %v1860 = vpack.c.b16 %v1460, %v1456
        %v1861 = vpack.c.b16 %v1461, %v1457
        %v1862 = vpack.c.b16 %v1462, %v1458
        %v1863 = vpack.c.b16 %v1463, %v1459
        %v1864 = vpack.c.b16 %v1468, %v1464
        %v1865 = vpack.c.b16 %v1469, %v1465
        %v1866 = vpack.c.b16 %v1470, %v1466
        %v1867 = vpack.c.b16 %v1471, %v1467
        %v1868 = vpack.c.b16 %v1476, %v1472
        %v1869 = vpack.c.b16 %v1477, %v1473
        %v1870 = vpack.c.b16 %v1478, %v1474
        %v1871 = vpack.c.b16 %v1479, %v1475
        %v1872 = vpack.c.b16 %v1484, %v1480
        %v1873 = vpack.c.b16 %v1485, %v1481
        %v1874 = vpack.c.b16 %v1486, %v1482
        %v1875 = vpack.c.b16 %v1487, %v1483
        %v1876 = vpack.c.b16 %v1492, %v1488
        %v1877 = vpack.c.b16 %v1493, %v1489
        %v1878 = vpack.c.b16 %v1494, %v1490
        %v1879 = vpack.c.b16 %v1495, %v1491
        %v1880 = vpack.c.b16 %v1500, %v1496
        %v1881 = vpack.c.b16 %v1501, %v1497
        %v1882 = vpack.c.b16 %v1502, %v1498
        %v1883 = vpack.c.b16 %v1503, %v1499
        %v1884 = vpack.c.b16 %v1508, %v1504
        %v1885 = vpack.c.b16 %v1509, %v1505
        %v1886 = vpack.c.b16 %v1510, %v1506
        %v1887 = vpack.c.b16 %v1511, %v1507
        %v1888 = vpack.c.b16 %v1516, %v1512
        %v1889 = vpack.c.b16 %v1517, %v1513
        %v1890 = vpack.c.b16 %v1518, %v1514
        %v1891 = vpack.c.b16 %v1519, %v1515
        %v1892 = vpack.c.b16 %v1524, %v1520
        %v1893 = vpack.c.b16 %v1525, %v1521
        %v1894 = vpack.c.b16 %v1526, %v1522
        %v1895 = vpack.c.b16 %v1527, %v1523
        %v1896 = vpack.c.b16 %v1532, %v1528
        %v1897 = vpack.c.b16 %v1533, %v1529
        %v1898 = vpack.c.b16 %v1534, %v1530
        %v1899 = vpack.c.b16 %v1535, %v1531
        %v1900 = vpack.c.b16 %v1540, %v1536
        %v1901 = vpack.c.b16 %v1541, %v1537
        %v1902 = vpack.c.b16 %v1542, %v1538
        %v1903 = vpack.c.b16 %v1543, %v1539
        %v1904 = vpack.c.b16 %v1548, %v1544
        %v1905 = vpack.c.b16 %v1549, %v1545
        %v1906 = vpack.c.b16 %v1550, %v1546
        %v1907 = vpack.c.b16 %v1551, %v1547
        %v1908 = vpack.c.b16 %v1556, %v1552
        %v1909 = vpack.c.b16 %v1557, %v1553
        %v1910 = vpack.c.b16 %v1558, %v1554
        %v1911 = vpack.c.b16 %v1559, %v1555
        %v1912 = vpack.c.b16 %v1564, %v1560
        %v1913 = vpack.c.b16 %v1565, %v1561
        %v1914 = vpack.c.b16 %v1566, %v1562
        %v1915 = vpack.c.b16 %v1567, %v1563
        %v1916 = vpack.c.b16 %v1572, %v1568
        %v1917 = vpack.c.b16 %v1573, %v1569
        %v1918 = vpack.c.b16 %v1574, %v1570
        %v1919 = vpack.c.b16 %v1575, %v1571
        %v1920 = vpack.c.b16 %v1580, %v1576
        %v1921 = vpack.c.b16 %v1581, %v1577
        %v1922 = vpack.c.b16 %v1582, %v1578
        %v1923 = vpack.c.b16 %v1583, %v1579
        %v1924 = vpack.c.b16 %v1588, %v1584
        %v1925 = vpack.c.b16 %v1589, %v1585
        %v1926 = vpack.c.b16 %v1590, %v1586
        %v1927 = vpack.c.b16 %v1591, %v1587
        %v1928 = vpack.c.b16 %v1596, %v1592
        %v1929 = vpack.c.b16 %v1597, %v1593
        %v1930 = vpack.c.b16 %v1598, %v1594
        %v1931 = vpack.c.b16 %v1599, %v1595
        %v1932 = vpack.c.b16 %v1604, %v1600
        %v1933 = vpack.c.b16 %v1605, %v1601
        %v1934 = vpack.c.b16 %v1606, %v1602
        %v1935 = vpack.c.b16 %v1607, %v1603
        %v1936 = vpack.c.b16 %v1612, %v1608
        %v1937 = vpack.c.b16 %v1613, %v1609
        %v1938 = vpack.c.b16 %v1614, %v1610
        %v1939 = vpack.c.b16 %v1615, %v1611
        %v1940 = vpack.c.b16 %v1620, %v1616
        %v1941 = vpack.c.b16 %v1621, %v1617
        %v1942 = vpack.c.b16 %v1622, %v1618
        %v1943 = vpack.c.b16 %v1623, %v1619
        %v1944 = vpack.c.b16 %v1628, %v1624
        %v1945 = vpack.c.b16 %v1629, %v1625
        %v1946 = vpack.c.b16 %v1630, %v1626
        %v1947 = vpack.c.b16 %v1631, %v1627
        %v1948 = vpack.c.b16 %v1636, %v1632
        %v1949 = vpack.c.b16 %v1637, %v1633
        %v1950 = vpack.c.b16 %v1638, %v1634
        %v1951 = vpack.c.b16 %v1639, %v1635
        %v1952 = vpack.c.b16 %v1644, %v1640
        %v1953 = vpack.c.b16 %v1645, %v1641
        %v1954 = vpack.c.b16 %v1646, %v1642
        %v1955 = vpack.c.b16 %v1647, %v1643
        %v1956 = vpack.c.b16 %v1652, %v1648
        %v1957 = vpack.c.b16 %v1653, %v1649
        %v1958 = vpack.c.b16 %v1654, %v1650
        %v1959 = vpack.c.b16 %v1655, %v1651
        %v1960 = vpack.c.b16 %v1660, %v1656
        %v1961 = vpack.c.b16 %v1661, %v1657
        %v1962 = vpack.c.b16 %v1662, %v1658
        %v1963 = vpack.c.b16 %v1663, %v1659
        %v1964 = vpack.c.b16 %v1668, %v1664
        %v1965 = vpack.c.b16 %v1669, %v1665
        %v1966 = vpack.c.b16 %v1670, %v1666
        %v1967 = vpack.c.b16 %v1671, %v1667
        %v1968 = vpack.c.b16 %v1676, %v1672
        %v1969 = vpack.c.b16 %v1677, %v1673
        %v1970 = vpack.c.b16 %v1678, %v1674
        %v1971 = vpack.c.b16 %v1679, %v1675
        %v1972 = vpack.c.b16 %v1684, %v1680
        %v1973 = vpack.c.b16 %v1685, %v1681
        %v1974 = vpack.c.b16 %v1686, %v1682
        %v1975 = vpack.c.b16 %v1687, %v1683
        %2264 = vmatprep.subr.bf16.mxu0 %v1689
        %2265 = vmatpush1.bf16.msra.mxu0 %v1688
        %2266 = vmatprep.subr.bf16.mxu0 %v1693
        %2267 = vmatpush1.bf16.msra.mxu0 %v1692
        %2268 = vmatprep.subr.bf16.mxu0 %v1697
        %2269 = vmatpush1.bf16.msra.mxu0 %v1696
        %2270 = vmatprep.subr.bf16.mxu0 %v1701
        %2271 = vmatpush1.bf16.msra.mxu0 %v1700
        %2272 = vmatprep.subr.bf16.mxu0 %v1705
        %2273 = vmatpush1.bf16.msra.mxu0 %v1704
        %2274 = vmatprep.subr.bf16.mxu0 %v1709
        %2275 = vmatpush1.bf16.msra.mxu0 %v1708
        %2276 = vmatprep.subr.bf16.mxu0 %v1713
        %2277 = vmatpush1.bf16.msra.mxu0 %v1712
        %2278 = vmatprep.subr.bf16.mxu0 %v1717
        %2279 = vmatpush1.bf16.msra.mxu0 %v1716
        %2280 = vmatprep.subr.bf16.mxu0 %v1721
        %2281 = vmatpush1.bf16.msra.mxu0 %v1720
        %2282 = vmatprep.subr.bf16.mxu0 %v1725
        %2283 = vmatpush1.bf16.msra.mxu0 %v1724
        %2284 = vmatprep.subr.bf16.mxu0 %v1729
        %2285 = vmatpush1.bf16.msra.mxu0 %v1728
        %2286 = vmatprep.subr.bf16.mxu0 %v1733
        %2287 = vmatpush1.bf16.msra.mxu0 %v1732
        %2288 = vmatprep.subr.bf16.mxu0 %v1737
        %2289 = vmatpush1.bf16.msra.mxu0 %v1736
        %2290 = vmatprep.subr.bf16.mxu0 %v1741
        %2291 = vmatpush1.bf16.msra.mxu0 %v1740
        %2292 = vmatprep.subr.bf16.mxu0 %v1745
        %2293 = vmatpush1.bf16.msra.mxu0 %v1744
        %2294 = vmatprep.subr.bf16.mxu0 %v1749
        %2295 = vmatpush1.bf16.msra.mxu0 %v1748
        %2296 = vmatprep.mubr.bf16.mxu0 %v789
        %2297 = vmatmul.mubr.bf16.gmra.mrb[0].mxu0 %v788
        %v2298 = vpop.f32.mrb[0].mxu0
        %v2299 = vadd.f32 0.0, %v2298
        %v2300 = vpop.f32.mrb[0].mxu0
        %v2301 = vadd.f32 0.0, %v2300
        %v2302 = vpop.f32.mrb[0].mxu0
        %v2303 = vadd.f32 0.0, %v2302
        %v2304 = vpop.f32.mrb[0].mxu0
        %v2305 = vadd.f32 0.0, %v2304
        %2306 = vmatprep.mubr.bf16.mxu0 %v798
        %2307 = vmatmul.mubr.bf16.gmra.mrb[0].mxu0 %v797
        %v2308 = vpop.f32.mrb[0].mxu0
        %v2309 = vadd.f32 0.0, %v2308
        %v2310 = vpop.f32.mrb[0].mxu0
        %v2311 = vadd.f32 0.0, %v2310
        %v2312 = vpop.f32.mrb[0].mxu0
        %v2313 = vadd.f32 0.0, %v2312
        %v2314 = vpop.f32.mrb[0].mxu0
        %v2315 = vadd.f32 0.0, %v2314
        %2316 = vdwg.mxu0
        %2317 = vmatprep.subr.bf16.mxu0 %v1753
        %2318 = vmatpush1.bf16.msra.mxu0 %v1752
        %2319 = vmatprep.subr.bf16.mxu0 %v1757
        %2320 = vmatpush1.bf16.msra.mxu0 %v1756
        %2321 = vmatprep.subr.bf16.mxu0 %v1761
        %2322 = vmatpush1.bf16.msra.mxu0 %v1760
        %2323 = vmatprep.subr.bf16.mxu0 %v1765
        %2324 = vmatpush1.bf16.msra.mxu0 %v1764
        %2325 = vmatprep.subr.bf16.mxu0 %v1769
        %2326 = vmatpush1.bf16.msra.mxu0 %v1768
        %2327 = vmatprep.subr.bf16.mxu0 %v1773
        %2328 = vmatpush1.bf16.msra.mxu0 %v1772
        %2329 = vmatprep.subr.bf16.mxu0 %v1777
        %2330 = vmatpush1.bf16.msra.mxu0 %v1776
        %2331 = vmatprep.subr.bf16.mxu0 %v1781
        %2332 = vmatpush1.bf16.msra.mxu0 %v1780
        %2333 = vmatprep.subr.bf16.mxu0 %v1785
        %2334 = vmatpush1.bf16.msra.mxu0 %v1784
        %2335 = vmatprep.subr.bf16.mxu0 %v1789
        %2336 = vmatpush1.bf16.msra.mxu0 %v1788
        %2337 = vmatprep.subr.bf16.mxu0 %v1793
        %2338 = vmatpush1.bf16.msra.mxu0 %v1792
        %2339 = vmatprep.subr.bf16.mxu0 %v1797
        %2340 = vmatpush1.bf16.msra.mxu0 %v1796
        %2341 = vmatprep.subr.bf16.mxu0 %v1801
        %2342 = vmatpush1.bf16.msra.mxu0 %v1800
        %2343 = vmatprep.subr.bf16.mxu0 %v1805
        %2344 = vmatpush1.bf16.msra.mxu0 %v1804
        %2345 = vmatprep.subr.bf16.mxu0 %v1809
        %2346 = vmatpush1.bf16.msra.mxu0 %v1808
        %2347 = vmatprep.subr.bf16.mxu0 %v1813
        %2348 = vmatpush1.bf16.msra.mxu0 %v1812
        %2349 = vmatprep.mubr.bf16.mxu0 %v791
        %2350 = vmatmul.mubr.bf16.gmra.mrb[0].mxu0 %v790
        %v2351 = vpop.f32.mrb[0].mxu0
        %v2352 = vadd.f32 %v2299, %v2351
        %v2353 = vpop.f32.mrb[0].mxu0
        %v2354 = vadd.f32 %v2301, %v2353
        %v2355 = vpop.f32.mrb[0].mxu0
        %v2356 = vadd.f32 %v2303, %v2355
        %v2357 = vpop.f32.mrb[0].mxu0
        %v2358 = vadd.f32 %v2305, %v2357
        %2359 = vmatprep.mubr.bf16.mxu0 %v800
        %2360 = vmatmul.mubr.bf16.gmra.mrb[0].mxu0 %v799
        %v2361 = vpop.f32.mrb[0].mxu0
        %v2362 = vadd.f32 %v2309, %v2361
        %v2363 = vpop.f32.mrb[0].mxu0
        %v2364 = vadd.f32 %v2311, %v2363
        %v2365 = vpop.f32.mrb[0].mxu0
        %v2366 = vadd.f32 %v2313, %v2365
        %v2367 = vpop.f32.mrb[0].mxu0
        %v2368 = vadd.f32 %v2315, %v2367
        %2369 = vdwg.mxu0
        %2370 = vmatprep.subr.bf16.mxu0 %v1817
        %2371 = vmatpush1.bf16.msra.mxu0 %v1816
        %2372 = vmatprep.subr.bf16.mxu0 %v1821
        %2373 = vmatpush1.bf16.msra.mxu0 %v1820
        %2374 = vmatprep.subr.bf16.mxu0 %v1825
        %2375 = vmatpush1.bf16.msra.mxu0 %v1824
        %2376 = vmatprep.subr.bf16.mxu0 %v1829
        %2377 = vmatpush1.bf16.msra.mxu0 %v1828
        %2378 = vmatprep.subr.bf16.mxu0 %v1833
        %2379 = vmatpush1.bf16.msra.mxu0 %v1832
        %2380 = vmatprep.subr.bf16.mxu0 %v1837
        %2381 = vmatpush1.bf16.msra.mxu0 %v1836
        %2382 = vmatprep.subr.bf16.mxu0 %v1841
        %2383 = vmatpush1.bf16.msra.mxu0 %v1840
        %2384 = vmatprep.subr.bf16.mxu0 %v1845
        %2385 = vmatpush1.bf16.msra.mxu0 %v1844
        %2386 = vmatprep.subr.bf16.mxu0 %v1849
        %2387 = vmatpush1.bf16.msra.mxu0 %v1848
        %2388 = vmatprep.subr.bf16.mxu0 %v1853
        %2389 = vmatpush1.bf16.msra.mxu0 %v1852
        %2390 = vmatprep.subr.bf16.mxu0 %v1857
        %2391 = vmatpush1.bf16.msra.mxu0 %v1856
        %2392 = vmatprep.subr.bf16.mxu0 %v1861
        %2393 = vmatpush1.bf16.msra.mxu0 %v1860
        %2394 = vmatprep.subr.bf16.mxu0 %v1865
        %2395 = vmatpush1.bf16.msra.mxu0 %v1864
        %2396 = vmatprep.subr.bf16.mxu0 %v1869
        %2397 = vmatpush1.bf16.msra.mxu0 %v1868
        %2398 = vmatprep.subr.bf16.mxu0 %v1873
        %2399 = vmatpush1.bf16.msra.mxu0 %v1872
        %2400 = vmatprep.subr.bf16.mxu0 %v1877
        %2401 = vmatpush1.bf16.msra.mxu0 %v1876
        %2402 = vmatprep.mubr.bf16.mxu0 %v793
        %2403 = vmatmul.mubr.bf16.gmra.mrb[0].mxu0 %v792
        %v2404 = vpop.f32.mrb[0].mxu0
        %v2405 = vadd.f32 %v2352, %v2404
        %v2406 = vpop.f32.mrb[0].mxu0
        %v2407 = vadd.f32 %v2354, %v2406
        %v2408 = vpop.f32.mrb[0].mxu0
        %v2409 = vadd.f32 %v2356, %v2408
        %v2410 = vpop.f32.mrb[0].mxu0
        %v2411 = vadd.f32 %v2358, %v2410
        %2412 = vmatprep.mubr.bf16.mxu0 %v802
        %2413 = vmatmul.mubr.bf16.gmra.mrb[0].mxu0 %v801
        %v2414 = vpop.f32.mrb[0].mxu0
        %v2415 = vadd.f32 %v2362, %v2414
        %v2416 = vpop.f32.mrb[0].mxu0
        %v2417 = vadd.f32 %v2364, %v2416
        %v2418 = vpop.f32.mrb[0].mxu0
        %v2419 = vadd.f32 %v2366, %v2418
        %v2420 = vpop.f32.mrb[0].mxu0
        %v2421 = vadd.f32 %v2368, %v2420
        %2422 = vdwg.mxu0
        %2423 = vmatprep.subr.bf16.mxu0 %v1881
        %2424 = vmatpush1.bf16.msra.mxu0 %v1880
        %2425 = vmatprep.subr.bf16.mxu0 %v1885
        %2426 = vmatpush1.bf16.msra.mxu0 %v1884
        %2427 = vmatprep.subr.bf16.mxu0 %v1889
        %2428 = vmatpush1.bf16.msra.mxu0 %v1888
        %2429 = vmatprep.subr.bf16.mxu0 %v1893
        %2430 = vmatpush1.bf16.msra.mxu0 %v1892
        %2431 = vmatprep.subr.bf16.mxu0 %v1897
        %2432 = vmatpush1.bf16.msra.mxu0 %v1896
        %2433 = vmatprep.subr.bf16.mxu0 %v1901
        %2434 = vmatpush1.bf16.msra.mxu0 %v1900
        %2435 = vmatprep.subr.bf16.mxu0 %v1905
        %2436 = vmatpush1.bf16.msra.mxu0 %v1904
        %2437 = vmatprep.subr.bf16.mxu0 %v1909
        %2438 = vmatpush1.bf16.msra.mxu0 %v1908
        %2439 = vmatprep.subr.bf16.mxu0 %v1913
        %2440 = vmatpush1.bf16.msra.mxu0 %v1912
        %2441 = vmatprep.subr.bf16.mxu0 %v1917
        %2442 = vmatpush1.bf16.msra.mxu0 %v1916
        %2443 = vmatprep.subr.bf16.mxu0 %v1921
        %2444 = vmatpush1.bf16.msra.mxu0 %v1920
        %2445 = vmatprep.subr.bf16.mxu0 %v1925
        %2446 = vmatpush1.bf16.msra.mxu0 %v1924
        %2447 = vmatprep.subr.bf16.mxu0 %v1929
        %2448 = vmatpush1.bf16.msra.mxu0 %v1928
        %2449 = vmatprep.subr.bf16.mxu0 %v1933
        %2450 = vmatpush1.bf16.msra.mxu0 %v1932
        %2451 = vmatprep.subr.bf16.mxu0 %v1937
        %2452 = vmatpush1.bf16.msra.mxu0 %v1936
        %2453 = vmatprep.subr.bf16.mxu0 %v1941
        %2454 = vmatpush1.bf16.msra.mxu0 %v1940
        %2455 = vmatprep.mubr.bf16.mxu0 %v795
        %2456 = vmatmul.mubr.bf16.gmra.mrb[0].mxu0 %v794
        %v2457 = vpop.f32.mrb[0].mxu0
        %v2458 = vadd.f32 %v2405, %v2457
        %v2459 = vpop.f32.mrb[0].mxu0
        %v2460 = vadd.f32 %v2407, %v2459
        %v2461 = vpop.f32.mrb[0].mxu0
        %v2462 = vadd.f32 %v2409, %v2461
        %v2463 = vpop.f32.mrb[0].mxu0
        %v2464 = vadd.f32 %v2411, %v2463
        %2465 = vmatprep.mubr.bf16.mxu0 %v804
        %2466 = vmatmul.mubr.bf16.gmra.mrb[0].mxu0 %v803
        %v2467 = vpop.f32.mrb[0].mxu0
        %v2468 = vadd.f32 %v2415, %v2467
        %v2469 = vpop.f32.mrb[0].mxu0
        %v2470 = vadd.f32 %v2417, %v2469
        %v2471 = vpop.f32.mrb[0].mxu0
        %v2472 = vadd.f32 %v2419, %v2471
        %v2473 = vpop.f32.mrb[0].mxu0
        %v2474 = vadd.f32 %v2421, %v2473
        %2475 = vdwg.mxu0
        %2476 = vmatprep.subr.bf16.mxu0 %v1945
        %2477 = vmatpush1.bf16.msra.mxu0 %v1944
        %2478 = vmatprep.subr.bf16.mxu0 %v1949
        %2479 = vmatpush1.bf16.msra.mxu0 %v1948
        %2480 = vmatprep.subr.bf16.mxu0 %v1953
        %2481 = vmatpush1.bf16.msra.mxu0 %v1952
        %2482 = vmatprep.subr.bf16.mxu0 %v1957
        %2483 = vmatpush1.bf16.msra.mxu0 %v1956
        %2484 = vmatprep.subr.bf16.mxu0 %v1961
        %2485 = vmatpush1.bf16.msra.mxu0 %v1960
        %2486 = vmatprep.subr.bf16.mxu0 %v1965
        %2487 = vmatpush1.bf16.msra.mxu0 %v1964
        %2488 = vmatprep.subr.bf16.mxu0 %v1969
        %2489 = vmatpush1.bf16.msra.mxu0 %v1968
        %2490 = vmatprep.subr.bf16.mxu0 %v1973
        %2491 = vmatpush1.bf16.msra.mxu0 %v1972
        %2492 = vmatprep.subr.bf16.mxu0 0
        %2493 = vmatpush1.bf16.msra.mxu0 0
        %2494 = vmatprep.subr.bf16.mxu0 0
        %2495 = vmatpush1.bf16.msra.mxu0 0
        %2496 = vmatprep.subr.bf16.mxu0 0
        %2497 = vmatpush1.bf16.msra.mxu0 0
        %2498 = vmatprep.subr.bf16.mxu0 0
        %2499 = vmatpush1.bf16.msra.mxu0 0
        %2500 = vmatprep.subr.bf16.mxu0 0
        %2501 = vmatpush1.bf16.msra.mxu0 0
        %2502 = vmatprep.subr.bf16.mxu0 0
        %2503 = vmatpush1.bf16.msra.mxu0 0
        %2504 = vmatprep.subr.bf16.mxu0 0
        %2505 = vmatpush1.bf16.msra.mxu0 0
        %2506 = vmatprep.subr.bf16.mxu0 0
        %2507 = vmatpush1.bf16.msra.mxu0 0
        %2508 = vmatprep.mubr.bf16.mxu0 0
        %2509 = vmatmul.mubr.bf16.gmra.mrb[0].mxu0 %v796
        %v2510 = vpop.f32.mrb[0].mxu0
        %v2511 = vadd.f32 %v2458, %v2510
        %v2512 = vpop.f32.mrb[0].mxu0
        %v2513 = vadd.f32 %v2460, %v2512
        %v2514 = vpop.f32.mrb[0].mxu0
        %v2515 = vadd.f32 %v2462, %v2514
        %v2516 = vpop.f32.mrb[0].mxu0
        %v2517 = vadd.f32 %v2464, %v2516
        %2518 = vmatprep.mubr.bf16.mxu0 0
        %2519 = vmatmul.mubr.bf16.gmra.mrb[0].mxu0 %v805
        %v2520 = vpop.f32.mrb[0].mxu0
        %v2521 = vadd.f32 %v2468, %v2520
        %v2522 = vpop.f32.mrb[0].mxu0
        %v2523 = vadd.f32 %v2470, %v2522
        %v2524 = vpop.f32.mrb[0].mxu0
        %v2525 = vadd.f32 %v2472, %v2524
        %v2526 = vpop.f32.mrb[0].mxu0
        %v2527 = vadd.f32 %v2474, %v2526
        %2528 = vdwg.mxu0
        %2529 = vmatprep.subr.bf16.mxu0 %v1691
        %2530 = vmatpush1.bf16.msra.mxu0 %v1690
        %2531 = vmatprep.subr.bf16.mxu0 %v1695
        %2532 = vmatpush1.bf16.msra.mxu0 %v1694
        %2533 = vmatprep.subr.bf16.mxu0 %v1699
        %2534 = vmatpush1.bf16.msra.mxu0 %v1698
        %2535 = vmatprep.subr.bf16.mxu0 %v1703
        %2536 = vmatpush1.bf16.msra.mxu0 %v1702
        %2537 = vmatprep.subr.bf16.mxu0 %v1707
        %2538 = vmatpush1.bf16.msra.mxu0 %v1706
        %2539 = vmatprep.subr.bf16.mxu0 %v1711
        %2540 = vmatpush1.bf16.msra.mxu0 %v1710
        %2541 = vmatprep.subr.bf16.mxu0 %v1715
        %2542 = vmatpush1.bf16.msra.mxu0 %v1714
        %2543 = vmatprep.subr.bf16.mxu0 %v1719
        %2544 = vmatpush1.bf16.msra.mxu0 %v1718
        %2545 = vmatprep.subr.bf16.mxu0 %v1723
        %2546 = vmatpush1.bf16.msra.mxu0 %v1722
        %2547 = vmatprep.subr.bf16.mxu0 %v1727
        %2548 = vmatpush1.bf16.msra.mxu0 %v1726
        %2549 = vmatprep.subr.bf16.mxu0 %v1731
        %2550 = vmatpush1.bf16.msra.mxu0 %v1730
        %2551 = vmatprep.subr.bf16.mxu0 %v1735
        %2552 = vmatpush1.bf16.msra.mxu0 %v1734
        %2553 = vmatprep.subr.bf16.mxu0 %v1739
        %2554 = vmatpush1.bf16.msra.mxu0 %v1738
        %2555 = vmatprep.subr.bf16.mxu0 %v1743
        %2556 = vmatpush1.bf16.msra.mxu0 %v1742
        %2557 = vmatprep.subr.bf16.mxu0 %v1747
        %2558 = vmatpush1.bf16.msra.mxu0 %v1746
        %2559 = vmatprep.subr.bf16.mxu0 %v1751
        %2560 = vmatpush1.bf16.msra.mxu0 %v1750
        %2561 = vmatprep.mubr.bf16.mxu0 %v789
        %2562 = vmatmul.mubr.bf16.gmra.mrb[0].mxu0 %v788
        %v2563 = vpop.f32.mrb[0].mxu0
        %v2564 = vadd.f32 0.0, %v2563
        %v2565 = vpop.f32.mrb[0].mxu0
        %v2566 = vadd.f32 0.0, %v2565
        %v2567 = vpop.f32.mrb[0].mxu0
        %v2568 = vadd.f32 0.0, %v2567
        %v2569 = vpop.f32.mrb[0].mxu0
        %v2570 = vadd.f32 0.0, %v2569
        %2571 = vmatprep.mubr.bf16.mxu0 %v798
        %2572 = vmatmul.mubr.bf16.gmra.mrb[0].mxu0 %v797
        %v2573 = vpop.f32.mrb[0].mxu0
        %v2574 = vadd.f32 0.0, %v2573
        %v2575 = vpop.f32.mrb[0].mxu0
        %v2576 = vadd.f32 0.0, %v2575
        %v2577 = vpop.f32.mrb[0].mxu0
        %v2578 = vadd.f32 0.0, %v2577
        %v2579 = vpop.f32.mrb[0].mxu0
        %v2580 = vadd.f32 0.0, %v2579
        %2581 = vdwg.mxu0
        %2582 = vmatprep.subr.bf16.mxu0 %v1755
        %2583 = vmatpush1.bf16.msra.mxu0 %v1754
        %2584 = vmatprep.subr.bf16.mxu0 %v1759
        %2585 = vmatpush1.bf16.msra.mxu0 %v1758
        %2586 = vmatprep.subr.bf16.mxu0 %v1763
        %2587 = vmatpush1.bf16.msra.mxu0 %v1762
        %2588 = vmatprep.subr.bf16.mxu0 %v1767
        %2589 = vmatpush1.bf16.msra.mxu0 %v1766
        %2590 = vmatprep.subr.bf16.mxu0 %v1771
        %2591 = vmatpush1.bf16.msra.mxu0 %v1770
        %2592 = vmatprep.subr.bf16.mxu0 %v1775
        %2593 = vmatpush1.bf16.msra.mxu0 %v1774
        %2594 = vmatprep.subr.bf16.mxu0 %v1779
        %2595 = vmatpush1.bf16.msra.mxu0 %v1778
        %2596 = vmatprep.subr.bf16.mxu0 %v1783
        %2597 = vmatpush1.bf16.msra.mxu0 %v1782
        %2598 = vmatprep.subr.bf16.mxu0 %v1787
        %2599 = vmatpush1.bf16.msra.mxu0 %v1786
        %2600 = vmatprep.subr.bf16.mxu0 %v1791
        %2601 = vmatpush1.bf16.msra.mxu0 %v1790
        %2602 = vmatprep.subr.bf16.mxu0 %v1795
        %2603 = vmatpush1.bf16.msra.mxu0 %v1794
        %2604 = vmatprep.subr.bf16.mxu0 %v1799
        %2605 = vmatpush1.bf16.msra.mxu0 %v1798
        %2606 = vmatprep.subr.bf16.mxu0 %v1803
        %2607 = vmatpush1.bf16.msra.mxu0 %v1802
        %2608 = vmatprep.subr.bf16.mxu0 %v1807
        %2609 = vmatpush1.bf16.msra.mxu0 %v1806
        %2610 = vmatprep.subr.bf16.mxu0 %v1811
        %2611 = vmatpush1.bf16.msra.mxu0 %v1810
        %2612 = vmatprep.subr.bf16.mxu0 %v1815
        %2613 = vmatpush1.bf16.msra.mxu0 %v1814
        %2614 = vmatprep.mubr.bf16.mxu0 %v791
        %2615 = vmatmul.mubr.bf16.gmra.mrb[0].mxu0 %v790
        %v2616 = vpop.f32.mrb[0].mxu0
        %v2617 = vadd.f32 %v2564, %v2616
        %v2618 = vpop.f32.mrb[0].mxu0
        %v2619 = vadd.f32 %v2566, %v2618
        %v2620 = vpop.f32.mrb[0].mxu0
        %v2621 = vadd.f32 %v2568, %v2620
        %v2622 = vpop.f32.mrb[0].mxu0
        %v2623 = vadd.f32 %v2570, %v2622
        %2624 = vmatprep.mubr.bf16.mxu0 %v800
        %2625 = vmatmul.mubr.bf16.gmra.mrb[0].mxu0 %v799
        %v2626 = vpop.f32.mrb[0].mxu0
        %v2627 = vadd.f32 %v2574, %v2626
        %v2628 = vpop.f32.mrb[0].mxu0
        %v2629 = vadd.f32 %v2576, %v2628
        %v2630 = vpop.f32.mrb[0].mxu0
        %v2631 = vadd.f32 %v2578, %v2630
        %v2632 = vpop.f32.mrb[0].mxu0
        %v2633 = vadd.f32 %v2580, %v2632
        %2634 = vdwg.mxu0
        %2635 = vmatprep.subr.bf16.mxu0 %v1819
        %2636 = vmatpush1.bf16.msra.mxu0 %v1818
        %2637 = vmatprep.subr.bf16.mxu0 %v1823
        %2638 = vmatpush1.bf16.msra.mxu0 %v1822
        %2639 = vmatprep.subr.bf16.mxu0 %v1827
        %2640 = vmatpush1.bf16.msra.mxu0 %v1826
        %2641 = vmatprep.subr.bf16.mxu0 %v1831
        %2642 = vmatpush1.bf16.msra.mxu0 %v1830
        %2643 = vmatprep.subr.bf16.mxu0 %v1835
        %2644 = vmatpush1.bf16.msra.mxu0 %v1834
        %2645 = vmatprep.subr.bf16.mxu0 %v1839
        %2646 = vmatpush1.bf16.msra.mxu0 %v1838
        %2647 = vmatprep.subr.bf16.mxu0 %v1843
        %2648 = vmatpush1.bf16.msra.mxu0 %v1842
        %2649 = vmatprep.subr.bf16.mxu0 %v1847
        %2650 = vmatpush1.bf16.msra.mxu0 %v1846
        %2651 = vmatprep.subr.bf16.mxu0 %v1851
        %2652 = vmatpush1.bf16.msra.mxu0 %v1850
        %2653 = vmatprep.subr.bf16.mxu0 %v1855
        %2654 = vmatpush1.bf16.msra.mxu0 %v1854
        %2655 = vmatprep.subr.bf16.mxu0 %v1859
        %2656 = vmatpush1.bf16.msra.mxu0 %v1858
        %2657 = vmatprep.subr.bf16.mxu0 %v1863
        %2658 = vmatpush1.bf16.msra.mxu0 %v1862
        %2659 = vmatprep.subr.bf16.mxu0 %v1867
        %2660 = vmatpush1.bf16.msra.mxu0 %v1866
        %2661 = vmatprep.subr.bf16.mxu0 %v1871
        %2662 = vmatpush1.bf16.msra.mxu0 %v1870
        %2663 = vmatprep.subr.bf16.mxu0 %v1875
        %2664 = vmatpush1.bf16.msra.mxu0 %v1874
        %2665 = vmatprep.subr.bf16.mxu0 %v1879
        %2666 = vmatpush1.bf16.msra.mxu0 %v1878
        %2667 = vmatprep.mubr.bf16.mxu0 %v793
        %2668 = vmatmul.mubr.bf16.gmra.mrb[0].mxu0 %v792
        %v2669 = vpop.f32.mrb[0].mxu0
        %v2670 = vadd.f32 %v2617, %v2669
        %v2671 = vpop.f32.mrb[0].mxu0
        %v2672 = vadd.f32 %v2619, %v2671
        %v2673 = vpop.f32.mrb[0].mxu0
        %v2674 = vadd.f32 %v2621, %v2673
        %v2675 = vpop.f32.mrb[0].mxu0
        %v2676 = vadd.f32 %v2623, %v2675
        %2677 = vmatprep.mubr.bf16.mxu0 %v802
        %2678 = vmatmul.mubr.bf16.gmra.mrb[0].mxu0 %v801
        %v2679 = vpop.f32.mrb[0].mxu0
        %v2680 = vadd.f32 %v2627, %v2679
        %v2681 = vpop.f32.mrb[0].mxu0
        %v2682 = vadd.f32 %v2629, %v2681
        %v2683 = vpop.f32.mrb[0].mxu0
        %v2684 = vadd.f32 %v2631, %v2683
        %v2685 = vpop.f32.mrb[0].mxu0
        %v2686 = vadd.f32 %v2633, %v2685
        %2687 = vdwg.mxu0
        %2688 = vmatprep.subr.bf16.mxu0 %v1883
        %2689 = vmatpush1.bf16.msra.mxu0 %v1882
        %2690 = vmatprep.subr.bf16.mxu0 %v1887
        %2691 = vmatpush1.bf16.msra.mxu0 %v1886
        %2692 = vmatprep.subr.bf16.mxu0 %v1891
        %2693 = vmatpush1.bf16.msra.mxu0 %v1890
        %2694 = vmatprep.subr.bf16.mxu0 %v1895
        %2695 = vmatpush1.bf16.msra.mxu0 %v1894
        %2696 = vmatprep.subr.bf16.mxu0 %v1899
        %2697 = vmatpush1.bf16.msra.mxu0 %v1898
        %2698 = vmatprep.subr.bf16.mxu0 %v1903
        %2699 = vmatpush1.bf16.msra.mxu0 %v1902
        %2700 = vmatprep.subr.bf16.mxu0 %v1907
        %2701 = vmatpush1.bf16.msra.mxu0 %v1906
        %2702 = vmatprep.subr.bf16.mxu0 %v1911
        %2703 = vmatpush1.bf16.msra.mxu0 %v1910
        %2704 = vmatprep.subr.bf16.mxu0 %v1915
        %2705 = vmatpush1.bf16.msra.mxu0 %v1914
        %2706 = vmatprep.subr.bf16.mxu0 %v1919
        %2707 = vmatpush1.bf16.msra.mxu0 %v1918
        %2708 = vmatprep.subr.bf16.mxu0 %v1923
        %2709 = vmatpush1.bf16.msra.mxu0 %v1922
        %2710 = vmatprep.subr.bf16.mxu0 %v1927
        %2711 = vmatpush1.bf16.msra.mxu0 %v1926
        %2712 = vmatprep.subr.bf16.mxu0 %v1931
        %2713 = vmatpush1.bf16.msra.mxu0 %v1930
        %2714 = vmatprep.subr.bf16.mxu0 %v1935
        %2715 = vmatpush1.bf16.msra.mxu0 %v1934
        %2716 = vmatprep.subr.bf16.mxu0 %v1939
        %2717 = vmatpush1.bf16.msra.mxu0 %v1938
        %2718 = vmatprep.subr.bf16.mxu0 %v1943
        %2719 = vmatpush1.bf16.msra.mxu0 %v1942
        %2720 = vmatprep.mubr.bf16.mxu0 %v795
        %2721 = vmatmul.mubr.bf16.gmra.mrb[0].mxu0 %v794
        %v2722 = vpop.f32.mrb[0].mxu0
        %v2723 = vadd.f32 %v2670, %v2722
        %v2724 = vpop.f32.mrb[0].mxu0
        %v2725 = vadd.f32 %v2672, %v2724
        %v2726 = vpop.f32.mrb[0].mxu0
        %v2727 = vadd.f32 %v2674, %v2726
        %v2728 = vpop.f32.mrb[0].mxu0
        %v2729 = vadd.f32 %v2676, %v2728
        %2730 = vmatprep.mubr.bf16.mxu0 %v804
        %2731 = vmatmul.mubr.bf16.gmra.mrb[0].mxu0 %v803
        %v2732 = vpop.f32.mrb[0].mxu0
        %v2733 = vadd.f32 %v2680, %v2732
        %v2734 = vpop.f32.mrb[0].mxu0
        %v2735 = vadd.f32 %v2682, %v2734
        %v2736 = vpop.f32.mrb[0].mxu0
        %v2737 = vadd.f32 %v2684, %v2736
        %v2738 = vpop.f32.mrb[0].mxu0
        %v2739 = vadd.f32 %v2686, %v2738
        %2740 = vdwg.mxu0
        %2741 = vmatprep.subr.bf16.mxu0 %v1947
        %2742 = vmatpush1.bf16.msra.mxu0 %v1946
        %2743 = vmatprep.subr.bf16.mxu0 %v1951
        %2744 = vmatpush1.bf16.msra.mxu0 %v1950
        %2745 = vmatprep.subr.bf16.mxu0 %v1955
        %2746 = vmatpush1.bf16.msra.mxu0 %v1954
        %2747 = vmatprep.subr.bf16.mxu0 %v1959
        %2748 = vmatpush1.bf16.msra.mxu0 %v1958
        %2749 = vmatprep.subr.bf16.mxu0 %v1963
        %2750 = vmatpush1.bf16.msra.mxu0 %v1962
        %2751 = vmatprep.subr.bf16.mxu0 %v1967
        %2752 = vmatpush1.bf16.msra.mxu0 %v1966
        %2753 = vmatprep.subr.bf16.mxu0 %v1971
        %2754 = vmatpush1.bf16.msra.mxu0 %v1970
        %2755 = vmatprep.subr.bf16.mxu0 %v1975
        %2756 = vmatpush1.bf16.msra.mxu0 %v1974
        %2757 = vmatprep.subr.bf16.mxu0 0
        %2758 = vmatpush1.bf16.msra.mxu0 0
        %2759 = vmatprep.subr.bf16.mxu0 0
        %2760 = vmatpush1.bf16.msra.mxu0 0
        %2761 = vmatprep.subr.bf16.mxu0 0
        %2762 = vmatpush1.bf16.msra.mxu0 0
        %2763 = vmatprep.subr.bf16.mxu0 0
        %2764 = vmatpush1.bf16.msra.mxu0 0
        %2765 = vmatprep.subr.bf16.mxu0 0
        %2766 = vmatpush1.bf16.msra.mxu0 0
        %2767 = vmatprep.subr.bf16.mxu0 0
        %2768 = vmatpush1.bf16.msra.mxu0 0
        %2769 = vmatprep.subr.bf16.mxu0 0
        %2770 = vmatpush1.bf16.msra.mxu0 0
        %2771 = vmatprep.subr.bf16.mxu0 0
        %2772 = vmatpush1.bf16.msra.mxu0 0
        %2773 = vmatprep.mubr.bf16.mxu0 0
        %2774 = vmatmul.mubr.bf16.gmra.mrb[0].mxu0 %v796
        %v2775 = vpop.f32.mrb[0].mxu0
        %v2776 = vadd.f32 %v2723, %v2775
        %v2777 = vpop.f32.mrb[0].mxu0
        %v2778 = vadd.f32 %v2725, %v2777
        %v2779 = vpop.f32.mrb[0].mxu0
        %v2780 = vadd.f32 %v2727, %v2779
        %v2781 = vpop.f32.mrb[0].mxu0
        %v2782 = vadd.f32 %v2729, %v2781
        %2783 = vmatprep.mubr.bf16.mxu0 0
        %2784 = vmatmul.mubr.bf16.gmra.mrb[0].mxu0 %v805
        %v2785 = vpop.f32.mrb[0].mxu0
        %v2786 = vadd.f32 %v2733, %v2785
        %v2787 = vpop.f32.mrb[0].mxu0
        %v2788 = vadd.f32 %v2735, %v2787
        %v2789 = vpop.f32.mrb[0].mxu0
        %v2790 = vadd.f32 %v2737, %v2789
        %v2791 = vpop.f32.mrb[0].mxu0
        %v2792 = vadd.f32 %v2739, %v2791
        %2793 = vdwg.mxu0
        %v2794 = vadd.f32 %v696, %v2511
        %v2795 = vadd.f32 %v697, %v2513
        %v2796 = vadd.f32 %v698, %v2776
        %v2797 = vadd.f32 %v699, %v2778
        %v2798 = vadd.f32 %v700, %v2515
        %v2799 = vadd.f32 %v701, %v2517
        %v2800 = vadd.f32 %v702, %v2780
        %v2801 = vadd.f32 %v703, %v2782
        %v2802 = vadd.f32 %v704, %v2521
        %v2803 = vadd.f32 %v705, %v2523
        %v2804 = vadd.f32 %v706, %v2786
        %v2805 = vadd.f32 %v707, %v2788
        %v2806 = vadd.f32 %v708, %v2525
        %v2807 = vadd.f32 %v709, %v2527
        %v2808 = vadd.f32 %v710, %v2790
        %v2809 = vadd.f32 %v711, %v2792
        %2810 = vst [vmem:[#allocation2] sm:$0xff] %v2794
        %2811 = vst [vmem:[#allocation2 + $0x8] sm:$0xff] %v2795
        %2812 = vst [vmem:[#allocation2 + $0x10] sm:$0xff] %v2796
        %2813 = vst [vmem:[#allocation2 + $0x18] sm:$0xff] %v2797
        %2814 = vst [vmem:[#allocation2 + $0x20] sm:$0xff] %v2798
        %2815 = vst [vmem:[#allocation2 + $0x28] sm:$0xff] %v2799
        %2816 = vst [vmem:[#allocation2 + $0x30] sm:$0xff] %v2800
        %2817 = vst [vmem:[#allocation2 + $0x38] sm:$0xff] %v2801
        %2818 = vst [vmem:[#allocation2 + $0x40] sm:$0xff] %v2802
        %2819 = vst [vmem:[#allocation2 + $0x48] sm:$0xff] %v2803
        %2820 = vst [vmem:[#allocation2 + $0x50] sm:$0xff] %v2804
        %2821 = vst [vmem:[#allocation2 + $0x58] sm:$0xff] %v2805
        %2822 = vst [vmem:[#allocation2 + $0x60] sm:$0xff] %v2806
        %2823 = vst [vmem:[#allocation2 + $0x68] sm:$0xff] %v2807
        %2824 = vst [vmem:[#allocation2 + $0x70] sm:$0xff] %v2808
        %2825 = vst [vmem:[#allocation2 + $0x78] sm:$0xff] %v2809
        %p2826 = scmp.eq.s32.totalorder %s22, 3
        // Predicated region
        $region67: #{_forward_core.7} parent=57 // pred_check
          %p2827 = pneg %p2826
        $region68: #{_forward_core.7} parent=57 // pred_check_branch
          %2829 = sbr.rel (%p2827) target = $region70
        $region69: #{_forward_core.7} parent=57 // pred_region
          %v2830 = vld [vmem:[#allocation2] sm:$0xff]
          %v2831 = vld [vmem:[#allocation2 + $0x8] sm:$0xff]
          %v2832 = vld [vmem:[#allocation2 + $0x10] sm:$0xff]
          %v2833 = vld [vmem:[#allocation2 + $0x18] sm:$0xff]
          %v2834 = vld [vmem:[#allocation2 + $0x20] sm:$0xff]
          %v2835 = vld [vmem:[#allocation2 + $0x28] sm:$0xff]
          %v2836 = vld [vmem:[#allocation2 + $0x30] sm:$0xff]
          %v2837 = vld [vmem:[#allocation2 + $0x38] sm:$0xff]
          %v2838 = vld [vmem:[#allocation2 + $0x40] sm:$0xff]
          %v2839 = vld [vmem:[#allocation2 + $0x48] sm:$0xff]
          %v2840 = vld [vmem:[#allocation2 + $0x50] sm:$0xff]
          %v2841 = vld [vmem:[#allocation2 + $0x58] sm:$0xff]
          %v2842 = vld [vmem:[#allocation2 + $0x60] sm:$0xff]
          %v2843 = vld [vmem:[#allocation2 + $0x68] sm:$0xff]
          %v2844 = vld [vmem:[#allocation2 + $0x70] sm:$0xff]
          %v2845 = vld [vmem:[#allocation2 + $0x78] sm:$0xff]
          %v2846 = vld [vmem:[%s367] sm:$0xf]
          %v2848 = vlaneseq
          %v2849 = vshrl.u32 %v2848, 7
          %v2850 = vsub.s32 0, %v2849
          %v2851 = vrot.slane %v2846, %v2850
          %v2852 = vlaneseq
          %v2853 = vshrl.u32 %v2852, 7
          %v2854 = vsub.s32 1, %v2853
          %v2855 = vrot.slane %v2846, %v2854
          %v2856 = vlaneseq
          %v2857 = vshrl.u32 %v2856, 7
          %v2858 = vsub.s32 2, %v2857
          %v2859 = vrot.slane %v2846, %v2858
          %v2860 = vlaneseq
          %v2861 = vshrl.u32 %v2860, 7
          %v2862 = vsub.s32 3, %v2861
          %v2863 = vrot.slane %v2846, %v2862
          %v2868 = vadd.f32 %v2830, %v2851
          %v2869 = vadd.f32 %v2831, %v2855
          %v2870 = vadd.f32 %v2832, %v2859
          %v2871 = vadd.f32 %v2833, %v2863
          %v2872 = vadd.f32 %v2834, %v2851
          %v2873 = vadd.f32 %v2835, %v2855
          %v2874 = vadd.f32 %v2836, %v2859
          %v2875 = vadd.f32 %v2837, %v2863
          %v2876 = vadd.f32 %v2838, %v2851
          %v2877 = vadd.f32 %v2839, %v2855
          %v2878 = vadd.f32 %v2840, %v2859
          %v2879 = vadd.f32 %v2841, %v2863
          %v2880 = vadd.f32 %v2842, %v2851
          %v2881 = vadd.f32 %v2843, %v2855
          %v2882 = vadd.f32 %v2844, %v2859
          %v2883 = vadd.f32 %v2845, %v2863
          %v2884 = vmax.f32 %v2868, 0.0
          %v2885 = vmax.f32 %v2869, 0.0
          %v2886 = vmax.f32 %v2870, 0.0
          %v2887 = vmax.f32 %v2871, 0.0
          %v2888 = vmax.f32 %v2872, 0.0
          %v2889 = vmax.f32 %v2873, 0.0
          %v2890 = vmax.f32 %v2874, 0.0
          %v2891 = vmax.f32 %v2875, 0.0
          %v2892 = vmax.f32 %v2876, 0.0
          %v2893 = vmax.f32 %v2877, 0.0
          %v2894 = vmax.f32 %v2878, 0.0
          %v2895 = vmax.f32 %v2879, 0.0
          %v2896 = vmax.f32 %v2880, 0.0
          %v2897 = vmax.f32 %v2881, 0.0
          %v2898 = vmax.f32 %v2882, 0.0
          %v2899 = vmax.f32 %v2883, 0.0
          %v2900 = vld [vmem:[%s373] sm:$0xff]
          %v2901 = vld [vmem:[%s373 + $0x8] sm:$0xff]
          %v2902 = vld [vmem:[%s373 + $0x10] sm:$0xff]
          %v2903 = vld [vmem:[%s373 + $0x18] sm:$0xff]
          %2905 = vset.pattern.permute.xlu0 0
          %2906 = vperm.xlu0 %2905, %v2900
          %v2907 = vpop.permute.xlu0 %2906
          %2910 = vset.pattern.permute.xlu0 0
          %2911 = vperm.xlu0 %2910, %v2901
          %v2912 = vpop.permute.xlu0 %2911
          %2915 = vset.pattern.permute.xlu0 0
          %2916 = vperm.xlu0 %2915, %v2902
          %v2917 = vpop.permute.xlu0 %2916
          %2920 = vset.pattern.permute.xlu0 0
          %2921 = vperm.xlu0 %2920, %v2903
          %v2922 = vpop.permute.xlu0 %2921
          %v2924 = vmul.f32 %v2884, %v2907
          %v2925 = vmul.f32 %v2885, %v2907
          %v2926 = vmul.f32 %v2886, %v2907
          %v2927 = vmul.f32 %v2887, %v2907
          %v2928 = vmul.f32 %v2888, %v2912
          %v2929 = vmul.f32 %v2889, %v2912
          %v2930 = vmul.f32 %v2890, %v2912
          %v2931 = vmul.f32 %v2891, %v2912
          %v2932 = vmul.f32 %v2892, %v2917
          %v2933 = vmul.f32 %v2893, %v2917
          %v2934 = vmul.f32 %v2894, %v2917
          %v2935 = vmul.f32 %v2895, %v2917
          %v2936 = vmul.f32 %v2896, %v2922
          %v2937 = vmul.f32 %v2897, %v2922
          %v2938 = vmul.f32 %v2898, %v2922
          %v2939 = vmul.f32 %v2899, %v2922
          %v2940 = vpack.c.bf16 %v2928, %v2924
          %v2941 = vpack.c.bf16 %v2929, %v2925
          %v2942 = vpack.c.bf16 %v2930, %v2926
          %v2943 = vpack.c.bf16 %v2931, %v2927
          %v2944 = vpack.c.bf16 %v2936, %v2932
          %v2945 = vpack.c.bf16 %v2937, %v2933
          %v2946 = vpack.c.bf16 %v2938, %v2934
          %v2947 = vpack.c.bf16 %v2939, %v2935
          %v2956 = vunpack.c.l.b16 %v2940
          %v2957 = vunpack.c.l.b16 %v2941
          %v2958 = vunpack.c.l.b16 %v2942
          %v2959 = vunpack.c.l.b16 %v2943
          %v2960 = vunpack.c.h.b16 %v2940
          %v2961 = vunpack.c.h.b16 %v2941
          %v2962 = vunpack.c.h.b16 %v2942
          %v2963 = vunpack.c.h.b16 %v2943
          %v2964 = vunpack.c.l.b16 %v2944
          %v2965 = vunpack.c.l.b16 %v2945
          %v2966 = vunpack.c.l.b16 %v2946
          %v2967 = vunpack.c.l.b16 %v2947
          %v2968 = vunpack.c.h.b16 %v2944
          %v2969 = vunpack.c.h.b16 %v2945
          %v2970 = vunpack.c.h.b16 %v2946
          %v2971 = vunpack.c.h.b16 %v2947
          %v2972 = vpack.c.b16 %v2957, %v2956
          %v2973 = vpack.c.b16 %v2959, %v2958
          %v2974 = vpack.c.b16 %v2961, %v2960
          %v2975 = vpack.c.b16 %v2963, %v2962
          %v2976 = vpack.c.b16 %v2965, %v2964
          %v2977 = vpack.c.b16 %v2967, %v2966
          %v2978 = vpack.c.b16 %v2969, %v2968
          %v2979 = vpack.c.b16 %v2971, %v2970
          %2988 = vst [vmem:[%s384] sm:$0xff] %v2972
          %2989 = vst [vmem:[%s384 + $0x8] sm:$0xff] %v2973
          %2990 = vst [vmem:[%s384 + $0x10] sm:$0xff] %v2974
          %2991 = vst [vmem:[%s384 + $0x18] sm:$0xff] %v2975
          %2992 = vst [vmem:[%s384 + $0x20] sm:$0xff] %v2976
          %2993 = vst [vmem:[%s384 + $0x28] sm:$0xff] %v2977
          %2994 = vst [vmem:[%s384 + $0x30] sm:$0xff] %v2978
          %2995 = vst [vmem:[%s384 + $0x38] sm:$0xff] %v2979
        $region70: #{_forward_core.7} parent=57 // pred_fallthru
          _
        %s2996 = smul.u32 4, %s20
        %s2997 = smul.u32 4, %s21
        %p2998 = scmp.lt.s32.totalorder %s2996, 3
        %s2999 = scalar_select %p2998, %s2996, 3
        %p3000 = scmp.lt.s32.totalorder %s2997, 3
        %s3001 = scalar_select %p3000, %s2997, 3
        %s3002 = smul.addr %s2999, 4
        %s3003 = sadd.s32 %s3001, %s3002
        %s3004 = smul.addr %s3003, 4
        %s3005 = scalar_lea.vmem %s4, %s3004
        // Predicated region
        $region71: #{_forward_core.7} parent=57 // pred_check
          %p3006 = pneg %p162
        $region72: #{_forward_core.7} parent=57 // pred_check_branch
          %3008 = sbr.rel (%p3006) target = $region74
        $region73: #{_forward_core.7} parent=57 // pred_region
          %s3009 = smul.u32 4, %s20
          %s3010 = smul.u32 4, %s21
        $region74: #{_forward_core.7} parent=57 // pred_fallthru
          _
        // Predicated region
        $region75: #{_forward_core.7} parent=57 // pred_check
          %p3011 = pneg %p162
        $region76: #{_forward_core.7} parent=57 // pred_check_branch
          %3013 = sbr.rel (%p3011) target = $region78
        $region77: #{_forward_core.7} parent=57 // pred_region
          %s3014 = smul.u32 4, %s20
          %s3015 = smul.u32 4, %s21
          %p3016 = scmp.lt.s32.totalorder %s3014, 3
          %s3017 = scalar_select %p3016, %s3014, 3
          %p3018 = scmp.lt.s32.totalorder %s3015, 3
          %s3019 = scalar_select %p3018, %s3015, 3
          %s3020 = smul.addr %s3017, 4
          %s3021 = sadd.s32 %s3019, %s3020
          %s3022 = smul.addr %s3021, 4
          %s3023 = scalar_lea.vmem %s4, %s3022
        $region78: #{_forward_core.7} parent=57 // pred_fallthru
          _
      $region58: #{_forward_core.7} parent=5 // pred_fallthru
        _
      %p3024 = scmp.le.s32.totalorder 2, %s10
      // Predicated region
      $region79: #{_forward_core.7} parent=5 // pred_check
        %p3025 = pneg %p3024
      $region80: #{_forward_core.7} parent=5 // pred_check_branch
        %3027 = sbr.rel (%p3025) target = $region82
      $region81: #{_forward_core.7} parent=5 // pred_region
        %s3028 = ssub.s32 %s10, 2
      $region82: #{_forward_core.7} parent=5 // pred_fallthru
        _
    $region6: #{_forward_core.7} parent=1 // loop_footer
      %s14 = sadd.s32 1, %s10
    $region7: #{_forward_core.7} parent=1 // loop_footer_branch
      %9 = sbr.rel target = $region3
    $region8: #{_forward_core.7} parent=1 // loop_exit
      _

// kernel: _forward_core.6
$region0: #{_forward_core.6}
  #allocation0 [shape = 'u32[]', space=smem, size = 0x4, offset = 0x4, fixed_abs, tag = 'smem constant byte address 0x4 - core index']
  #allocation1 [shape = 'u32[144,128]{1,0:T(1,128)}', space=vmem, size = 0x12000, scoped, tag = 'internal scratch']
  #allocation2 [shape = 'f32[32,512]{1,0:T(8,128)}', space=vmem, size = 0x10000, scoped, tag = 'scratch operand']
  %s0 = inlined_call_operand.vmem [shape: bf16[32,4608], index: 0, kind: input, shape index: {}]
  %s1 = inlined_call_operand.vmem [shape: bf16[4608,512], index: 1, kind: input, shape index: {}]
  %s2 = inlined_call_operand.vmem [shape: f32[1,512], index: 2, kind: input, shape index: {}]
  %s3 = inlined_call_operand.vmem [shape: f32[32,1], index: 3, kind: input, shape index: {}]
  %s4 = inlined_call_operand.vmem [shape: bf16[32,512], index: 4, kind: input, shape index: {}]
  %s5 = inlined_call_operand.vmem [shape: bf16[32,512], index: 5, kind: output, shape index: {}]
  %s6 = sld [smem:[#allocation0]]
  $region87: #{_forward_core.6} parent=0
    _
  %s8 = ssub.s32 1, %s6
  %s9 = scalar_select 0, %s8, %s6
  $region1: #{_forward_core.6} parent=0
    #allocation3 [shape = 'u8[147456]{0}', space=vmem, size = 0x24000, scoped, tag = 'input window, operand 0']
    loop: start=0, step=1, limit=6
    $region2: #{_forward_core.6} parent=1 // loop_pre_header
      _
    $region3: #{_forward_core.6} parent=1 // loop_header
      %s11 = sphi 0, %s15
      %p12 = scmp.ge.s32.totalorder %s11, 6
      %s18 = sphi 0, %s37
      %s19 = sphi 0, %s33
      %s20 = sphi 0, %s29
      %s21 = sphi 0, %s18
      %s22 = sphi 0, %s19
      %s23 = sphi 0, %s20
      %s24 = sphi 0, %s21
      %s25 = sphi 0, %s22
      %s26 = sphi 0, %s23
      %s42 = sphi 0, %s44
      %s45 = sphi 0, %s42
      %s46 = sphi 0, %s45
      %s62 = sphi 0, %s46
      %s70 = sphi 0, %s72
      %s73 = sphi 0, %s70
      %s74 = sphi 0, %s73
      %s90 = sphi 0, %s74
      %s96 = sphi 0, %s98
      %s99 = sphi 0, %s96
      %s100 = sphi 0, %s99
      %s116 = sphi 0, %s100
      %s122 = sphi 0, %s124
      %s125 = sphi 0, %s122
      %s126 = sphi 0, %s125
      %s142 = sphi 0, %s126
      %s150 = sphi 0, %s152
      %s153 = sphi 0, %s150
      %s154 = sphi 0, %s153
      %s170 = sphi 0, %s154
      %s178 = sphi 0, %s180
      %s181 = sphi 0, %s178
      %s182 = sphi 0, %s181
      %s198 = sphi 0, %s182
    $region4: #{_forward_core.6} parent=1 // loop_header_branch
      %14 = sbr.rel (%p12) target = $region8
    $region5: #{_forward_core.6} parent=1 // loop_body
      %s16 = ssub.s32 %s11, 1
      %s17 = ssub.s32 %s11, 2
      %s27 = sadd.s32 1, %s20
      %p28 = scmp.ge.s32.totalorder %s27, 4
      %s29 = scalar_select %p28, 0, %s27
      %s30 = sadd.s32 1, %s19
      %s31 = scalar_select %p28, %s30, %s19
      %p32 = scmp.ge.s32.totalorder %s31, 1
      %s33 = scalar_select %p32, 0, %s31
      %s34 = sadd.s32 1, %s18
      %s35 = scalar_select %p32, %s34, %s18
      %p36 = scmp.ge.s32.totalorder %s35, 1
      %s37 = scalar_select %p36, 0, %s35
      %s38 = ssub.s32 %s18, %s37
      %s39 = ssub.s32 %s20, %s29
      %s40 = sor.u32 %s38, %s39
      %p41 = scmp.eq.s32.totalorder %s40, 0
      %s43 = sadd.s32 %s42, 1
      %s44 = scalar_select %p41, %s42, %s43
      %p47 = pneg %p41
      %p48 = scmp.eq.s32.totalorder %s11, 3
      %p49 = por %p47, %p48
      %p50 = scmp.ne.s32.totalorder %s42, %s45
      %p51 = scmp.eq.s32.totalorder %s11, 0
      %p52 = por %p50, %p51
      %p53 = scmp.ne.s32.totalorder %s42, %s45
      %p54 = scmp.eq.s32.totalorder %s16, 3
      %p55 = por %p53, %p54
      %p56 = scmp.ne.s32.totalorder %s45, %s46
      %p57 = scmp.eq.s32.totalorder %s16, 0
      %p58 = por %p56, %p57
      %p59 = scmp.ne.s32.totalorder %s45, %s46
      %p60 = scmp.eq.s32.totalorder %s17, 3
      %p61 = por %p59, %p60
      %p63 = scmp.ne.s32.totalorder %s46, %s62
      %p64 = scmp.eq.s32.totalorder %s17, 0
      %p65 = por %p63, %p64
      %s66 = ssub.s32 %s20, %s29
      %s67 = ssub.s32 %s19, %s33
      %s68 = sor.u32 %s66, %s67
      %p69 = scmp.eq.s32.totalorder %s68, 0
      %s71 = sadd.s32 %s70, 1
      %s72 = scalar_select %p69, %s70, %s71
      %p75 = pneg %p69
      %p76 = scmp.eq.s32.totalorder %s11, 3
      %p77 = por %p75, %p76
      %p78 = scmp.ne.s32.totalorder %s70, %s73
      %p79 = scmp.eq.s32.totalorder %s11, 0
      %p80 = por %p78, %p79
      %p81 = scmp.ne.s32.totalorder %s70, %s73
      %p82 = scmp.eq.s32.totalorder %s16, 3
      %p83 = por %p81, %p82
      %p84 = scmp.ne.s32.totalorder %s73, %s74
      %p85 = scmp.eq.s32.totalorder %s16, 0
      %p86 = por %p84, %p85
      %p87 = scmp.ne.s32.totalorder %s73, %s74
      %p88 = scmp.eq.s32.totalorder %s17, 3
      %p89 = por %p87, %p88
      %p91 = scmp.ne.s32.totalorder %s74, %s90
      %p92 = scmp.eq.s32.totalorder %s17, 0
      %p93 = por %p91, %p92
      %s94 = ssub.s32 %s19, %s33
      %p95 = scmp.eq.s32.totalorder %s94, 0
      %s97 = sadd.s32 %s96, 1
      %s98 = scalar_select %p95, %s96, %s97
      %p101 = pneg %p95
      %p102 = scmp.eq.s32.totalorder %s11, 3
      %p103 = por %p101, %p102
      %p104 = scmp.ne.s32.totalorder %s96, %s99
      %p105 = scmp.eq.s32.totalorder %s11, 0
      %p106 = por %p104, %p105
      %p107 = scmp.ne.s32.totalorder %s96, %s99
      %p108 = scmp.eq.s32.totalorder %s16, 3
      %p109 = por %p107, %p108
      %p110 = scmp.ne.s32.totalorder %s99, %s100
      %p111 = scmp.eq.s32.totalorder %s16, 0
      %p112 = por %p110, %p111
      %p113 = scmp.ne.s32.totalorder %s99, %s100
      %p114 = scmp.eq.s32.totalorder %s17, 3
      %p115 = por %p113, %p114
      %p117 = scmp.ne.s32.totalorder %s100, %s116
      %p118 = scmp.eq.s32.totalorder %s17, 0
      %p119 = por %p117, %p118
      %s120 = ssub.s32 %s18, %s37
      %p121 = scmp.eq.s32.totalorder %s120, 0
      %s123 = sadd.s32 %s122, 1
      %s124 = scalar_select %p121, %s122, %s123
      %p127 = pneg %p121
      %p128 = scmp.eq.s32.totalorder %s11, 3
      %p129 = por %p127, %p128
      %p130 = scmp.ne.s32.totalorder %s122, %s125
      %p131 = scmp.eq.s32.totalorder %s11, 0
      %p132 = por %p130, %p131
      %p133 = scmp.ne.s32.totalorder %s122, %s125
      %p134 = scmp.eq.s32.totalorder %s16, 3
      %p135 = por %p133, %p134
      %p136 = scmp.ne.s32.totalorder %s125, %s126
      %p137 = scmp.eq.s32.totalorder %s16, 0
      %p138 = por %p136, %p137
      %p139 = scmp.ne.s32.totalorder %s125, %s126
      %p140 = scmp.eq.s32.totalorder %s17, 3
      %p141 = por %p139, %p140
      %p143 = scmp.ne.s32.totalorder %s126, %s142
      %p144 = scmp.eq.s32.totalorder %s17, 0
      %p145 = por %p143, %p144
      %s146 = ssub.s32 %s18, %s37
      %s147 = ssub.s32 %s19, %s33
      %s148 = sor.u32 %s146, %s147
      %p149 = scmp.eq.s32.totalorder %s148, 0
      %s151 = sadd.s32 %s150, 1
      %s152 = scalar_select %p149, %s150, %s151
      %p155 = pneg %p149
      %p156 = scmp.eq.s32.totalorder %s11, 3
      %p157 = por %p155, %p156
      %p158 = scmp.ne.s32.totalorder %s150, %s153
      %p159 = scmp.eq.s32.totalorder %s11, 0
      %p160 = por %p158, %p159
      %p161 = scmp.ne.s32.totalorder %s150, %s153
      %p162 = scmp.eq.s32.totalorder %s16, 3
      %p163 = por %p161, %p162
      %p164 = scmp.ne.s32.totalorder %s153, %s154
      %p165 = scmp.eq.s32.totalorder %s16, 0
      %p166 = por %p164, %p165
      %p167 = scmp.ne.s32.totalorder %s153, %s154
      %p168 = scmp.eq.s32.totalorder %s17, 3
      %p169 = por %p167, %p168
      %p171 = scmp.ne.s32.totalorder %s154, %s170
      %p172 = scmp.eq.s32.totalorder %s17, 0
      %p173 = por %p171, %p172
      %s174 = ssub.s32 %s18, %s37
      %s175 = ssub.s32 %s19, %s33
      %s176 = sor.u32 %s174, %s175
      %p177 = scmp.eq.s32.totalorder %s176, 0
      %s179 = sadd.s32 %s178, 1
      %s180 = scalar_select %p177, %s178, %s179
      %p183 = pneg %p177
      %p184 = scmp.eq.s32.totalorder %s11, 3
      %p185 = por %p183, %p184
      %p186 = scmp.ne.s32.totalorder %s178, %s181
      %p187 = scmp.eq.s32.totalorder %s11, 0
      %p188 = por %p186, %p187
      %p189 = scmp.ne.s32.totalorder %s178, %s181
      %p190 = scmp.eq.s32.totalorder %s16, 3
      %p191 = por %p189, %p190
      %p192 = scmp.ne.s32.totalorder %s181, %s182
      %p193 = scmp.eq.s32.totalorder %s16, 0
      %p194 = por %p192, %p193
      %p195 = scmp.ne.s32.totalorder %s181, %s182
      %p196 = scmp.eq.s32.totalorder %s17, 3
      %p197 = por %p195, %p196
      %p199 = scmp.ne.s32.totalorder %s182, %s198
      %p200 = scmp.eq.s32.totalorder %s17, 0
      %p201 = por %p199, %p200
      %p202 = scmp.le.s32.totalorder 1, %s11
      %p203 = scmp.lt.s32.totalorder %s11, 5
      %p204 = pnand %p202, %p203
      %p205 = pneg %p204
      // Predicated region
      $region9: #{_forward_core.6} parent=5 // pred_check
        _
      $region10: #{_forward_core.6} parent=5 // pred_check_branch
        %207 = sbr.rel (%p204) target = $region12
      $region11: #{_forward_core.6} parent=5 // pred_region
        %s208 = ssub.s32 %s11, 1
        // Predicated region
        $region13: #{_forward_core.6} parent=11 // pred_check
          %p209 = pneg %p112
        $region14: #{_forward_core.6} parent=11 // pred_check_branch
          %211 = sbr.rel (%p209) target = $region16
        $region15: #{_forward_core.6} parent=11 // pred_region
          %s212 = smul.u32 4, %s22
          %p213 = scmp.lt.s32.totalorder %s212, 3
          %s214 = scalar_select %p213, %s212, 3
          %s215 = scalar_lea.vmem %s2, %s214
          %s216 = smul.u32 4, %s22
        $region16: #{_forward_core.6} parent=11 // pred_fallthru
          _
        // Predicated region
        $region17: #{_forward_core.6} parent=11 // pred_check
          %p217 = pneg %p138
        $region18: #{_forward_core.6} parent=11 // pred_check_branch
          %219 = sbr.rel (%p217) target = $region20
        $region19: #{_forward_core.6} parent=11 // pred_region
          %s220 = smul.u32 4, %s21
          %p221 = scmp.lt.s32.totalorder %s220, 3
          %s222 = scalar_select %p221, %s220, 3
          %s223 = smul.addr %s222, 8
          %s224 = scalar_lea.vmem %s3, %s223
          %s225 = smul.u32 4, %s21
        $region20: #{_forward_core.6} parent=11 // pred_fallthru
          _
        // Predicated region
        $region21: #{_forward_core.6} parent=11 // pred_check
          %p226 = pneg %p166
        $region22: #{_forward_core.6} parent=11 // pred_check_branch
          %228 = sbr.rel (%p226) target = $region24
        $region23: #{_forward_core.6} parent=11 // pred_region
          %s229 = smul.u32 4, %s21
          %s230 = smul.u32 4, %s22
          %p231 = scmp.lt.s32.totalorder %s229, 3
          %s232 = scalar_select %p231, %s229, 3
          %p233 = scmp.lt.s32.totalorder %s230, 3
          %s234 = scalar_select %p233, %s230, 3
          %s235 = smul.addr %s232, 4
          %s236 = sadd.s32 %s234, %s235
          %s237 = smul.addr %s236, 4
          %s238 = scalar_lea.vmem %s4, %s237
          %s239 = smul.u32 4, %s21
          %s240 = smul.u32 4, %s22
        $region24: #{_forward_core.6} parent=11 // pred_fallthru
          _
      $region12: #{_forward_core.6} parent=5 // pred_fallthru
        _
      %p241 = scmp.lt.s32.totalorder %s11, 4
      // Predicated region
      $region25: #{_forward_core.6} parent=5 // pred_check
        %p242 = pneg %p241
      $region26: #{_forward_core.6} parent=5 // pred_check_branch
        %244 = sbr.rel (%p242) target = $region28
      $region27: #{_forward_core.6} parent=5 // pred_region
        // Predicated region
        $region29: #{_forward_core.6} parent=27 // pred_check
          %p245 = pneg %p52
        $region30: #{_forward_core.6} parent=27 // pred_check_branch
          %247 = sbr.rel (%p245) target = $region32
        $region31: #{_forward_core.6} parent=27 // pred_region
          %s248 = sand.u32 %s42, 1
          %s249 = sand.u32 %s42, 1
          %s250 = smul.addr %s249, 144
          %s251 = scalar_lea.vmem [#allocation3], %s250
          %s252 = smul.u32 4, %s18
          %s253 = smul.u32 9, %s20
          %s254 = smul.addr %s252, 36
          %s255 = sadd.s32 %s253, %s254
          %s256 = smul.addr %s255, 4
          %s257 = scalar_lea.vmem %s0, %s256
          // Predicated region
          $region33: #{_forward_core.6} parent=31 // pred_check
            _
          $region34: #{_forward_core.6} parent=31 // pred_check_branch
            %259 = sbr.rel (0) target = $region36
          $region35: #{_forward_core.6} parent=31 // pred_region
            // Predicated region
            $region37: #{_forward_core.6} parent=35 // pred_check
              _
            $region38: #{_forward_core.6} parent=35 // pred_check_branch
              %261 = sbr.rel (0) target = $region40
            $region39: #{_forward_core.6} parent=35 // pred_region
              %s262 = scalar_lea.vmem %s257, 32
              %s263 = scalar_lea.vmem %s251, 32 [#allocation3]
              loop: start=0, step=1, limit=1
              $region41: #{_forward_core.6} parent=39 // loop_pre_header
                _
              $region42: #{_forward_core.6} parent=39 // loop_header
                %s265 = sphi 0, %s269
                %p266 = scmp.ge.s32.totalorder %s265, 1
                %s270 = sphi %s257, %s257
                %s271 = sphi %s251, %s251
              $region43: #{_forward_core.6} parent=39 // loop_header_branch
                %268 = sbr.rel (%p266) target = $region47
              $region44: #{_forward_core.6} parent=39 // loop_body
                %v272 = vld [vmem:[%s270] sm:$0xff]
                %273 = vst [vmem:[%s271] sm:$0xff] %v272
                %v274 = vld [vmem:[%s270 + $0x8] sm:$0xff]
                %275 = vst [vmem:[%s271 + $0x8] sm:$0xff] %v274
                %v276 = vld [vmem:[%s270 + $0x10] sm:$0xff]
                %277 = vst [vmem:[%s271 + $0x10] sm:$0xff] %v276
                %v278 = vld [vmem:[%s270 + $0x18] sm:$0xff]
                %279 = vst [vmem:[%s271 + $0x18] sm:$0xff] %v278
                %v280 = vld [vmem:[%s270 + $0x90] sm:$0xff]
                %281 = vst [vmem:[%s271 + $0x24] sm:$0xff] %v280
                %v282 = vld [vmem:[%s270 + $0x98] sm:$0xff]
                %283 = vst [vmem:[%s271 + $0x2c] sm:$0xff] %v282
                %v284 = vld [vmem:[%s270 + $0xa0] sm:$0xff]
                %285 = vst [vmem:[%s271 + $0x34] sm:$0xff] %v284
                %v286 = vld [vmem:[%s270 + $0xa8] sm:$0xff]
                %287 = vst [vmem:[%s271 + $0x3c] sm:$0xff] %v286
                %v288 = vld [vmem:[%s270 + $0x120] sm:$0xff]
                %289 = vst [vmem:[%s271 + $0x48] sm:$0xff] %v288
                %v290 = vld [vmem:[%s270 + $0x128] sm:$0xff]
                %291 = vst [vmem:[%s271 + $0x50] sm:$0xff] %v290
                %v292 = vld [vmem:[%s270 + $0x130] sm:$0xff]
                %293 = vst [vmem:[%s271 + $0x58] sm:$0xff] %v292
                %v294 = vld [vmem:[%s270 + $0x138] sm:$0xff]
                %295 = vst [vmem:[%s271 + $0x60] sm:$0xff] %v294
                %v296 = vld [vmem:[%s270 + $0x1b0] sm:$0xff]
                %297 = vst [vmem:[%s271 + $0x6c] sm:$0xff] %v296
                %v298 = vld [vmem:[%s270 + $0x1b8] sm:$0xff]
                %299 = vst [vmem:[%s271 + $0x74] sm:$0xff] %v298
                %v300 = vld [vmem:[%s270 + $0x1c0] sm:$0xff]
                %301 = vst [vmem:[%s271 + $0x7c] sm:$0xff] %v300
                %v302 = vld [vmem:[%s270 + $0x1c8] sm:$0xff]
                %303 = vst [vmem:[%s271 + $0x84] sm:$0xff] %v302
              $region45: #{_forward_core.6} parent=39 // loop_footer
                %s269 = sadd.s32 1, %s265
              $region46: #{_forward_core.6} parent=39 // loop_footer_branch
                %264 = sbr.rel target = $region42
              $region47: #{_forward_core.6} parent=39 // loop_exit
                _
              loop: start=0, step=1, limit=1
              $region48: #{_forward_core.6} parent=39 // loop_pre_header
                _
              $region49: #{_forward_core.6} parent=39 // loop_header
                %s306 = sphi 0, %s310
                %p307 = scmp.ge.s32.totalorder %s306, 1
                %s311 = sphi %s262, %s262
                %s312 = sphi %s263, %s263
              $region50: #{_forward_core.6} parent=39 // loop_header_branch
                %309 = sbr.rel (%p307) target = $region54
              $region51: #{_forward_core.6} parent=39 // loop_body
                %v313 = vld [vmem:[%s311] sm:$0xf]
                %314 = vst [vmem:[%s312] sm:$0xf] %v313
                %v315 = vld [vmem:[%s311 + $0x90] sm:$0xf]
                %316 = vst [vmem:[%s312 + $0x24] sm:$0xf] %v315
                %v317 = vld [vmem:[%s311 + $0x120] sm:$0xf]
                %318 = vst [vmem:[%s312 + $0x48] sm:$0xf] %v317
                %v319 = vld [vmem:[%s311 + $0x1b0] sm:$0xf]
                %320 = vst [vmem:[%s312 + $0x6c] sm:$0xf] %v319
              $region52: #{_forward_core.6} parent=39 // loop_footer
                %s310 = sadd.s32 1, %s306
              $region53: #{_forward_core.6} parent=39 // loop_footer_branch
                %305 = sbr.rel target = $region49
              $region54: #{_forward_core.6} parent=39 // loop_exit
                _
            $region40: #{_forward_core.6} parent=35 // pred_fallthru
              _
          $region36: #{_forward_core.6} parent=31 // pred_fallthru
            _
          %321 = vnop
        $region32: #{_forward_core.6} parent=27 // pred_fallthru
          _
        // Predicated region
        $region55: #{_forward_core.6} parent=27 // pred_check
          %p322 = pneg %p80
        $region56: #{_forward_core.6} parent=27 // pred_check_branch
          %324 = sbr.rel (%p322) target = $region58
        $region57: #{_forward_core.6} parent=27 // pred_region
          %s325 = smul.u32 144, %s20
          %s326 = smul.u32 4, %s19
          %p327 = scmp.lt.s32.totalorder %s325, 575
          %s328 = scalar_select %p327, %s325, 575
          %p329 = scmp.lt.s32.totalorder %s326, 3
          %s330 = scalar_select %p329, %s326, 3
          %s331 = smul.addr %s328, 4
          %s332 = sadd.s32 %s330, %s331
          %s333 = smul.addr %s332, 4
          %s334 = scalar_lea.vmem %s1, %s333
          %s335 = smul.u32 144, %s20
          %s336 = smul.u32 4, %s19
        $region58: #{_forward_core.6} parent=27 // pred_fallthru
          _
      $region28: #{_forward_core.6} parent=5 // pred_fallthru
        _
      %p337 = scmp.le.s32.totalorder 1, %s11
      %p338 = scmp.lt.s32.totalorder %s11, 5
      %p339 = pnand %p337, %p338
      %p340 = pneg %p339
      // Predicated region
      $region59: #{_forward_core.6} parent=5 // pred_check
        _
      $region60: #{_forward_core.6} parent=5 // pred_check_branch
        %342 = sbr.rel (%p339) target = $region62
      $region61: #{_forward_core.6} parent=5 // pred_region
        %s343 = ssub.s32 %s11, 1
        %s344 = sand.u32 %s45, 1
        %s345 = sand.u32 %s45, 1
        %s346 = smul.addr %s345, 144
        %s347 = scalar_lea.vmem [#allocation3], %s346
        // Predicated region
        $region63: #{_forward_core.6} parent=61 // pred_check
          %p348 = pneg %p58
        $region64: #{_forward_core.6} parent=61 // pred_check_branch
          %350 = sbr.rel (%p348) target = $region66
        $region65: #{_forward_core.6} parent=61 // pred_region
          _
        $region66: #{_forward_core.6} parent=61 // pred_fallthru
          _
        %s351 = sand.u32 %s45, 1
        %s352 = sand.u32 %s45, 1
        %s353 = smul.addr %s352, 144
        %s354 = scalar_lea.vmem [#allocation3], %s353
        %p355 = pneg %p58
        %p356 = pneg %p55
        %s357 = smul.u32 144, %s23
        %s358 = smul.u32 4, %s22
        %p359 = scmp.lt.s32.totalorder %s357, 575
        %s360 = scalar_select %p359, %s357, 575
        %p361 = scmp.lt.s32.totalorder %s358, 3
        %s362 = scalar_select %p361, %s358, 3
        %s363 = smul.addr %s360, 4
        %s364 = sadd.s32 %s362, %s363
        %s365 = smul.addr %s364, 4
        %s366 = scalar_lea.vmem %s1, %s365
        %p367 = pneg %p86
        %p368 = pneg %p83
        %s369 = smul.u32 4, %s22
        %p370 = scmp.lt.s32.totalorder %s369, 3
        %s371 = scalar_select %p370, %s369, 3
        %s372 = scalar_lea.vmem %s2, %s371
        %p373 = pneg %p112
        %p374 = pneg %p109
        %s375 = smul.u32 4, %s21
        %p376 = scmp.lt.s32.totalorder %s375, 3
        %s377 = scalar_select %p376, %s375, 3
        %s378 = smul.addr %s377, 8
        %s379 = scalar_lea.vmem %s3, %s378
        %p380 = pneg %p138
        %p381 = pneg %p135
        %s382 = smul.u32 4, %s21
        %s383 = smul.u32 4, %s22
        %p384 = scmp.lt.s32.totalorder %s382, 3
        %s385 = scalar_select %p384, %s382, 3
        %p386 = scmp.lt.s32.totalorder %s383, 3
        %s387 = scalar_select %p386, %s383, 3
        %s388 = smul.addr %s385, 4
        %s389 = sadd.s32 %s387, %s388
        %s390 = smul.addr %s389, 4
        %s391 = scalar_lea.vmem %s4, %s390
        %p392 = pneg %p166
        %p393 = pneg %p163
        %p394 = pneg %p194
        %p395 = pneg %p191
        %s396 = smul.u32 4, %s21
        %s397 = smul.u32 4, %s22
        %p398 = scmp.lt.s32.totalorder %s396, 3
        %s399 = scalar_select %p398, %s396, 3
        %p400 = scmp.lt.s32.totalorder %s397, 3
        %s401 = scalar_select %p400, %s397, 3
        %s402 = smul.addr %s399, 4
        %s403 = sadd.s32 %s401, %s402
        %s404 = smul.addr %s403, 4
        %s405 = scalar_lea.vmem %s5, %s404
        %s406 = smul.u32 4, %s21
        %s407 = smul.u32 9, %s23
        %s408 = smul.u32 144, %s23
        %s409 = smul.u32 4, %s22
        %p410 = scmp.lt.s32.totalorder %s408, 575
        %s411 = scalar_select %p410, %s408, 575
        %p412 = scmp.lt.s32.totalorder %s409, 3
        %s413 = scalar_select %p412, %s409, 3
        %s414 = smul.addr %s411, 4
        %s415 = sadd.s32 %s413, %s414
        %s416 = smul.addr %s415, 4
        %s417 = scalar_lea.vmem %s1, %s416
        %s418 = smul.u32 144, %s23
        %s419 = smul.u32 4, %s22
        %s420 = smul.u32 4, %s22
        %p421 = scmp.lt.s32.totalorder %s420, 3
        %s422 = scalar_select %p421, %s420, 3
        %s423 = scalar_lea.vmem %s2, %s422
        %s424 = smul.u32 4, %s22
        %s425 = smul.u32 4, %s21
        %p426 = scmp.lt.s32.totalorder %s425, 3
        %s427 = scalar_select %p426, %s425, 3
        %s428 = smul.addr %s427, 8
        %s429 = scalar_lea.vmem %s3, %s428
        %s430 = smul.u32 4, %s21
        %s431 = smul.u32 4, %s21
        %s432 = smul.u32 4, %s22
        %p433 = scmp.lt.s32.totalorder %s431, 3
        %s434 = scalar_select %p433, %s431, 3
        %p435 = scmp.lt.s32.totalorder %s432, 3
        %s436 = scalar_select %p435, %s432, 3
        %s437 = smul.addr %s434, 4
        %s438 = sadd.s32 %s436, %s437
        %s439 = smul.addr %s438, 4
        %s440 = scalar_lea.vmem %s4, %s439
        %s441 = smul.u32 4, %s21
        %s442 = smul.u32 4, %s22
        %s443 = smul.u32 4, %s21
        %s444 = smul.u32 4, %s22
        %p445 = scmp.lt.s32.totalorder %s443, 3
        %s446 = scalar_select %p445, %s443, 3
        %p447 = scmp.lt.s32.totalorder %s444, 3
        %s448 = scalar_select %p447, %s444, 3
        %s449 = smul.addr %s446, 4
        %s450 = sadd.s32 %s448, %s449
        %s451 = smul.addr %s450, 4
        %s452 = scalar_lea.vmem %s5, %s451
        %s453 = smul.u32 4, %s21
        %s454 = smul.u32 4, %s22
        %p456 = scmp.eq.s32.totalorder %s23, 0
        // Predicated region
        $region67: #{_forward_core.6} parent=61 // pred_check
          %p457 = pneg %p456
        $region68: #{_forward_core.6} parent=61 // pred_check_branch
          %459 = sbr.rel (%p457) target = $region70
        $region69: #{_forward_core.6} parent=61 // pred_region
          %460 = vst [vmem:[#allocation2] sm:$0xff] 0.0
          %461 = vst [vmem:[#allocation2 + $0x8] sm:$0xff] 0.0
          %462 = vst [vmem:[#allocation2 + $0x10] sm:$0xff] 0.0
          %463 = vst [vmem:[#allocation2 + $0x18] sm:$0xff] 0.0
          %464 = vst [vmem:[#allocation2 + $0x20] sm:$0xff] 0.0
          %465 = vst [vmem:[#allocation2 + $0x28] sm:$0xff] 0.0
          %466 = vst [vmem:[#allocation2 + $0x30] sm:$0xff] 0.0
          %467 = vst [vmem:[#allocation2 + $0x38] sm:$0xff] 0.0
          %468 = vst [vmem:[#allocation2 + $0x40] sm:$0xff] 0.0
          %469 = vst [vmem:[#allocation2 + $0x48] sm:$0xff] 0.0
          %470 = vst [vmem:[#allocation2 + $0x50] sm:$0xff] 0.0
          %471 = vst [vmem:[#allocation2 + $0x58] sm:$0xff] 0.0
          %472 = vst [vmem:[#allocation2 + $0x60] sm:$0xff] 0.0
          %473 = vst [vmem:[#allocation2 + $0x68] sm:$0xff] 0.0
          %474 = vst [vmem:[#allocation2 + $0x70] sm:$0xff] 0.0
          %475 = vst [vmem:[#allocation2 + $0x78] sm:$0xff] 0.0
        $region70: #{_forward_core.6} parent=61 // pred_fallthru
          _
        %v476 = vld [vmem:[%s417] sm:$0xff]
        %v477 = vld [vmem:[%s417 + $0x8] sm:$0xff]
        %v478 = vld [vmem:[%s417 + $0x10] sm:$0xff]
        %v479 = vld [vmem:[%s417 + $0x18] sm:$0xff]
        %v480 = vld [vmem:[%s417 + $0x20] sm:$0xff]
        %v481 = vld [vmem:[%s417 + $0x28] sm:$0xff]
        %v482 = vld [vmem:[%s417 + $0x30] sm:$0xff]
        %v483 = vld [vmem:[%s417 + $0x38] sm:$0xff]
        %v484 = vld [vmem:[%s417 + $0x40] sm:$0xff]
        %v485 = vld [vmem:[%s417 + $0x48] sm:$0xff]
        %v486 = vld [vmem:[%s417 + $0x50] sm:$0xff]
        %v487 = vld [vmem:[%s417 + $0x58] sm:$0xff]
        %v488 = vld [vmem:[%s417 + $0x60] sm:$0xff]
        %v489 = vld [vmem:[%s417 + $0x68] sm:$0xff]
        %v490 = vld [vmem:[%s417 + $0x70] sm:$0xff]
        %v491 = vld [vmem:[%s417 + $0x78] sm:$0xff]
        %v492 = vld [vmem:[%s417 + $0x80] sm:$0xff]
        %v493 = vld [vmem:[%s417 + $0x88] sm:$0xff]
        %v494 = vld [vmem:[%s417 + $0x90] sm:$0xff]
        %v495 = vld [vmem:[%s417 + $0x98] sm:$0xff]
        %v496 = vld [vmem:[%s417 + $0xa0] sm:$0xff]
        %v497 = vld [vmem:[%s417 + $0xa8] sm:$0xff]
        %v498 = vld [vmem:[%s417 + $0xb0] sm:$0xff]
        %v499 = vld [vmem:[%s417 + $0xb8] sm:$0xff]
        %v500 = vld [vmem:[%s417 + $0xc0] sm:$0xff]
        %v501 = vld [vmem:[%s417 + $0xc8] sm:$0xff]
        %v502 = vld [vmem:[%s417 + $0xd0] sm:$0xff]
        %v503 = vld [vmem:[%s417 + $0xd8] sm:$0xff]
        %v504 = vld [vmem:[%s417 + $0xe0] sm:$0xff]
        %v505 = vld [vmem:[%s417 + $0xe8] sm:$0xff]
        %v506 = vld [vmem:[%s417 + $0xf0] sm:$0xff]
        %v507 = vld [vmem:[%s417 + $0xf8] sm:$0xff]
        %v508 = vld [vmem:[%s417 + $0x100] sm:$0xff]
        %v509 = vld [vmem:[%s417 + $0x108] sm:$0xff]
        %v510 = vld [vmem:[%s417 + $0x110] sm:$0xff]
        %v511 = vld [vmem:[%s417 + $0x118] sm:$0xff]
        %v512 = vld [vmem:[%s417 + $0x120] sm:$0xff]
        %v513 = vld [vmem:[%s417 + $0x128] sm:$0xff]
        %v514 = vld [vmem:[%s417 + $0x130] sm:$0xff]
        %v515 = vld [vmem:[%s417 + $0x138] sm:$0xff]
        %v516 = vld [vmem:[%s417 + $0x140] sm:$0xff]
        %v517 = vld [vmem:[%s417 + $0x148] sm:$0xff]
        %v518 = vld [vmem:[%s417 + $0x150] sm:$0xff]
        %v519 = vld [vmem:[%s417 + $0x158] sm:$0xff]
        %v520 = vld [vmem:[%s417 + $0x160] sm:$0xff]
        %v521 = vld [vmem:[%s417 + $0x168] sm:$0xff]
        %v522 = vld [vmem:[%s417 + $0x170] sm:$0xff]
        %v523 = vld [vmem:[%s417 + $0x178] sm:$0xff]
        %v524 = vld [vmem:[%s417 + $0x180] sm:$0xff]
        %v525 = vld [vmem:[%s417 + $0x188] sm:$0xff]
        %v526 = vld [vmem:[%s417 + $0x190] sm:$0xff]
        %v527 = vld [vmem:[%s417 + $0x198] sm:$0xff]
        %v528 = vld [vmem:[%s417 + $0x1a0] sm:$0xff]
        %v529 = vld [vmem:[%s417 + $0x1a8] sm:$0xff]
        %v530 = vld [vmem:[%s417 + $0x1b0] sm:$0xff]
        %v531 = vld [vmem:[%s417 + $0x1b8] sm:$0xff]
        %v532 = vld [vmem:[%s417 + $0x1c0] sm:$0xff]
        %v533 = vld [vmem:[%s417 + $0x1c8] sm:$0xff]
        %v534 = vld [vmem:[%s417 + $0x1d0] sm:$0xff]
        %v535 = vld [vmem:[%s417 + $0x1d8] sm:$0xff]
        %v536 = vld [vmem:[%s417 + $0x1e0] sm:$0xff]
        %v537 = vld [vmem:[%s417 + $0x1e8] sm:$0xff]
        %v538 = vld [vmem:[%s417 + $0x1f0] sm:$0xff]
        %v539 = vld [vmem:[%s417 + $0x1f8] sm:$0xff]
        %v540 = vld [vmem:[%s417 + $0x200] sm:$0xff]
        %v541 = vld [vmem:[%s417 + $0x208] sm:$0xff]
        %v542 = vld [vmem:[%s417 + $0x210] sm:$0xff]
        %v543 = vld [vmem:[%s417 + $0x218] sm:$0xff]
        %v544 = vld [vmem:[%s417 + $0x220] sm:$0xff]
        %v545 = vld [vmem:[%s417 + $0x228] sm:$0xff]
        %v546 = vld [vmem:[%s417 + $0x230] sm:$0xff]
        %v547 = vld [vmem:[%s417 + $0x238] sm:$0xff]
        %v548 = vld [vmem:[%s417 + $0x240] sm:$0xff]
        %v549 = vld [vmem:[%s417 + $0x248] sm:$0xff]
        %v550 = vld [vmem:[%s417 + $0x250] sm:$0xff]
        %v551 = vld [vmem:[%s417 + $0x258] sm:$0xff]
        %v552 = vld [vmem:[%s417 + $0x260] sm:$0xff]
        %v553 = vld [vmem:[%s417 + $0x268] sm:$0xff]
        %v554 = vld [vmem:[%s417 + $0x270] sm:$0xff]
        %v555 = vld [vmem:[%s417 + $0x278] sm:$0xff]
        %v556 = vld [vmem:[%s417 + $0x280] sm:$0xff]
        %v557 = vld [vmem:[%s417 + $0x288] sm:$0xff]
        %v558 = vld [vmem:[%s417 + $0x290] sm:$0xff]
        %v559 = vld [vmem:[%s417 + $0x298] sm:$0xff]
        %v560 = vld [vmem:[%s417 + $0x2a0] sm:$0xff]
        %v561 = vld [vmem:[%s417 + $0x2a8] sm:$0xff]
        %v562 = vld [vmem:[%s417 + $0x2b0] sm:$0xff]
        %v563 = vld [vmem:[%s417 + $0x2b8] sm:$0xff]
        %v564 = vld [vmem:[%s417 + $0x2c0] sm:$0xff]
        %v565 = vld [vmem:[%s417 + $0x2c8] sm:$0xff]
        %v566 = vld [vmem:[%s417 + $0x2d0] sm:$0xff]
        %v567 = vld [vmem:[%s417 + $0x2d8] sm:$0xff]
        %v568 = vld [vmem:[%s417 + $0x2e0] sm:$0xff]
        %v569 = vld [vmem:[%s417 + $0x2e8] sm:$0xff]
        %v570 = vld [vmem:[%s417 + $0x2f0] sm:$0xff]
        %v571 = vld [vmem:[%s417 + $0x2f8] sm:$0xff]
        %v572 = vld [vmem:[%s417 + $0x300] sm:$0xff]
        %v573 = vld [vmem:[%s417 + $0x308] sm:$0xff]
        %v574 = vld [vmem:[%s417 + $0x310] sm:$0xff]
        %v575 = vld [vmem:[%s417 + $0x318] sm:$0xff]
        %v576 = vld [vmem:[%s417 + $0x320] sm:$0xff]
        %v577 = vld [vmem:[%s417 + $0x328] sm:$0xff]
        %v578 = vld [vmem:[%s417 + $0x330] sm:$0xff]
        %v579 = vld [vmem:[%s417 + $0x338] sm:$0xff]
        %v580 = vld [vmem:[%s417 + $0x340] sm:$0xff]
        %v581 = vld [vmem:[%s417 + $0x348] sm:$0xff]
        %v582 = vld [vmem:[%s417 + $0x350] sm:$0xff]
        %v583 = vld [vmem:[%s417 + $0x358] sm:$0xff]
        %v584 = vld [vmem:[%s417 + $0x360] sm:$0xff]
        %v585 = vld [vmem:[%s417 + $0x368] sm:$0xff]
        %v586 = vld [vmem:[%s417 + $0x370] sm:$0xff]
        %v587 = vld [vmem:[%s417 + $0x378] sm:$0xff]
        %v588 = vld [vmem:[%s417 + $0x380] sm:$0xff]
        %v589 = vld [vmem:[%s417 + $0x388] sm:$0xff]
        %v590 = vld [vmem:[%s417 + $0x390] sm:$0xff]
        %v591 = vld [vmem:[%s417 + $0x398] sm:$0xff]
        %v592 = vld [vmem:[%s417 + $0x3a0] sm:$0xff]
        %v593 = vld [vmem:[%s417 + $0x3a8] sm:$0xff]
        %v594 = vld [vmem:[%s417 + $0x3b0] sm:$0xff]
        %v595 = vld [vmem:[%s417 + $0x3b8] sm:$0xff]
        %v596 = vld [vmem:[%s417 + $0x3c0] sm:$0xff]
        %v597 = vld [vmem:[%s417 + $0x3c8] sm:$0xff]
        %v598 = vld [vmem:[%s417 + $0x3d0] sm:$0xff]
        %v599 = vld [vmem:[%s417 + $0x3d8] sm:$0xff]
        %v600 = vld [vmem:[%s417 + $0x3e0] sm:$0xff]
        %v601 = vld [vmem:[%s417 + $0x3e8] sm:$0xff]
        %v602 = vld [vmem:[%s417 + $0x3f0] sm:$0xff]
        %v603 = vld [vmem:[%s417 + $0x3f8] sm:$0xff]
        %v604 = vld [vmem:[%s417 + $0x400] sm:$0xff]
        %v605 = vld [vmem:[%s417 + $0x408] sm:$0xff]
        %v606 = vld [vmem:[%s417 + $0x410] sm:$0xff]
        %v607 = vld [vmem:[%s417 + $0x418] sm:$0xff]
        %v608 = vld [vmem:[%s417 + $0x420] sm:$0xff]
        %v609 = vld [vmem:[%s417 + $0x428] sm:$0xff]
        %v610 = vld [vmem:[%s417 + $0x430] sm:$0xff]
        %v611 = vld [vmem:[%s417 + $0x438] sm:$0xff]
        %v612 = vld [vmem:[%s417 + $0x440] sm:$0xff]
        %v613 = vld [vmem:[%s417 + $0x448] sm:$0xff]
        %v614 = vld [vmem:[%s417 + $0x450] sm:$0xff]
        %v615 = vld [vmem:[%s417 + $0x458] sm:$0xff]
        %v616 = vld [vmem:[%s417 + $0x460] sm:$0xff]
        %v617 = vld [vmem:[%s417 + $0x468] sm:$0xff]
        %v618 = vld [vmem:[%s417 + $0x470] sm:$0xff]
        %v619 = vld [vmem:[%s417 + $0x478] sm:$0xff]
        %v620 = vld [vmem:[%s417 + $0x480] sm:$0xff]
        %v621 = vld [vmem:[%s417 + $0x488] sm:$0xff]
        %v622 = vld [vmem:[%s417 + $0x490] sm:$0xff]
        %v623 = vld [vmem:[%s417 + $0x498] sm:$0xff]
        %v624 = vld [vmem:[%s417 + $0x4a0] sm:$0xff]
        %v625 = vld [vmem:[%s417 + $0x4a8] sm:$0xff]
        %v626 = vld [vmem:[%s417 + $0x4b0] sm:$0xff]
        %v627 = vld [vmem:[%s417 + $0x4b8] sm:$0xff]
        %v628 = vld [vmem:[%s417 + $0x4c0] sm:$0xff]
        %v629 = vld [vmem:[%s417 + $0x4c8] sm:$0xff]
        %v630 = vld [vmem:[%s417 + $0x4d0] sm:$0xff]
        %v631 = vld [vmem:[%s417 + $0x4d8] sm:$0xff]
        %v632 = vld [vmem:[%s417 + $0x4e0] sm:$0xff]
        %v633 = vld [vmem:[%s417 + $0x4e8] sm:$0xff]
        %v634 = vld [vmem:[%s417 + $0x4f0] sm:$0xff]
        %v635 = vld [vmem:[%s417 + $0x4f8] sm:$0xff]
        %v636 = vld [vmem:[%s417 + $0x500] sm:$0xff]
        %v637 = vld [vmem:[%s417 + $0x508] sm:$0xff]
        %v638 = vld [vmem:[%s417 + $0x510] sm:$0xff]
        %v639 = vld [vmem:[%s417 + $0x518] sm:$0xff]
        %v640 = vld [vmem:[%s417 + $0x520] sm:$0xff]
        %v641 = vld [vmem:[%s417 + $0x528] sm:$0xff]
        %v642 = vld [vmem:[%s417 + $0x530] sm:$0xff]
        %v643 = vld [vmem:[%s417 + $0x538] sm:$0xff]
        %v644 = vld [vmem:[%s417 + $0x540] sm:$0xff]
        %v645 = vld [vmem:[%s417 + $0x548] sm:$0xff]
        %v646 = vld [vmem:[%s417 + $0x550] sm:$0xff]
        %v647 = vld [vmem:[%s417 + $0x558] sm:$0xff]
        %v648 = vld [vmem:[%s417 + $0x560] sm:$0xff]
        %v649 = vld [vmem:[%s417 + $0x568] sm:$0xff]
        %v650 = vld [vmem:[%s417 + $0x570] sm:$0xff]
        %v651 = vld [vmem:[%s417 + $0x578] sm:$0xff]
        %v652 = vld [vmem:[%s417 + $0x580] sm:$0xff]
        %v653 = vld [vmem:[%s417 + $0x588] sm:$0xff]
        %v654 = vld [vmem:[%s417 + $0x590] sm:$0xff]
        %v655 = vld [vmem:[%s417 + $0x598] sm:$0xff]
        %v656 = vld [vmem:[%s417 + $0x5a0] sm:$0xff]
        %v657 = vld [vmem:[%s417 + $0x5a8] sm:$0xff]
        %v658 = vld [vmem:[%s417 + $0x5b0] sm:$0xff]
        %v659 = vld [vmem:[%s417 + $0x5b8] sm:$0xff]
        %v660 = vld [vmem:[%s417 + $0x5c0] sm:$0xff]
        %v661 = vld [vmem:[%s417 + $0x5c8] sm:$0xff]
        %v662 = vld [vmem:[%s417 + $0x5d0] sm:$0xff]
        %v663 = vld [vmem:[%s417 + $0x5d8] sm:$0xff]
        %v664 = vld [vmem:[%s417 + $0x5e0] sm:$0xff]
        %v665 = vld [vmem:[%s417 + $0x5e8] sm:$0xff]
        %v666 = vld [vmem:[%s417 + $0x5f0] sm:$0xff]
        %v667 = vld [vmem:[%s417 + $0x5f8] sm:$0xff]
        %v668 = vld [vmem:[%s417 + $0x600] sm:$0xff]
        %v669 = vld [vmem:[%s417 + $0x608] sm:$0xff]
        %v670 = vld [vmem:[%s417 + $0x610] sm:$0xff]
        %v671 = vld [vmem:[%s417 + $0x618] sm:$0xff]
        %v672 = vld [vmem:[%s417 + $0x620] sm:$0xff]
        %v673 = vld [vmem:[%s417 + $0x628] sm:$0xff]
        %v674 = vld [vmem:[%s417 + $0x630] sm:$0xff]
        %v675 = vld [vmem:[%s417 + $0x638] sm:$0xff]
        %v676 = vld [vmem:[%s417 + $0x640] sm:$0xff]
        %v677 = vld [vmem:[%s417 + $0x648] sm:$0xff]
        %v678 = vld [vmem:[%s417 + $0x650] sm:$0xff]
        %v679 = vld [vmem:[%s417 + $0x658] sm:$0xff]
        %v680 = vld [vmem:[%s417 + $0x660] sm:$0xff]
        %v681 = vld [vmem:[%s417 + $0x668] sm:$0xff]
        %v682 = vld [vmem:[%s417 + $0x670] sm:$0xff]
        %v683 = vld [vmem:[%s417 + $0x678] sm:$0xff]
        %v684 = vld [vmem:[%s417 + $0x680] sm:$0xff]
        %v685 = vld [vmem:[%s417 + $0x688] sm:$0xff]
        %v686 = vld [vmem:[%s417 + $0x690] sm:$0xff]
        %v687 = vld [vmem:[%s417 + $0x698] sm:$0xff]
        %v688 = vld [vmem:[%s417 + $0x6a0] sm:$0xff]
        %v689 = vld [vmem:[%s417 + $0x6a8] sm:$0xff]
        %v690 = vld [vmem:[%s417 + $0x6b0] sm:$0xff]
        %v691 = vld [vmem:[%s417 + $0x6b8] sm:$0xff]
        %v692 = vld [vmem:[%s417 + $0x6c0] sm:$0xff]
        %v693 = vld [vmem:[%s417 + $0x6c8] sm:$0xff]
        %v694 = vld [vmem:[%s417 + $0x6d0] sm:$0xff]
        %v695 = vld [vmem:[%s417 + $0x6d8] sm:$0xff]
        %v696 = vld [vmem:[%s417 + $0x6e0] sm:$0xff]
        %v697 = vld [vmem:[%s417 + $0x6e8] sm:$0xff]
        %v698 = vld [vmem:[%s417 + $0x6f0] sm:$0xff]
        %v699 = vld [vmem:[%s417 + $0x6f8] sm:$0xff]
        %v700 = vld [vmem:[%s417 + $0x700] sm:$0xff]
        %v701 = vld [vmem:[%s417 + $0x708] sm:$0xff]
        %v702 = vld [vmem:[%s417 + $0x710] sm:$0xff]
        %v703 = vld [vmem:[%s417 + $0x718] sm:$0xff]
        %v704 = vld [vmem:[%s417 + $0x720] sm:$0xff]
        %v705 = vld [vmem:[%s417 + $0x728] sm:$0xff]
        %v706 = vld [vmem:[%s417 + $0x730] sm:$0xff]
        %v707 = vld [vmem:[%s417 + $0x738] sm:$0xff]
        %v708 = vld [vmem:[%s417 + $0x740] sm:$0xff]
        %v709 = vld [vmem:[%s417 + $0x748] sm:$0xff]
        %v710 = vld [vmem:[%s417 + $0x750] sm:$0xff]
        %v711 = vld [vmem:[%s417 + $0x758] sm:$0xff]
        %v712 = vld [vmem:[%s417 + $0x760] sm:$0xff]
        %v713 = vld [vmem:[%s417 + $0x768] sm:$0xff]
        %v714 = vld [vmem:[%s417 + $0x770] sm:$0xff]
        %v715 = vld [vmem:[%s417 + $0x778] sm:$0xff]
        %v716 = vld [vmem:[%s417 + $0x780] sm:$0xff]
        %v717 = vld [vmem:[%s417 + $0x788] sm:$0xff]
        %v718 = vld [vmem:[%s417 + $0x790] sm:$0xff]
        %v719 = vld [vmem:[%s417 + $0x798] sm:$0xff]
        %v720 = vld [vmem:[%s417 + $0x7a0] sm:$0xff]
        %v721 = vld [vmem:[%s417 + $0x7a8] sm:$0xff]
        %v722 = vld [vmem:[%s417 + $0x7b0] sm:$0xff]
        %v723 = vld [vmem:[%s417 + $0x7b8] sm:$0xff]
        %v724 = vld [vmem:[%s417 + $0x7c0] sm:$0xff]
        %v725 = vld [vmem:[%s417 + $0x7c8] sm:$0xff]
        %v726 = vld [vmem:[%s417 + $0x7d0] sm:$0xff]
        %v727 = vld [vmem:[%s417 + $0x7d8] sm:$0xff]
        %v728 = vld [vmem:[%s417 + $0x7e0] sm:$0xff]
        %v729 = vld [vmem:[%s417 + $0x7e8] sm:$0xff]
        %v730 = vld [vmem:[%s417 + $0x7f0] sm:$0xff]
        %v731 = vld [vmem:[%s417 + $0x7f8] sm:$0xff]
        %v732 = vld [vmem:[%s417 + $0x800] sm:$0xff]
        %v733 = vld [vmem:[%s417 + $0x808] sm:$0xff]
        %v734 = vld [vmem:[%s417 + $0x810] sm:$0xff]
        %v735 = vld [vmem:[%s417 + $0x818] sm:$0xff]
        %v736 = vld [vmem:[%s417 + $0x820] sm:$0xff]
        %v737 = vld [vmem:[%s417 + $0x828] sm:$0xff]
        %v738 = vld [vmem:[%s417 + $0x830] sm:$0xff]
        %v739 = vld [vmem:[%s417 + $0x838] sm:$0xff]
        %v740 = vld [vmem:[%s417 + $0x840] sm:$0xff]
        %v741 = vld [vmem:[%s417 + $0x848] sm:$0xff]
        %v742 = vld [vmem:[%s417 + $0x850] sm:$0xff]
        %v743 = vld [vmem:[%s417 + $0x858] sm:$0xff]
        %v744 = vld [vmem:[%s417 + $0x860] sm:$0xff]
        %v745 = vld [vmem:[%s417 + $0x868] sm:$0xff]
        %v746 = vld [vmem:[%s417 + $0x870] sm:$0xff]
        %v747 = vld [vmem:[%s417 + $0x878] sm:$0xff]
        %v748 = vld [vmem:[%s417 + $0x880] sm:$0xff]
        %v749 = vld [vmem:[%s417 + $0x888] sm:$0xff]
        %v750 = vld [vmem:[%s417 + $0x890] sm:$0xff]
        %v751 = vld [vmem:[%s417 + $0x898] sm:$0xff]
        %v752 = vld [vmem:[%s417 + $0x8a0] sm:$0xff]
        %v753 = vld [vmem:[%s417 + $0x8a8] sm:$0xff]
        %v754 = vld [vmem:[%s417 + $0x8b0] sm:$0xff]
        %v755 = vld [vmem:[%s417 + $0x8b8] sm:$0xff]
        %v756 = vld [vmem:[%s417 + $0x8c0] sm:$0xff]
        %v757 = vld [vmem:[%s417 + $0x8c8] sm:$0xff]
        %v758 = vld [vmem:[%s417 + $0x8d0] sm:$0xff]
        %v759 = vld [vmem:[%s417 + $0x8d8] sm:$0xff]
        %v760 = vld [vmem:[%s417 + $0x8e0] sm:$0xff]
        %v761 = vld [vmem:[%s417 + $0x8e8] sm:$0xff]
        %v762 = vld [vmem:[%s417 + $0x8f0] sm:$0xff]
        %v763 = vld [vmem:[%s417 + $0x8f8] sm:$0xff]
        %v764 = vld [vmem:[#allocation2] sm:$0xff]
        %v765 = vld [vmem:[#allocation2 + $0x8] sm:$0xff]
        %v766 = vld [vmem:[#allocation2 + $0x10] sm:$0xff]
        %v767 = vld [vmem:[#allocation2 + $0x18] sm:$0xff]
        %v768 = vld [vmem:[#allocation2 + $0x20] sm:$0xff]
        %v769 = vld [vmem:[#allocation2 + $0x28] sm:$0xff]
        %v770 = vld [vmem:[#allocation2 + $0x30] sm:$0xff]
        %v771 = vld [vmem:[#allocation2 + $0x38] sm:$0xff]
        %v772 = vld [vmem:[#allocation2 + $0x40] sm:$0xff]
        %v773 = vld [vmem:[#allocation2 + $0x48] sm:$0xff]
        %v774 = vld [vmem:[#allocation2 + $0x50] sm:$0xff]
        %v775 = vld [vmem:[#allocation2 + $0x58] sm:$0xff]
        %v776 = vld [vmem:[#allocation2 + $0x60] sm:$0xff]
        %v777 = vld [vmem:[#allocation2 + $0x68] sm:$0xff]
        %v778 = vld [vmem:[#allocation2 + $0x70] sm:$0xff]
        %v779 = vld [vmem:[#allocation2 + $0x78] sm:$0xff]
        %v780 = vld [vmem:[%s347] sm:$0xff]
        %v781 = vld [vmem:[%s347 + $0x8] sm:$0xff]
        %v782 = vld [vmem:[%s347 + $0x10] sm:$0xff]
        %v783 = vld [vmem:[%s347 + $0x18] sm:$0xff]
        %v784 = vld [vmem:[%s347 + $0x20] sm:$0xf]
        %v785 = vld [vmem:[%s347 + $0x24] sm:$0xff]
        %v786 = vld [vmem:[%s347 + $0x2c] sm:$0xff]
        %v787 = vld [vmem:[%s347 + $0x34] sm:$0xff]
        %v788 = vld [vmem:[%s347 + $0x3c] sm:$0xff]
        %v789 = vld [vmem:[%s347 + $0x44] sm:$0xf]
        %v790 = vld [vmem:[%s347 + $0x48] sm:$0xff]
        %v791 = vld [vmem:[%s347 + $0x50] sm:$0xff]
        %v792 = vld [vmem:[%s347 + $0x58] sm:$0xff]
        %v793 = vld [vmem:[%s347 + $0x60] sm:$0xff]
        %v794 = vld [vmem:[%s347 + $0x68] sm:$0xf]
        %v795 = vld [vmem:[%s347 + $0x6c] sm:$0xff]
        %v796 = vld [vmem:[%s347 + $0x74] sm:$0xff]
        %v797 = vld [vmem:[%s347 + $0x7c] sm:$0xff]
        %v798 = vld [vmem:[%s347 + $0x84] sm:$0xff]
        %v799 = vld [vmem:[%s347 + $0x8c] sm:$0xf]
        %v820 = vunpack.c.l.b16 %v780
        %v821 = vunpack.c.h.b16 %v780
        %v822 = vunpack.c.l.b16 %v781
        %v823 = vunpack.c.h.b16 %v781
        %v824 = vunpack.c.l.b16 %v782
        %v825 = vunpack.c.h.b16 %v782
        %v826 = vunpack.c.l.b16 %v783
        %v827 = vunpack.c.h.b16 %v783
        %v828 = vunpack.c.l.b16 %v784
        %v829 = vunpack.c.l.b16 %v785
        %v830 = vunpack.c.h.b16 %v785
        %v831 = vunpack.c.l.b16 %v786
        %v832 = vunpack.c.h.b16 %v786
        %v833 = vunpack.c.l.b16 %v787
        %v834 = vunpack.c.h.b16 %v787
        %v835 = vunpack.c.l.b16 %v788
        %v836 = vunpack.c.h.b16 %v788
        %v837 = vunpack.c.l.b16 %v789
        %v838 = vunpack.c.l.b16 %v790
        %v839 = vunpack.c.h.b16 %v790
        %v840 = vunpack.c.l.b16 %v791
        %v841 = vunpack.c.h.b16 %v791
        %v842 = vunpack.c.l.b16 %v792
        %v843 = vunpack.c.h.b16 %v792
        %v844 = vunpack.c.l.b16 %v793
        %v845 = vunpack.c.h.b16 %v793
        %v846 = vunpack.c.l.b16 %v794
        %v847 = vunpack.c.l.b16 %v795
        %v848 = vunpack.c.h.b16 %v795
        %v849 = vunpack.c.l.b16 %v796
        %v850 = vunpack.c.h.b16 %v796
        %v851 = vunpack.c.l.b16 %v797
        %v852 = vunpack.c.h.b16 %v797
        %v853 = vunpack.c.l.b16 %v798
        %v854 = vunpack.c.h.b16 %v798
        %v855 = vunpack.c.l.b16 %v799
        %v856 = vpack.c.b16 %v829, %v820
        %v857 = vpack.c.b16 %v830, %v821
        %v858 = vpack.c.b16 %v831, %v822
        %v859 = vpack.c.b16 %v832, %v823
        %v860 = vpack.c.b16 %v833, %v824
        %v861 = vpack.c.b16 %v834, %v825
        %v862 = vpack.c.b16 %v835, %v826
        %v863 = vpack.c.b16 %v836, %v827
        %v864 = vpack.c.b16 %v837, %v828
        %v865 = vpack.c.b16 %v847, %v838
        %v866 = vpack.c.b16 %v848, %v839
        %v867 = vpack.c.b16 %v849, %v840
        %v868 = vpack.c.b16 %v850, %v841
        %v869 = vpack.c.b16 %v851, %v842
        %v870 = vpack.c.b16 %v852, %v843
        %v871 = vpack.c.b16 %v853, %v844
        %v872 = vpack.c.b16 %v854, %v845
        %v873 = vpack.c.b16 %v855, %v846
        %v1180 = vunpack.c.l.b16 %v476
        %v1181 = vunpack.c.h.b16 %v476
        %v1182 = vunpack.c.l.b16 %v477
        %v1183 = vunpack.c.h.b16 %v477
        %v1184 = vunpack.c.l.b16 %v478
        %v1185 = vunpack.c.h.b16 %v478
        %v1186 = vunpack.c.l.b16 %v479
        %v1187 = vunpack.c.h.b16 %v479
        %v1188 = vunpack.c.l.b16 %v480
        %v1189 = vunpack.c.h.b16 %v480
        %v1190 = vunpack.c.l.b16 %v481
        %v1191 = vunpack.c.h.b16 %v481
        %v1192 = vunpack.c.l.b16 %v482
        %v1193 = vunpack.c.h.b16 %v482
        %v1194 = vunpack.c.l.b16 %v483
        %v1195 = vunpack.c.h.b16 %v483
        %v1196 = vunpack.c.l.b16 %v484
        %v1197 = vunpack.c.h.b16 %v484
        %v1198 = vunpack.c.l.b16 %v485
        %v1199 = vunpack.c.h.b16 %v485
        %v1200 = vunpack.c.l.b16 %v486
        %v1201 = vunpack.c.h.b16 %v486
        %v1202 = vunpack.c.l.b16 %v487
        %v1203 = vunpack.c.h.b16 %v487
        %v1204 = vunpack.c.l.b16 %v488
        %v1205 = vunpack.c.h.b16 %v488
        %v1206 = vunpack.c.l.b16 %v489
        %v1207 = vunpack.c.h.b16 %v489
        %v1208 = vunpack.c.l.b16 %v490
        %v1209 = vunpack.c.h.b16 %v490
        %v1210 = vunpack.c.l.b16 %v491
        %v1211 = vunpack.c.h.b16 %v491
        %v1212 = vunpack.c.l.b16 %v492
        %v1213 = vunpack.c.h.b16 %v492
        %v1214 = vunpack.c.l.b16 %v493
        %v1215 = vunpack.c.h.b16 %v493
        %v1216 = vunpack.c.l.b16 %v494
        %v1217 = vunpack.c.h.b16 %v494
        %v1218 = vunpack.c.l.b16 %v495
        %v1219 = vunpack.c.h.b16 %v495
        %v1220 = vunpack.c.l.b16 %v496
        %v1221 = vunpack.c.h.b16 %v496
        %v1222 = vunpack.c.l.b16 %v497
        %v1223 = vunpack.c.h.b16 %v497
        %v1224 = vunpack.c.l.b16 %v498
        %v1225 = vunpack.c.h.b16 %v498
        %v1226 = vunpack.c.l.b16 %v499
        %v1227 = vunpack.c.h.b16 %v499
        %v1228 = vunpack.c.l.b16 %v500
        %v1229 = vunpack.c.h.b16 %v500
        %v1230 = vunpack.c.l.b16 %v501
        %v1231 = vunpack.c.h.b16 %v501
        %v1232 = vunpack.c.l.b16 %v502
        %v1233 = vunpack.c.h.b16 %v502
        %v1234 = vunpack.c.l.b16 %v503
        %v1235 = vunpack.c.h.b16 %v503
        %v1236 = vunpack.c.l.b16 %v504
        %v1237 = vunpack.c.h.b16 %v504
        %v1238 = vunpack.c.l.b16 %v505
        %v1239 = vunpack.c.h.b16 %v505
        %v1240 = vunpack.c.l.b16 %v506
        %v1241 = vunpack.c.h.b16 %v506
        %v1242 = vunpack.c.l.b16 %v507
        %v1243 = vunpack.c.h.b16 %v507
        %v1244 = vunpack.c.l.b16 %v508
        %v1245 = vunpack.c.h.b16 %v508
        %v1246 = vunpack.c.l.b16 %v509
        %v1247 = vunpack.c.h.b16 %v509
        %v1248 = vunpack.c.l.b16 %v510
        %v1249 = vunpack.c.h.b16 %v510
        %v1250 = vunpack.c.l.b16 %v511
        %v1251 = vunpack.c.h.b16 %v511
        %v1252 = vunpack.c.l.b16 %v512
        %v1253 = vunpack.c.h.b16 %v512
        %v1254 = vunpack.c.l.b16 %v513
        %v1255 = vunpack.c.h.b16 %v513
        %v1256 = vunpack.c.l.b16 %v514
        %v1257 = vunpack.c.h.b16 %v514
        %v1258 = vunpack.c.l.b16 %v515
        %v1259 = vunpack.c.h.b16 %v515
        %v1260 = vunpack.c.l.b16 %v516
        %v1261 = vunpack.c.h.b16 %v516
        %v1262 = vunpack.c.l.b16 %v517
        %v1263 = vunpack.c.h.b16 %v517
        %v1264 = vunpack.c.l.b16 %v518
        %v1265 = vunpack.c.h.b16 %v518
        %v1266 = vunpack.c.l.b16 %v519
        %v1267 = vunpack.c.h.b16 %v519
        %v1268 = vunpack.c.l.b16 %v520
        %v1269 = vunpack.c.h.b16 %v520
        %v1270 = vunpack.c.l.b16 %v521
        %v1271 = vunpack.c.h.b16 %v521
        %v1272 = vunpack.c.l.b16 %v522
        %v1273 = vunpack.c.h.b16 %v522
        %v1274 = vunpack.c.l.b16 %v523
        %v1275 = vunpack.c.h.b16 %v523
        %v1276 = vunpack.c.l.b16 %v524
        %v1277 = vunpack.c.h.b16 %v524
        %v1278 = vunpack.c.l.b16 %v525
        %v1279 = vunpack.c.h.b16 %v525
        %v1280 = vunpack.c.l.b16 %v526
        %v1281 = vunpack.c.h.b16 %v526
        %v1282 = vunpack.c.l.b16 %v527
        %v1283 = vunpack.c.h.b16 %v527
        %v1284 = vunpack.c.l.b16 %v528
        %v1285 = vunpack.c.h.b16 %v528
        %v1286 = vunpack.c.l.b16 %v529
        %v1287 = vunpack.c.h.b16 %v529
        %v1288 = vunpack.c.l.b16 %v530
        %v1289 = vunpack.c.h.b16 %v530
        %v1290 = vunpack.c.l.b16 %v531
        %v1291 = vunpack.c.h.b16 %v531
        %v1292 = vunpack.c.l.b16 %v532
        %v1293 = vunpack.c.h.b16 %v532
        %v1294 = vunpack.c.l.b16 %v533
        %v1295 = vunpack.c.h.b16 %v533
        %v1296 = vunpack.c.l.b16 %v534
        %v1297 = vunpack.c.h.b16 %v534
        %v1298 = vunpack.c.l.b16 %v535
        %v1299 = vunpack.c.h.b16 %v535
        %v1300 = vunpack.c.l.b16 %v536
        %v1301 = vunpack.c.h.b16 %v536
        %v1302 = vunpack.c.l.b16 %v537
        %v1303 = vunpack.c.h.b16 %v537
        %v1304 = vunpack.c.l.b16 %v538
        %v1305 = vunpack.c.h.b16 %v538
        %v1306 = vunpack.c.l.b16 %v539
        %v1307 = vunpack.c.h.b16 %v539
        %v1308 = vunpack.c.l.b16 %v540
        %v1309 = vunpack.c.h.b16 %v540
        %v1310 = vunpack.c.l.b16 %v541
        %v1311 = vunpack.c.h.b16 %v541
        %v1312 = vunpack.c.l.b16 %v542
        %v1313 = vunpack.c.h.b16 %v542
        %v1314 = vunpack.c.l.b16 %v543
        %v1315 = vunpack.c.h.b16 %v543
        %v1316 = vunpack.c.l.b16 %v544
        %v1317 = vunpack.c.h.b16 %v544
        %v1318 = vunpack.c.l.b16 %v545
        %v1319 = vunpack.c.h.b16 %v545
        %v1320 = vunpack.c.l.b16 %v546
        %v1321 = vunpack.c.h.b16 %v546
        %v1322 = vunpack.c.l.b16 %v547
        %v1323 = vunpack.c.h.b16 %v547
        %v1324 = vunpack.c.l.b16 %v548
        %v1325 = vunpack.c.h.b16 %v548
        %v1326 = vunpack.c.l.b16 %v549
        %v1327 = vunpack.c.h.b16 %v549
        %v1328 = vunpack.c.l.b16 %v550
        %v1329 = vunpack.c.h.b16 %v550
        %v1330 = vunpack.c.l.b16 %v551
        %v1331 = vunpack.c.h.b16 %v551
        %v1332 = vunpack.c.l.b16 %v552
        %v1333 = vunpack.c.h.b16 %v552
        %v1334 = vunpack.c.l.b16 %v553
        %v1335 = vunpack.c.h.b16 %v553
        %v1336 = vunpack.c.l.b16 %v554
        %v1337 = vunpack.c.h.b16 %v554
        %v1338 = vunpack.c.l.b16 %v555
        %v1339 = vunpack.c.h.b16 %v555
        %v1340 = vunpack.c.l.b16 %v556
        %v1341 = vunpack.c.h.b16 %v556
        %v1342 = vunpack.c.l.b16 %v557
        %v1343 = vunpack.c.h.b16 %v557
        %v1344 = vunpack.c.l.b16 %v558
        %v1345 = vunpack.c.h.b16 %v558
        %v1346 = vunpack.c.l.b16 %v559
        %v1347 = vunpack.c.h.b16 %v559
        %v1348 = vunpack.c.l.b16 %v560
        %v1349 = vunpack.c.h.b16 %v560
        %v1350 = vunpack.c.l.b16 %v561
        %v1351 = vunpack.c.h.b16 %v561
        %v1352 = vunpack.c.l.b16 %v562
        %v1353 = vunpack.c.h.b16 %v562
        %v1354 = vunpack.c.l.b16 %v563
        %v1355 = vunpack.c.h.b16 %v563
        %v1356 = vunpack.c.l.b16 %v564
        %v1357 = vunpack.c.h.b16 %v564
        %v1358 = vunpack.c.l.b16 %v565
        %v1359 = vunpack.c.h.b16 %v565
        %v1360 = vunpack.c.l.b16 %v566
        %v1361 = vunpack.c.h.b16 %v566
        %v1362 = vunpack.c.l.b16 %v567
        %v1363 = vunpack.c.h.b16 %v567
        %v1364 = vunpack.c.l.b16 %v568
        %v1365 = vunpack.c.h.b16 %v568
        %v1366 = vunpack.c.l.b16 %v569
        %v1367 = vunpack.c.h.b16 %v569
        %v1368 = vunpack.c.l.b16 %v570
        %v1369 = vunpack.c.h.b16 %v570
        %v1370 = vunpack.c.l.b16 %v571
        %v1371 = vunpack.c.h.b16 %v571
        %v1372 = vunpack.c.l.b16 %v572
        %v1373 = vunpack.c.h.b16 %v572
        %v1374 = vunpack.c.l.b16 %v573
        %v1375 = vunpack.c.h.b16 %v573
        %v1376 = vunpack.c.l.b16 %v574
        %v1377 = vunpack.c.h.b16 %v574
        %v1378 = vunpack.c.l.b16 %v575
        %v1379 = vunpack.c.h.b16 %v575
        %v1380 = vunpack.c.l.b16 %v576
        %v1381 = vunpack.c.h.b16 %v576
        %v1382 = vunpack.c.l.b16 %v577
        %v1383 = vunpack.c.h.b16 %v577
        %v1384 = vunpack.c.l.b16 %v578
        %v1385 = vunpack.c.h.b16 %v578
        %v1386 = vunpack.c.l.b16 %v579
        %v1387 = vunpack.c.h.b16 %v579
        %v1388 = vunpack.c.l.b16 %v580
        %v1389 = vunpack.c.h.b16 %v580
        %v1390 = vunpack.c.l.b16 %v581
        %v1391 = vunpack.c.h.b16 %v581
        %v1392 = vunpack.c.l.b16 %v582
        %v1393 = vunpack.c.h.b16 %v582
        %v1394 = vunpack.c.l.b16 %v583
        %v1395 = vunpack.c.h.b16 %v583
        %v1396 = vunpack.c.l.b16 %v584
        %v1397 = vunpack.c.h.b16 %v584
        %v1398 = vunpack.c.l.b16 %v585
        %v1399 = vunpack.c.h.b16 %v585
        %v1400 = vunpack.c.l.b16 %v586
        %v1401 = vunpack.c.h.b16 %v586
        %v1402 = vunpack.c.l.b16 %v587
        %v1403 = vunpack.c.h.b16 %v587
        %v1404 = vunpack.c.l.b16 %v588
        %v1405 = vunpack.c.h.b16 %v588
        %v1406 = vunpack.c.l.b16 %v589
        %v1407 = vunpack.c.h.b16 %v589
        %v1408 = vunpack.c.l.b16 %v590
        %v1409 = vunpack.c.h.b16 %v590
        %v1410 = vunpack.c.l.b16 %v591
        %v1411 = vunpack.c.h.b16 %v591
        %v1412 = vunpack.c.l.b16 %v592
        %v1413 = vunpack.c.h.b16 %v592
        %v1414 = vunpack.c.l.b16 %v593
        %v1415 = vunpack.c.h.b16 %v593
        %v1416 = vunpack.c.l.b16 %v594
        %v1417 = vunpack.c.h.b16 %v594
        %v1418 = vunpack.c.l.b16 %v595
        %v1419 = vunpack.c.h.b16 %v595
        %v1420 = vunpack.c.l.b16 %v596
        %v1421 = vunpack.c.h.b16 %v596
        %v1422 = vunpack.c.l.b16 %v597
        %v1423 = vunpack.c.h.b16 %v597
        %v1424 = vunpack.c.l.b16 %v598
        %v1425 = vunpack.c.h.b16 %v598
        %v1426 = vunpack.c.l.b16 %v599
        %v1427 = vunpack.c.h.b16 %v599
        %v1428 = vunpack.c.l.b16 %v600
        %v1429 = vunpack.c.h.b16 %v600
        %v1430 = vunpack.c.l.b16 %v601
        %v1431 = vunpack.c.h.b16 %v601
        %v1432 = vunpack.c.l.b16 %v602
        %v1433 = vunpack.c.h.b16 %v602
        %v1434 = vunpack.c.l.b16 %v603
        %v1435 = vunpack.c.h.b16 %v603
        %v1436 = vunpack.c.l.b16 %v604
        %v1437 = vunpack.c.h.b16 %v604
        %v1438 = vunpack.c.l.b16 %v605
        %v1439 = vunpack.c.h.b16 %v605
        %v1440 = vunpack.c.l.b16 %v606
        %v1441 = vunpack.c.h.b16 %v606
        %v1442 = vunpack.c.l.b16 %v607
        %v1443 = vunpack.c.h.b16 %v607
        %v1444 = vunpack.c.l.b16 %v608
        %v1445 = vunpack.c.h.b16 %v608
        %v1446 = vunpack.c.l.b16 %v609
        %v1447 = vunpack.c.h.b16 %v609
        %v1448 = vunpack.c.l.b16 %v610
        %v1449 = vunpack.c.h.b16 %v610
        %v1450 = vunpack.c.l.b16 %v611
        %v1451 = vunpack.c.h.b16 %v611
        %v1452 = vunpack.c.l.b16 %v612
        %v1453 = vunpack.c.h.b16 %v612
        %v1454 = vunpack.c.l.b16 %v613
        %v1455 = vunpack.c.h.b16 %v613
        %v1456 = vunpack.c.l.b16 %v614
        %v1457 = vunpack.c.h.b16 %v614
        %v1458 = vunpack.c.l.b16 %v615
        %v1459 = vunpack.c.h.b16 %v615
        %v1460 = vunpack.c.l.b16 %v616
        %v1461 = vunpack.c.h.b16 %v616
        %v1462 = vunpack.c.l.b16 %v617
        %v1463 = vunpack.c.h.b16 %v617
        %v1464 = vunpack.c.l.b16 %v618
        %v1465 = vunpack.c.h.b16 %v618
        %v1466 = vunpack.c.l.b16 %v619
        %v1467 = vunpack.c.h.b16 %v619
        %v1468 = vunpack.c.l.b16 %v620
        %v1469 = vunpack.c.h.b16 %v620
        %v1470 = vunpack.c.l.b16 %v621
        %v1471 = vunpack.c.h.b16 %v621
        %v1472 = vunpack.c.l.b16 %v622
        %v1473 = vunpack.c.h.b16 %v622
        %v1474 = vunpack.c.l.b16 %v623
        %v1475 = vunpack.c.h.b16 %v623
        %v1476 = vunpack.c.l.b16 %v624
        %v1477 = vunpack.c.h.b16 %v624
        %v1478 = vunpack.c.l.b16 %v625
        %v1479 = vunpack.c.h.b16 %v625
        %v1480 = vunpack.c.l.b16 %v626
        %v1481 = vunpack.c.h.b16 %v626
        %v1482 = vunpack.c.l.b16 %v627
        %v1483 = vunpack.c.h.b16 %v627
        %v1484 = vunpack.c.l.b16 %v628
        %v1485 = vunpack.c.h.b16 %v628
        %v1486 = vunpack.c.l.b16 %v629
        %v1487 = vunpack.c.h.b16 %v629
        %v1488 = vunpack.c.l.b16 %v630
        %v1489 = vunpack.c.h.b16 %v630
        %v1490 = vunpack.c.l.b16 %v631
        %v1491 = vunpack.c.h.b16 %v631
        %v1492 = vunpack.c.l.b16 %v632
        %v1493 = vunpack.c.h.b16 %v632
        %v1494 = vunpack.c.l.b16 %v633
        %v1495 = vunpack.c.h.b16 %v633
        %v1496 = vunpack.c.l.b16 %v634
        %v1497 = vunpack.c.h.b16 %v634
        %v1498 = vunpack.c.l.b16 %v635
        %v1499 = vunpack.c.h.b16 %v635
        %v1500 = vunpack.c.l.b16 %v636
        %v1501 = vunpack.c.h.b16 %v636
        %v1502 = vunpack.c.l.b16 %v637
        %v1503 = vunpack.c.h.b16 %v637
        %v1504 = vunpack.c.l.b16 %v638
        %v1505 = vunpack.c.h.b16 %v638
        %v1506 = vunpack.c.l.b16 %v639
        %v1507 = vunpack.c.h.b16 %v639
        %v1508 = vunpack.c.l.b16 %v640
        %v1509 = vunpack.c.h.b16 %v640
        %v1510 = vunpack.c.l.b16 %v641
        %v1511 = vunpack.c.h.b16 %v641
        %v1512 = vunpack.c.l.b16 %v642
        %v1513 = vunpack.c.h.b16 %v642
        %v1514 = vunpack.c.l.b16 %v643
        %v1515 = vunpack.c.h.b16 %v643
        %v1516 = vunpack.c.l.b16 %v644
        %v1517 = vunpack.c.h.b16 %v644
        %v1518 = vunpack.c.l.b16 %v645
        %v1519 = vunpack.c.h.b16 %v645
        %v1520 = vunpack.c.l.b16 %v646
        %v1521 = vunpack.c.h.b16 %v646
        %v1522 = vunpack.c.l.b16 %v647
        %v1523 = vunpack.c.h.b16 %v647
        %v1524 = vunpack.c.l.b16 %v648
        %v1525 = vunpack.c.h.b16 %v648
        %v1526 = vunpack.c.l.b16 %v649
        %v1527 = vunpack.c.h.b16 %v649
        %v1528 = vunpack.c.l.b16 %v650
        %v1529 = vunpack.c.h.b16 %v650
        %v1530 = vunpack.c.l.b16 %v651
        %v1531 = vunpack.c.h.b16 %v651
        %v1532 = vunpack.c.l.b16 %v652
        %v1533 = vunpack.c.h.b16 %v652
        %v1534 = vunpack.c.l.b16 %v653
        %v1535 = vunpack.c.h.b16 %v653
        %v1536 = vunpack.c.l.b16 %v654
        %v1537 = vunpack.c.h.b16 %v654
        %v1538 = vunpack.c.l.b16 %v655
        %v1539 = vunpack.c.h.b16 %v655
        %v1540 = vunpack.c.l.b16 %v656
        %v1541 = vunpack.c.h.b16 %v656
        %v1542 = vunpack.c.l.b16 %v657
        %v1543 = vunpack.c.h.b16 %v657
        %v1544 = vunpack.c.l.b16 %v658
        %v1545 = vunpack.c.h.b16 %v658
        %v1546 = vunpack.c.l.b16 %v659
        %v1547 = vunpack.c.h.b16 %v659
        %v1548 = vunpack.c.l.b16 %v660
        %v1549 = vunpack.c.h.b16 %v660
        %v1550 = vunpack.c.l.b16 %v661
        %v1551 = vunpack.c.h.b16 %v661
        %v1552 = vunpack.c.l.b16 %v662
        %v1553 = vunpack.c.h.b16 %v662
        %v1554 = vunpack.c.l.b16 %v663
        %v1555 = vunpack.c.h.b16 %v663
        %v1556 = vunpack.c.l.b16 %v664
        %v1557 = vunpack.c.h.b16 %v664
        %v1558 = vunpack.c.l.b16 %v665
        %v1559 = vunpack.c.h.b16 %v665
        %v1560 = vunpack.c.l.b16 %v666
        %v1561 = vunpack.c.h.b16 %v666
        %v1562 = vunpack.c.l.b16 %v667
        %v1563 = vunpack.c.h.b16 %v667
        %v1564 = vunpack.c.l.b16 %v668
        %v1565 = vunpack.c.h.b16 %v668
        %v1566 = vunpack.c.l.b16 %v669
        %v1567 = vunpack.c.h.b16 %v669
        %v1568 = vunpack.c.l.b16 %v670
        %v1569 = vunpack.c.h.b16 %v670
        %v1570 = vunpack.c.l.b16 %v671
        %v1571 = vunpack.c.h.b16 %v671
        %v1572 = vunpack.c.l.b16 %v672
        %v1573 = vunpack.c.h.b16 %v672
        %v1574 = vunpack.c.l.b16 %v673
        %v1575 = vunpack.c.h.b16 %v673
        %v1576 = vunpack.c.l.b16 %v674
        %v1577 = vunpack.c.h.b16 %v674
        %v1578 = vunpack.c.l.b16 %v675
        %v1579 = vunpack.c.h.b16 %v675
        %v1580 = vunpack.c.l.b16 %v676
        %v1581 = vunpack.c.h.b16 %v676
        %v1582 = vunpack.c.l.b16 %v677
        %v1583 = vunpack.c.h.b16 %v677
        %v1584 = vunpack.c.l.b16 %v678
        %v1585 = vunpack.c.h.b16 %v678
        %v1586 = vunpack.c.l.b16 %v679
        %v1587 = vunpack.c.h.b16 %v679
        %v1588 = vunpack.c.l.b16 %v680
        %v1589 = vunpack.c.h.b16 %v680
        %v1590 = vunpack.c.l.b16 %v681
        %v1591 = vunpack.c.h.b16 %v681
        %v1592 = vunpack.c.l.b16 %v682
        %v1593 = vunpack.c.h.b16 %v682
        %v1594 = vunpack.c.l.b16 %v683
        %v1595 = vunpack.c.h.b16 %v683
        %v1596 = vunpack.c.l.b16 %v684
        %v1597 = vunpack.c.h.b16 %v684
        %v1598 = vunpack.c.l.b16 %v685
        %v1599 = vunpack.c.h.b16 %v685
        %v1600 = vunpack.c.l.b16 %v686
        %v1601 = vunpack.c.h.b16 %v686
        %v1602 = vunpack.c.l.b16 %v687
        %v1603 = vunpack.c.h.b16 %v687
        %v1604 = vunpack.c.l.b16 %v688
        %v1605 = vunpack.c.h.b16 %v688
        %v1606 = vunpack.c.l.b16 %v689
        %v1607 = vunpack.c.h.b16 %v689
        %v1608 = vunpack.c.l.b16 %v690
        %v1609 = vunpack.c.h.b16 %v690
        %v1610 = vunpack.c.l.b16 %v691
        %v1611 = vunpack.c.h.b16 %v691
        %v1612 = vunpack.c.l.b16 %v692
        %v1613 = vunpack.c.h.b16 %v692
        %v1614 = vunpack.c.l.b16 %v693
        %v1615 = vunpack.c.h.b16 %v693
        %v1616 = vunpack.c.l.b16 %v694
        %v1617 = vunpack.c.h.b16 %v694
        %v1618 = vunpack.c.l.b16 %v695
        %v1619 = vunpack.c.h.b16 %v695
        %v1620 = vunpack.c.l.b16 %v696
        %v1621 = vunpack.c.h.b16 %v696
        %v1622 = vunpack.c.l.b16 %v697
        %v1623 = vunpack.c.h.b16 %v697
        %v1624 = vunpack.c.l.b16 %v698
        %v1625 = vunpack.c.h.b16 %v698
        %v1626 = vunpack.c.l.b16 %v699
        %v1627 = vunpack.c.h.b16 %v699
        %v1628 = vunpack.c.l.b16 %v700
        %v1629 = vunpack.c.h.b16 %v700
        %v1630 = vunpack.c.l.b16 %v701
        %v1631 = vunpack.c.h.b16 %v701
        %v1632 = vunpack.c.l.b16 %v702
        %v1633 = vunpack.c.h.b16 %v702
        %v1634 = vunpack.c.l.b16 %v703
        %v1635 = vunpack.c.h.b16 %v703
        %v1636 = vunpack.c.l.b16 %v704
        %v1637 = vunpack.c.h.b16 %v704
        %v1638 = vunpack.c.l.b16 %v705
        %v1639 = vunpack.c.h.b16 %v705
        %v1640 = vunpack.c.l.b16 %v706
        %v1641 = vunpack.c.h.b16 %v706
        %v1642 = vunpack.c.l.b16 %v707
        %v1643 = vunpack.c.h.b16 %v707
        %v1644 = vunpack.c.l.b16 %v708
        %v1645 = vunpack.c.h.b16 %v708
        %v1646 = vunpack.c.l.b16 %v709
        %v1647 = vunpack.c.h.b16 %v709
        %v1648 = vunpack.c.l.b16 %v710
        %v1649 = vunpack.c.h.b16 %v710
        %v1650 = vunpack.c.l.b16 %v711
        %v1651 = vunpack.c.h.b16 %v711
        %v1652 = vunpack.c.l.b16 %v712
        %v1653 = vunpack.c.h.b16 %v712
        %v1654 = vunpack.c.l.b16 %v713
        %v1655 = vunpack.c.h.b16 %v713
        %v1656 = vunpack.c.l.b16 %v714
        %v1657 = vunpack.c.h.b16 %v714
        %v1658 = vunpack.c.l.b16 %v715
        %v1659 = vunpack.c.h.b16 %v715
        %v1660 = vunpack.c.l.b16 %v716
        %v1661 = vunpack.c.h.b16 %v716
        %v1662 = vunpack.c.l.b16 %v717
        %v1663 = vunpack.c.h.b16 %v717
        %v1664 = vunpack.c.l.b16 %v718
        %v1665 = vunpack.c.h.b16 %v718
        %v1666 = vunpack.c.l.b16 %v719
        %v1667 = vunpack.c.h.b16 %v719
        %v1668 = vunpack.c.l.b16 %v720
        %v1669 = vunpack.c.h.b16 %v720
        %v1670 = vunpack.c.l.b16 %v721
        %v1671 = vunpack.c.h.b16 %v721
        %v1672 = vunpack.c.l.b16 %v722
        %v1673 = vunpack.c.h.b16 %v722
        %v1674 = vunpack.c.l.b16 %v723
        %v1675 = vunpack.c.h.b16 %v723
        %v1676 = vunpack.c.l.b16 %v724
        %v1677 = vunpack.c.h.b16 %v724
        %v1678 = vunpack.c.l.b16 %v725
        %v1679 = vunpack.c.h.b16 %v725
        %v1680 = vunpack.c.l.b16 %v726
        %v1681 = vunpack.c.h.b16 %v726
        %v1682 = vunpack.c.l.b16 %v727
        %v1683 = vunpack.c.h.b16 %v727
        %v1684 = vunpack.c.l.b16 %v728
        %v1685 = vunpack.c.h.b16 %v728
        %v1686 = vunpack.c.l.b16 %v729
        %v1687 = vunpack.c.h.b16 %v729
        %v1688 = vunpack.c.l.b16 %v730
        %v1689 = vunpack.c.h.b16 %v730
        %v1690 = vunpack.c.l.b16 %v731
        %v1691 = vunpack.c.h.b16 %v731
        %v1692 = vunpack.c.l.b16 %v732
        %v1693 = vunpack.c.h.b16 %v732
        %v1694 = vunpack.c.l.b16 %v733
        %v1695 = vunpack.c.h.b16 %v733
        %v1696 = vunpack.c.l.b16 %v734
        %v1697 = vunpack.c.h.b16 %v734
        %v1698 = vunpack.c.l.b16 %v735
        %v1699 = vunpack.c.h.b16 %v735
        %v1700 = vunpack.c.l.b16 %v736
        %v1701 = vunpack.c.h.b16 %v736
        %v1702 = vunpack.c.l.b16 %v737
        %v1703 = vunpack.c.h.b16 %v737
        %v1704 = vunpack.c.l.b16 %v738
        %v1705 = vunpack.c.h.b16 %v738
        %v1706 = vunpack.c.l.b16 %v739
        %v1707 = vunpack.c.h.b16 %v739
        %v1708 = vunpack.c.l.b16 %v740
        %v1709 = vunpack.c.h.b16 %v740
        %v1710 = vunpack.c.l.b16 %v741
        %v1711 = vunpack.c.h.b16 %v741
        %v1712 = vunpack.c.l.b16 %v742
        %v1713 = vunpack.c.h.b16 %v742
        %v1714 = vunpack.c.l.b16 %v743
        %v1715 = vunpack.c.h.b16 %v743
        %v1716 = vunpack.c.l.b16 %v744
        %v1717 = vunpack.c.h.b16 %v744
        %v1718 = vunpack.c.l.b16 %v745
        %v1719 = vunpack.c.h.b16 %v745
        %v1720 = vunpack.c.l.b16 %v746
        %v1721 = vunpack.c.h.b16 %v746
        %v1722 = vunpack.c.l.b16 %v747
        %v1723 = vunpack.c.h.b16 %v747
        %v1724 = vunpack.c.l.b16 %v748
        %v1725 = vunpack.c.h.b16 %v748
        %v1726 = vunpack.c.l.b16 %v749
        %v1727 = vunpack.c.h.b16 %v749
        %v1728 = vunpack.c.l.b16 %v750
        %v1729 = vunpack.c.h.b16 %v750
        %v1730 = vunpack.c.l.b16 %v751
        %v1731 = vunpack.c.h.b16 %v751
        %v1732 = vunpack.c.l.b16 %v752
        %v1733 = vunpack.c.h.b16 %v752
        %v1734 = vunpack.c.l.b16 %v753
        %v1735 = vunpack.c.h.b16 %v753
        %v1736 = vunpack.c.l.b16 %v754
        %v1737 = vunpack.c.h.b16 %v754
        %v1738 = vunpack.c.l.b16 %v755
        %v1739 = vunpack.c.h.b16 %v755
        %v1740 = vunpack.c.l.b16 %v756
        %v1741 = vunpack.c.h.b16 %v756
        %v1742 = vunpack.c.l.b16 %v757
        %v1743 = vunpack.c.h.b16 %v757
        %v1744 = vunpack.c.l.b16 %v758
        %v1745 = vunpack.c.h.b16 %v758
        %v1746 = vunpack.c.l.b16 %v759
        %v1747 = vunpack.c.h.b16 %v759
        %v1748 = vunpack.c.l.b16 %v760
        %v1749 = vunpack.c.h.b16 %v760
        %v1750 = vunpack.c.l.b16 %v761
        %v1751 = vunpack.c.h.b16 %v761
        %v1752 = vunpack.c.l.b16 %v762
        %v1753 = vunpack.c.h.b16 %v762
        %v1754 = vunpack.c.l.b16 %v763
        %v1755 = vunpack.c.h.b16 %v763
        %v1756 = vpack.c.b16 %v1184, %v1180
        %v1757 = vpack.c.b16 %v1185, %v1181
        %v1758 = vpack.c.b16 %v1186, %v1182
        %v1759 = vpack.c.b16 %v1187, %v1183
        %v1760 = vpack.c.b16 %v1192, %v1188
        %v1761 = vpack.c.b16 %v1193, %v1189
        %v1762 = vpack.c.b16 %v1194, %v1190
        %v1763 = vpack.c.b16 %v1195, %v1191
        %v1764 = vpack.c.b16 %v1200, %v1196
        %v1765 = vpack.c.b16 %v1201, %v1197
        %v1766 = vpack.c.b16 %v1202, %v1198
        %v1767 = vpack.c.b16 %v1203, %v1199
        %v1768 = vpack.c.b16 %v1208, %v1204
        %v1769 = vpack.c.b16 %v1209, %v1205
        %v1770 = vpack.c.b16 %v1210, %v1206
        %v1771 = vpack.c.b16 %v1211, %v1207
        %v1772 = vpack.c.b16 %v1216, %v1212
        %v1773 = vpack.c.b16 %v1217, %v1213
        %v1774 = vpack.c.b16 %v1218, %v1214
        %v1775 = vpack.c.b16 %v1219, %v1215
        %v1776 = vpack.c.b16 %v1224, %v1220
        %v1777 = vpack.c.b16 %v1225, %v1221
        %v1778 = vpack.c.b16 %v1226, %v1222
        %v1779 = vpack.c.b16 %v1227, %v1223
        %v1780 = vpack.c.b16 %v1232, %v1228
        %v1781 = vpack.c.b16 %v1233, %v1229
        %v1782 = vpack.c.b16 %v1234, %v1230
        %v1783 = vpack.c.b16 %v1235, %v1231
        %v1784 = vpack.c.b16 %v1240, %v1236
        %v1785 = vpack.c.b16 %v1241, %v1237
        %v1786 = vpack.c.b16 %v1242, %v1238
        %v1787 = vpack.c.b16 %v1243, %v1239
        %v1788 = vpack.c.b16 %v1248, %v1244
        %v1789 = vpack.c.b16 %v1249, %v1245
        %v1790 = vpack.c.b16 %v1250, %v1246
        %v1791 = vpack.c.b16 %v1251, %v1247
        %v1792 = vpack.c.b16 %v1256, %v1252
        %v1793 = vpack.c.b16 %v1257, %v1253
        %v1794 = vpack.c.b16 %v1258, %v1254
        %v1795 = vpack.c.b16 %v1259, %v1255
        %v1796 = vpack.c.b16 %v1264, %v1260
        %v1797 = vpack.c.b16 %v1265, %v1261
        %v1798 = vpack.c.b16 %v1266, %v1262
        %v1799 = vpack.c.b16 %v1267, %v1263
        %v1800 = vpack.c.b16 %v1272, %v1268
        %v1801 = vpack.c.b16 %v1273, %v1269
        %v1802 = vpack.c.b16 %v1274, %v1270
        %v1803 = vpack.c.b16 %v1275, %v1271
        %v1804 = vpack.c.b16 %v1280, %v1276
        %v1805 = vpack.c.b16 %v1281, %v1277
        %v1806 = vpack.c.b16 %v1282, %v1278
        %v1807 = vpack.c.b16 %v1283, %v1279
        %v1808 = vpack.c.b16 %v1288, %v1284
        %v1809 = vpack.c.b16 %v1289, %v1285
        %v1810 = vpack.c.b16 %v1290, %v1286
        %v1811 = vpack.c.b16 %v1291, %v1287
        %v1812 = vpack.c.b16 %v1296, %v1292
        %v1813 = vpack.c.b16 %v1297, %v1293
        %v1814 = vpack.c.b16 %v1298, %v1294
        %v1815 = vpack.c.b16 %v1299, %v1295
        %v1816 = vpack.c.b16 %v1304, %v1300
        %v1817 = vpack.c.b16 %v1305, %v1301
        %v1818 = vpack.c.b16 %v1306, %v1302
        %v1819 = vpack.c.b16 %v1307, %v1303
        %v1820 = vpack.c.b16 %v1312, %v1308
        %v1821 = vpack.c.b16 %v1313, %v1309
        %v1822 = vpack.c.b16 %v1314, %v1310
        %v1823 = vpack.c.b16 %v1315, %v1311
        %v1824 = vpack.c.b16 %v1320, %v1316
        %v1825 = vpack.c.b16 %v1321, %v1317
        %v1826 = vpack.c.b16 %v1322, %v1318
        %v1827 = vpack.c.b16 %v1323, %v1319
        %v1828 = vpack.c.b16 %v1328, %v1324
        %v1829 = vpack.c.b16 %v1329, %v1325
        %v1830 = vpack.c.b16 %v1330, %v1326
        %v1831 = vpack.c.b16 %v1331, %v1327
        %v1832 = vpack.c.b16 %v1336, %v1332
        %v1833 = vpack.c.b16 %v1337, %v1333
        %v1834 = vpack.c.b16 %v1338, %v1334
        %v1835 = vpack.c.b16 %v1339, %v1335
        %v1836 = vpack.c.b16 %v1344, %v1340
        %v1837 = vpack.c.b16 %v1345, %v1341
        %v1838 = vpack.c.b16 %v1346, %v1342
        %v1839 = vpack.c.b16 %v1347, %v1343
        %v1840 = vpack.c.b16 %v1352, %v1348
        %v1841 = vpack.c.b16 %v1353, %v1349
        %v1842 = vpack.c.b16 %v1354, %v1350
        %v1843 = vpack.c.b16 %v1355, %v1351
        %v1844 = vpack.c.b16 %v1360, %v1356
        %v1845 = vpack.c.b16 %v1361, %v1357
        %v1846 = vpack.c.b16 %v1362, %v1358
        %v1847 = vpack.c.b16 %v1363, %v1359
        %v1848 = vpack.c.b16 %v1368, %v1364
        %v1849 = vpack.c.b16 %v1369, %v1365
        %v1850 = vpack.c.b16 %v1370, %v1366
        %v1851 = vpack.c.b16 %v1371, %v1367
        %v1852 = vpack.c.b16 %v1376, %v1372
        %v1853 = vpack.c.b16 %v1377, %v1373
        %v1854 = vpack.c.b16 %v1378, %v1374
        %v1855 = vpack.c.b16 %v1379, %v1375
        %v1856 = vpack.c.b16 %v1384, %v1380
        %v1857 = vpack.c.b16 %v1385, %v1381
        %v1858 = vpack.c.b16 %v1386, %v1382
        %v1859 = vpack.c.b16 %v1387, %v1383
        %v1860 = vpack.c.b16 %v1392, %v1388
        %v1861 = vpack.c.b16 %v1393, %v1389
        %v1862 = vpack.c.b16 %v1394, %v1390
        %v1863 = vpack.c.b16 %v1395, %v1391
        %v1864 = vpack.c.b16 %v1400, %v1396
        %v1865 = vpack.c.b16 %v1401, %v1397
        %v1866 = vpack.c.b16 %v1402, %v1398
        %v1867 = vpack.c.b16 %v1403, %v1399
        %v1868 = vpack.c.b16 %v1408, %v1404
        %v1869 = vpack.c.b16 %v1409, %v1405
        %v1870 = vpack.c.b16 %v1410, %v1406
        %v1871 = vpack.c.b16 %v1411, %v1407
        %v1872 = vpack.c.b16 %v1416, %v1412
        %v1873 = vpack.c.b16 %v1417, %v1413
        %v1874 = vpack.c.b16 %v1418, %v1414
        %v1875 = vpack.c.b16 %v1419, %v1415
        %v1876 = vpack.c.b16 %v1424, %v1420
        %v1877 = vpack.c.b16 %v1425, %v1421
        %v1878 = vpack.c.b16 %v1426, %v1422
        %v1879 = vpack.c.b16 %v1427, %v1423
        %v1880 = vpack.c.b16 %v1432, %v1428
        %v1881 = vpack.c.b16 %v1433, %v1429
        %v1882 = vpack.c.b16 %v1434, %v1430
        %v1883 = vpack.c.b16 %v1435, %v1431
        %v1884 = vpack.c.b16 %v1440, %v1436
        %v1885 = vpack.c.b16 %v1441, %v1437
        %v1886 = vpack.c.b16 %v1442, %v1438
        %v1887 = vpack.c.b16 %v1443, %v1439
        %v1888 = vpack.c.b16 %v1448, %v1444
        %v1889 = vpack.c.b16 %v1449, %v1445
        %v1890 = vpack.c.b16 %v1450, %v1446
        %v1891 = vpack.c.b16 %v1451, %v1447
        %v1892 = vpack.c.b16 %v1456, %v1452
        %v1893 = vpack.c.b16 %v1457, %v1453
        %v1894 = vpack.c.b16 %v1458, %v1454
        %v1895 = vpack.c.b16 %v1459, %v1455
        %v1896 = vpack.c.b16 %v1464, %v1460
        %v1897 = vpack.c.b16 %v1465, %v1461
        %v1898 = vpack.c.b16 %v1466, %v1462
        %v1899 = vpack.c.b16 %v1467, %v1463
        %v1900 = vpack.c.b16 %v1472, %v1468
        %v1901 = vpack.c.b16 %v1473, %v1469
        %v1902 = vpack.c.b16 %v1474, %v1470
        %v1903 = vpack.c.b16 %v1475, %v1471
        %v1904 = vpack.c.b16 %v1480, %v1476
        %v1905 = vpack.c.b16 %v1481, %v1477
        %v1906 = vpack.c.b16 %v1482, %v1478
        %v1907 = vpack.c.b16 %v1483, %v1479
        %v1908 = vpack.c.b16 %v1488, %v1484
        %v1909 = vpack.c.b16 %v1489, %v1485
        %v1910 = vpack.c.b16 %v1490, %v1486
        %v1911 = vpack.c.b16 %v1491, %v1487
        %v1912 = vpack.c.b16 %v1496, %v1492
        %v1913 = vpack.c.b16 %v1497, %v1493
        %v1914 = vpack.c.b16 %v1498, %v1494
        %v1915 = vpack.c.b16 %v1499, %v1495
        %v1916 = vpack.c.b16 %v1504, %v1500
        %v1917 = vpack.c.b16 %v1505, %v1501
        %v1918 = vpack.c.b16 %v1506, %v1502
        %v1919 = vpack.c.b16 %v1507, %v1503
        %v1920 = vpack.c.b16 %v1512, %v1508
        %v1921 = vpack.c.b16 %v1513, %v1509
        %v1922 = vpack.c.b16 %v1514, %v1510
        %v1923 = vpack.c.b16 %v1515, %v1511
        %v1924 = vpack.c.b16 %v1520, %v1516
        %v1925 = vpack.c.b16 %v1521, %v1517
        %v1926 = vpack.c.b16 %v1522, %v1518
        %v1927 = vpack.c.b16 %v1523, %v1519
        %v1928 = vpack.c.b16 %v1528, %v1524
        %v1929 = vpack.c.b16 %v1529, %v1525
        %v1930 = vpack.c.b16 %v1530, %v1526
        %v1931 = vpack.c.b16 %v1531, %v1527
        %v1932 = vpack.c.b16 %v1536, %v1532
        %v1933 = vpack.c.b16 %v1537, %v1533
        %v1934 = vpack.c.b16 %v1538, %v1534
        %v1935 = vpack.c.b16 %v1539, %v1535
        %v1936 = vpack.c.b16 %v1544, %v1540
        %v1937 = vpack.c.b16 %v1545, %v1541
        %v1938 = vpack.c.b16 %v1546, %v1542
        %v1939 = vpack.c.b16 %v1547, %v1543
        %v1940 = vpack.c.b16 %v1552, %v1548
        %v1941 = vpack.c.b16 %v1553, %v1549
        %v1942 = vpack.c.b16 %v1554, %v1550
        %v1943 = vpack.c.b16 %v1555, %v1551
        %v1944 = vpack.c.b16 %v1560, %v1556
        %v1945 = vpack.c.b16 %v1561, %v1557
        %v1946 = vpack.c.b16 %v1562, %v1558
        %v1947 = vpack.c.b16 %v1563, %v1559
        %v1948 = vpack.c.b16 %v1568, %v1564
        %v1949 = vpack.c.b16 %v1569, %v1565
        %v1950 = vpack.c.b16 %v1570, %v1566
        %v1951 = vpack.c.b16 %v1571, %v1567
        %v1952 = vpack.c.b16 %v1576, %v1572
        %v1953 = vpack.c.b16 %v1577, %v1573
        %v1954 = vpack.c.b16 %v1578, %v1574
        %v1955 = vpack.c.b16 %v1579, %v1575
        %v1956 = vpack.c.b16 %v1584, %v1580
        %v1957 = vpack.c.b16 %v1585, %v1581
        %v1958 = vpack.c.b16 %v1586, %v1582
        %v1959 = vpack.c.b16 %v1587, %v1583
        %v1960 = vpack.c.b16 %v1592, %v1588
        %v1961 = vpack.c.b16 %v1593, %v1589
        %v1962 = vpack.c.b16 %v1594, %v1590
        %v1963 = vpack.c.b16 %v1595, %v1591
        %v1964 = vpack.c.b16 %v1600, %v1596
        %v1965 = vpack.c.b16 %v1601, %v1597
        %v1966 = vpack.c.b16 %v1602, %v1598
        %v1967 = vpack.c.b16 %v1603, %v1599
        %v1968 = vpack.c.b16 %v1608, %v1604
        %v1969 = vpack.c.b16 %v1609, %v1605
        %v1970 = vpack.c.b16 %v1610, %v1606
        %v1971 = vpack.c.b16 %v1611, %v1607
        %v1972 = vpack.c.b16 %v1616, %v1612
        %v1973 = vpack.c.b16 %v1617, %v1613
        %v1974 = vpack.c.b16 %v1618, %v1614
        %v1975 = vpack.c.b16 %v1619, %v1615
        %v1976 = vpack.c.b16 %v1624, %v1620
        %v1977 = vpack.c.b16 %v1625, %v1621
        %v1978 = vpack.c.b16 %v1626, %v1622
        %v1979 = vpack.c.b16 %v1627, %v1623
        %v1980 = vpack.c.b16 %v1632, %v1628
        %v1981 = vpack.c.b16 %v1633, %v1629
        %v1982 = vpack.c.b16 %v1634, %v1630
        %v1983 = vpack.c.b16 %v1635, %v1631
        %v1984 = vpack.c.b16 %v1640, %v1636
        %v1985 = vpack.c.b16 %v1641, %v1637
        %v1986 = vpack.c.b16 %v1642, %v1638
        %v1987 = vpack.c.b16 %v1643, %v1639
        %v1988 = vpack.c.b16 %v1648, %v1644
        %v1989 = vpack.c.b16 %v1649, %v1645
        %v1990 = vpack.c.b16 %v1650, %v1646
        %v1991 = vpack.c.b16 %v1651, %v1647
        %v1992 = vpack.c.b16 %v1656, %v1652
        %v1993 = vpack.c.b16 %v1657, %v1653
        %v1994 = vpack.c.b16 %v1658, %v1654
        %v1995 = vpack.c.b16 %v1659, %v1655
        %v1996 = vpack.c.b16 %v1664, %v1660
        %v1997 = vpack.c.b16 %v1665, %v1661
        %v1998 = vpack.c.b16 %v1666, %v1662
        %v1999 = vpack.c.b16 %v1667, %v1663
        %v2000 = vpack.c.b16 %v1672, %v1668
        %v2001 = vpack.c.b16 %v1673, %v1669
        %v2002 = vpack.c.b16 %v1674, %v1670
        %v2003 = vpack.c.b16 %v1675, %v1671
        %v2004 = vpack.c.b16 %v1680, %v1676
        %v2005 = vpack.c.b16 %v1681, %v1677
        %v2006 = vpack.c.b16 %v1682, %v1678
        %v2007 = vpack.c.b16 %v1683, %v1679
        %v2008 = vpack.c.b16 %v1688, %v1684
        %v2009 = vpack.c.b16 %v1689, %v1685
        %v2010 = vpack.c.b16 %v1690, %v1686
        %v2011 = vpack.c.b16 %v1691, %v1687
        %v2012 = vpack.c.b16 %v1696, %v1692
        %v2013 = vpack.c.b16 %v1697, %v1693
        %v2014 = vpack.c.b16 %v1698, %v1694
        %v2015 = vpack.c.b16 %v1699, %v1695
        %v2016 = vpack.c.b16 %v1704, %v1700
        %v2017 = vpack.c.b16 %v1705, %v1701
        %v2018 = vpack.c.b16 %v1706, %v1702
        %v2019 = vpack.c.b16 %v1707, %v1703
        %v2020 = vpack.c.b16 %v1712, %v1708
        %v2021 = vpack.c.b16 %v1713, %v1709
        %v2022 = vpack.c.b16 %v1714, %v1710
        %v2023 = vpack.c.b16 %v1715, %v1711
        %v2024 = vpack.c.b16 %v1720, %v1716
        %v2025 = vpack.c.b16 %v1721, %v1717
        %v2026 = vpack.c.b16 %v1722, %v1718
        %v2027 = vpack.c.b16 %v1723, %v1719
        %v2028 = vpack.c.b16 %v1728, %v1724
        %v2029 = vpack.c.b16 %v1729, %v1725
        %v2030 = vpack.c.b16 %v1730, %v1726
        %v2031 = vpack.c.b16 %v1731, %v1727
        %v2032 = vpack.c.b16 %v1736, %v1732
        %v2033 = vpack.c.b16 %v1737, %v1733
        %v2034 = vpack.c.b16 %v1738, %v1734
        %v2035 = vpack.c.b16 %v1739, %v1735
        %v2036 = vpack.c.b16 %v1744, %v1740
        %v2037 = vpack.c.b16 %v1745, %v1741
        %v2038 = vpack.c.b16 %v1746, %v1742
        %v2039 = vpack.c.b16 %v1747, %v1743
        %v2040 = vpack.c.b16 %v1752, %v1748
        %v2041 = vpack.c.b16 %v1753, %v1749
        %v2042 = vpack.c.b16 %v1754, %v1750
        %v2043 = vpack.c.b16 %v1755, %v1751
        %2332 = vmatprep.subr.bf16.mxu0 %v1757
        %2333 = vmatpush1.bf16.msra.mxu0 %v1756
        %2334 = vmatprep.subr.bf16.mxu0 %v1761
        %2335 = vmatpush1.bf16.msra.mxu0 %v1760
        %2336 = vmatprep.subr.bf16.mxu0 %v1765
        %2337 = vmatpush1.bf16.msra.mxu0 %v1764
        %2338 = vmatprep.subr.bf16.mxu0 %v1769
        %2339 = vmatpush1.bf16.msra.mxu0 %v1768
        %2340 = vmatprep.subr.bf16.mxu0 %v1773
        %2341 = vmatpush1.bf16.msra.mxu0 %v1772
        %2342 = vmatprep.subr.bf16.mxu0 %v1777
        %2343 = vmatpush1.bf16.msra.mxu0 %v1776
        %2344 = vmatprep.subr.bf16.mxu0 %v1781
        %2345 = vmatpush1.bf16.msra.mxu0 %v1780
        %2346 = vmatprep.subr.bf16.mxu0 %v1785
        %2347 = vmatpush1.bf16.msra.mxu0 %v1784
        %2348 = vmatprep.subr.bf16.mxu0 %v1789
        %2349 = vmatpush1.bf16.msra.mxu0 %v1788
        %2350 = vmatprep.subr.bf16.mxu0 %v1793
        %2351 = vmatpush1.bf16.msra.mxu0 %v1792
        %2352 = vmatprep.subr.bf16.mxu0 %v1797
        %2353 = vmatpush1.bf16.msra.mxu0 %v1796
        %2354 = vmatprep.subr.bf16.mxu0 %v1801
        %2355 = vmatpush1.bf16.msra.mxu0 %v1800
        %2356 = vmatprep.subr.bf16.mxu0 %v1805
        %2357 = vmatpush1.bf16.msra.mxu0 %v1804
        %2358 = vmatprep.subr.bf16.mxu0 %v1809
        %2359 = vmatpush1.bf16.msra.mxu0 %v1808
        %2360 = vmatprep.subr.bf16.mxu0 %v1813
        %2361 = vmatpush1.bf16.msra.mxu0 %v1812
        %2362 = vmatprep.subr.bf16.mxu0 %v1817
        %2363 = vmatpush1.bf16.msra.mxu0 %v1816
        %2364 = vmatprep.mubr.bf16.mxu0 %v857
        %2365 = vmatmul.mubr.bf16.gmra.mrb[0].mxu0 %v856
        %v2366 = vpop.f32.mrb[0].mxu0
        %v2367 = vadd.f32 0.0, %v2366
        %v2368 = vpop.f32.mrb[0].mxu0
        %v2369 = vadd.f32 0.0, %v2368
        %v2370 = vpop.f32.mrb[0].mxu0
        %v2371 = vadd.f32 0.0, %v2370
        %v2372 = vpop.f32.mrb[0].mxu0
        %v2373 = vadd.f32 0.0, %v2372
        %2374 = vmatprep.mubr.bf16.mxu0 %v866
        %2375 = vmatmul.mubr.bf16.gmra.mrb[0].mxu0 %v865
        %v2376 = vpop.f32.mrb[0].mxu0
        %v2377 = vadd.f32 0.0, %v2376
        %v2378 = vpop.f32.mrb[0].mxu0
        %v2379 = vadd.f32 0.0, %v2378
        %v2380 = vpop.f32.mrb[0].mxu0
        %v2381 = vadd.f32 0.0, %v2380
        %v2382 = vpop.f32.mrb[0].mxu0
        %v2383 = vadd.f32 0.0, %v2382
        %2384 = vdwg.mxu0
        %2385 = vmatprep.subr.bf16.mxu0 %v1821
        %2386 = vmatpush1.bf16.msra.mxu0 %v1820
        %2387 = vmatprep.subr.bf16.mxu0 %v1825
        %2388 = vmatpush1.bf16.msra.mxu0 %v1824
        %2389 = vmatprep.subr.bf16.mxu0 %v1829
        %2390 = vmatpush1.bf16.msra.mxu0 %v1828
        %2391 = vmatprep.subr.bf16.mxu0 %v1833
        %2392 = vmatpush1.bf16.msra.mxu0 %v1832
        %2393 = vmatprep.subr.bf16.mxu0 %v1837
        %2394 = vmatpush1.bf16.msra.mxu0 %v1836
        %2395 = vmatprep.subr.bf16.mxu0 %v1841
        %2396 = vmatpush1.bf16.msra.mxu0 %v1840
        %2397 = vmatprep.subr.bf16.mxu0 %v1845
        %2398 = vmatpush1.bf16.msra.mxu0 %v1844
        %2399 = vmatprep.subr.bf16.mxu0 %v1849
        %2400 = vmatpush1.bf16.msra.mxu0 %v1848
        %2401 = vmatprep.subr.bf16.mxu0 %v1853
        %2402 = vmatpush1.bf16.msra.mxu0 %v1852
        %2403 = vmatprep.subr.bf16.mxu0 %v1857
        %2404 = vmatpush1.bf16.msra.mxu0 %v1856
        %2405 = vmatprep.subr.bf16.mxu0 %v1861
        %2406 = vmatpush1.bf16.msra.mxu0 %v1860
        %2407 = vmatprep.subr.bf16.mxu0 %v1865
        %2408 = vmatpush1.bf16.msra.mxu0 %v1864
        %2409 = vmatprep.subr.bf16.mxu0 %v1869
        %2410 = vmatpush1.bf16.msra.mxu0 %v1868
        %2411 = vmatprep.subr.bf16.mxu0 %v1873
        %2412 = vmatpush1.bf16.msra.mxu0 %v1872
        %2413 = vmatprep.subr.bf16.mxu0 %v1877
        %2414 = vmatpush1.bf16.msra.mxu0 %v1876
        %2415 = vmatprep.subr.bf16.mxu0 %v1881
        %2416 = vmatpush1.bf16.msra.mxu0 %v1880
        %2417 = vmatprep.mubr.bf16.mxu0 %v859
        %2418 = vmatmul.mubr.bf16.gmra.mrb[0].mxu0 %v858
        %v2419 = vpop.f32.mrb[0].mxu0
        %v2420 = vadd.f32 %v2367, %v2419
        %v2421 = vpop.f32.mrb[0].mxu0
        %v2422 = vadd.f32 %v2369, %v2421
        %v2423 = vpop.f32.mrb[0].mxu0
        %v2424 = vadd.f32 %v2371, %v2423
        %v2425 = vpop.f32.mrb[0].mxu0
        %v2426 = vadd.f32 %v2373, %v2425
        %2427 = vmatprep.mubr.bf16.mxu0 %v868
        %2428 = vmatmul.mubr.bf16.gmra.mrb[0].mxu0 %v867
        %v2429 = vpop.f32.mrb[0].mxu0
        %v2430 = vadd.f32 %v2377, %v2429
        %v2431 = vpop.f32.mrb[0].mxu0
        %v2432 = vadd.f32 %v2379, %v2431
        %v2433 = vpop.f32.mrb[0].mxu0
        %v2434 = vadd.f32 %v2381, %v2433
        %v2435 = vpop.f32.mrb[0].mxu0
        %v2436 = vadd.f32 %v2383, %v2435
        %2437 = vdwg.mxu0
        %2438 = vmatprep.subr.bf16.mxu0 %v1885
        %2439 = vmatpush1.bf16.msra.mxu0 %v1884
        %2440 = vmatprep.subr.bf16.mxu0 %v1889
        %2441 = vmatpush1.bf16.msra.mxu0 %v1888
        %2442 = vmatprep.subr.bf16.mxu0 %v1893
        %2443 = vmatpush1.bf16.msra.mxu0 %v1892
        %2444 = vmatprep.subr.bf16.mxu0 %v1897
        %2445 = vmatpush1.bf16.msra.mxu0 %v1896
        %2446 = vmatprep.subr.bf16.mxu0 %v1901
        %2447 = vmatpush1.bf16.msra.mxu0 %v1900
        %2448 = vmatprep.subr.bf16.mxu0 %v1905
        %2449 = vmatpush1.bf16.msra.mxu0 %v1904
        %2450 = vmatprep.subr.bf16.mxu0 %v1909
        %2451 = vmatpush1.bf16.msra.mxu0 %v1908
        %2452 = vmatprep.subr.bf16.mxu0 %v1913
        %2453 = vmatpush1.bf16.msra.mxu0 %v1912
        %2454 = vmatprep.subr.bf16.mxu0 %v1917
        %2455 = vmatpush1.bf16.msra.mxu0 %v1916
        %2456 = vmatprep.subr.bf16.mxu0 %v1921
        %2457 = vmatpush1.bf16.msra.mxu0 %v1920
        %2458 = vmatprep.subr.bf16.mxu0 %v1925
        %2459 = vmatpush1.bf16.msra.mxu0 %v1924
        %2460 = vmatprep.subr.bf16.mxu0 %v1929
        %2461 = vmatpush1.bf16.msra.mxu0 %v1928
        %2462 = vmatprep.subr.bf16.mxu0 %v1933
        %2463 = vmatpush1.bf16.msra.mxu0 %v1932
        %2464 = vmatprep.subr.bf16.mxu0 %v1937
        %2465 = vmatpush1.bf16.msra.mxu0 %v1936
        %2466 = vmatprep.subr.bf16.mxu0 %v1941
        %2467 = vmatpush1.bf16.msra.mxu0 %v1940
        %2468 = vmatprep.subr.bf16.mxu0 %v1945
        %2469 = vmatpush1.bf16.msra.mxu0 %v1944
        %2470 = vmatprep.mubr.bf16.mxu0 %v861
        %2471 = vmatmul.mubr.bf16.gmra.mrb[0].mxu0 %v860
        %v2472 = vpop.f32.mrb[0].mxu0
        %v2473 = vadd.f32 %v2420, %v2472
        %v2474 = vpop.f32.mrb[0].mxu0
        %v2475 = vadd.f32 %v2422, %v2474
        %v2476 = vpop.f32.mrb[0].mxu0
        %v2477 = vadd.f32 %v2424, %v2476
        %v2478 = vpop.f32.mrb[0].mxu0
        %v2479 = vadd.f32 %v2426, %v2478
        %2480 = vmatprep.mubr.bf16.mxu0 %v870
        %2481 = vmatmul.mubr.bf16.gmra.mrb[0].mxu0 %v869
        %v2482 = vpop.f32.mrb[0].mxu0
        %v2483 = vadd.f32 %v2430, %v2482
        %v2484 = vpop.f32.mrb[0].mxu0
        %v2485 = vadd.f32 %v2432, %v2484
        %v2486 = vpop.f32.mrb[0].mxu0
        %v2487 = vadd.f32 %v2434, %v2486
        %v2488 = vpop.f32.mrb[0].mxu0
        %v2489 = vadd.f32 %v2436, %v2488
        %2490 = vdwg.mxu0
        %2491 = vmatprep.subr.bf16.mxu0 %v1949
        %2492 = vmatpush1.bf16.msra.mxu0 %v1948
        %2493 = vmatprep.subr.bf16.mxu0 %v1953
        %2494 = vmatpush1.bf16.msra.mxu0 %v1952
        %2495 = vmatprep.subr.bf16.mxu0 %v1957
        %2496 = vmatpush1.bf16.msra.mxu0 %v1956
        %2497 = vmatprep.subr.bf16.mxu0 %v1961
        %2498 = vmatpush1.bf16.msra.mxu0 %v1960
        %2499 = vmatprep.subr.bf16.mxu0 %v1965
        %2500 = vmatpush1.bf16.msra.mxu0 %v1964
        %2501 = vmatprep.subr.bf16.mxu0 %v1969
        %2502 = vmatpush1.bf16.msra.mxu0 %v1968
        %2503 = vmatprep.subr.bf16.mxu0 %v1973
        %2504 = vmatpush1.bf16.msra.mxu0 %v1972
        %2505 = vmatprep.subr.bf16.mxu0 %v1977
        %2506 = vmatpush1.bf16.msra.mxu0 %v1976
        %2507 = vmatprep.subr.bf16.mxu0 %v1981
        %2508 = vmatpush1.bf16.msra.mxu0 %v1980
        %2509 = vmatprep.subr.bf16.mxu0 %v1985
        %2510 = vmatpush1.bf16.msra.mxu0 %v1984
        %2511 = vmatprep.subr.bf16.mxu0 %v1989
        %2512 = vmatpush1.bf16.msra.mxu0 %v1988
        %2513 = vmatprep.subr.bf16.mxu0 %v1993
        %2514 = vmatpush1.bf16.msra.mxu0 %v1992
        %2515 = vmatprep.subr.bf16.mxu0 %v1997
        %2516 = vmatpush1.bf16.msra.mxu0 %v1996
        %2517 = vmatprep.subr.bf16.mxu0 %v2001
        %2518 = vmatpush1.bf16.msra.mxu0 %v2000
        %2519 = vmatprep.subr.bf16.mxu0 %v2005
        %2520 = vmatpush1.bf16.msra.mxu0 %v2004
        %2521 = vmatprep.subr.bf16.mxu0 %v2009
        %2522 = vmatpush1.bf16.msra.mxu0 %v2008
        %2523 = vmatprep.mubr.bf16.mxu0 %v863
        %2524 = vmatmul.mubr.bf16.gmra.mrb[0].mxu0 %v862
        %v2525 = vpop.f32.mrb[0].mxu0
        %v2526 = vadd.f32 %v2473, %v2525
        %v2527 = vpop.f32.mrb[0].mxu0
        %v2528 = vadd.f32 %v2475, %v2527
        %v2529 = vpop.f32.mrb[0].mxu0
        %v2530 = vadd.f32 %v2477, %v2529
        %v2531 = vpop.f32.mrb[0].mxu0
        %v2532 = vadd.f32 %v2479, %v2531
        %2533 = vmatprep.mubr.bf16.mxu0 %v872
        %2534 = vmatmul.mubr.bf16.gmra.mrb[0].mxu0 %v871
        %v2535 = vpop.f32.mrb[0].mxu0
        %v2536 = vadd.f32 %v2483, %v2535
        %v2537 = vpop.f32.mrb[0].mxu0
        %v2538 = vadd.f32 %v2485, %v2537
        %v2539 = vpop.f32.mrb[0].mxu0
        %v2540 = vadd.f32 %v2487, %v2539
        %v2541 = vpop.f32.mrb[0].mxu0
        %v2542 = vadd.f32 %v2489, %v2541
        %2543 = vdwg.mxu0
        %2544 = vmatprep.subr.bf16.mxu0 %v2013
        %2545 = vmatpush1.bf16.msra.mxu0 %v2012
        %2546 = vmatprep.subr.bf16.mxu0 %v2017
        %2547 = vmatpush1.bf16.msra.mxu0 %v2016
        %2548 = vmatprep.subr.bf16.mxu0 %v2021
        %2549 = vmatpush1.bf16.msra.mxu0 %v2020
        %2550 = vmatprep.subr.bf16.mxu0 %v2025
        %2551 = vmatpush1.bf16.msra.mxu0 %v2024
        %2552 = vmatprep.subr.bf16.mxu0 %v2029
        %2553 = vmatpush1.bf16.msra.mxu0 %v2028
        %2554 = vmatprep.subr.bf16.mxu0 %v2033
        %2555 = vmatpush1.bf16.msra.mxu0 %v2032
        %2556 = vmatprep.subr.bf16.mxu0 %v2037
        %2557 = vmatpush1.bf16.msra.mxu0 %v2036
        %2558 = vmatprep.subr.bf16.mxu0 %v2041
        %2559 = vmatpush1.bf16.msra.mxu0 %v2040
        %2560 = vmatprep.subr.bf16.mxu0 0
        %2561 = vmatpush1.bf16.msra.mxu0 0
        %2562 = vmatprep.subr.bf16.mxu0 0
        %2563 = vmatpush1.bf16.msra.mxu0 0
        %2564 = vmatprep.subr.bf16.mxu0 0
        %2565 = vmatpush1.bf16.msra.mxu0 0
        %2566 = vmatprep.subr.bf16.mxu0 0
        %2567 = vmatpush1.bf16.msra.mxu0 0
        %2568 = vmatprep.subr.bf16.mxu0 0
        %2569 = vmatpush1.bf16.msra.mxu0 0
        %2570 = vmatprep.subr.bf16.mxu0 0
        %2571 = vmatpush1.bf16.msra.mxu0 0
        %2572 = vmatprep.subr.bf16.mxu0 0
        %2573 = vmatpush1.bf16.msra.mxu0 0
        %2574 = vmatprep.subr.bf16.mxu0 0
        %2575 = vmatpush1.bf16.msra.mxu0 0
        %2576 = vmatprep.mubr.bf16.mxu0 0
        %2577 = vmatmul.mubr.bf16.gmra.mrb[0].mxu0 %v864
        %v2578 = vpop.f32.mrb[0].mxu0
        %v2579 = vadd.f32 %v2526, %v2578
        %v2580 = vpop.f32.mrb[0].mxu0
        %v2581 = vadd.f32 %v2528, %v2580
        %v2582 = vpop.f32.mrb[0].mxu0
        %v2583 = vadd.f32 %v2530, %v2582
        %v2584 = vpop.f32.mrb[0].mxu0
        %v2585 = vadd.f32 %v2532, %v2584
        %2586 = vmatprep.mubr.bf16.mxu0 0
        %2587 = vmatmul.mubr.bf16.gmra.mrb[0].mxu0 %v873
        %v2588 = vpop.f32.mrb[0].mxu0
        %v2589 = vadd.f32 %v2536, %v2588
        %v2590 = vpop.f32.mrb[0].mxu0
        %v2591 = vadd.f32 %v2538, %v2590
        %v2592 = vpop.f32.mrb[0].mxu0
        %v2593 = vadd.f32 %v2540, %v2592
        %v2594 = vpop.f32.mrb[0].mxu0
        %v2595 = vadd.f32 %v2542, %v2594
        %2596 = vdwg.mxu0
        %2597 = vmatprep.subr.bf16.mxu0 %v1759
        %2598 = vmatpush1.bf16.msra.mxu0 %v1758
        %2599 = vmatprep.subr.bf16.mxu0 %v1763
        %2600 = vmatpush1.bf16.msra.mxu0 %v1762
        %2601 = vmatprep.subr.bf16.mxu0 %v1767
        %2602 = vmatpush1.bf16.msra.mxu0 %v1766
        %2603 = vmatprep.subr.bf16.mxu0 %v1771
        %2604 = vmatpush1.bf16.msra.mxu0 %v1770
        %2605 = vmatprep.subr.bf16.mxu0 %v1775
        %2606 = vmatpush1.bf16.msra.mxu0 %v1774
        %2607 = vmatprep.subr.bf16.mxu0 %v1779
        %2608 = vmatpush1.bf16.msra.mxu0 %v1778
        %2609 = vmatprep.subr.bf16.mxu0 %v1783
        %2610 = vmatpush1.bf16.msra.mxu0 %v1782
        %2611 = vmatprep.subr.bf16.mxu0 %v1787
        %2612 = vmatpush1.bf16.msra.mxu0 %v1786
        %2613 = vmatprep.subr.bf16.mxu0 %v1791
        %2614 = vmatpush1.bf16.msra.mxu0 %v1790
        %2615 = vmatprep.subr.bf16.mxu0 %v1795
        %2616 = vmatpush1.bf16.msra.mxu0 %v1794
        %2617 = vmatprep.subr.bf16.mxu0 %v1799
        %2618 = vmatpush1.bf16.msra.mxu0 %v1798
        %2619 = vmatprep.subr.bf16.mxu0 %v1803
        %2620 = vmatpush1.bf16.msra.mxu0 %v1802
        %2621 = vmatprep.subr.bf16.mxu0 %v1807
        %2622 = vmatpush1.bf16.msra.mxu0 %v1806
        %2623 = vmatprep.subr.bf16.mxu0 %v1811
        %2624 = vmatpush1.bf16.msra.mxu0 %v1810
        %2625 = vmatprep.subr.bf16.mxu0 %v1815
        %2626 = vmatpush1.bf16.msra.mxu0 %v1814
        %2627 = vmatprep.subr.bf16.mxu0 %v1819
        %2628 = vmatpush1.bf16.msra.mxu0 %v1818
        %2629 = vmatprep.mubr.bf16.mxu0 %v857
        %2630 = vmatmul.mubr.bf16.gmra.mrb[0].mxu0 %v856
        %v2631 = vpop.f32.mrb[0].mxu0
        %v2632 = vadd.f32 0.0, %v2631
        %v2633 = vpop.f32.mrb[0].mxu0
        %v2634 = vadd.f32 0.0, %v2633
        %v2635 = vpop.f32.mrb[0].mxu0
        %v2636 = vadd.f32 0.0, %v2635
        %v2637 = vpop.f32.mrb[0].mxu0
        %v2638 = vadd.f32 0.0, %v2637
        %2639 = vmatprep.mubr.bf16.mxu0 %v866
        %2640 = vmatmul.mubr.bf16.gmra.mrb[0].mxu0 %v865
        %v2641 = vpop.f32.mrb[0].mxu0
        %v2642 = vadd.f32 0.0, %v2641
        %v2643 = vpop.f32.mrb[0].mxu0
        %v2644 = vadd.f32 0.0, %v2643
        %v2645 = vpop.f32.mrb[0].mxu0
        %v2646 = vadd.f32 0.0, %v2645
        %v2647 = vpop.f32.mrb[0].mxu0
        %v2648 = vadd.f32 0.0, %v2647
        %2649 = vdwg.mxu0
        %2650 = vmatprep.subr.bf16.mxu0 %v1823
        %2651 = vmatpush1.bf16.msra.mxu0 %v1822
        %2652 = vmatprep.subr.bf16.mxu0 %v1827
        %2653 = vmatpush1.bf16.msra.mxu0 %v1826
        %2654 = vmatprep.subr.bf16.mxu0 %v1831
        %2655 = vmatpush1.bf16.msra.mxu0 %v1830
        %2656 = vmatprep.subr.bf16.mxu0 %v1835
        %2657 = vmatpush1.bf16.msra.mxu0 %v1834
        %2658 = vmatprep.subr.bf16.mxu0 %v1839
        %2659 = vmatpush1.bf16.msra.mxu0 %v1838
        %2660 = vmatprep.subr.bf16.mxu0 %v1843
        %2661 = vmatpush1.bf16.msra.mxu0 %v1842
        %2662 = vmatprep.subr.bf16.mxu0 %v1847
        %2663 = vmatpush1.bf16.msra.mxu0 %v1846
        %2664 = vmatprep.subr.bf16.mxu0 %v1851
        %2665 = vmatpush1.bf16.msra.mxu0 %v1850
        %2666 = vmatprep.subr.bf16.mxu0 %v1855
        %2667 = vmatpush1.bf16.msra.mxu0 %v1854
        %2668 = vmatprep.subr.bf16.mxu0 %v1859
        %2669 = vmatpush1.bf16.msra.mxu0 %v1858
        %2670 = vmatprep.subr.bf16.mxu0 %v1863
        %2671 = vmatpush1.bf16.msra.mxu0 %v1862
        %2672 = vmatprep.subr.bf16.mxu0 %v1867
        %2673 = vmatpush1.bf16.msra.mxu0 %v1866
        %2674 = vmatprep.subr.bf16.mxu0 %v1871
        %2675 = vmatpush1.bf16.msra.mxu0 %v1870
        %2676 = vmatprep.subr.bf16.mxu0 %v1875
        %2677 = vmatpush1.bf16.msra.mxu0 %v1874
        %2678 = vmatprep.subr.bf16.mxu0 %v1879
        %2679 = vmatpush1.bf16.msra.mxu0 %v1878
        %2680 = vmatprep.subr.bf16.mxu0 %v1883
        %2681 = vmatpush1.bf16.msra.mxu0 %v1882
        %2682 = vmatprep.mubr.bf16.mxu0 %v859
        %2683 = vmatmul.mubr.bf16.gmra.mrb[0].mxu0 %v858
        %v2684 = vpop.f32.mrb[0].mxu0
        %v2685 = vadd.f32 %v2632, %v2684
        %v2686 = vpop.f32.mrb[0].mxu0
        %v2687 = vadd.f32 %v2634, %v2686
        %v2688 = vpop.f32.mrb[0].mxu0
        %v2689 = vadd.f32 %v2636, %v2688
        %v2690 = vpop.f32.mrb[0].mxu0
        %v2691 = vadd.f32 %v2638, %v2690
        %2692 = vmatprep.mubr.bf16.mxu0 %v868
        %2693 = vmatmul.mubr.bf16.gmra.mrb[0].mxu0 %v867
        %v2694 = vpop.f32.mrb[0].mxu0
        %v2695 = vadd.f32 %v2642, %v2694
        %v2696 = vpop.f32.mrb[0].mxu0
        %v2697 = vadd.f32 %v2644, %v2696
        %v2698 = vpop.f32.mrb[0].mxu0
        %v2699 = vadd.f32 %v2646, %v2698
        %v2700 = vpop.f32.mrb[0].mxu0
        %v2701 = vadd.f32 %v2648, %v2700
        %2702 = vdwg.mxu0
        %2703 = vmatprep.subr.bf16.mxu0 %v1887
        %2704 = vmatpush1.bf16.msra.mxu0 %v1886
        %2705 = vmatprep.subr.bf16.mxu0 %v1891
        %2706 = vmatpush1.bf16.msra.mxu0 %v1890
        %2707 = vmatprep.subr.bf16.mxu0 %v1895
        %2708 = vmatpush1.bf16.msra.mxu0 %v1894
        %2709 = vmatprep.subr.bf16.mxu0 %v1899
        %2710 = vmatpush1.bf16.msra.mxu0 %v1898
        %2711 = vmatprep.subr.bf16.mxu0 %v1903
        %2712 = vmatpush1.bf16.msra.mxu0 %v1902
        %2713 = vmatprep.subr.bf16.mxu0 %v1907
        %2714 = vmatpush1.bf16.msra.mxu0 %v1906
        %2715 = vmatprep.subr.bf16.mxu0 %v1911
        %2716 = vmatpush1.bf16.msra.mxu0 %v1910
        %2717 = vmatprep.subr.bf16.mxu0 %v1915
        %2718 = vmatpush1.bf16.msra.mxu0 %v1914
        %2719 = vmatprep.subr.bf16.mxu0 %v1919
        %2720 = vmatpush1.bf16.msra.mxu0 %v1918
        %2721 = vmatprep.subr.bf16.mxu0 %v1923
        %2722 = vmatpush1.bf16.msra.mxu0 %v1922
        %2723 = vmatprep.subr.bf16.mxu0 %v1927
        %2724 = vmatpush1.bf16.msra.mxu0 %v1926
        %2725 = vmatprep.subr.bf16.mxu0 %v1931
        %2726 = vmatpush1.bf16.msra.mxu0 %v1930
        %2727 = vmatprep.subr.bf16.mxu0 %v1935
        %2728 = vmatpush1.bf16.msra.mxu0 %v1934
        %2729 = vmatprep.subr.bf16.mxu0 %v1939
        %2730 = vmatpush1.bf16.msra.mxu0 %v1938
        %2731 = vmatprep.subr.bf16.mxu0 %v1943
        %2732 = vmatpush1.bf16.msra.mxu0 %v1942
        %2733 = vmatprep.subr.bf16.mxu0 %v1947
        %2734 = vmatpush1.bf16.msra.mxu0 %v1946
        %2735 = vmatprep.mubr.bf16.mxu0 %v861
        %2736 = vmatmul.mubr.bf16.gmra.mrb[0].mxu0 %v860
        %v2737 = vpop.f32.mrb[0].mxu0
        %v2738 = vadd.f32 %v2685, %v2737
        %v2739 = vpop.f32.mrb[0].mxu0
        %v2740 = vadd.f32 %v2687, %v2739
        %v2741 = vpop.f32.mrb[0].mxu0
        %v2742 = vadd.f32 %v2689, %v2741
        %v2743 = vpop.f32.mrb[0].mxu0
        %v2744 = vadd.f32 %v2691, %v2743
        %2745 = vmatprep.mubr.bf16.mxu0 %v870
        %2746 = vmatmul.mubr.bf16.gmra.mrb[0].mxu0 %v869
        %v2747 = vpop.f32.mrb[0].mxu0
        %v2748 = vadd.f32 %v2695, %v2747
        %v2749 = vpop.f32.mrb[0].mxu0
        %v2750 = vadd.f32 %v2697, %v2749
        %v2751 = vpop.f32.mrb[0].mxu0
        %v2752 = vadd.f32 %v2699, %v2751
        %v2753 = vpop.f32.mrb[0].mxu0
        %v2754 = vadd.f32 %v2701, %v2753
        %2755 = vdwg.mxu0
        %2756 = vmatprep.subr.bf16.mxu0 %v1951
        %2757 = vmatpush1.bf16.msra.mxu0 %v1950
        %2758 = vmatprep.subr.bf16.mxu0 %v1955
        %2759 = vmatpush1.bf16.msra.mxu0 %v1954
        %2760 = vmatprep.subr.bf16.mxu0 %v1959
        %2761 = vmatpush1.bf16.msra.mxu0 %v1958
        %2762 = vmatprep.subr.bf16.mxu0 %v1963
        %2763 = vmatpush1.bf16.msra.mxu0 %v1962
        %2764 = vmatprep.subr.bf16.mxu0 %v1967
        %2765 = vmatpush1.bf16.msra.mxu0 %v1966
        %2766 = vmatprep.subr.bf16.mxu0 %v1971
        %2767 = vmatpush1.bf16.msra.mxu0 %v1970
        %2768 = vmatprep.subr.bf16.mxu0 %v1975
        %2769 = vmatpush1.bf16.msra.mxu0 %v1974
        %2770 = vmatprep.subr.bf16.mxu0 %v1979
        %2771 = vmatpush1.bf16.msra.mxu0 %v1978
        %2772 = vmatprep.subr.bf16.mxu0 %v1983
        %2773 = vmatpush1.bf16.msra.mxu0 %v1982
        %2774 = vmatprep.subr.bf16.mxu0 %v1987
        %2775 = vmatpush1.bf16.msra.mxu0 %v1986
        %2776 = vmatprep.subr.bf16.mxu0 %v1991
        %2777 = vmatpush1.bf16.msra.mxu0 %v1990
        %2778 = vmatprep.subr.bf16.mxu0 %v1995
        %2779 = vmatpush1.bf16.msra.mxu0 %v1994
        %2780 = vmatprep.subr.bf16.mxu0 %v1999
        %2781 = vmatpush1.bf16.msra.mxu0 %v1998
        %2782 = vmatprep.subr.bf16.mxu0 %v2003
        %2783 = vmatpush1.bf16.msra.mxu0 %v2002
        %2784 = vmatprep.subr.bf16.mxu0 %v2007
        %2785 = vmatpush1.bf16.msra.mxu0 %v2006
        %2786 = vmatprep.subr.bf16.mxu0 %v2011
        %2787 = vmatpush1.bf16.msra.mxu0 %v2010
        %2788 = vmatprep.mubr.bf16.mxu0 %v863
        %2789 = vmatmul.mubr.bf16.gmra.mrb[0].mxu0 %v862
        %v2790 = vpop.f32.mrb[0].mxu0
        %v2791 = vadd.f32 %v2738, %v2790
        %v2792 = vpop.f32.mrb[0].mxu0
        %v2793 = vadd.f32 %v2740, %v2792
        %v2794 = vpop.f32.mrb[0].mxu0
        %v2795 = vadd.f32 %v2742, %v2794
        %v2796 = vpop.f32.mrb[0].mxu0
        %v2797 = vadd.f32 %v2744, %v2796
        %2798 = vmatprep.mubr.bf16.mxu0 %v872
        %2799 = vmatmul.mubr.bf16.gmra.mrb[0].mxu0 %v871
        %v2800 = vpop.f32.mrb[0].mxu0
        %v2801 = vadd.f32 %v2748, %v2800
        %v2802 = vpop.f32.mrb[0].mxu0
        %v2803 = vadd.f32 %v2750, %v2802
        %v2804 = vpop.f32.mrb[0].mxu0
        %v2805 = vadd.f32 %v2752, %v2804
        %v2806 = vpop.f32.mrb[0].mxu0
        %v2807 = vadd.f32 %v2754, %v2806
        %2808 = vdwg.mxu0
        %2809 = vmatprep.subr.bf16.mxu0 %v2015
        %2810 = vmatpush1.bf16.msra.mxu0 %v2014
        %2811 = vmatprep.subr.bf16.mxu0 %v2019
        %2812 = vmatpush1.bf16.msra.mxu0 %v2018
        %2813 = vmatprep.subr.bf16.mxu0 %v2023
        %2814 = vmatpush1.bf16.msra.mxu0 %v2022
        %2815 = vmatprep.subr.bf16.mxu0 %v2027
        %2816 = vmatpush1.bf16.msra.mxu0 %v2026
        %2817 = vmatprep.subr.bf16.mxu0 %v2031
        %2818 = vmatpush1.bf16.msra.mxu0 %v2030
        %2819 = vmatprep.subr.bf16.mxu0 %v2035
        %2820 = vmatpush1.bf16.msra.mxu0 %v2034
        %2821 = vmatprep.subr.bf16.mxu0 %v2039
        %2822 = vmatpush1.bf16.msra.mxu0 %v2038
        %2823 = vmatprep.subr.bf16.mxu0 %v2043
        %2824 = vmatpush1.bf16.msra.mxu0 %v2042
        %2825 = vmatprep.subr.bf16.mxu0 0
        %2826 = vmatpush1.bf16.msra.mxu0 0
        %2827 = vmatprep.subr.bf16.mxu0 0
        %2828 = vmatpush1.bf16.msra.mxu0 0
        %2829 = vmatprep.subr.bf16.mxu0 0
        %2830 = vmatpush1.bf16.msra.mxu0 0
        %2831 = vmatprep.subr.bf16.mxu0 0
        %2832 = vmatpush1.bf16.msra.mxu0 0
        %2833 = vmatprep.subr.bf16.mxu0 0
        %2834 = vmatpush1.bf16.msra.mxu0 0
        %2835 = vmatprep.subr.bf16.mxu0 0
        %2836 = vmatpush1.bf16.msra.mxu0 0
        %2837 = vmatprep.subr.bf16.mxu0 0
        %2838 = vmatpush1.bf16.msra.mxu0 0
        %2839 = vmatprep.subr.bf16.mxu0 0
        %2840 = vmatpush1.bf16.msra.mxu0 0
        %2841 = vmatprep.mubr.bf16.mxu0 0
        %2842 = vmatmul.mubr.bf16.gmra.mrb[0].mxu0 %v864
        %v2843 = vpop.f32.mrb[0].mxu0
        %v2844 = vadd.f32 %v2791, %v2843
        %v2845 = vpop.f32.mrb[0].mxu0
        %v2846 = vadd.f32 %v2793, %v2845
        %v2847 = vpop.f32.mrb[0].mxu0
        %v2848 = vadd.f32 %v2795, %v2847
        %v2849 = vpop.f32.mrb[0].mxu0
        %v2850 = vadd.f32 %v2797, %v2849
        %2851 = vmatprep.mubr.bf16.mxu0 0
        %2852 = vmatmul.mubr.bf16.gmra.mrb[0].mxu0 %v873
        %v2853 = vpop.f32.mrb[0].mxu0
        %v2854 = vadd.f32 %v2801, %v2853
        %v2855 = vpop.f32.mrb[0].mxu0
        %v2856 = vadd.f32 %v2803, %v2855
        %v2857 = vpop.f32.mrb[0].mxu0
        %v2858 = vadd.f32 %v2805, %v2857
        %v2859 = vpop.f32.mrb[0].mxu0
        %v2860 = vadd.f32 %v2807, %v2859
        %2861 = vdwg.mxu0
        %v2862 = vadd.f32 %v764, %v2579
        %v2863 = vadd.f32 %v765, %v2581
        %v2864 = vadd.f32 %v766, %v2844
        %v2865 = vadd.f32 %v767, %v2846
        %v2866 = vadd.f32 %v768, %v2583
        %v2867 = vadd.f32 %v769, %v2585
        %v2868 = vadd.f32 %v770, %v2848
        %v2869 = vadd.f32 %v771, %v2850
        %v2870 = vadd.f32 %v772, %v2589
        %v2871 = vadd.f32 %v773, %v2591
        %v2872 = vadd.f32 %v774, %v2854
        %v2873 = vadd.f32 %v775, %v2856
        %v2874 = vadd.f32 %v776, %v2593
        %v2875 = vadd.f32 %v777, %v2595
        %v2876 = vadd.f32 %v778, %v2858
        %v2877 = vadd.f32 %v779, %v2860
        %2878 = vst [vmem:[#allocation2] sm:$0xff] %v2862
        %2879 = vst [vmem:[#allocation2 + $0x8] sm:$0xff] %v2863
        %2880 = vst [vmem:[#allocation2 + $0x10] sm:$0xff] %v2864
        %2881 = vst [vmem:[#allocation2 + $0x18] sm:$0xff] %v2865
        %2882 = vst [vmem:[#allocation2 + $0x20] sm:$0xff] %v2866
        %2883 = vst [vmem:[#allocation2 + $0x28] sm:$0xff] %v2867
        %2884 = vst [vmem:[#allocation2 + $0x30] sm:$0xff] %v2868
        %2885 = vst [vmem:[#allocation2 + $0x38] sm:$0xff] %v2869
        %2886 = vst [vmem:[#allocation2 + $0x40] sm:$0xff] %v2870
        %2887 = vst [vmem:[#allocation2 + $0x48] sm:$0xff] %v2871
        %2888 = vst [vmem:[#allocation2 + $0x50] sm:$0xff] %v2872
        %2889 = vst [vmem:[#allocation2 + $0x58] sm:$0xff] %v2873
        %2890 = vst [vmem:[#allocation2 + $0x60] sm:$0xff] %v2874
        %2891 = vst [vmem:[#allocation2 + $0x68] sm:$0xff] %v2875
        %2892 = vst [vmem:[#allocation2 + $0x70] sm:$0xff] %v2876
        %2893 = vst [vmem:[#allocation2 + $0x78] sm:$0xff] %v2877
        %p2894 = scmp.eq.s32.totalorder %s23, 3
        // Predicated region
        $region71: #{_forward_core.6} parent=61 // pred_check
          %p2895 = pneg %p2894
        $region72: #{_forward_core.6} parent=61 // pred_check_branch
          %2897 = sbr.rel (%p2895) target = $region74
        $region73: #{_forward_core.6} parent=61 // pred_region
          %v2898 = vld [vmem:[#allocation2] sm:$0xff]
          %v2899 = vld [vmem:[#allocation2 + $0x8] sm:$0xff]
          %v2900 = vld [vmem:[#allocation2 + $0x10] sm:$0xff]
          %v2901 = vld [vmem:[#allocation2 + $0x18] sm:$0xff]
          %v2902 = vld [vmem:[#allocation2 + $0x20] sm:$0xff]
          %v2903 = vld [vmem:[#allocation2 + $0x28] sm:$0xff]
          %v2904 = vld [vmem:[#allocation2 + $0x30] sm:$0xff]
          %v2905 = vld [vmem:[#allocation2 + $0x38] sm:$0xff]
          %v2906 = vld [vmem:[#allocation2 + $0x40] sm:$0xff]
          %v2907 = vld [vmem:[#allocation2 + $0x48] sm:$0xff]
          %v2908 = vld [vmem:[#allocation2 + $0x50] sm:$0xff]
          %v2909 = vld [vmem:[#allocation2 + $0x58] sm:$0xff]
          %v2910 = vld [vmem:[#allocation2 + $0x60] sm:$0xff]
          %v2911 = vld [vmem:[#allocation2 + $0x68] sm:$0xff]
          %v2912 = vld [vmem:[#allocation2 + $0x70] sm:$0xff]
          %v2913 = vld [vmem:[#allocation2 + $0x78] sm:$0xff]
          %v2914 = vld [vmem:[%s423] sm:$0xf]
          %v2916 = vlaneseq
          %v2917 = vshrl.u32 %v2916, 7
          %v2918 = vsub.s32 0, %v2917
          %v2919 = vrot.slane %v2914, %v2918
          %v2920 = vlaneseq
          %v2921 = vshrl.u32 %v2920, 7
          %v2922 = vsub.s32 1, %v2921
          %v2923 = vrot.slane %v2914, %v2922
          %v2924 = vlaneseq
          %v2925 = vshrl.u32 %v2924, 7
          %v2926 = vsub.s32 2, %v2925
          %v2927 = vrot.slane %v2914, %v2926
          %v2928 = vlaneseq
          %v2929 = vshrl.u32 %v2928, 7
          %v2930 = vsub.s32 3, %v2929
          %v2931 = vrot.slane %v2914, %v2930
          %v2936 = vadd.f32 %v2898, %v2919
          %v2937 = vadd.f32 %v2899, %v2923
          %v2938 = vadd.f32 %v2900, %v2927
          %v2939 = vadd.f32 %v2901, %v2931
          %v2940 = vadd.f32 %v2902, %v2919
          %v2941 = vadd.f32 %v2903, %v2923
          %v2942 = vadd.f32 %v2904, %v2927
          %v2943 = vadd.f32 %v2905, %v2931
          %v2944 = vadd.f32 %v2906, %v2919
          %v2945 = vadd.f32 %v2907, %v2923
          %v2946 = vadd.f32 %v2908, %v2927
          %v2947 = vadd.f32 %v2909, %v2931
          %v2948 = vadd.f32 %v2910, %v2919
          %v2949 = vadd.f32 %v2911, %v2923
          %v2950 = vadd.f32 %v2912, %v2927
          %v2951 = vadd.f32 %v2913, %v2931
          %v2952 = vld [vmem:[%s440] sm:$0xff]
          %v2953 = vld [vmem:[%s440 + $0x8] sm:$0xff]
          %v2954 = vld [vmem:[%s440 + $0x10] sm:$0xff]
          %v2955 = vld [vmem:[%s440 + $0x18] sm:$0xff]
          %v2956 = vld [vmem:[%s440 + $0x20] sm:$0xff]
          %v2957 = vld [vmem:[%s440 + $0x28] sm:$0xff]
          %v2958 = vld [vmem:[%s440 + $0x30] sm:$0xff]
          %v2959 = vld [vmem:[%s440 + $0x38] sm:$0xff]
          %v2960 = vunpack.c.l.bf16 %v2952
          %v2961 = vunpack.c.h.bf16 %v2952
          %v2962 = vunpack.c.l.bf16 %v2953
          %v2963 = vunpack.c.h.bf16 %v2953
          %v2964 = vunpack.c.l.bf16 %v2954
          %v2965 = vunpack.c.h.bf16 %v2954
          %v2966 = vunpack.c.l.bf16 %v2955
          %v2967 = vunpack.c.h.bf16 %v2955
          %v2968 = vunpack.c.l.bf16 %v2956
          %v2969 = vunpack.c.h.bf16 %v2956
          %v2970 = vunpack.c.l.bf16 %v2957
          %v2971 = vunpack.c.h.bf16 %v2957
          %v2972 = vunpack.c.l.bf16 %v2958
          %v2973 = vunpack.c.h.bf16 %v2958
          %v2974 = vunpack.c.l.bf16 %v2959
          %v2975 = vunpack.c.h.bf16 %v2959
          %v2976 = vadd.f32 %v2936, %v2960
          %v2977 = vadd.f32 %v2937, %v2961
          %v2978 = vadd.f32 %v2938, %v2962
          %v2979 = vadd.f32 %v2939, %v2963
          %v2980 = vadd.f32 %v2940, %v2964
          %v2981 = vadd.f32 %v2941, %v2965
          %v2982 = vadd.f32 %v2942, %v2966
          %v2983 = vadd.f32 %v2943, %v2967
          %v2984 = vadd.f32 %v2944, %v2968
          %v2985 = vadd.f32 %v2945, %v2969
          %v2986 = vadd.f32 %v2946, %v2970
          %v2987 = vadd.f32 %v2947, %v2971
          %v2988 = vadd.f32 %v2948, %v2972
          %v2989 = vadd.f32 %v2949, %v2973
          %v2990 = vadd.f32 %v2950, %v2974
          %v2991 = vadd.f32 %v2951, %v2975
          %v2992 = vmax.f32 %v2976, 0.0
          %v2993 = vmax.f32 %v2977, 0.0
          %v2994 = vmax.f32 %v2978, 0.0
          %v2995 = vmax.f32 %v2979, 0.0
          %v2996 = vmax.f32 %v2980, 0.0
          %v2997 = vmax.f32 %v2981, 0.0
          %v2998 = vmax.f32 %v2982, 0.0
          %v2999 = vmax.f32 %v2983, 0.0
          %v3000 = vmax.f32 %v2984, 0.0
          %v3001 = vmax.f32 %v2985, 0.0
          %v3002 = vmax.f32 %v2986, 0.0
          %v3003 = vmax.f32 %v2987, 0.0
          %v3004 = vmax.f32 %v2988, 0.0
          %v3005 = vmax.f32 %v2989, 0.0
          %v3006 = vmax.f32 %v2990, 0.0
          %v3007 = vmax.f32 %v2991, 0.0
          %v3008 = vld [vmem:[%s429] sm:$0xff]
          %v3009 = vld [vmem:[%s429 + $0x8] sm:$0xff]
          %v3010 = vld [vmem:[%s429 + $0x10] sm:$0xff]
          %v3011 = vld [vmem:[%s429 + $0x18] sm:$0xff]
          %3013 = vset.pattern.permute.xlu0 0
          %3014 = vperm.xlu0 %3013, %v3008
          %v3015 = vpop.permute.xlu0 %3014
          %3018 = vset.pattern.permute.xlu0 0
          %3019 = vperm.xlu0 %3018, %v3009
          %v3020 = vpop.permute.xlu0 %3019
          %3023 = vset.pattern.permute.xlu0 0
          %3024 = vperm.xlu0 %3023, %v3010
          %v3025 = vpop.permute.xlu0 %3024
          %3028 = vset.pattern.permute.xlu0 0
          %3029 = vperm.xlu0 %3028, %v3011
          %v3030 = vpop.permute.xlu0 %3029
          %v3032 = vmul.f32 %v2992, %v3015
          %v3033 = vmul.f32 %v2993, %v3015
          %v3034 = vmul.f32 %v2994, %v3015
          %v3035 = vmul.f32 %v2995, %v3015
          %v3036 = vmul.f32 %v2996, %v3020
          %v3037 = vmul.f32 %v2997, %v3020
          %v3038 = vmul.f32 %v2998, %v3020
          %v3039 = vmul.f32 %v2999, %v3020
          %v3040 = vmul.f32 %v3000, %v3025
          %v3041 = vmul.f32 %v3001, %v3025
          %v3042 = vmul.f32 %v3002, %v3025
          %v3043 = vmul.f32 %v3003, %v3025
          %v3044 = vmul.f32 %v3004, %v3030
          %v3045 = vmul.f32 %v3005, %v3030
          %v3046 = vmul.f32 %v3006, %v3030
          %v3047 = vmul.f32 %v3007, %v3030
          %v3048 = vpack.c.bf16 %v3036, %v3032
          %v3049 = vpack.c.bf16 %v3037, %v3033
          %v3050 = vpack.c.bf16 %v3038, %v3034
          %v3051 = vpack.c.bf16 %v3039, %v3035
          %v3052 = vpack.c.bf16 %v3044, %v3040
          %v3053 = vpack.c.bf16 %v3045, %v3041
          %v3054 = vpack.c.bf16 %v3046, %v3042
          %v3055 = vpack.c.bf16 %v3047, %v3043
          %v3064 = vunpack.c.l.b16 %v3048
          %v3065 = vunpack.c.l.b16 %v3049
          %v3066 = vunpack.c.l.b16 %v3050
          %v3067 = vunpack.c.l.b16 %v3051
          %v3068 = vunpack.c.h.b16 %v3048
          %v3069 = vunpack.c.h.b16 %v3049
          %v3070 = vunpack.c.h.b16 %v3050
          %v3071 = vunpack.c.h.b16 %v3051
          %v3072 = vunpack.c.l.b16 %v3052
          %v3073 = vunpack.c.l.b16 %v3053
          %v3074 = vunpack.c.l.b16 %v3054
          %v3075 = vunpack.c.l.b16 %v3055
          %v3076 = vunpack.c.h.b16 %v3052
          %v3077 = vunpack.c.h.b16 %v3053
          %v3078 = vunpack.c.h.b16 %v3054
          %v3079 = vunpack.c.h.b16 %v3055
          %v3080 = vpack.c.b16 %v3065, %v3064
          %v3081 = vpack.c.b16 %v3067, %v3066
          %v3082 = vpack.c.b16 %v3069, %v3068
          %v3083 = vpack.c.b16 %v3071, %v3070
          %v3084 = vpack.c.b16 %v3073, %v3072
          %v3085 = vpack.c.b16 %v3075, %v3074
          %v3086 = vpack.c.b16 %v3077, %v3076
          %v3087 = vpack.c.b16 %v3079, %v3078
          %3096 = vst [vmem:[%s452] sm:$0xff] %v3080
          %3097 = vst [vmem:[%s452 + $0x8] sm:$0xff] %v3081
          %3098 = vst [vmem:[%s452 + $0x10] sm:$0xff] %v3082
          %3099 = vst [vmem:[%s452 + $0x18] sm:$0xff] %v3083
          %3100 = vst [vmem:[%s452 + $0x20] sm:$0xff] %v3084
          %3101 = vst [vmem:[%s452 + $0x28] sm:$0xff] %v3085
          %3102 = vst [vmem:[%s452 + $0x30] sm:$0xff] %v3086
          %3103 = vst [vmem:[%s452 + $0x38] sm:$0xff] %v3087
        $region74: #{_forward_core.6} parent=61 // pred_fallthru
          _
        %s3104 = smul.u32 4, %s21
        %s3105 = smul.u32 4, %s22
        %p3106 = scmp.lt.s32.totalorder %s3104, 3
        %s3107 = scalar_select %p3106, %s3104, 3
        %p3108 = scmp.lt.s32.totalorder %s3105, 3
        %s3109 = scalar_select %p3108, %s3105, 3
        %s3110 = smul.addr %s3107, 4
        %s3111 = sadd.s32 %s3109, %s3110
        %s3112 = smul.addr %s3111, 4
        %s3113 = scalar_lea.vmem %s5, %s3112
        // Predicated region
        $region75: #{_forward_core.6} parent=61 // pred_check
          %p3114 = pneg %p191
        $region76: #{_forward_core.6} parent=61 // pred_check_branch
          %3116 = sbr.rel (%p3114) target = $region78
        $region77: #{_forward_core.6} parent=61 // pred_region
          %s3117 = smul.u32 4, %s21
          %s3118 = smul.u32 4, %s22
        $region78: #{_forward_core.6} parent=61 // pred_fallthru
          _
        // Predicated region
        $region79: #{_forward_core.6} parent=61 // pred_check
          %p3119 = pneg %p191
        $region80: #{_forward_core.6} parent=61 // pred_check_branch
          %3121 = sbr.rel (%p3119) target = $region82
        $region81: #{_forward_core.6} parent=61 // pred_region
          %s3122 = smul.u32 4, %s21
          %s3123 = smul.u32 4, %s22
          %p3124 = scmp.lt.s32.totalorder %s3122, 3
          %s3125 = scalar_select %p3124, %s3122, 3
          %p3126 = scmp.lt.s32.totalorder %s3123, 3
          %s3127 = scalar_select %p3126, %s3123, 3
          %s3128 = smul.addr %s3125, 4
          %s3129 = sadd.s32 %s3127, %s3128
          %s3130 = smul.addr %s3129, 4
          %s3131 = scalar_lea.vmem %s5, %s3130
        $region82: #{_forward_core.6} parent=61 // pred_fallthru
          _
      $region62: #{_forward_core.6} parent=5 // pred_fallthru
        _
      %p3132 = scmp.le.s32.totalorder 2, %s11
      // Predicated region
      $region83: #{_forward_core.6} parent=5 // pred_check
        %p3133 = pneg %p3132
      $region84: #{_forward_core.6} parent=5 // pred_check_branch
        %3135 = sbr.rel (%p3133) target = $region86
      $region85: #{_forward_core.6} parent=5 // pred_region
        %s3136 = ssub.s32 %s11, 2
      $region86: #{_forward_core.6} parent=5 // pred_fallthru
        _
    $region6: #{_forward_core.6} parent=1 // loop_footer
      %s15 = sadd.s32 1, %s11
    $region7: #{_forward_core.6} parent=1 // loop_footer_branch
      %10 = sbr.rel target = $region3
    $region8: #{_forward_core.6} parent=1 // loop_exit
      _

// kernel: _forward_core.9
$region0: #{_forward_core.9}
  #allocation0 [shape = 'u32[]', space=smem, size = 0x4, offset = 0x4, fixed_abs, tag = 'smem constant byte address 0x4 - core index']
  #allocation1 [shape = 'u32[144,128]{1,0:T(1,128)}', space=vmem, size = 0x12000, scoped, tag = 'internal scratch']
  #allocation2 [shape = 'f32[8,512]{1,0:T(8,128)}', space=vmem, size = 0x4000, scoped, tag = 'scratch operand']
  %s0 = inlined_call_operand.vmem [shape: bf16[8,24], index: 0, kind: input, shape index: {}]
  %s1 = inlined_call_operand.vmem [shape: bf16[24,512], index: 1, kind: input, shape index: {}]
  %s2 = inlined_call_operand.vmem [shape: f32[8,1], index: 2, kind: input, shape index: {}]
  %s3 = inlined_call_operand.vmem [shape: f32[8,512], index: 3, kind: output, shape index: {}]
  %s4 = sld [smem:[#allocation0]]
  $region30: #{_forward_core.9} parent=0
    _
  %s6 = ssub.s32 1, %s4
  %s7 = scalar_select 0, %s6, %s4
  // Predicated region
  $region2: #{_forward_core.9} parent=0 // pred_check
    _
  $region3: #{_forward_core.9} parent=0 // pred_check_branch
    %9 = sbr.rel (0) target = $region5
  $region4: #{_forward_core.9} parent=0 // pred_region
    _
  $region5: #{_forward_core.9} parent=0 // pred_fallthru
    _
  // Predicated region
  $region6: #{_forward_core.9} parent=0 // pred_check
    _
  $region7: #{_forward_core.9} parent=0 // pred_check_branch
    %11 = sbr.rel (0) target = $region9
  $region8: #{_forward_core.9} parent=0 // pred_region
    _
  $region9: #{_forward_core.9} parent=0 // pred_fallthru
    _
  // Predicated region
  $region10: #{_forward_core.9} parent=0 // pred_check
    _
  $region11: #{_forward_core.9} parent=0 // pred_check_branch
    %13 = sbr.rel (0) target = $region13
  $region12: #{_forward_core.9} parent=0 // pred_region
    _
  $region13: #{_forward_core.9} parent=0 // pred_fallthru
    _
  %p15 = scmp.eq.s32.totalorder 0, 0
  // Predicated region
  $region14: #{_forward_core.9} parent=0 // pred_check
    %p16 = pneg %p15
  $region15: #{_forward_core.9} parent=0 // pred_check_branch
    %18 = sbr.rel (%p16) target = $region17
  $region16: #{_forward_core.9} parent=0 // pred_region
    %19 = vst [vmem:[#allocation2] sm:$0xff] 0.0
    %20 = vst [vmem:[#allocation2 + $0x8] sm:$0xff] 0.0
    %21 = vst [vmem:[#allocation2 + $0x10] sm:$0xff] 0.0
    %22 = vst [vmem:[#allocation2 + $0x18] sm:$0xff] 0.0
  $region17: #{_forward_core.9} parent=0 // pred_fallthru
    _
  %v23 = vld [vmem:[#allocation2] sm:$0xff]
  %v24 = vld [vmem:[#allocation2 + $0x8] sm:$0xff]
  %v25 = vld [vmem:[#allocation2 + $0x10] sm:$0xff]
  %v26 = vld [vmem:[#allocation2 + $0x18] sm:$0xff]
  %v27 = vld [vmem:[%s0] sm:$0xf]
  %v28 = vld [vmem:[%s1] sm:$0xff]
  %v29 = vld [vmem:[%s1 + $0x8] sm:$0xff]
  %v30 = vld [vmem:[%s1 + $0x10] sm:$0xff]
  %v31 = vld [vmem:[%s1 + $0x18] sm:$0xff]
  %v32 = vld [vmem:[%s1 + $0x20] sm:$0xff]
  %v33 = vld [vmem:[%s1 + $0x28] sm:$0xff]
  %v40 = vunpack.c.l.b16 %v28
  %v41 = vunpack.c.h.b16 %v28
  %v42 = vunpack.c.l.b16 %v29
  %v43 = vunpack.c.h.b16 %v29
  %v44 = vunpack.c.l.b16 %v30
  %v45 = vunpack.c.h.b16 %v30
  %v46 = vunpack.c.l.b16 %v31
  %v47 = vunpack.c.h.b16 %v31
  %v48 = vunpack.c.l.b16 %v32
  %v49 = vunpack.c.h.b16 %v32
  %v50 = vunpack.c.l.b16 %v33
  %v51 = vunpack.c.h.b16 %v33
  %v52 = vpack.c.b16 %v44, %v40
  %v53 = vpack.c.b16 %v45, %v41
  %v54 = vpack.c.b16 %v46, %v42
  %v55 = vpack.c.b16 %v47, %v43
  %v56 = vpack.c.b16 %v48, %v48
  %v57 = vpack.c.b16 %v49, %v49
  %v58 = vpack.c.b16 %v50, %v50
  %v59 = vpack.c.b16 %v51, %v51
  %vm64 = vcmask 195584
  %v66 = vsel %vm64, %v27, 0
  %vm68 = vcmask 1043456
  %v70 = vsel %vm68, %v56, 0
  %v73 = vsel %vm68, %v57, 0
  %v76 = vsel %vm68, %v58, 0
  %v79 = vsel %vm68, %v59, 0
  %81 = vmatprep.subr.bf16.mxu0 %v53
  %82 = vmatpush1.bf16.msra.mxu0 %v52
  %83 = vmatprep.subr.bf16.mxu0 %v73
  %84 = vmatpush1.bf16.msra.mxu0 %v70
  %85 = vmatprep.subr.bf16.mxu0 0
  %86 = vmatpush1.bf16.msra.mxu0 0
  %87 = vmatprep.subr.bf16.mxu0 0
  %88 = vmatpush1.bf16.msra.mxu0 0
  %89 = vmatprep.subr.bf16.mxu0 0
  %90 = vmatpush1.bf16.msra.mxu0 0
  %91 = vmatprep.subr.bf16.mxu0 0
  %92 = vmatpush1.bf16.msra.mxu0 0
  %93 = vmatprep.subr.bf16.mxu0 0
  %94 = vmatpush1.bf16.msra.mxu0 0
  %95 = vmatprep.subr.bf16.mxu0 0
  %96 = vmatpush1.bf16.msra.mxu0 0
  %97 = vmatprep.subr.bf16.mxu0 0
  %98 = vmatpush1.bf16.msra.mxu0 0
  %99 = vmatprep.subr.bf16.mxu0 0
  %100 = vmatpush1.bf16.msra.mxu0 0
  %101 = vmatprep.subr.bf16.mxu0 0
  %102 = vmatpush1.bf16.msra.mxu0 0
  %103 = vmatprep.subr.bf16.mxu0 0
  %104 = vmatpush1.bf16.msra.mxu0 0
  %105 = vmatprep.subr.bf16.mxu0 0
  %106 = vmatpush1.bf16.msra.mxu0 0
  %107 = vmatprep.subr.bf16.mxu0 0
  %108 = vmatpush1.bf16.msra.mxu0 0
  %109 = vmatprep.subr.bf16.mxu0 0
  %110 = vmatpush1.bf16.msra.mxu0 0
  %111 = vmatprep.subr.bf16.mxu0 0
  %112 = vmatpush1.bf16.msra.mxu0 0
  %113 = vmatprep.mubr.bf16.mxu0 0
  %114 = vmatmul.mubr.bf16.gmra.mrb[0].mxu0 %v66
  %v115 = vpop.f32.mrb[0].mxu0
  %v116 = vadd.f32 0.0, %v115
  %v117 = vpop.f32.mrb[0].mxu0
  %v118 = vadd.f32 0.0, %v117
  %v119 = vpop.f32.mrb[0].mxu0
  %v120 = vpop.f32.mrb[0].mxu0
  %121 = vdwg.mxu0
  %122 = vmatprep.subr.bf16.mxu0 %v55
  %123 = vmatpush1.bf16.msra.mxu0 %v54
  %124 = vmatprep.subr.bf16.mxu0 %v79
  %125 = vmatpush1.bf16.msra.mxu0 %v76
  %126 = vmatprep.subr.bf16.mxu0 0
  %127 = vmatpush1.bf16.msra.mxu0 0
  %128 = vmatprep.subr.bf16.mxu0 0
  %129 = vmatpush1.bf16.msra.mxu0 0
  %130 = vmatprep.subr.bf16.mxu0 0
  %131 = vmatpush1.bf16.msra.mxu0 0
  %132 = vmatprep.subr.bf16.mxu0 0
  %133 = vmatpush1.bf16.msra.mxu0 0
  %134 = vmatprep.subr.bf16.mxu0 0
  %135 = vmatpush1.bf16.msra.mxu0 0
  %136 = vmatprep.subr.bf16.mxu0 0
  %137 = vmatpush1.bf16.msra.mxu0 0
  %138 = vmatprep.subr.bf16.mxu0 0
  %139 = vmatpush1.bf16.msra.mxu0 0
  %140 = vmatprep.subr.bf16.mxu0 0
  %141 = vmatpush1.bf16.msra.mxu0 0
  %142 = vmatprep.subr.bf16.mxu0 0
  %143 = vmatpush1.bf16.msra.mxu0 0
  %144 = vmatprep.subr.bf16.mxu0 0
  %145 = vmatpush1.bf16.msra.mxu0 0
  %146 = vmatprep.subr.bf16.mxu0 0
  %147 = vmatpush1.bf16.msra.mxu0 0
  %148 = vmatprep.subr.bf16.mxu0 0
  %149 = vmatpush1.bf16.msra.mxu0 0
  %150 = vmatprep.subr.bf16.mxu0 0
  %151 = vmatpush1.bf16.msra.mxu0 0
  %152 = vmatprep.subr.bf16.mxu0 0
  %153 = vmatpush1.bf16.msra.mxu0 0
  %154 = vmatprep.mubr.bf16.mxu0 0
  %155 = vmatmul.mubr.bf16.gmra.mrb[0].mxu0 %v66
  %v156 = vpop.f32.mrb[0].mxu0
  %v157 = vadd.f32 0.0, %v156
  %v158 = vpop.f32.mrb[0].mxu0
  %v159 = vadd.f32 0.0, %v158
  %v160 = vpop.f32.mrb[0].mxu0
  %v161 = vpop.f32.mrb[0].mxu0
  %162 = vdwg.mxu0
  %v163 = vadd.f32 %v23, %v116
  %v164 = vadd.f32 %v24, %v118
  %v165 = vadd.f32 %v25, %v157
  %v166 = vadd.f32 %v26, %v159
  %167 = vst [vmem:[#allocation2] sm:$0xff] %v163
  %168 = vst [vmem:[#allocation2 + $0x8] sm:$0xff] %v164
  %169 = vst [vmem:[#allocation2 + $0x10] sm:$0xff] %v165
  %170 = vst [vmem:[#allocation2 + $0x18] sm:$0xff] %v166
  // Predicated region
  $region18: #{_forward_core.9} parent=0 // pred_check
    %p171 = pneg %p15
  $region19: #{_forward_core.9} parent=0 // pred_check_branch
    %173 = sbr.rel (%p171) target = $region21
  $region20: #{_forward_core.9} parent=0 // pred_region
    %v174 = vld [vmem:[#allocation2] sm:$0xff]
    %v175 = vld [vmem:[#allocation2 + $0x8] sm:$0xff]
    %v176 = vld [vmem:[#allocation2 + $0x10] sm:$0xff]
    %v177 = vld [vmem:[#allocation2 + $0x18] sm:$0xff]
    %v178 = vld [vmem:[%s2] sm:$0xff]
    %v179 = vmax.f32 %v178, 1.0
    %181 = vset.pattern.permute.xlu0 0
    %182 = vperm.xlu0 %181, %v179
    %v183 = vpop.permute.xlu0 %182
    %v185 = vrcp.pop %v183
    %v186 = vmul.f32 %v174, %v185
    %v187 = vmul.f32 %v175, %v185
    %v188 = vmul.f32 %v176, %v185
    %v189 = vmul.f32 %v177, %v185
    %190 = vst [vmem:[%s3] sm:$0xff] %v186
    %191 = vst [vmem:[%s3 + $0x8] sm:$0xff] %v187
    %192 = vst [vmem:[%s3 + $0x10] sm:$0xff] %v188
    %193 = vst [vmem:[%s3 + $0x18] sm:$0xff] %v189
  $region21: #{_forward_core.9} parent=0 // pred_fallthru
    _
  // Predicated region
  $region22: #{_forward_core.9} parent=0 // pred_check
    _
  $region23: #{_forward_core.9} parent=0 // pred_check_branch
    %195 = sbr.rel (0) target = $region25
  $region24: #{_forward_core.9} parent=0 // pred_region
    _
  $region25: #{_forward_core.9} parent=0 // pred_fallthru
    _
  // Predicated region
  $region26: #{_forward_core.9} parent=0 // pred_check
    _
  $region27: #{_forward_core.9} parent=0 // pred_check_branch
    %197 = sbr.rel (0) target = $region29
  $region28: #{_forward_core.9} parent=0 // pred_region
    _
  $region29: #{_forward_core.9} parent=0 // pred_fallthru
    _

</llo_original>
